<compile_context>
chip_gen: v7x
topology: tpu7x:2x2x1
jax: 0.10.0
libtpu: 0.0.40
codegen_flags: <defaults>
</compile_context>

<pallas_src>
import jax
import jax.numpy as jnp
from jax import lax
from jax.experimental import pallas as pl
from jax.experimental.pallas import tpu as pltpu

EMBEDDING_DIM = 32     # small stand-in for 300
HIDDEN_DIM = 32
LSTM_LAYERS = 3
VOCAB_SIZE = 128
SEQ_LEN = 8
PAD_DIM = 128          # lane-aligned padded width for E and H

_VMEM_SPEC = pl.BlockSpec(memory_space=pltpu.MemorySpace.VMEM)


def _rnn_lm_fused_kernel(x_ref, wih_ref, whh_ref, b_ref, fcw_ref, fcb_ref,
                         out_ref, seq_scr, xw_scr, h_scr, c_scr):
    """Fused forward: 3 LSTM layers (recurrence in-kernel) + fc1 + log_softmax.

    Shapes (HP = 128 padded hidden/embedding width):
      x_ref   : (T, HP)        padded embedded tokens
      wih_ref : (L, HP, 4*HP)  W_ih^T, gate-block packed (zero padded)
      whh_ref : (L, HP, 4*HP)  W_hh^T, gate-block packed (zero padded)
      b_ref   : (L, 1, 4*HP)   b_ih + b_hh, gate-block packed
      fcw_ref : (HP, V)        fc1 weight^T (zero padded rows)
      fcb_ref : (1, V)
      out_ref : (T, V)         log-probabilities
    """
    T = x_ref.shape[0]
    HP = x_ref.shape[1]

    # Current layer's input sequence lives in VMEM scratch (never leaves chip).
    seq_scr[...] = x_ref[...]

    for l in range(LSTM_LAYERS):        # static layer loop (L = 3)
        # Input projection for all timesteps at once on the MXU: (T, 4*HP).
        xw_scr[...] = (
            jnp.dot(seq_scr[...], wih_ref[l],
                    preferred_element_type=jnp.float32)
            + b_ref[l]
        )
        h_scr[...] = jnp.zeros_like(h_scr)
        c_scr[...] = jnp.zeros_like(c_scr)
        whh_l = whh_ref[l]              # (HP, 4*HP), loaded once per layer

        def step(t, carry):
            # gates: (1, 4*HP) = (x_t W_ih^T + b) + h_{t-1} W_hh^T
            gates = xw_scr[pl.ds(t, 1), :] + jnp.dot(
                h_scr[...], whh_l, preferred_element_type=jnp.float32)
            # Gate slices are full 128-lane vreg blocks (no sub-lane extracts).
            i = jax.nn.sigmoid(gates[:, 0 * HP:1 * HP])
            f = jax.nn.sigmoid(gates[:, 1 * HP:2 * HP])
            g = jnp.tanh(gates[:, 2 * HP:3 * HP])
            o = jax.nn.sigmoid(gates[:, 3 * HP:4 * HP])
            c = f * c_scr[...] + i * g
            h = o * jnp.tanh(c)
            c_scr[...] = c
            h_scr[...] = h
            # Lane-dense (1, 128) row store into the VMEM-resident sequence.
            seq_scr[pl.ds(t, 1), :] = h
            return carry

        # Short static trip count -> fully unrolled for LLO scheduling.
        lax.fori_loop(0, T, step, 0, unroll=True)

    # fc1 + log_softmax over the vocab axis, fused; (T, V) is lane-dense.
    logits = (
        jnp.dot(seq_scr[...], fcw_ref[...], preferred_element_type=jnp.float32)
        + fcb_ref[...]
    )
    m = jnp.max(logits, axis=1, keepdims=True)
    lse = m + jnp.log(jnp.sum(jnp.exp(logits - m), axis=1, keepdims=True))
    out_ref[...] = logits - lse


def rnn_lm_forward(token_ids, prep):
    """Equivalent of RnnLm.forward on a packed token stream of T tokens.

    token_ids: int32 (T,)  ->  log-probs (T, vocab_size)
    """
    # get_embedded (tied=False): embedding gather — glue, not the hot path.
    # The table is pre-padded to 128 lanes so the gathered x is lane-dense.
    x = jnp.take(prep["embedding"], token_ids, axis=0)          # (T, HP)
    T, HP = x.shape
    V = prep["fcw"].shape[1]
    L = prep["wih"].shape[0]

    flops = (
        2 * T * HP * 4 * HP * L      # input projections
        + 2 * T * HP * 4 * HP * L    # recurrent matmuls
        + 2 * T * HP * V             # fc1
    )
    transcendentals = T * L * 5 * HP + T * V      # sigmoid/tanh + softmax exp
    bytes_accessed = 4 * (x.size + prep["wih"].size + prep["whh"].size
                          + prep["bias"].size + prep["fcw"].size
                          + prep["fcb"].size + T * V)

    return pl.pallas_call(
        _rnn_lm_fused_kernel,
        out_shape=jax.ShapeDtypeStruct((T, V), jnp.float32),
        in_specs=[_VMEM_SPEC] * 6,
        out_specs=_VMEM_SPEC,
        scratch_shapes=[
            pltpu.VMEM((T, HP), jnp.float32),       # layer input/output seq
            pltpu.VMEM((T, 4 * HP), jnp.float32),   # precomputed x@W_ih^T + b
            pltpu.VMEM((1, HP), jnp.float32),       # h state
            pltpu.VMEM((1, HP), jnp.float32),       # c state
        ],
        cost_estimate=pl.CostEstimate(
            flops=flops,
            transcendentals=transcendentals,
            bytes_accessed=bytes_accessed),
    )(x, prep["wih"], prep["whh"], prep["bias"], prep["fcw"], prep["fcb"])


def init_params(key, vocab_size, embedding_dim, hidden_dim, lstm_layers):
    """Deterministic synthetic parameters (PyTorch-style uniform init)."""
    params = {}
    k = 1.0 / jnp.sqrt(hidden_dim)
    keys = jax.random.split(key, 3 + 4 * lstm_layers)
    params["embedding"] = jax.random.uniform(
        keys[0], (vocab_size, embedding_dim), jnp.float32, -0.1, 0.1)
    for l in range(lstm_layers):
        in_dim = embedding_dim if l == 0 else hidden_dim
        kk = keys[3 + 4 * l: 3 + 4 * (l + 1)]
        params[f"w_ih_{l}"] = jax.random.uniform(
            kk[0], (4 * hidden_dim, in_dim), jnp.float32, -k, k)
        params[f"w_hh_{l}"] = jax.random.uniform(
            kk[1], (4 * hidden_dim, hidden_dim), jnp.float32, -k, k)
        params[f"b_ih_{l}"] = jax.random.uniform(
            kk[2], (4 * hidden_dim,), jnp.float32, -k, k)
        params[f"b_hh_{l}"] = jax.random.uniform(
            kk[3], (4 * hidden_dim,), jnp.float32, -k, k)
    params["fc_w"] = jax.random.uniform(
        keys[1], (vocab_size, hidden_dim), jnp.float32, -k, k)
    params["fc_b"] = jax.random.uniform(
        keys[2], (vocab_size,), jnp.float32, -k, k)
    return params


def prepare_params(raw):
    """One-time weight packing: transpose, pad to 128 lanes, gate-block layout.

    Gate g (PyTorch order i,f,g,o) of layer l lives in columns
    [g*128, g*128 + H) of the packed (128, 512) W^T; all padding is zero so the
    padded lanes of h/c stay exactly zero through the recurrence.
    """
    HP = PAD_DIM
    H = HIDDEN_DIM
    E = EMBEDDING_DIM
    wih_list, whh_list, b_list = [], [], []
    for l in range(LSTM_LAYERS):
        in_dim = E if l == 0 else H
        w_ih = raw[f"w_ih_{l}"].astype(jnp.float32)          # (4H, in_dim)
        w_hh = raw[f"w_hh_{l}"].astype(jnp.float32)          # (4H, H)
        b = (raw[f"b_ih_{l}"] + raw[f"b_hh_{l}"]).astype(jnp.float32)
        wih_p = jnp.zeros((HP, 4 * HP), jnp.float32)
        whh_p = jnp.zeros((HP, 4 * HP), jnp.float32)
        b_p = jnp.zeros((1, 4 * HP), jnp.float32)
        for g in range(4):
            wih_p = wih_p.at[:in_dim, g * HP:g * HP + H].set(
                w_ih[g * H:(g + 1) * H, :].T)
            whh_p = whh_p.at[:H, g * HP:g * HP + H].set(
                w_hh[g * H:(g + 1) * H, :].T)
            b_p = b_p.at[:, g * HP:g * HP + H].set(b[g * H:(g + 1) * H][None, :])
        wih_list.append(wih_p)
        whh_list.append(whh_p)
        b_list.append(b_p)
    emb_p = jnp.zeros((VOCAB_SIZE, HP), jnp.float32).at[:, :E].set(
        raw["embedding"].astype(jnp.float32))
    fcw_p = jnp.zeros((HP, VOCAB_SIZE), jnp.float32).at[:H, :].set(
        raw["fc_w"].astype(jnp.float32).T)
    fcb = raw["fc_b"].reshape(1, VOCAB_SIZE).astype(jnp.float32)
    return {
        "embedding": emb_p,                 # (V, 128)
        "wih": jnp.stack(wih_list),         # (L, 128, 512)
        "whh": jnp.stack(whh_list),         # (L, 128, 512)
        "bias": jnp.stack(b_list),          # (L, 1, 512)
        "fcw": fcw_p,                       # (128, V)
        "fcb": fcb,                         # (1, V)
    }


def rnn_lm_reference(token_ids, raw):
    """Pure-JAX reference (unpadded) matching PyTorch LSTM + fc + log_softmax."""
    H = HIDDEN_DIM
    x = jnp.take(raw["embedding"], token_ids, axis=0)
    for l in range(LSTM_LAYERS):
        w_ih = raw[f"w_ih_{l}"]
        w_hh = raw[f"w_hh_{l}"]
        b = raw[f"b_ih_{l}"] + raw[f"b_hh_{l}"]

        def step(carry, x_t):
            h, c = carry
            gates = x_t @ w_ih.T + h @ w_hh.T + b
            i = jax.nn.sigmoid(gates[0:H])
            f = jax.nn.sigmoid(gates[H:2 * H])
            g = jnp.tanh(gates[2 * H:3 * H])
            o = jax.nn.sigmoid(gates[3 * H:4 * H])
            c = f * c + i * g
            h = o * jnp.tanh(c)
            return (h, c), h

        (_, _), hs = lax.scan(
            step, (jnp.zeros((H,), jnp.float32), jnp.zeros((H,), jnp.float32)), x)
        x = hs
    logits = x @ raw["fc_w"].T + raw["fc_b"]
    return jax.nn.log_softmax(logits, axis=1)


if __name__ == "__main__":
    key = jax.random.PRNGKey(0)
    pkey, tkey = jax.random.split(key)
    raw_params = init_params(pkey, VOCAB_SIZE, EMBEDDING_DIM, HIDDEN_DIM,
                             LSTM_LAYERS)
    prep_params = prepare_params(raw_params)          # one-time packing
    token_ids = jax.random.randint(tkey, (SEQ_LEN,), 0, VOCAB_SIZE,
                                   dtype=jnp.int32)

    out = jax.jit(rnn_lm_forward)(token_ids, prep_params)
    jax.block_until_ready(out)

    assert out.shape == (SEQ_LEN, VOCAB_SIZE)
    # log_softmax rows must (log-)sum to ~1.
    row_sums = jnp.sum(jnp.exp(out), axis=1)
    assert bool(jnp.all(jnp.abs(row_sums - 1.0) < 1e-4))
    # Check against the pure-JAX reference of the unpadded model.
    ref = rnn_lm_reference(token_ids, raw_params)
    max_err = float(jnp.max(jnp.abs(out - ref)))
    assert max_err < 1e-4, f"mismatch vs reference: {max_err}"
    print("KERNEL_OK")
</pallas_src>

<mosaic_0001>
module attributes {stable_mosaic.version = 11 : i64} {
  func.func @_rnn_lm_fused_kernel(%arg0: memref<8x128xf32, #tpu.memory_space<vmem>>, %arg1: memref<3x128x512xf32, #tpu.memory_space<vmem>>, %arg2: memref<3x128x512xf32, #tpu.memory_space<vmem>>, %arg3: memref<3x1x512xf32, #tpu.memory_space<vmem>>, %arg4: memref<128x128xf32, #tpu.memory_space<vmem>>, %arg5: memref<1x128xf32, #tpu.memory_space<vmem>>, %arg6: memref<8x128xf32, #tpu.memory_space<vmem>>, %arg7: memref<8x128xf32, #tpu.memory_space<vmem>>, %arg8: memref<8x512xf32, #tpu.memory_space<vmem>>, %arg9: memref<1x128xf32, #tpu.memory_space<vmem>>, %arg10: memref<1x128xf32, #tpu.memory_space<vmem>>) attributes {dimension_semantics = [], scalar_prefetch = 0 : i64, scratch_operands = 4 : i64, tpu.core_type = #tpu.core_type<tc>} {
    %c0 = arith.constant 0 : index
    %c0_0 = arith.constant 0 : index
    %0 = vector.load %arg0[%c0, %c0_0] : memref<8x128xf32, #tpu.memory_space<vmem>>, vector<8x128xf32>
    %c0_1 = arith.constant 0 : index
    %c0_2 = arith.constant 0 : index
    %1 = vector.load %arg7[%c0_1, %c0_2] : memref<8x128xf32, #tpu.memory_space<vmem>>, vector<8x128xf32>
    tpu.vector_store %arg7[%c0_1, %c0_2], %0 {strides = array<i32>} : memref<8x128xf32, #tpu.memory_space<vmem>>, vector<8x128xf32>,
    %c0_3 = arith.constant 0 : index
    %c0_4 = arith.constant 0 : index
    %2 = vector.load %arg7[%c0_3, %c0_4] : memref<8x128xf32, #tpu.memory_space<vmem>>, vector<8x128xf32>
    %c0_5 = arith.constant 0 : index
    %c0_6 = arith.constant 0 : index
    %c0_7 = arith.constant 0 : index
    %3 = vector.load %arg1[%c0_5, %c0_6, %c0_7] : memref<3x128x512xf32, #tpu.memory_space<vmem>>, vector<1x128x512xf32>
    %4 = vector.shape_cast %3 : vector<1x128x512xf32> to vector<128x512xf32>
    %cst = arith.constant dense<0.000000e+00> : vector<8x512xf32>
    %5 = tpu.matmul %2, %4, %cst {dimension_numbers = #tpu.dot_dimension_numbers<[1], [0], [0], [1], [0, 0, 1, 1], [], []>} : vector<8x128xf32>, vector<128x512xf32>, vector<8x512xf32> -> vector<8x512xf32>
    %c0_8 = arith.constant 0 : index
    %c0_9 = arith.constant 0 : index
    %c0_10 = arith.constant 0 : index
    %6 = vector.load %arg3[%c0_8, %c0_9, %c0_10] : memref<3x1x512xf32, #tpu.memory_space<vmem>>, vector<1x1x512xf32>
    %7 = vector.shape_cast %6 : vector<1x1x512xf32> to vector<1x512xf32>
    %8 = vector.broadcast %7 : vector<1x512xf32> to vector<8x512xf32>
    %9 = arith.addf %5, %8 : vector<8x512xf32>
    %c0_11 = arith.constant 0 : index
    %c0_12 = arith.constant 0 : index
    %10 = vector.load %arg8[%c0_11, %c0_12] : memref<8x512xf32, #tpu.memory_space<vmem>>, vector<8x512xf32>
    tpu.vector_store %arg8[%c0_11, %c0_12], %9 {strides = array<i32>} : memref<8x512xf32, #tpu.memory_space<vmem>>, vector<8x512xf32>,
    %cst_13 = arith.constant 0.000000e+00 : f32
    %11 = vector.broadcast %cst_13 : f32 to vector<1x128xf32>
    %c0_14 = arith.constant 0 : index
    %c0_15 = arith.constant 0 : index
    %12 = vector.load %arg9[%c0_14, %c0_15] : memref<1x128xf32, #tpu.memory_space<vmem>>, vector<1x128xf32>
    tpu.vector_store %arg9[%c0_14, %c0_15], %11 {strides = array<i32>} : memref<1x128xf32, #tpu.memory_space<vmem>>, vector<1x128xf32>,
    %cst_16 = arith.constant 0.000000e+00 : f32
    %13 = vector.broadcast %cst_16 : f32 to vector<1x128xf32>
    %c0_17 = arith.constant 0 : index
    %c0_18 = arith.constant 0 : index
    %14 = vector.load %arg10[%c0_17, %c0_18] : memref<1x128xf32, #tpu.memory_space<vmem>>, vector<1x128xf32>
    tpu.vector_store %arg10[%c0_17, %c0_18], %13 {strides = array<i32>} : memref<1x128xf32, #tpu.memory_space<vmem>>, vector<1x128xf32>,
    %c0_19 = arith.constant 0 : index
    %c0_20 = arith.constant 0 : index
    %c0_21 = arith.constant 0 : index
    %15 = vector.load %arg2[%c0_19, %c0_20, %c0_21] : memref<3x128x512xf32, #tpu.memory_space<vmem>>, vector<1x128x512xf32>
    %16 = vector.shape_cast %15 : vector<1x128x512xf32> to vector<128x512xf32>
    %c0_i32 = arith.constant 0 : i32
    %17 = arith.index_cast %c0_i32 : i32 to index
    %c0_22 = arith.constant 0 : index
    %18 = vector.load %arg8[%17, %c0_22] : memref<8x512xf32, #tpu.memory_space<vmem>>, vector<1x512xf32>
    %c0_23 = arith.constant 0 : index
    %c0_24 = arith.constant 0 : index
    %19 = vector.load %arg9[%c0_23, %c0_24] : memref<1x128xf32, #tpu.memory_space<vmem>>, vector<1x128xf32>
    %cst_25 = arith.constant dense<0.000000e+00> : vector<1x512xf32>
    %20 = tpu.matmul %19, %16, %cst_25 {dimension_numbers = #tpu.dot_dimension_numbers<[1], [0], [0], [1], [0, 0, 1, 1], [], []>} : vector<1x128xf32>, vector<128x512xf32>, vector<1x512xf32> -> vector<1x512xf32>
    %21 = arith.addf %18, %20 : vector<1x512xf32>
    %22 = vector.extract_strided_slice %21 {offsets = [0, 0], sizes = [1, 128], strides = [1, 1]} : vector<1x512xf32> to vector<1x128xf32>
    %23 = arith.negf %22 : vector<1x128xf32>
    %24 = math.exp %23 : vector<1x128xf32>
    %cst_26 = arith.constant 1.000000e+00 : f32
    %25 = vector.broadcast %cst_26 : f32 to vector<1x128xf32>
    %26 = arith.addf %25, %24 : vector<1x128xf32>
    %27 = arith.divf %25, %26 : vector<1x128xf32>
    %28 = vector.extract_strided_slice %21 {offsets = [0, 128], sizes = [1, 128], strides = [1, 1]} : vector<1x512xf32> to vector<1x128xf32>
    %29 = arith.negf %28 : vector<1x128xf32>
    %30 = math.exp %29 : vector<1x128xf32>
    %cst_27 = arith.constant 1.000000e+00 : f32
    %31 = vector.broadcast %cst_27 : f32 to vector<1x128xf32>
    %32 = arith.addf %31, %30 : vector<1x128xf32>
    %33 = arith.divf %31, %32 : vector<1x128xf32>
    %34 = vector.extract_strided_slice %21 {offsets = [0, 256], sizes = [1, 128], strides = [1, 1]} : vector<1x512xf32> to vector<1x128xf32>
    %35 = math.tanh %34 : vector<1x128xf32>
    %36 = vector.extract_strided_slice %21 {offsets = [0, 384], sizes = [1, 128], strides = [1, 1]} : vector<1x512xf32> to vector<1x128xf32>
    %37 = arith.negf %36 : vector<1x128xf32>
    %38 = math.exp %37 : vector<1x128xf32>
    %cst_28 = arith.constant 1.000000e+00 : f32
    %39 = vector.broadcast %cst_28 : f32 to vector<1x128xf32>
    %40 = arith.addf %39, %38 : vector<1x128xf32>
    %41 = arith.divf %39, %40 : vector<1x128xf32>
    %c0_29 = arith.constant 0 : index
    %c0_30 = arith.constant 0 : index
    %42 = vector.load %arg10[%c0_29, %c0_30] : memref<1x128xf32, #tpu.memory_space<vmem>>, vector<1x128xf32>
    %43 = arith.mulf %33, %42 : vector<1x128xf32>
    %44 = arith.mulf %27, %35 : vector<1x128xf32>
    %45 = arith.addf %43, %44 : vector<1x128xf32>
    %46 = math.tanh %45 : vector<1x128xf32>
    %47 = arith.mulf %41, %46 : vector<1x128xf32>
    %c0_31 = arith.constant 0 : index
    %c0_32 = arith.constant 0 : index
    %48 = vector.load %arg10[%c0_31, %c0_32] : memref<1x128xf32, #tpu.memory_space<vmem>>, vector<1x128xf32>
    tpu.vector_store %arg10[%c0_31, %c0_32], %45 {strides = array<i32>} : memref<1x128xf32, #tpu.memory_space<vmem>>, vector<1x128xf32>,
    %c0_33 = arith.constant 0 : index
    %c0_34 = arith.constant 0 : index
    %49 = vector.load %arg9[%c0_33, %c0_34] : memref<1x128xf32, #tpu.memory_space<vmem>>, vector<1x128xf32>
    tpu.vector_store %arg9[%c0_33, %c0_34], %47 {strides = array<i32>} : memref<1x128xf32, #tpu.memory_space<vmem>>, vector<1x128xf32>,
    %50 = arith.index_cast %c0_i32 : i32 to index
    %c0_35 = arith.constant 0 : index
    %51 = vector.load %arg7[%50, %c0_35] : memref<8x128xf32, #tpu.memory_space<vmem>>, vector<1x128xf32>
    tpu.vector_store %arg7[%50, %c0_35], %47 {strides = array<i32>} : memref<8x128xf32, #tpu.memory_space<vmem>>, vector<1x128xf32>,
    %c1_i32 = arith.constant 1 : i32
    %52 = arith.index_cast %c1_i32 : i32 to index
    %c0_36 = arith.constant 0 : index
    %53 = vector.load %arg8[%52, %c0_36] : memref<8x512xf32, #tpu.memory_space<vmem>>, vector<1x512xf32>
    %c0_37 = arith.constant 0 : index
    %c0_38 = arith.constant 0 : index
    %54 = vector.load %arg9[%c0_37, %c0_38] : memref<1x128xf32, #tpu.memory_space<vmem>>, vector<1x128xf32>
    %cst_39 = arith.constant dense<0.000000e+00> : vector<1x512xf32>
    %55 = tpu.matmul %54, %16, %cst_39 {dimension_numbers = #tpu.dot_dimension_numbers<[1], [0], [0], [1], [0, 0, 1, 1], [], []>} : vector<1x128xf32>, vector<128x512xf32>, vector<1x512xf32> -> vector<1x512xf32>
    %56 = arith.addf %53, %55 : vector<1x512xf32>
    %57 = vector.extract_strided_slice %56 {offsets = [0, 0], sizes = [1, 128], strides = [1, 1]} : vector<1x512xf32> to vector<1x128xf32>
    %58 = arith.negf %57 : vector<1x128xf32>
    %59 = math.exp %58 : vector<1x128xf32>
    %cst_40 = arith.constant 1.000000e+00 : f32
    %60 = vector.broadcast %cst_40 : f32 to vector<1x128xf32>
    %61 = arith.addf %60, %59 : vector<1x128xf32>
    %62 = arith.divf %60, %61 : vector<1x128xf32>
    %63 = vector.extract_strided_slice %56 {offsets = [0, 128], sizes = [1, 128], strides = [1, 1]} : vector<1x512xf32> to vector<1x128xf32>
    %64 = arith.negf %63 : vector<1x128xf32>
    %65 = math.exp %64 : vector<1x128xf32>
    %cst_41 = arith.constant 1.000000e+00 : f32
    %66 = vector.broadcast %cst_41 : f32 to vector<1x128xf32>
    %67 = arith.addf %66, %65 : vector<1x128xf32>
    %68 = arith.divf %66, %67 : vector<1x128xf32>
    %69 = vector.extract_strided_slice %56 {offsets = [0, 256], sizes = [1, 128], strides = [1, 1]} : vector<1x512xf32> to vector<1x128xf32>
    %70 = math.tanh %69 : vector<1x128xf32>
    %71 = vector.extract_strided_slice %56 {offsets = [0, 384], sizes = [1, 128], strides = [1, 1]} : vector<1x512xf32> to vector<1x128xf32>
    %72 = arith.negf %71 : vector<1x128xf32>
    %73 = math.exp %72 : vector<1x128xf32>
    %cst_42 = arith.constant 1.000000e+00 : f32
    %74 = vector.broadcast %cst_42 : f32 to vector<1x128xf32>
    %75 = arith.addf %74, %73 : vector<1x128xf32>
    %76 = arith.divf %74, %75 : vector<1x128xf32>
    %c0_43 = arith.constant 0 : index
    %c0_44 = arith.constant 0 : index
    %77 = vector.load %arg10[%c0_43, %c0_44] : memref<1x128xf32, #tpu.memory_space<vmem>>, vector<1x128xf32>
    %78 = arith.mulf %68, %77 : vector<1x128xf32>
    %79 = arith.mulf %62, %70 : vector<1x128xf32>
    %80 = arith.addf %78, %79 : vector<1x128xf32>
    %81 = math.tanh %80 : vector<1x128xf32>
    %82 = arith.mulf %76, %81 : vector<1x128xf32>
    %c0_45 = arith.constant 0 : index
    %c0_46 = arith.constant 0 : index
    %83 = vector.load %arg10[%c0_45, %c0_46] : memref<1x128xf32, #tpu.memory_space<vmem>>, vector<1x128xf32>
    tpu.vector_store %arg10[%c0_45, %c0_46], %80 {strides = array<i32>} : memref<1x128xf32, #tpu.memory_space<vmem>>, vector<1x128xf32>,
    %c0_47 = arith.constant 0 : index
    %c0_48 = arith.constant 0 : index
    %84 = vector.load %arg9[%c0_47, %c0_48] : memref<1x128xf32, #tpu.memory_space<vmem>>, vector<1x128xf32>
    tpu.vector_store %arg9[%c0_47, %c0_48], %82 {strides = array<i32>} : memref<1x128xf32, #tpu.memory_space<vmem>>, vector<1x128xf32>,
    %85 = arith.index_cast %c1_i32 : i32 to index
    %c0_49 = arith.constant 0 : index
    %86 = vector.load %arg7[%85, %c0_49] : memref<8x128xf32, #tpu.memory_space<vmem>>, vector<1x128xf32>
    tpu.vector_store %arg7[%85, %c0_49], %82 {strides = array<i32>} : memref<8x128xf32, #tpu.memory_space<vmem>>, vector<1x128xf32>,
    %c2_i32 = arith.constant 2 : i32
    %87 = arith.index_cast %c2_i32 : i32 to index
    %c0_50 = arith.constant 0 : index
    %88 = vector.load %arg8[%87, %c0_50] : memref<8x512xf32, #tpu.memory_space<vmem>>, vector<1x512xf32>
    %c0_51 = arith.constant 0 : index
    %c0_52 = arith.constant 0 : index
    %89 = vector.load %arg9[%c0_51, %c0_52] : memref<1x128xf32, #tpu.memory_space<vmem>>, vector<1x128xf32>
    %cst_53 = arith.constant dense<0.000000e+00> : vector<1x512xf32>
    %90 = tpu.matmul %89, %16, %cst_53 {dimension_numbers = #tpu.dot_dimension_numbers<[1], [0], [0], [1], [0, 0, 1, 1], [], []>} : vector<1x128xf32>, vector<128x512xf32>, vector<1x512xf32> -> vector<1x512xf32>
    %91 = arith.addf %88, %90 : vector<1x512xf32>
    %92 = vector.extract_strided_slice %91 {offsets = [0, 0], sizes = [1, 128], strides = [1, 1]} : vector<1x512xf32> to vector<1x128xf32>
    %93 = arith.negf %92 : vector<1x128xf32>
    %94 = math.exp %93 : vector<1x128xf32>
    %cst_54 = arith.constant 1.000000e+00 : f32
    %95 = vector.broadcast %cst_54 : f32 to vector<1x128xf32>
    %96 = arith.addf %95, %94 : vector<1x128xf32>
    %97 = arith.divf %95, %96 : vector<1x128xf32>
    %98 = vector.extract_strided_slice %91 {offsets = [0, 128], sizes = [1, 128], strides = [1, 1]} : vector<1x512xf32> to vector<1x128xf32>
    %99 = arith.negf %98 : vector<1x128xf32>
    %100 = math.exp %99 : vector<1x128xf32>
    %cst_55 = arith.constant 1.000000e+00 : f32
    %101 = vector.broadcast %cst_55 : f32 to vector<1x128xf32>
    %102 = arith.addf %101, %100 : vector<1x128xf32>
    %103 = arith.divf %101, %102 : vector<1x128xf32>
    %104 = vector.extract_strided_slice %91 {offsets = [0, 256], sizes = [1, 128], strides = [1, 1]} : vector<1x512xf32> to vector<1x128xf32>
    %105 = math.tanh %104 : vector<1x128xf32>
    %106 = vector.extract_strided_slice %91 {offsets = [0, 384], sizes = [1, 128], strides = [1, 1]} : vector<1x512xf32> to vector<1x128xf32>
    %107 = arith.negf %106 : vector<1x128xf32>
    %108 = math.exp %107 : vector<1x128xf32>
    %cst_56 = arith.constant 1.000000e+00 : f32
    %109 = vector.broadcast %cst_56 : f32 to vector<1x128xf32>
    %110 = arith.addf %109, %108 : vector<1x128xf32>
    %111 = arith.divf %109, %110 : vector<1x128xf32>
    %c0_57 = arith.constant 0 : index
    %c0_58 = arith.constant 0 : index
    %112 = vector.load %arg10[%c0_57, %c0_58] : memref<1x128xf32, #tpu.memory_space<vmem>>, vector<1x128xf32>
    %113 = arith.mulf %103, %112 : vector<1x128xf32>
    %114 = arith.mulf %97, %105 : vector<1x128xf32>
    %115 = arith.addf %113, %114 : vector<1x128xf32>
    %116 = math.tanh %115 : vector<1x128xf32>
    %117 = arith.mulf %111, %116 : vector<1x128xf32>
    %c0_59 = arith.constant 0 : index
    %c0_60 = arith.constant 0 : index
    %118 = vector.load %arg10[%c0_59, %c0_60] : memref<1x128xf32, #tpu.memory_space<vmem>>, vector<1x128xf32>
    tpu.vector_store %arg10[%c0_59, %c0_60], %115 {strides = array<i32>} : memref<1x128xf32, #tpu.memory_space<vmem>>, vector<1x128xf32>,
    %c0_61 = arith.constant 0 : index
    %c0_62 = arith.constant 0 : index
    %119 = vector.load %arg9[%c0_61, %c0_62] : memref<1x128xf32, #tpu.memory_space<vmem>>, vector<1x128xf32>
    tpu.vector_store %arg9[%c0_61, %c0_62], %117 {strides = array<i32>} : memref<1x128xf32, #tpu.memory_space<vmem>>, vector<1x128xf32>,
    %120 = arith.index_cast %c2_i32 : i32 to index
    %c0_63 = arith.constant 0 : index
    %121 = vector.load %arg7[%120, %c0_63] : memref<8x128xf32, #tpu.memory_space<vmem>>, vector<1x128xf32>
    tpu.vector_store %arg7[%120, %c0_63], %117 {strides = array<i32>} : memref<8x128xf32, #tpu.memory_space<vmem>>, vector<1x128xf32>,
    %c3_i32 = arith.constant 3 : i32
    %122 = arith.index_cast %c3_i32 : i32 to index
    %c0_64 = arith.constant 0 : index
    %123 = vector.load %arg8[%122, %c0_64] : memref<8x512xf32, #tpu.memory_space<vmem>>, vector<1x512xf32>
    %c0_65 = arith.constant 0 : index
    %c0_66 = arith.constant 0 : index
    %124 = vector.load %arg9[%c0_65, %c0_66] : memref<1x128xf32, #tpu.memory_space<vmem>>, vector<1x128xf32>
    %cst_67 = arith.constant dense<0.000000e+00> : vector<1x512xf32>
    %125 = tpu.matmul %124, %16, %cst_67 {dimension_numbers = #tpu.dot_dimension_numbers<[1], [0], [0], [1], [0, 0, 1, 1], [], []>} : vector<1x128xf32>, vector<128x512xf32>, vector<1x512xf32> -> vector<1x512xf32>
    %126 = arith.addf %123, %125 : vector<1x512xf32>
    %127 = vector.extract_strided_slice %126 {offsets = [0, 0], sizes = [1, 128], strides = [1, 1]} : vector<1x512xf32> to vector<1x128xf32>
    %128 = arith.negf %127 : vector<1x128xf32>
    %129 = math.exp %128 : vector<1x128xf32>
    %cst_68 = arith.constant 1.000000e+00 : f32
    %130 = vector.broadcast %cst_68 : f32 to vector<1x128xf32>
    %131 = arith.addf %130, %129 : vector<1x128xf32>
    %132 = arith.divf %130, %131 : vector<1x128xf32>
    %133 = vector.extract_strided_slice %126 {offsets = [0, 128], sizes = [1, 128], strides = [1, 1]} : vector<1x512xf32> to vector<1x128xf32>
    %134 = arith.negf %133 : vector<1x128xf32>
    %135 = math.exp %134 : vector<1x128xf32>
    %cst_69 = arith.constant 1.000000e+00 : f32
    %136 = vector.broadcast %cst_69 : f32 to vector<1x128xf32>
    %137 = arith.addf %136, %135 : vector<1x128xf32>
    %138 = arith.divf %136, %137 : vector<1x128xf32>
    %139 = vector.extract_strided_slice %126 {offsets = [0, 256], sizes = [1, 128], strides = [1, 1]} : vector<1x512xf32> to vector<1x128xf32>
    %140 = math.tanh %139 : vector<1x128xf32>
    %141 = vector.extract_strided_slice %126 {offsets = [0, 384], sizes = [1, 128], strides = [1, 1]} : vector<1x512xf32> to vector<1x128xf32>
    %142 = arith.negf %141 : vector<1x128xf32>
    %143 = math.exp %142 : vector<1x128xf32>
    %cst_70 = arith.constant 1.000000e+00 : f32
    %144 = vector.broadcast %cst_70 : f32 to vector<1x128xf32>
    %145 = arith.addf %144, %143 : vector<1x128xf32>
    %146 = arith.divf %144, %145 : vector<1x128xf32>
    %c0_71 = arith.constant 0 : index
    %c0_72 = arith.constant 0 : index
    %147 = vector.load %arg10[%c0_71, %c0_72] : memref<1x128xf32, #tpu.memory_space<vmem>>, vector<1x128xf32>
    %148 = arith.mulf %138, %147 : vector<1x128xf32>
    %149 = arith.mulf %132, %140 : vector<1x128xf32>
    %150 = arith.addf %148, %149 : vector<1x128xf32>
    %151 = math.tanh %150 : vector<1x128xf32>
    %152 = arith.mulf %146, %151 : vector<1x128xf32>
    %c0_73 = arith.constant 0 : index
    %c0_74 = arith.constant 0 : index
    %153 = vector.load %arg10[%c0_73, %c0_74] : memref<1x128xf32, #tpu.memory_space<vmem>>, vector<1x128xf32>
    tpu.vector_store %arg10[%c0_73, %c0_74], %150 {strides = array<i32>} : memref<1x128xf32, #tpu.memory_space<vmem>>, vector<1x128xf32>,
    %c0_75 = arith.constant 0 : index
    %c0_76 = arith.constant 0 : index
    %154 = vector.load %arg9[%c0_75, %c0_76] : memref<1x128xf32, #tpu.memory_space<vmem>>, vector<1x128xf32>
    tpu.vector_store %arg9[%c0_75, %c0_76], %152 {strides = array<i32>} : memref<1x128xf32, #tpu.memory_space<vmem>>, vector<1x128xf32>,
    %155 = arith.index_cast %c3_i32 : i32 to index
    %c0_77 = arith.constant 0 : index
    %156 = vector.load %arg7[%155, %c0_77] : memref<8x128xf32, #tpu.memory_space<vmem>>, vector<1x128xf32>
    tpu.vector_store %arg7[%155, %c0_77], %152 {strides = array<i32>} : memref<8x128xf32, #tpu.memory_space<vmem>>, vector<1x128xf32>,
    %c4_i32 = arith.constant 4 : i32
    %157 = arith.index_cast %c4_i32 : i32 to index
    %c0_78 = arith.constant 0 : index
    %158 = vector.load %arg8[%157, %c0_78] : memref<8x512xf32, #tpu.memory_space<vmem>>, vector<1x512xf32>
    %c0_79 = arith.constant 0 : index
    %c0_80 = arith.constant 0 : index
    %159 = vector.load %arg9[%c0_79, %c0_80] : memref<1x128xf32, #tpu.memory_space<vmem>>, vector<1x128xf32>
    %cst_81 = arith.constant dense<0.000000e+00> : vector<1x512xf32>
    %160 = tpu.matmul %159, %16, %cst_81 {dimension_numbers = #tpu.dot_dimension_numbers<[1], [0], [0], [1], [0, 0, 1, 1], [], []>} : vector<1x128xf32>, vector<128x512xf32>, vector<1x512xf32> -> vector<1x512xf32>
    %161 = arith.addf %158, %160 : vector<1x512xf32>
    %162 = vector.extract_strided_slice %161 {offsets = [0, 0], sizes = [1, 128], strides = [1, 1]} : vector<1x512xf32> to vector<1x128xf32>
    %163 = arith.negf %162 : vector<1x128xf32>
    %164 = math.exp %163 : vector<1x128xf32>
    %cst_82 = arith.constant 1.000000e+00 : f32
    %165 = vector.broadcast %cst_82 : f32 to vector<1x128xf32>
    %166 = arith.addf %165, %164 : vector<1x128xf32>
    %167 = arith.divf %165, %166 : vector<1x128xf32>
    %168 = vector.extract_strided_slice %161 {offsets = [0, 128], sizes = [1, 128], strides = [1, 1]} : vector<1x512xf32> to vector<1x128xf32>
    %169 = arith.negf %168 : vector<1x128xf32>
    %170 = math.exp %169 : vector<1x128xf32>
    %cst_83 = arith.constant 1.000000e+00 : f32
    %171 = vector.broadcast %cst_83 : f32 to vector<1x128xf32>
    %172 = arith.addf %171, %170 : vector<1x128xf32>
    %173 = arith.divf %171, %172 : vector<1x128xf32>
    %174 = vector.extract_strided_slice %161 {offsets = [0, 256], sizes = [1, 128], strides = [1, 1]} : vector<1x512xf32> to vector<1x128xf32>
    %175 = math.tanh %174 : vector<1x128xf32>
    %176 = vector.extract_strided_slice %161 {offsets = [0, 384], sizes = [1, 128], strides = [1, 1]} : vector<1x512xf32> to vector<1x128xf32>
    %177 = arith.negf %176 : vector<1x128xf32>
    %178 = math.exp %177 : vector<1x128xf32>
    %cst_84 = arith.constant 1.000000e+00 : f32
    %179 = vector.broadcast %cst_84 : f32 to vector<1x128xf32>
    %180 = arith.addf %179, %178 : vector<1x128xf32>
    %181 = arith.divf %179, %180 : vector<1x128xf32>
    %c0_85 = arith.constant 0 : index
    %c0_86 = arith.constant 0 : index
    %182 = vector.load %arg10[%c0_85, %c0_86] : memref<1x128xf32, #tpu.memory_space<vmem>>, vector<1x128xf32>
    %183 = arith.mulf %173, %182 : vector<1x128xf32>
    %184 = arith.mulf %167, %175 : vector<1x128xf32>
    %185 = arith.addf %183, %184 : vector<1x128xf32>
    %186 = math.tanh %185 : vector<1x128xf32>
    %187 = arith.mulf %181, %186 : vector<1x128xf32>
    %c0_87 = arith.constant 0 : index
    %c0_88 = arith.constant 0 : index
    %188 = vector.load %arg10[%c0_87, %c0_88] : memref<1x128xf32, #tpu.memory_space<vmem>>, vector<1x128xf32>
    tpu.vector_store %arg10[%c0_87, %c0_88], %185 {strides = array<i32>} : memref<1x128xf32, #tpu.memory_space<vmem>>, vector<1x128xf32>,
    %c0_89 = arith.constant 0 : index
    %c0_90 = arith.constant 0 : index
    %189 = vector.load %arg9[%c0_89, %c0_90] : memref<1x128xf32, #tpu.memory_space<vmem>>, vector<1x128xf32>
    tpu.vector_store %arg9[%c0_89, %c0_90], %187 {strides = array<i32>} : memref<1x128xf32, #tpu.memory_space<vmem>>, vector<1x128xf32>,
    %190 = arith.index_cast %c4_i32 : i32 to index
    %c0_91 = arith.constant 0 : index
    %191 = vector.load %arg7[%190, %c0_91] : memref<8x128xf32, #tpu.memory_space<vmem>>, vector<1x128xf32>
    tpu.vector_store %arg7[%190, %c0_91], %187 {strides = array<i32>} : memref<8x128xf32, #tpu.memory_space<vmem>>, vector<1x128xf32>,
    %c5_i32 = arith.constant 5 : i32
    %192 = arith.index_cast %c5_i32 : i32 to index
    %c0_92 = arith.constant 0 : index
    %193 = vector.load %arg8[%192, %c0_92] : memref<8x512xf32, #tpu.memory_space<vmem>>, vector<1x512xf32>
    %c0_93 = arith.constant 0 : index
    %c0_94 = arith.constant 0 : index
    %194 = vector.load %arg9[%c0_93, %c0_94] : memref<1x128xf32, #tpu.memory_space<vmem>>, vector<1x128xf32>
    %cst_95 = arith.constant dense<0.000000e+00> : vector<1x512xf32>
    %195 = tpu.matmul %194, %16, %cst_95 {dimension_numbers = #tpu.dot_dimension_numbers<[1], [0], [0], [1], [0, 0, 1, 1], [], []>} : vector<1x128xf32>, vector<128x512xf32>, vector<1x512xf32> -> vector<1x512xf32>
    %196 = arith.addf %193, %195 : vector<1x512xf32>
    %197 = vector.extract_strided_slice %196 {offsets = [0, 0], sizes = [1, 128], strides = [1, 1]} : vector<1x512xf32> to vector<1x128xf32>
    %198 = arith.negf %197 : vector<1x128xf32>
    %199 = math.exp %198 : vector<1x128xf32>
    %cst_96 = arith.constant 1.000000e+00 : f32
    %200 = vector.broadcast %cst_96 : f32 to vector<1x128xf32>
    %201 = arith.addf %200, %199 : vector<1x128xf32>
    %202 = arith.divf %200, %201 : vector<1x128xf32>
    %203 = vector.extract_strided_slice %196 {offsets = [0, 128], sizes = [1, 128], strides = [1, 1]} : vector<1x512xf32> to vector<1x128xf32>
    %204 = arith.negf %203 : vector<1x128xf32>
    %205 = math.exp %204 : vector<1x128xf32>
    %cst_97 = arith.constant 1.000000e+00 : f32
    %206 = vector.broadcast %cst_97 : f32 to vector<1x128xf32>
    %207 = arith.addf %206, %205 : vector<1x128xf32>
    %208 = arith.divf %206, %207 : vector<1x128xf32>
    %209 = vector.extract_strided_slice %196 {offsets = [0, 256], sizes = [1, 128], strides = [1, 1]} : vector<1x512xf32> to vector<1x128xf32>
    %210 = math.tanh %209 : vector<1x128xf32>
    %211 = vector.extract_strided_slice %196 {offsets = [0, 384], sizes = [1, 128], strides = [1, 1]} : vector<1x512xf32> to vector<1x128xf32>
    %212 = arith.negf %211 : vector<1x128xf32>
    %213 = math.exp %212 : vector<1x128xf32>
    %cst_98 = arith.constant 1.000000e+00 : f32
    %214 = vector.broadcast %cst_98 : f32 to vector<1x128xf32>
    %215 = arith.addf %214, %213 : vector<1x128xf32>
    %216 = arith.divf %214, %215 : vector<1x128xf32>
    %c0_99 = arith.constant 0 : index
    %c0_100 = arith.constant 0 : index
    %217 = vector.load %arg10[%c0_99, %c0_100] : memref<1x128xf32, #tpu.memory_space<vmem>>, vector<1x128xf32>
    %218 = arith.mulf %208, %217 : vector<1x128xf32>
    %219 = arith.mulf %202, %210 : vector<1x128xf32>
    %220 = arith.addf %218, %219 : vector<1x128xf32>
    %221 = math.tanh %220 : vector<1x128xf32>
    %222 = arith.mulf %216, %221 : vector<1x128xf32>
    %c0_101 = arith.constant 0 : index
    %c0_102 = arith.constant 0 : index
    %223 = vector.load %arg10[%c0_101, %c0_102] : memref<1x128xf32, #tpu.memory_space<vmem>>, vector<1x128xf32>
    tpu.vector_store %arg10[%c0_101, %c0_102], %220 {strides = array<i32>} : memref<1x128xf32, #tpu.memory_space<vmem>>, vector<1x128xf32>,
    %c0_103 = arith.constant 0 : index
    %c0_104 = arith.constant 0 : index
    %224 = vector.load %arg9[%c0_103, %c0_104] : memref<1x128xf32, #tpu.memory_space<vmem>>, vector<1x128xf32>
    tpu.vector_store %arg9[%c0_103, %c0_104], %222 {strides = array<i32>} : memref<1x128xf32, #tpu.memory_space<vmem>>, vector<1x128xf32>,
    %225 = arith.index_cast %c5_i32 : i32 to index
    %c0_105 = arith.constant 0 : index
    %226 = vector.load %arg7[%225, %c0_105] : memref<8x128xf32, #tpu.memory_space<vmem>>, vector<1x128xf32>
    tpu.vector_store %arg7[%225, %c0_105], %222 {strides = array<i32>} : memref<8x128xf32, #tpu.memory_space<vmem>>, vector<1x128xf32>,
    %c6_i32 = arith.constant 6 : i32
    %227 = arith.index_cast %c6_i32 : i32 to index
    %c0_106 = arith.constant 0 : index
    %228 = vector.load %arg8[%227, %c0_106] : memref<8x512xf32, #tpu.memory_space<vmem>>, vector<1x512xf32>
    %c0_107 = arith.constant 0 : index
    %c0_108 = arith.constant 0 : index
    %229 = vector.load %arg9[%c0_107, %c0_108] : memref<1x128xf32, #tpu.memory_space<vmem>>, vector<1x128xf32>
    %cst_109 = arith.constant dense<0.000000e+00> : vector<1x512xf32>
    %230 = tpu.matmul %229, %16, %cst_109 {dimension_numbers = #tpu.dot_dimension_numbers<[1], [0], [0], [1], [0, 0, 1, 1], [], []>} : vector<1x128xf32>, vector<128x512xf32>, vector<1x512xf32> -> vector<1x512xf32>
    %231 = arith.addf %228, %230 : vector<1x512xf32>
    %232 = vector.extract_strided_slice %231 {offsets = [0, 0], sizes = [1, 128], strides = [1, 1]} : vector<1x512xf32> to vector<1x128xf32>
    %233 = arith.negf %232 : vector<1x128xf32>
    %234 = math.exp %233 : vector<1x128xf32>
    %cst_110 = arith.constant 1.000000e+00 : f32
    %235 = vector.broadcast %cst_110 : f32 to vector<1x128xf32>
    %236 = arith.addf %235, %234 : vector<1x128xf32>
    %237 = arith.divf %235, %236 : vector<1x128xf32>
    %238 = vector.extract_strided_slice %231 {offsets = [0, 128], sizes = [1, 128], strides = [1, 1]} : vector<1x512xf32> to vector<1x128xf32>
    %239 = arith.negf %238 : vector<1x128xf32>
    %240 = math.exp %239 : vector<1x128xf32>
    %cst_111 = arith.constant 1.000000e+00 : f32
    %241 = vector.broadcast %cst_111 : f32 to vector<1x128xf32>
    %242 = arith.addf %241, %240 : vector<1x128xf32>
    %243 = arith.divf %241, %242 : vector<1x128xf32>
    %244 = vector.extract_strided_slice %231 {offsets = [0, 256], sizes = [1, 128], strides = [1, 1]} : vector<1x512xf32> to vector<1x128xf32>
    %245 = math.tanh %244 : vector<1x128xf32>
    %246 = vector.extract_strided_slice %231 {offsets = [0, 384], sizes = [1, 128], strides = [1, 1]} : vector<1x512xf32> to vector<1x128xf32>
    %247 = arith.negf %246 : vector<1x128xf32>
    %248 = math.exp %247 : vector<1x128xf32>
    %cst_112 = arith.constant 1.000000e+00 : f32
    %249 = vector.broadcast %cst_112 : f32 to vector<1x128xf32>
    %250 = arith.addf %249, %248 : vector<1x128xf32>
    %251 = arith.divf %249, %250 : vector<1x128xf32>
    %c0_113 = arith.constant 0 : index
    %c0_114 = arith.constant 0 : index
    %252 = vector.load %arg10[%c0_113, %c0_114] : memref<1x128xf32, #tpu.memory_space<vmem>>, vector<1x128xf32>
    %253 = arith.mulf %243, %252 : vector<1x128xf32>
    %254 = arith.mulf %237, %245 : vector<1x128xf32>
    %255 = arith.addf %253, %254 : vector<1x128xf32>
    %256 = math.tanh %255 : vector<1x128xf32>
    %257 = arith.mulf %251, %256 : vector<1x128xf32>
    %c0_115 = arith.constant 0 : index
    %c0_116 = arith.constant 0 : index
    %258 = vector.load %arg10[%c0_115, %c0_116] : memref<1x128xf32, #tpu.memory_space<vmem>>, vector<1x128xf32>
    tpu.vector_store %arg10[%c0_115, %c0_116], %255 {strides = array<i32>} : memref<1x128xf32, #tpu.memory_space<vmem>>, vector<1x128xf32>,
    %c0_117 = arith.constant 0 : index
    %c0_118 = arith.constant 0 : index
    %259 = vector.load %arg9[%c0_117, %c0_118] : memref<1x128xf32, #tpu.memory_space<vmem>>, vector<1x128xf32>
    tpu.vector_store %arg9[%c0_117, %c0_118], %257 {strides = array<i32>} : memref<1x128xf32, #tpu.memory_space<vmem>>, vector<1x128xf32>,
    %260 = arith.index_cast %c6_i32 : i32 to index
    %c0_119 = arith.constant 0 : index
    %261 = vector.load %arg7[%260, %c0_119] : memref<8x128xf32, #tpu.memory_space<vmem>>, vector<1x128xf32>
    tpu.vector_store %arg7[%260, %c0_119], %257 {strides = array<i32>} : memref<8x128xf32, #tpu.memory_space<vmem>>, vector<1x128xf32>,
    %c7_i32 = arith.constant 7 : i32
    %262 = arith.index_cast %c7_i32 : i32 to index
    %c0_120 = arith.constant 0 : index
    %263 = vector.load %arg8[%262, %c0_120] : memref<8x512xf32, #tpu.memory_space<vmem>>, vector<1x512xf32>
    %c0_121 = arith.constant 0 : index
    %c0_122 = arith.constant 0 : index
    %264 = vector.load %arg9[%c0_121, %c0_122] : memref<1x128xf32, #tpu.memory_space<vmem>>, vector<1x128xf32>
    %cst_123 = arith.constant dense<0.000000e+00> : vector<1x512xf32>
    %265 = tpu.matmul %264, %16, %cst_123 {dimension_numbers = #tpu.dot_dimension_numbers<[1], [0], [0], [1], [0, 0, 1, 1], [], []>} : vector<1x128xf32>, vector<128x512xf32>, vector<1x512xf32> -> vector<1x512xf32>
    %266 = arith.addf %263, %265 : vector<1x512xf32>
    %267 = vector.extract_strided_slice %266 {offsets = [0, 0], sizes = [1, 128], strides = [1, 1]} : vector<1x512xf32> to vector<1x128xf32>
    %268 = arith.negf %267 : vector<1x128xf32>
    %269 = math.exp %268 : vector<1x128xf32>
    %cst_124 = arith.constant 1.000000e+00 : f32
    %270 = vector.broadcast %cst_124 : f32 to vector<1x128xf32>
    %271 = arith.addf %270, %269 : vector<1x128xf32>
    %272 = arith.divf %270, %271 : vector<1x128xf32>
    %273 = vector.extract_strided_slice %266 {offsets = [0, 128], sizes = [1, 128], strides = [1, 1]} : vector<1x512xf32> to vector<1x128xf32>
    %274 = arith.negf %273 : vector<1x128xf32>
    %275 = math.exp %274 : vector<1x128xf32>
    %cst_125 = arith.constant 1.000000e+00 : f32
    %276 = vector.broadcast %cst_125 : f32 to vector<1x128xf32>
    %277 = arith.addf %276, %275 : vector<1x128xf32>
    %278 = arith.divf %276, %277 : vector<1x128xf32>
    %279 = vector.extract_strided_slice %266 {offsets = [0, 256], sizes = [1, 128], strides = [1, 1]} : vector<1x512xf32> to vector<1x128xf32>
    %280 = math.tanh %279 : vector<1x128xf32>
    %281 = vector.extract_strided_slice %266 {offsets = [0, 384], sizes = [1, 128], strides = [1, 1]} : vector<1x512xf32> to vector<1x128xf32>
    %282 = arith.negf %281 : vector<1x128xf32>
    %283 = math.exp %282 : vector<1x128xf32>
    %cst_126 = arith.constant 1.000000e+00 : f32
    %284 = vector.broadcast %cst_126 : f32 to vector<1x128xf32>
    %285 = arith.addf %284, %283 : vector<1x128xf32>
    %286 = arith.divf %284, %285 : vector<1x128xf32>
    %c0_127 = arith.constant 0 : index
    %c0_128 = arith.constant 0 : index
    %287 = vector.load %arg10[%c0_127, %c0_128] : memref<1x128xf32, #tpu.memory_space<vmem>>, vector<1x128xf32>
    %288 = arith.mulf %278, %287 : vector<1x128xf32>
    %289 = arith.mulf %272, %280 : vector<1x128xf32>
    %290 = arith.addf %288, %289 : vector<1x128xf32>
    %291 = math.tanh %290 : vector<1x128xf32>
    %292 = arith.mulf %286, %291 : vector<1x128xf32>
    %c0_129 = arith.constant 0 : index
    %c0_130 = arith.constant 0 : index
    %293 = vector.load %arg10[%c0_129, %c0_130] : memref<1x128xf32, #tpu.memory_space<vmem>>, vector<1x128xf32>
    tpu.vector_store %arg10[%c0_129, %c0_130], %290 {strides = array<i32>} : memref<1x128xf32, #tpu.memory_space<vmem>>, vector<1x128xf32>,
    %c0_131 = arith.constant 0 : index
    %c0_132 = arith.constant 0 : index
    %294 = vector.load %arg9[%c0_131, %c0_132] : memref<1x128xf32, #tpu.memory_space<vmem>>, vector<1x128xf32>
    tpu.vector_store %arg9[%c0_131, %c0_132], %292 {strides = array<i32>} : memref<1x128xf32, #tpu.memory_space<vmem>>, vector<1x128xf32>,
    %295 = arith.index_cast %c7_i32 : i32 to index
    %c0_133 = arith.constant 0 : index
    %296 = vector.load %arg7[%295, %c0_133] : memref<8x128xf32, #tpu.memory_space<vmem>>, vector<1x128xf32>
    tpu.vector_store %arg7[%295, %c0_133], %292 {strides = array<i32>} : memref<8x128xf32, #tpu.memory_space<vmem>>, vector<1x128xf32>,
    %c8_i32 = arith.constant 8 : i32
    %c0_134 = arith.constant 0 : index
    %c0_135 = arith.constant 0 : index
    %297 = vector.load %arg7[%c0_134, %c0_135] : memref<8x128xf32, #tpu.memory_space<vmem>>, vector<8x128xf32>
    %c1 = arith.constant 1 : index
    %c0_136 = arith.constant 0 : index
    %c0_137 = arith.constant 0 : index
    %298 = vector.load %arg1[%c1, %c0_136, %c0_137] : memref<3x128x512xf32, #tpu.memory_space<vmem>>, vector<1x128x512xf32>
    %299 = vector.shape_cast %298 : vector<1x128x512xf32> to vector<128x512xf32>
    %cst_138 = arith.constant dense<0.000000e+00> : vector<8x512xf32>
    %300 = tpu.matmul %297, %299, %cst_138 {dimension_numbers = #tpu.dot_dimension_numbers<[1], [0], [0], [1], [0, 0, 1, 1], [], []>} : vector<8x128xf32>, vector<128x512xf32>, vector<8x512xf32> -> vector<8x512xf32>
    %c1_139 = arith.constant 1 : index
    %c0_140 = arith.constant 0 : index
    %c0_141 = arith.constant 0 : index
    %301 = vector.load %arg3[%c1_139, %c0_140, %c0_141] : memref<3x1x512xf32, #tpu.memory_space<vmem>>, vector<1x1x512xf32>
    %302 = vector.shape_cast %301 : vector<1x1x512xf32> to vector<1x512xf32>
    %303 = vector.broadcast %302 : vector<1x512xf32> to vector<8x512xf32>
    %304 = arith.addf %300, %303 : vector<8x512xf32>
    %c0_142 = arith.constant 0 : index
    %c0_143 = arith.constant 0 : index
    %305 = vector.load %arg8[%c0_142, %c0_143] : memref<8x512xf32, #tpu.memory_space<vmem>>, vector<8x512xf32>
    tpu.vector_store %arg8[%c0_142, %c0_143], %304 {strides = array<i32>} : memref<8x512xf32, #tpu.memory_space<vmem>>, vector<8x512xf32>,
    %cst_144 = arith.constant 0.000000e+00 : f32
    %306 = vector.broadcast %cst_144 : f32 to vector<1x128xf32>
    %c0_145 = arith.constant 0 : index
    %c0_146 = arith.constant 0 : index
    %307 = vector.load %arg9[%c0_145, %c0_146] : memref<1x128xf32, #tpu.memory_space<vmem>>, vector<1x128xf32>
    tpu.vector_store %arg9[%c0_145, %c0_146], %306 {strides = array<i32>} : memref<1x128xf32, #tpu.memory_space<vmem>>, vector<1x128xf32>,
    %cst_147 = arith.constant 0.000000e+00 : f32
    %308 = vector.broadcast %cst_147 : f32 to vector<1x128xf32>
    %c0_148 = arith.constant 0 : index
    %c0_149 = arith.constant 0 : index
    %309 = vector.load %arg10[%c0_148, %c0_149] : memref<1x128xf32, #tpu.memory_space<vmem>>, vector<1x128xf32>
    tpu.vector_store %arg10[%c0_148, %c0_149], %308 {strides = array<i32>} : memref<1x128xf32, #tpu.memory_space<vmem>>, vector<1x128xf32>,
    %c1_150 = arith.constant 1 : index
    %c0_151 = arith.constant 0 : index
    %c0_152 = arith.constant 0 : index
    %310 = vector.load %arg2[%c1_150, %c0_151, %c0_152] : memref<3x128x512xf32, #tpu.memory_space<vmem>>, vector<1x128x512xf32>
    %311 = vector.shape_cast %310 : vector<1x128x512xf32> to vector<128x512xf32>
    %c0_i32_153 = arith.constant 0 : i32
    %312 = arith.index_cast %c0_i32_153 : i32 to index
    %c0_154 = arith.constant 0 : index
    %313 = vector.load %arg8[%312, %c0_154] : memref<8x512xf32, #tpu.memory_space<vmem>>, vector<1x512xf32>
    %c0_155 = arith.constant 0 : index
    %c0_156 = arith.constant 0 : index
    %314 = vector.load %arg9[%c0_155, %c0_156] : memref<1x128xf32, #tpu.memory_space<vmem>>, vector<1x128xf32>
    %cst_157 = arith.constant dense<0.000000e+00> : vector<1x512xf32>
    %315 = tpu.matmul %314, %311, %cst_157 {dimension_numbers = #tpu.dot_dimension_numbers<[1], [0], [0], [1], [0, 0, 1, 1], [], []>} : vector<1x128xf32>, vector<128x512xf32>, vector<1x512xf32> -> vector<1x512xf32>
    %316 = arith.addf %313, %315 : vector<1x512xf32>
    %317 = vector.extract_strided_slice %316 {offsets = [0, 0], sizes = [1, 128], strides = [1, 1]} : vector<1x512xf32> to vector<1x128xf32>
    %318 = arith.negf %317 : vector<1x128xf32>
    %319 = math.exp %318 : vector<1x128xf32>
    %cst_158 = arith.constant 1.000000e+00 : f32
    %320 = vector.broadcast %cst_158 : f32 to vector<1x128xf32>
    %321 = arith.addf %320, %319 : vector<1x128xf32>
    %322 = arith.divf %320, %321 : vector<1x128xf32>
    %323 = vector.extract_strided_slice %316 {offsets = [0, 128], sizes = [1, 128], strides = [1, 1]} : vector<1x512xf32> to vector<1x128xf32>
    %324 = arith.negf %323 : vector<1x128xf32>
    %325 = math.exp %324 : vector<1x128xf32>
    %cst_159 = arith.constant 1.000000e+00 : f32
    %326 = vector.broadcast %cst_159 : f32 to vector<1x128xf32>
    %327 = arith.addf %326, %325 : vector<1x128xf32>
    %328 = arith.divf %326, %327 : vector<1x128xf32>
    %329 = vector.extract_strided_slice %316 {offsets = [0, 256], sizes = [1, 128], strides = [1, 1]} : vector<1x512xf32> to vector<1x128xf32>
    %330 = math.tanh %329 : vector<1x128xf32>
    %331 = vector.extract_strided_slice %316 {offsets = [0, 384], sizes = [1, 128], strides = [1, 1]} : vector<1x512xf32> to vector<1x128xf32>
    %332 = arith.negf %331 : vector<1x128xf32>
    %333 = math.exp %332 : vector<1x128xf32>
    %cst_160 = arith.constant 1.000000e+00 : f32
    %334 = vector.broadcast %cst_160 : f32 to vector<1x128xf32>
    %335 = arith.addf %334, %333 : vector<1x128xf32>
    %336 = arith.divf %334, %335 : vector<1x128xf32>
    %c0_161 = arith.constant 0 : index
    %c0_162 = arith.constant 0 : index
    %337 = vector.load %arg10[%c0_161, %c0_162] : memref<1x128xf32, #tpu.memory_space<vmem>>, vector<1x128xf32>
    %338 = arith.mulf %328, %337 : vector<1x128xf32>
    %339 = arith.mulf %322, %330 : vector<1x128xf32>
    %340 = arith.addf %338, %339 : vector<1x128xf32>
    %341 = math.tanh %340 : vector<1x128xf32>
    %342 = arith.mulf %336, %341 : vector<1x128xf32>
    %c0_163 = arith.constant 0 : index
    %c0_164 = arith.constant 0 : index
    %343 = vector.load %arg10[%c0_163, %c0_164] : memref<1x128xf32, #tpu.memory_space<vmem>>, vector<1x128xf32>
    tpu.vector_store %arg10[%c0_163, %c0_164], %340 {strides = array<i32>} : memref<1x128xf32, #tpu.memory_space<vmem>>, vector<1x128xf32>,
    %c0_165 = arith.constant 0 : index
    %c0_166 = arith.constant 0 : index
    %344 = vector.load %arg9[%c0_165, %c0_166] : memref<1x128xf32, #tpu.memory_space<vmem>>, vector<1x128xf32>
    tpu.vector_store %arg9[%c0_165, %c0_166], %342 {strides = array<i32>} : memref<1x128xf32, #tpu.memory_space<vmem>>, vector<1x128xf32>,
    %345 = arith.index_cast %c0_i32_153 : i32 to index
    %c0_167 = arith.constant 0 : index
    %346 = vector.load %arg7[%345, %c0_167] : memref<8x128xf32, #tpu.memory_space<vmem>>, vector<1x128xf32>
    tpu.vector_store %arg7[%345, %c0_167], %342 {strides = array<i32>} : memref<8x128xf32, #tpu.memory_space<vmem>>, vector<1x128xf32>,
    %c1_i32_168 = arith.constant 1 : i32
    %347 = arith.index_cast %c1_i32_168 : i32 to index
    %c0_169 = arith.constant 0 : index
    %348 = vector.load %arg8[%347, %c0_169] : memref<8x512xf32, #tpu.memory_space<vmem>>, vector<1x512xf32>
    %c0_170 = arith.constant 0 : index
    %c0_171 = arith.constant 0 : index
    %349 = vector.load %arg9[%c0_170, %c0_171] : memref<1x128xf32, #tpu.memory_space<vmem>>, vector<1x128xf32>
    %cst_172 = arith.constant dense<0.000000e+00> : vector<1x512xf32>
    %350 = tpu.matmul %349, %311, %cst_172 {dimension_numbers = #tpu.dot_dimension_numbers<[1], [0], [0], [1], [0, 0, 1, 1], [], []>} : vector<1x128xf32>, vector<128x512xf32>, vector<1x512xf32> -> vector<1x512xf32>
    %351 = arith.addf %348, %350 : vector<1x512xf32>
    %352 = vector.extract_strided_slice %351 {offsets = [0, 0], sizes = [1, 128], strides = [1, 1]} : vector<1x512xf32> to vector<1x128xf32>
    %353 = arith.negf %352 : vector<1x128xf32>
    %354 = math.exp %353 : vector<1x128xf32>
    %cst_173 = arith.constant 1.000000e+00 : f32
    %355 = vector.broadcast %cst_173 : f32 to vector<1x128xf32>
    %356 = arith.addf %355, %354 : vector<1x128xf32>
    %357 = arith.divf %355, %356 : vector<1x128xf32>
    %358 = vector.extract_strided_slice %351 {offsets = [0, 128], sizes = [1, 128], strides = [1, 1]} : vector<1x512xf32> to vector<1x128xf32>
    %359 = arith.negf %358 : vector<1x128xf32>
    %360 = math.exp %359 : vector<1x128xf32>
    %cst_174 = arith.constant 1.000000e+00 : f32
    %361 = vector.broadcast %cst_174 : f32 to vector<1x128xf32>
    %362 = arith.addf %361, %360 : vector<1x128xf32>
    %363 = arith.divf %361, %362 : vector<1x128xf32>
    %364 = vector.extract_strided_slice %351 {offsets = [0, 256], sizes = [1, 128], strides = [1, 1]} : vector<1x512xf32> to vector<1x128xf32>
    %365 = math.tanh %364 : vector<1x128xf32>
    %366 = vector.extract_strided_slice %351 {offsets = [0, 384], sizes = [1, 128], strides = [1, 1]} : vector<1x512xf32> to vector<1x128xf32>
    %367 = arith.negf %366 : vector<1x128xf32>
    %368 = math.exp %367 : vector<1x128xf32>
    %cst_175 = arith.constant 1.000000e+00 : f32
    %369 = vector.broadcast %cst_175 : f32 to vector<1x128xf32>
    %370 = arith.addf %369, %368 : vector<1x128xf32>
    %371 = arith.divf %369, %370 : vector<1x128xf32>
    %c0_176 = arith.constant 0 : index
    %c0_177 = arith.constant 0 : index
    %372 = vector.load %arg10[%c0_176, %c0_177] : memref<1x128xf32, #tpu.memory_space<vmem>>, vector<1x128xf32>
    %373 = arith.mulf %363, %372 : vector<1x128xf32>
    %374 = arith.mulf %357, %365 : vector<1x128xf32>
    %375 = arith.addf %373, %374 : vector<1x128xf32>
    %376 = math.tanh %375 : vector<1x128xf32>
    %377 = arith.mulf %371, %376 : vector<1x128xf32>
    %c0_178 = arith.constant 0 : index
    %c0_179 = arith.constant 0 : index
    %378 = vector.load %arg10[%c0_178, %c0_179] : memref<1x128xf32, #tpu.memory_space<vmem>>, vector<1x128xf32>
    tpu.vector_store %arg10[%c0_178, %c0_179], %375 {strides = array<i32>} : memref<1x128xf32, #tpu.memory_space<vmem>>, vector<1x128xf32>,
    %c0_180 = arith.constant 0 : index
    %c0_181 = arith.constant 0 : index
    %379 = vector.load %arg9[%c0_180, %c0_181] : memref<1x128xf32, #tpu.memory_space<vmem>>, vector<1x128xf32>
    tpu.vector_store %arg9[%c0_180, %c0_181], %377 {strides = array<i32>} : memref<1x128xf32, #tpu.memory_space<vmem>>, vector<1x128xf32>,
    %380 = arith.index_cast %c1_i32_168 : i32 to index
    %c0_182 = arith.constant 0 : index
    %381 = vector.load %arg7[%380, %c0_182] : memref<8x128xf32, #tpu.memory_space<vmem>>, vector<1x128xf32>
    tpu.vector_store %arg7[%380, %c0_182], %377 {strides = array<i32>} : memref<8x128xf32, #tpu.memory_space<vmem>>, vector<1x128xf32>,
    %c2_i32_183 = arith.constant 2 : i32
    %382 = arith.index_cast %c2_i32_183 : i32 to index
    %c0_184 = arith.constant 0 : index
    %383 = vector.load %arg8[%382, %c0_184] : memref<8x512xf32, #tpu.memory_space<vmem>>, vector<1x512xf32>
    %c0_185 = arith.constant 0 : index
    %c0_186 = arith.constant 0 : index
    %384 = vector.load %arg9[%c0_185, %c0_186] : memref<1x128xf32, #tpu.memory_space<vmem>>, vector<1x128xf32>
    %cst_187 = arith.constant dense<0.000000e+00> : vector<1x512xf32>
    %385 = tpu.matmul %384, %311, %cst_187 {dimension_numbers = #tpu.dot_dimension_numbers<[1], [0], [0], [1], [0, 0, 1, 1], [], []>} : vector<1x128xf32>, vector<128x512xf32>, vector<1x512xf32> -> vector<1x512xf32>
    %386 = arith.addf %383, %385 : vector<1x512xf32>
    %387 = vector.extract_strided_slice %386 {offsets = [0, 0], sizes = [1, 128], strides = [1, 1]} : vector<1x512xf32> to vector<1x128xf32>
    %388 = arith.negf %387 : vector<1x128xf32>
    %389 = math.exp %388 : vector<1x128xf32>
    %cst_188 = arith.constant 1.000000e+00 : f32
    %390 = vector.broadcast %cst_188 : f32 to vector<1x128xf32>
    %391 = arith.addf %390, %389 : vector<1x128xf32>
    %392 = arith.divf %390, %391 : vector<1x128xf32>
    %393 = vector.extract_strided_slice %386 {offsets = [0, 128], sizes = [1, 128], strides = [1, 1]} : vector<1x512xf32> to vector<1x128xf32>
    %394 = arith.negf %393 : vector<1x128xf32>
    %395 = math.exp %394 : vector<1x128xf32>
    %cst_189 = arith.constant 1.000000e+00 : f32
    %396 = vector.broadcast %cst_189 : f32 to vector<1x128xf32>
    %397 = arith.addf %396, %395 : vector<1x128xf32>
    %398 = arith.divf %396, %397 : vector<1x128xf32>
    %399 = vector.extract_strided_slice %386 {offsets = [0, 256], sizes = [1, 128], strides = [1, 1]} : vector<1x512xf32> to vector<1x128xf32>
    %400 = math.tanh %399 : vector<1x128xf32>
    %401 = vector.extract_strided_slice %386 {offsets = [0, 384], sizes = [1, 128], strides = [1, 1]} : vector<1x512xf32> to vector<1x128xf32>
    %402 = arith.negf %401 : vector<1x128xf32>
    %403 = math.exp %402 : vector<1x128xf32>
    %cst_190 = arith.constant 1.000000e+00 : f32
    %404 = vector.broadcast %cst_190 : f32 to vector<1x128xf32>
    %405 = arith.addf %404, %403 : vector<1x128xf32>
    %406 = arith.divf %404, %405 : vector<1x128xf32>
    %c0_191 = arith.constant 0 : index
    %c0_192 = arith.constant 0 : index
    %407 = vector.load %arg10[%c0_191, %c0_192] : memref<1x128xf32, #tpu.memory_space<vmem>>, vector<1x128xf32>
    %408 = arith.mulf %398, %407 : vector<1x128xf32>
    %409 = arith.mulf %392, %400 : vector<1x128xf32>
    %410 = arith.addf %408, %409 : vector<1x128xf32>
    %411 = math.tanh %410 : vector<1x128xf32>
    %412 = arith.mulf %406, %411 : vector<1x128xf32>
    %c0_193 = arith.constant 0 : index
    %c0_194 = arith.constant 0 : index
    %413 = vector.load %arg10[%c0_193, %c0_194] : memref<1x128xf32, #tpu.memory_space<vmem>>, vector<1x128xf32>
    tpu.vector_store %arg10[%c0_193, %c0_194], %410 {strides = array<i32>} : memref<1x128xf32, #tpu.memory_space<vmem>>, vector<1x128xf32>,
    %c0_195 = arith.constant 0 : index
    %c0_196 = arith.constant 0 : index
    %414 = vector.load %arg9[%c0_195, %c0_196] : memref<1x128xf32, #tpu.memory_space<vmem>>, vector<1x128xf32>
    tpu.vector_store %arg9[%c0_195, %c0_196], %412 {strides = array<i32>} : memref<1x128xf32, #tpu.memory_space<vmem>>, vector<1x128xf32>,
    %415 = arith.index_cast %c2_i32_183 : i32 to index
    %c0_197 = arith.constant 0 : index
    %416 = vector.load %arg7[%415, %c0_197] : memref<8x128xf32, #tpu.memory_space<vmem>>, vector<1x128xf32>
    tpu.vector_store %arg7[%415, %c0_197], %412 {strides = array<i32>} : memref<8x128xf32, #tpu.memory_space<vmem>>, vector<1x128xf32>,
    %c3_i32_198 = arith.constant 3 : i32
    %417 = arith.index_cast %c3_i32_198 : i32 to index
    %c0_199 = arith.constant 0 : index
    %418 = vector.load %arg8[%417, %c0_199] : memref<8x512xf32, #tpu.memory_space<vmem>>, vector<1x512xf32>
    %c0_200 = arith.constant 0 : index
    %c0_201 = arith.constant 0 : index
    %419 = vector.load %arg9[%c0_200, %c0_201] : memref<1x128xf32, #tpu.memory_space<vmem>>, vector<1x128xf32>
    %cst_202 = arith.constant dense<0.000000e+00> : vector<1x512xf32>
    %420 = tpu.matmul %419, %311, %cst_202 {dimension_numbers = #tpu.dot_dimension_numbers<[1], [0], [0], [1], [0, 0, 1, 1], [], []>} : vector<1x128xf32>, vector<128x512xf32>, vector<1x512xf32> -> vector<1x512xf32>
    %421 = arith.addf %418, %420 : vector<1x512xf32>
    %422 = vector.extract_strided_slice %421 {offsets = [0, 0], sizes = [1, 128], strides = [1, 1]} : vector<1x512xf32> to vector<1x128xf32>
    %423 = arith.negf %422 : vector<1x128xf32>
    %424 = math.exp %423 : vector<1x128xf32>
    %cst_203 = arith.constant 1.000000e+00 : f32
    %425 = vector.broadcast %cst_203 : f32 to vector<1x128xf32>
    %426 = arith.addf %425, %424 : vector<1x128xf32>
    %427 = arith.divf %425, %426 : vector<1x128xf32>
    %428 = vector.extract_strided_slice %421 {offsets = [0, 128], sizes = [1, 128], strides = [1, 1]} : vector<1x512xf32> to vector<1x128xf32>
    %429 = arith.negf %428 : vector<1x128xf32>
    %430 = math.exp %429 : vector<1x128xf32>
    %cst_204 = arith.constant 1.000000e+00 : f32
    %431 = vector.broadcast %cst_204 : f32 to vector<1x128xf32>
    %432 = arith.addf %431, %430 : vector<1x128xf32>
    %433 = arith.divf %431, %432 : vector<1x128xf32>
    %434 = vector.extract_strided_slice %421 {offsets = [0, 256], sizes = [1, 128], strides = [1, 1]} : vector<1x512xf32> to vector<1x128xf32>
    %435 = math.tanh %434 : vector<1x128xf32>
    %436 = vector.extract_strided_slice %421 {offsets = [0, 384], sizes = [1, 128], strides = [1, 1]} : vector<1x512xf32> to vector<1x128xf32>
    %437 = arith.negf %436 : vector<1x128xf32>
    %438 = math.exp %437 : vector<1x128xf32>
    %cst_205 = arith.constant 1.000000e+00 : f32
    %439 = vector.broadcast %cst_205 : f32 to vector<1x128xf32>
    %440 = arith.addf %439, %438 : vector<1x128xf32>
    %441 = arith.divf %439, %440 : vector<1x128xf32>
    %c0_206 = arith.constant 0 : index
    %c0_207 = arith.constant 0 : index
    %442 = vector.load %arg10[%c0_206, %c0_207] : memref<1x128xf32, #tpu.memory_space<vmem>>, vector<1x128xf32>
    %443 = arith.mulf %433, %442 : vector<1x128xf32>
    %444 = arith.mulf %427, %435 : vector<1x128xf32>
    %445 = arith.addf %443, %444 : vector<1x128xf32>
    %446 = math.tanh %445 : vector<1x128xf32>
    %447 = arith.mulf %441, %446 : vector<1x128xf32>
    %c0_208 = arith.constant 0 : index
    %c0_209 = arith.constant 0 : index
    %448 = vector.load %arg10[%c0_208, %c0_209] : memref<1x128xf32, #tpu.memory_space<vmem>>, vector<1x128xf32>
    tpu.vector_store %arg10[%c0_208, %c0_209], %445 {strides = array<i32>} : memref<1x128xf32, #tpu.memory_space<vmem>>, vector<1x128xf32>,
    %c0_210 = arith.constant 0 : index
    %c0_211 = arith.constant 0 : index
    %449 = vector.load %arg9[%c0_210, %c0_211] : memref<1x128xf32, #tpu.memory_space<vmem>>, vector<1x128xf32>
    tpu.vector_store %arg9[%c0_210, %c0_211], %447 {strides = array<i32>} : memref<1x128xf32, #tpu.memory_space<vmem>>, vector<1x128xf32>,
    %450 = arith.index_cast %c3_i32_198 : i32 to index
    %c0_212 = arith.constant 0 : index
    %451 = vector.load %arg7[%450, %c0_212] : memref<8x128xf32, #tpu.memory_space<vmem>>, vector<1x128xf32>
    tpu.vector_store %arg7[%450, %c0_212], %447 {strides = array<i32>} : memref<8x128xf32, #tpu.memory_space<vmem>>, vector<1x128xf32>,
    %c4_i32_213 = arith.constant 4 : i32
    %452 = arith.index_cast %c4_i32_213 : i32 to index
    %c0_214 = arith.constant 0 : index
    %453 = vector.load %arg8[%452, %c0_214] : memref<8x512xf32, #tpu.memory_space<vmem>>, vector<1x512xf32>
    %c0_215 = arith.constant 0 : index
    %c0_216 = arith.constant 0 : index
    %454 = vector.load %arg9[%c0_215, %c0_216] : memref<1x128xf32, #tpu.memory_space<vmem>>, vector<1x128xf32>
    %cst_217 = arith.constant dense<0.000000e+00> : vector<1x512xf32>
    %455 = tpu.matmul %454, %311, %cst_217 {dimension_numbers = #tpu.dot_dimension_numbers<[1], [0], [0], [1], [0, 0, 1, 1], [], []>} : vector<1x128xf32>, vector<128x512xf32>, vector<1x512xf32> -> vector<1x512xf32>
    %456 = arith.addf %453, %455 : vector<1x512xf32>
    %457 = vector.extract_strided_slice %456 {offsets = [0, 0], sizes = [1, 128], strides = [1, 1]} : vector<1x512xf32> to vector<1x128xf32>
    %458 = arith.negf %457 : vector<1x128xf32>
    %459 = math.exp %458 : vector<1x128xf32>
    %cst_218 = arith.constant 1.000000e+00 : f32
    %460 = vector.broadcast %cst_218 : f32 to vector<1x128xf32>
    %461 = arith.addf %460, %459 : vector<1x128xf32>
    %462 = arith.divf %460, %461 : vector<1x128xf32>
    %463 = vector.extract_strided_slice %456 {offsets = [0, 128], sizes = [1, 128], strides = [1, 1]} : vector<1x512xf32> to vector<1x128xf32>
    %464 = arith.negf %463 : vector<1x128xf32>
    %465 = math.exp %464 : vector<1x128xf32>
    %cst_219 = arith.constant 1.000000e+00 : f32
    %466 = vector.broadcast %cst_219 : f32 to vector<1x128xf32>
    %467 = arith.addf %466, %465 : vector<1x128xf32>
    %468 = arith.divf %466, %467 : vector<1x128xf32>
    %469 = vector.extract_strided_slice %456 {offsets = [0, 256], sizes = [1, 128], strides = [1, 1]} : vector<1x512xf32> to vector<1x128xf32>
    %470 = math.tanh %469 : vector<1x128xf32>
    %471 = vector.extract_strided_slice %456 {offsets = [0, 384], sizes = [1, 128], strides = [1, 1]} : vector<1x512xf32> to vector<1x128xf32>
    %472 = arith.negf %471 : vector<1x128xf32>
    %473 = math.exp %472 : vector<1x128xf32>
    %cst_220 = arith.constant 1.000000e+00 : f32
    %474 = vector.broadcast %cst_220 : f32 to vector<1x128xf32>
    %475 = arith.addf %474, %473 : vector<1x128xf32>
    %476 = arith.divf %474, %475 : vector<1x128xf32>
    %c0_221 = arith.constant 0 : index
    %c0_222 = arith.constant 0 : index
    %477 = vector.load %arg10[%c0_221, %c0_222] : memref<1x128xf32, #tpu.memory_space<vmem>>, vector<1x128xf32>
    %478 = arith.mulf %468, %477 : vector<1x128xf32>
    %479 = arith.mulf %462, %470 : vector<1x128xf32>
    %480 = arith.addf %478, %479 : vector<1x128xf32>
    %481 = math.tanh %480 : vector<1x128xf32>
    %482 = arith.mulf %476, %481 : vector<1x128xf32>
    %c0_223 = arith.constant 0 : index
    %c0_224 = arith.constant 0 : index
    %483 = vector.load %arg10[%c0_223, %c0_224] : memref<1x128xf32, #tpu.memory_space<vmem>>, vector<1x128xf32>
    tpu.vector_store %arg10[%c0_223, %c0_224], %480 {strides = array<i32>} : memref<1x128xf32, #tpu.memory_space<vmem>>, vector<1x128xf32>,
    %c0_225 = arith.constant 0 : index
    %c0_226 = arith.constant 0 : index
    %484 = vector.load %arg9[%c0_225, %c0_226] : memref<1x128xf32, #tpu.memory_space<vmem>>, vector<1x128xf32>
    tpu.vector_store %arg9[%c0_225, %c0_226], %482 {strides = array<i32>} : memref<1x128xf32, #tpu.memory_space<vmem>>, vector<1x128xf32>,
    %485 = arith.index_cast %c4_i32_213 : i32 to index
    %c0_227 = arith.constant 0 : index
    %486 = vector.load %arg7[%485, %c0_227] : memref<8x128xf32, #tpu.memory_space<vmem>>, vector<1x128xf32>
    tpu.vector_store %arg7[%485, %c0_227], %482 {strides = array<i32>} : memref<8x128xf32, #tpu.memory_space<vmem>>, vector<1x128xf32>,
    %c5_i32_228 = arith.constant 5 : i32
    %487 = arith.index_cast %c5_i32_228 : i32 to index
    %c0_229 = arith.constant 0 : index
    %488 = vector.load %arg8[%487, %c0_229] : memref<8x512xf32, #tpu.memory_space<vmem>>, vector<1x512xf32>
    %c0_230 = arith.constant 0 : index
    %c0_231 = arith.constant 0 : index
    %489 = vector.load %arg9[%c0_230, %c0_231] : memref<1x128xf32, #tpu.memory_space<vmem>>, vector<1x128xf32>
    %cst_232 = arith.constant dense<0.000000e+00> : vector<1x512xf32>
    %490 = tpu.matmul %489, %311, %cst_232 {dimension_numbers = #tpu.dot_dimension_numbers<[1], [0], [0], [1], [0, 0, 1, 1], [], []>} : vector<1x128xf32>, vector<128x512xf32>, vector<1x512xf32> -> vector<1x512xf32>
    %491 = arith.addf %488, %490 : vector<1x512xf32>
    %492 = vector.extract_strided_slice %491 {offsets = [0, 0], sizes = [1, 128], strides = [1, 1]} : vector<1x512xf32> to vector<1x128xf32>
    %493 = arith.negf %492 : vector<1x128xf32>
    %494 = math.exp %493 : vector<1x128xf32>
    %cst_233 = arith.constant 1.000000e+00 : f32
    %495 = vector.broadcast %cst_233 : f32 to vector<1x128xf32>
    %496 = arith.addf %495, %494 : vector<1x128xf32>
    %497 = arith.divf %495, %496 : vector<1x128xf32>
    %498 = vector.extract_strided_slice %491 {offsets = [0, 128], sizes = [1, 128], strides = [1, 1]} : vector<1x512xf32> to vector<1x128xf32>
    %499 = arith.negf %498 : vector<1x128xf32>
    %500 = math.exp %499 : vector<1x128xf32>
    %cst_234 = arith.constant 1.000000e+00 : f32
    %501 = vector.broadcast %cst_234 : f32 to vector<1x128xf32>
    %502 = arith.addf %501, %500 : vector<1x128xf32>
    %503 = arith.divf %501, %502 : vector<1x128xf32>
    %504 = vector.extract_strided_slice %491 {offsets = [0, 256], sizes = [1, 128], strides = [1, 1]} : vector<1x512xf32> to vector<1x128xf32>
    %505 = math.tanh %504 : vector<1x128xf32>
    %506 = vector.extract_strided_slice %491 {offsets = [0, 384], sizes = [1, 128], strides = [1, 1]} : vector<1x512xf32> to vector<1x128xf32>
    %507 = arith.negf %506 : vector<1x128xf32>
    %508 = math.exp %507 : vector<1x128xf32>
    %cst_235 = arith.constant 1.000000e+00 : f32
    %509 = vector.broadcast %cst_235 : f32 to vector<1x128xf32>
    %510 = arith.addf %509, %508 : vector<1x128xf32>
    %511 = arith.divf %509, %510 : vector<1x128xf32>
    %c0_236 = arith.constant 0 : index
    %c0_237 = arith.constant 0 : index
    %512 = vector.load %arg10[%c0_236, %c0_237] : memref<1x128xf32, #tpu.memory_space<vmem>>, vector<1x128xf32>
    %513 = arith.mulf %503, %512 : vector<1x128xf32>
    %514 = arith.mulf %497, %505 : vector<1x128xf32>
    %515 = arith.addf %513, %514 : vector<1x128xf32>
    %516 = math.tanh %515 : vector<1x128xf32>
    %517 = arith.mulf %511, %516 : vector<1x128xf32>
    %c0_238 = arith.constant 0 : index
    %c0_239 = arith.constant 0 : index
    %518 = vector.load %arg10[%c0_238, %c0_239] : memref<1x128xf32, #tpu.memory_space<vmem>>, vector<1x128xf32>
    tpu.vector_store %arg10[%c0_238, %c0_239], %515 {strides = array<i32>} : memref<1x128xf32, #tpu.memory_space<vmem>>, vector<1x128xf32>,
    %c0_240 = arith.constant 0 : index
    %c0_241 = arith.constant 0 : index
    %519 = vector.load %arg9[%c0_240, %c0_241] : memref<1x128xf32, #tpu.memory_space<vmem>>, vector<1x128xf32>
    tpu.vector_store %arg9[%c0_240, %c0_241], %517 {strides = array<i32>} : memref<1x128xf32, #tpu.memory_space<vmem>>, vector<1x128xf32>,
    %520 = arith.index_cast %c5_i32_228 : i32 to index
    %c0_242 = arith.constant 0 : index
    %521 = vector.load %arg7[%520, %c0_242] : memref<8x128xf32, #tpu.memory_space<vmem>>, vector<1x128xf32>
    tpu.vector_store %arg7[%520, %c0_242], %517 {strides = array<i32>} : memref<8x128xf32, #tpu.memory_space<vmem>>, vector<1x128xf32>,
    %c6_i32_243 = arith.constant 6 : i32
    %522 = arith.index_cast %c6_i32_243 : i32 to index
    %c0_244 = arith.constant 0 : index
    %523 = vector.load %arg8[%522, %c0_244] : memref<8x512xf32, #tpu.memory_space<vmem>>, vector<1x512xf32>
    %c0_245 = arith.constant 0 : index
    %c0_246 = arith.constant 0 : index
    %524 = vector.load %arg9[%c0_245, %c0_246] : memref<1x128xf32, #tpu.memory_space<vmem>>, vector<1x128xf32>
    %cst_247 = arith.constant dense<0.000000e+00> : vector<1x512xf32>
    %525 = tpu.matmul %524, %311, %cst_247 {dimension_numbers = #tpu.dot_dimension_numbers<[1], [0], [0], [1], [0, 0, 1, 1], [], []>} : vector<1x128xf32>, vector<128x512xf32>, vector<1x512xf32> -> vector<1x512xf32>
    %526 = arith.addf %523, %525 : vector<1x512xf32>
    %527 = vector.extract_strided_slice %526 {offsets = [0, 0], sizes = [1, 128], strides = [1, 1]} : vector<1x512xf32> to vector<1x128xf32>
    %528 = arith.negf %527 : vector<1x128xf32>
    %529 = math.exp %528 : vector<1x128xf32>
    %cst_248 = arith.constant 1.000000e+00 : f32
    %530 = vector.broadcast %cst_248 : f32 to vector<1x128xf32>
    %531 = arith.addf %530, %529 : vector<1x128xf32>
    %532 = arith.divf %530, %531 : vector<1x128xf32>
    %533 = vector.extract_strided_slice %526 {offsets = [0, 128], sizes = [1, 128], strides = [1, 1]} : vector<1x512xf32> to vector<1x128xf32>
    %534 = arith.negf %533 : vector<1x128xf32>
    %535 = math.exp %534 : vector<1x128xf32>
    %cst_249 = arith.constant 1.000000e+00 : f32
    %536 = vector.broadcast %cst_249 : f32 to vector<1x128xf32>
    %537 = arith.addf %536, %535 : vector<1x128xf32>
    %538 = arith.divf %536, %537 : vector<1x128xf32>
    %539 = vector.extract_strided_slice %526 {offsets = [0, 256], sizes = [1, 128], strides = [1, 1]} : vector<1x512xf32> to vector<1x128xf32>
    %540 = math.tanh %539 : vector<1x128xf32>
    %541 = vector.extract_strided_slice %526 {offsets = [0, 384], sizes = [1, 128], strides = [1, 1]} : vector<1x512xf32> to vector<1x128xf32>
    %542 = arith.negf %541 : vector<1x128xf32>
    %543 = math.exp %542 : vector<1x128xf32>
    %cst_250 = arith.constant 1.000000e+00 : f32
    %544 = vector.broadcast %cst_250 : f32 to vector<1x128xf32>
    %545 = arith.addf %544, %543 : vector<1x128xf32>
    %546 = arith.divf %544, %545 : vector<1x128xf32>
    %c0_251 = arith.constant 0 : index
    %c0_252 = arith.constant 0 : index
    %547 = vector.load %arg10[%c0_251, %c0_252] : memref<1x128xf32, #tpu.memory_space<vmem>>, vector<1x128xf32>
    %548 = arith.mulf %538, %547 : vector<1x128xf32>
    %549 = arith.mulf %532, %540 : vector<1x128xf32>
    %550 = arith.addf %548, %549 : vector<1x128xf32>
    %551 = math.tanh %550 : vector<1x128xf32>
    %552 = arith.mulf %546, %551 : vector<1x128xf32>
    %c0_253 = arith.constant 0 : index
    %c0_254 = arith.constant 0 : index
    %553 = vector.load %arg10[%c0_253, %c0_254] : memref<1x128xf32, #tpu.memory_space<vmem>>, vector<1x128xf32>
    tpu.vector_store %arg10[%c0_253, %c0_254], %550 {strides = array<i32>} : memref<1x128xf32, #tpu.memory_space<vmem>>, vector<1x128xf32>,
    %c0_255 = arith.constant 0 : index
    %c0_256 = arith.constant 0 : index
    %554 = vector.load %arg9[%c0_255, %c0_256] : memref<1x128xf32, #tpu.memory_space<vmem>>, vector<1x128xf32>
    tpu.vector_store %arg9[%c0_255, %c0_256], %552 {strides = array<i32>} : memref<1x128xf32, #tpu.memory_space<vmem>>, vector<1x128xf32>,
    %555 = arith.index_cast %c6_i32_243 : i32 to index
    %c0_257 = arith.constant 0 : index
    %556 = vector.load %arg7[%555, %c0_257] : memref<8x128xf32, #tpu.memory_space<vmem>>, vector<1x128xf32>
    tpu.vector_store %arg7[%555, %c0_257], %552 {strides = array<i32>} : memref<8x128xf32, #tpu.memory_space<vmem>>, vector<1x128xf32>,
    %c7_i32_258 = arith.constant 7 : i32
    %557 = arith.index_cast %c7_i32_258 : i32 to index
    %c0_259 = arith.constant 0 : index
    %558 = vector.load %arg8[%557, %c0_259] : memref<8x512xf32, #tpu.memory_space<vmem>>, vector<1x512xf32>
    %c0_260 = arith.constant 0 : index
    %c0_261 = arith.constant 0 : index
    %559 = vector.load %arg9[%c0_260, %c0_261] : memref<1x128xf32, #tpu.memory_space<vmem>>, vector<1x128xf32>
    %cst_262 = arith.constant dense<0.000000e+00> : vector<1x512xf32>
    %560 = tpu.matmul %559, %311, %cst_262 {dimension_numbers = #tpu.dot_dimension_numbers<[1], [0], [0], [1], [0, 0, 1, 1], [], []>} : vector<1x128xf32>, vector<128x512xf32>, vector<1x512xf32> -> vector<1x512xf32>
    %561 = arith.addf %558, %560 : vector<1x512xf32>
    %562 = vector.extract_strided_slice %561 {offsets = [0, 0], sizes = [1, 128], strides = [1, 1]} : vector<1x512xf32> to vector<1x128xf32>
    %563 = arith.negf %562 : vector<1x128xf32>
    %564 = math.exp %563 : vector<1x128xf32>
    %cst_263 = arith.constant 1.000000e+00 : f32
    %565 = vector.broadcast %cst_263 : f32 to vector<1x128xf32>
    %566 = arith.addf %565, %564 : vector<1x128xf32>
    %567 = arith.divf %565, %566 : vector<1x128xf32>
    %568 = vector.extract_strided_slice %561 {offsets = [0, 128], sizes = [1, 128], strides = [1, 1]} : vector<1x512xf32> to vector<1x128xf32>
    %569 = arith.negf %568 : vector<1x128xf32>
    %570 = math.exp %569 : vector<1x128xf32>
    %cst_264 = arith.constant 1.000000e+00 : f32
    %571 = vector.broadcast %cst_264 : f32 to vector<1x128xf32>
    %572 = arith.addf %571, %570 : vector<1x128xf32>
    %573 = arith.divf %571, %572 : vector<1x128xf32>
    %574 = vector.extract_strided_slice %561 {offsets = [0, 256], sizes = [1, 128], strides = [1, 1]} : vector<1x512xf32> to vector<1x128xf32>
    %575 = math.tanh %574 : vector<1x128xf32>
    %576 = vector.extract_strided_slice %561 {offsets = [0, 384], sizes = [1, 128], strides = [1, 1]} : vector<1x512xf32> to vector<1x128xf32>
    %577 = arith.negf %576 : vector<1x128xf32>
    %578 = math.exp %577 : vector<1x128xf32>
    %cst_265 = arith.constant 1.000000e+00 : f32
    %579 = vector.broadcast %cst_265 : f32 to vector<1x128xf32>
    %580 = arith.addf %579, %578 : vector<1x128xf32>
    %581 = arith.divf %579, %580 : vector<1x128xf32>
    %c0_266 = arith.constant 0 : index
    %c0_267 = arith.constant 0 : index
    %582 = vector.load %arg10[%c0_266, %c0_267] : memref<1x128xf32, #tpu.memory_space<vmem>>, vector<1x128xf32>
    %583 = arith.mulf %573, %582 : vector<1x128xf32>
    %584 = arith.mulf %567, %575 : vector<1x128xf32>
    %585 = arith.addf %583, %584 : vector<1x128xf32>
    %586 = math.tanh %585 : vector<1x128xf32>
    %587 = arith.mulf %581, %586 : vector<1x128xf32>
    %c0_268 = arith.constant 0 : index
    %c0_269 = arith.constant 0 : index
    %588 = vector.load %arg10[%c0_268, %c0_269] : memref<1x128xf32, #tpu.memory_space<vmem>>, vector<1x128xf32>
    tpu.vector_store %arg10[%c0_268, %c0_269], %585 {strides = array<i32>} : memref<1x128xf32, #tpu.memory_space<vmem>>, vector<1x128xf32>,
    %c0_270 = arith.constant 0 : index
    %c0_271 = arith.constant 0 : index
    %589 = vector.load %arg9[%c0_270, %c0_271] : memref<1x128xf32, #tpu.memory_space<vmem>>, vector<1x128xf32>
    tpu.vector_store %arg9[%c0_270, %c0_271], %587 {strides = array<i32>} : memref<1x128xf32, #tpu.memory_space<vmem>>, vector<1x128xf32>,
    %590 = arith.index_cast %c7_i32_258 : i32 to index
    %c0_272 = arith.constant 0 : index
    %591 = vector.load %arg7[%590, %c0_272] : memref<8x128xf32, #tpu.memory_space<vmem>>, vector<1x128xf32>
    tpu.vector_store %arg7[%590, %c0_272], %587 {strides = array<i32>} : memref<8x128xf32, #tpu.memory_space<vmem>>, vector<1x128xf32>,
    %c8_i32_273 = arith.constant 8 : i32
    %c0_274 = arith.constant 0 : index
    %c0_275 = arith.constant 0 : index
    %592 = vector.load %arg7[%c0_274, %c0_275] : memref<8x128xf32, #tpu.memory_space<vmem>>, vector<8x128xf32>
    %c2 = arith.constant 2 : index
    %c0_276 = arith.constant 0 : index
    %c0_277 = arith.constant 0 : index
    %593 = vector.load %arg1[%c2, %c0_276, %c0_277] : memref<3x128x512xf32, #tpu.memory_space<vmem>>, vector<1x128x512xf32>
    %594 = vector.shape_cast %593 : vector<1x128x512xf32> to vector<128x512xf32>
    %cst_278 = arith.constant dense<0.000000e+00> : vector<8x512xf32>
    %595 = tpu.matmul %592, %594, %cst_278 {dimension_numbers = #tpu.dot_dimension_numbers<[1], [0], [0], [1], [0, 0, 1, 1], [], []>} : vector<8x128xf32>, vector<128x512xf32>, vector<8x512xf32> -> vector<8x512xf32>
    %c2_279 = arith.constant 2 : index
    %c0_280 = arith.constant 0 : index
    %c0_281 = arith.constant 0 : index
    %596 = vector.load %arg3[%c2_279, %c0_280, %c0_281] : memref<3x1x512xf32, #tpu.memory_space<vmem>>, vector<1x1x512xf32>
    %597 = vector.shape_cast %596 : vector<1x1x512xf32> to vector<1x512xf32>
    %598 = vector.broadcast %597 : vector<1x512xf32> to vector<8x512xf32>
    %599 = arith.addf %595, %598 : vector<8x512xf32>
    %c0_282 = arith.constant 0 : index
    %c0_283 = arith.constant 0 : index
    %600 = vector.load %arg8[%c0_282, %c0_283] : memref<8x512xf32, #tpu.memory_space<vmem>>, vector<8x512xf32>
    tpu.vector_store %arg8[%c0_282, %c0_283], %599 {strides = array<i32>} : memref<8x512xf32, #tpu.memory_space<vmem>>, vector<8x512xf32>,
    %cst_284 = arith.constant 0.000000e+00 : f32
    %601 = vector.broadcast %cst_284 : f32 to vector<1x128xf32>
    %c0_285 = arith.constant 0 : index
    %c0_286 = arith.constant 0 : index
    %602 = vector.load %arg9[%c0_285, %c0_286] : memref<1x128xf32, #tpu.memory_space<vmem>>, vector<1x128xf32>
    tpu.vector_store %arg9[%c0_285, %c0_286], %601 {strides = array<i32>} : memref<1x128xf32, #tpu.memory_space<vmem>>, vector<1x128xf32>,
    %cst_287 = arith.constant 0.000000e+00 : f32
    %603 = vector.broadcast %cst_287 : f32 to vector<1x128xf32>
    %c0_288 = arith.constant 0 : index
    %c0_289 = arith.constant 0 : index
    %604 = vector.load %arg10[%c0_288, %c0_289] : memref<1x128xf32, #tpu.memory_space<vmem>>, vector<1x128xf32>
    tpu.vector_store %arg10[%c0_288, %c0_289], %603 {strides = array<i32>} : memref<1x128xf32, #tpu.memory_space<vmem>>, vector<1x128xf32>,
    %c2_290 = arith.constant 2 : index
    %c0_291 = arith.constant 0 : index
    %c0_292 = arith.constant 0 : index
    %605 = vector.load %arg2[%c2_290, %c0_291, %c0_292] : memref<3x128x512xf32, #tpu.memory_space<vmem>>, vector<1x128x512xf32>
    %606 = vector.shape_cast %605 : vector<1x128x512xf32> to vector<128x512xf32>
    %c0_i32_293 = arith.constant 0 : i32
    %607 = arith.index_cast %c0_i32_293 : i32 to index
    %c0_294 = arith.constant 0 : index
    %608 = vector.load %arg8[%607, %c0_294] : memref<8x512xf32, #tpu.memory_space<vmem>>, vector<1x512xf32>
    %c0_295 = arith.constant 0 : index
    %c0_296 = arith.constant 0 : index
    %609 = vector.load %arg9[%c0_295, %c0_296] : memref<1x128xf32, #tpu.memory_space<vmem>>, vector<1x128xf32>
    %cst_297 = arith.constant dense<0.000000e+00> : vector<1x512xf32>
    %610 = tpu.matmul %609, %606, %cst_297 {dimension_numbers = #tpu.dot_dimension_numbers<[1], [0], [0], [1], [0, 0, 1, 1], [], []>} : vector<1x128xf32>, vector<128x512xf32>, vector<1x512xf32> -> vector<1x512xf32>
    %611 = arith.addf %608, %610 : vector<1x512xf32>
    %612 = vector.extract_strided_slice %611 {offsets = [0, 0], sizes = [1, 128], strides = [1, 1]} : vector<1x512xf32> to vector<1x128xf32>
    %613 = arith.negf %612 : vector<1x128xf32>
    %614 = math.exp %613 : vector<1x128xf32>
    %cst_298 = arith.constant 1.000000e+00 : f32
    %615 = vector.broadcast %cst_298 : f32 to vector<1x128xf32>
    %616 = arith.addf %615, %614 : vector<1x128xf32>
    %617 = arith.divf %615, %616 : vector<1x128xf32>
    %618 = vector.extract_strided_slice %611 {offsets = [0, 128], sizes = [1, 128], strides = [1, 1]} : vector<1x512xf32> to vector<1x128xf32>
    %619 = arith.negf %618 : vector<1x128xf32>
    %620 = math.exp %619 : vector<1x128xf32>
    %cst_299 = arith.constant 1.000000e+00 : f32
    %621 = vector.broadcast %cst_299 : f32 to vector<1x128xf32>
    %622 = arith.addf %621, %620 : vector<1x128xf32>
    %623 = arith.divf %621, %622 : vector<1x128xf32>
    %624 = vector.extract_strided_slice %611 {offsets = [0, 256], sizes = [1, 128], strides = [1, 1]} : vector<1x512xf32> to vector<1x128xf32>
    %625 = math.tanh %624 : vector<1x128xf32>
    %626 = vector.extract_strided_slice %611 {offsets = [0, 384], sizes = [1, 128], strides = [1, 1]} : vector<1x512xf32> to vector<1x128xf32>
    %627 = arith.negf %626 : vector<1x128xf32>
    %628 = math.exp %627 : vector<1x128xf32>
    %cst_300 = arith.constant 1.000000e+00 : f32
    %629 = vector.broadcast %cst_300 : f32 to vector<1x128xf32>
    %630 = arith.addf %629, %628 : vector<1x128xf32>
    %631 = arith.divf %629, %630 : vector<1x128xf32>
    %c0_301 = arith.constant 0 : index
    %c0_302 = arith.constant 0 : index
    %632 = vector.load %arg10[%c0_301, %c0_302] : memref<1x128xf32, #tpu.memory_space<vmem>>, vector<1x128xf32>
    %633 = arith.mulf %623, %632 : vector<1x128xf32>
    %634 = arith.mulf %617, %625 : vector<1x128xf32>
    %635 = arith.addf %633, %634 : vector<1x128xf32>
    %636 = math.tanh %635 : vector<1x128xf32>
    %637 = arith.mulf %631, %636 : vector<1x128xf32>
    %c0_303 = arith.constant 0 : index
    %c0_304 = arith.constant 0 : index
    %638 = vector.load %arg10[%c0_303, %c0_304] : memref<1x128xf32, #tpu.memory_space<vmem>>, vector<1x128xf32>
    tpu.vector_store %arg10[%c0_303, %c0_304], %635 {strides = array<i32>} : memref<1x128xf32, #tpu.memory_space<vmem>>, vector<1x128xf32>,
    %c0_305 = arith.constant 0 : index
    %c0_306 = arith.constant 0 : index
    %639 = vector.load %arg9[%c0_305, %c0_306] : memref<1x128xf32, #tpu.memory_space<vmem>>, vector<1x128xf32>
    tpu.vector_store %arg9[%c0_305, %c0_306], %637 {strides = array<i32>} : memref<1x128xf32, #tpu.memory_space<vmem>>, vector<1x128xf32>,
    %640 = arith.index_cast %c0_i32_293 : i32 to index
    %c0_307 = arith.constant 0 : index
    %641 = vector.load %arg7[%640, %c0_307] : memref<8x128xf32, #tpu.memory_space<vmem>>, vector<1x128xf32>
    tpu.vector_store %arg7[%640, %c0_307], %637 {strides = array<i32>} : memref<8x128xf32, #tpu.memory_space<vmem>>, vector<1x128xf32>,
    %c1_i32_308 = arith.constant 1 : i32
    %642 = arith.index_cast %c1_i32_308 : i32 to index
    %c0_309 = arith.constant 0 : index
    %643 = vector.load %arg8[%642, %c0_309] : memref<8x512xf32, #tpu.memory_space<vmem>>, vector<1x512xf32>
    %c0_310 = arith.constant 0 : index
    %c0_311 = arith.constant 0 : index
    %644 = vector.load %arg9[%c0_310, %c0_311] : memref<1x128xf32, #tpu.memory_space<vmem>>, vector<1x128xf32>
    %cst_312 = arith.constant dense<0.000000e+00> : vector<1x512xf32>
    %645 = tpu.matmul %644, %606, %cst_312 {dimension_numbers = #tpu.dot_dimension_numbers<[1], [0], [0], [1], [0, 0, 1, 1], [], []>} : vector<1x128xf32>, vector<128x512xf32>, vector<1x512xf32> -> vector<1x512xf32>
    %646 = arith.addf %643, %645 : vector<1x512xf32>
    %647 = vector.extract_strided_slice %646 {offsets = [0, 0], sizes = [1, 128], strides = [1, 1]} : vector<1x512xf32> to vector<1x128xf32>
    %648 = arith.negf %647 : vector<1x128xf32>
    %649 = math.exp %648 : vector<1x128xf32>
    %cst_313 = arith.constant 1.000000e+00 : f32
    %650 = vector.broadcast %cst_313 : f32 to vector<1x128xf32>
    %651 = arith.addf %650, %649 : vector<1x128xf32>
    %652 = arith.divf %650, %651 : vector<1x128xf32>
    %653 = vector.extract_strided_slice %646 {offsets = [0, 128], sizes = [1, 128], strides = [1, 1]} : vector<1x512xf32> to vector<1x128xf32>
    %654 = arith.negf %653 : vector<1x128xf32>
    %655 = math.exp %654 : vector<1x128xf32>
    %cst_314 = arith.constant 1.000000e+00 : f32
    %656 = vector.broadcast %cst_314 : f32 to vector<1x128xf32>
    %657 = arith.addf %656, %655 : vector<1x128xf32>
    %658 = arith.divf %656, %657 : vector<1x128xf32>
    %659 = vector.extract_strided_slice %646 {offsets = [0, 256], sizes = [1, 128], strides = [1, 1]} : vector<1x512xf32> to vector<1x128xf32>
    %660 = math.tanh %659 : vector<1x128xf32>
    %661 = vector.extract_strided_slice %646 {offsets = [0, 384], sizes = [1, 128], strides = [1, 1]} : vector<1x512xf32> to vector<1x128xf32>
    %662 = arith.negf %661 : vector<1x128xf32>
    %663 = math.exp %662 : vector<1x128xf32>
    %cst_315 = arith.constant 1.000000e+00 : f32
    %664 = vector.broadcast %cst_315 : f32 to vector<1x128xf32>
    %665 = arith.addf %664, %663 : vector<1x128xf32>
    %666 = arith.divf %664, %665 : vector<1x128xf32>
    %c0_316 = arith.constant 0 : index
    %c0_317 = arith.constant 0 : index
    %667 = vector.load %arg10[%c0_316, %c0_317] : memref<1x128xf32, #tpu.memory_space<vmem>>, vector<1x128xf32>
    %668 = arith.mulf %658, %667 : vector<1x128xf32>
    %669 = arith.mulf %652, %660 : vector<1x128xf32>
    %670 = arith.addf %668, %669 : vector<1x128xf32>
    %671 = math.tanh %670 : vector<1x128xf32>
    %672 = arith.mulf %666, %671 : vector<1x128xf32>
    %c0_318 = arith.constant 0 : index
    %c0_319 = arith.constant 0 : index
    %673 = vector.load %arg10[%c0_318, %c0_319] : memref<1x128xf32, #tpu.memory_space<vmem>>, vector<1x128xf32>
    tpu.vector_store %arg10[%c0_318, %c0_319], %670 {strides = array<i32>} : memref<1x128xf32, #tpu.memory_space<vmem>>, vector<1x128xf32>,
    %c0_320 = arith.constant 0 : index
    %c0_321 = arith.constant 0 : index
    %674 = vector.load %arg9[%c0_320, %c0_321] : memref<1x128xf32, #tpu.memory_space<vmem>>, vector<1x128xf32>
    tpu.vector_store %arg9[%c0_320, %c0_321], %672 {strides = array<i32>} : memref<1x128xf32, #tpu.memory_space<vmem>>, vector<1x128xf32>,
    %675 = arith.index_cast %c1_i32_308 : i32 to index
    %c0_322 = arith.constant 0 : index
    %676 = vector.load %arg7[%675, %c0_322] : memref<8x128xf32, #tpu.memory_space<vmem>>, vector<1x128xf32>
    tpu.vector_store %arg7[%675, %c0_322], %672 {strides = array<i32>} : memref<8x128xf32, #tpu.memory_space<vmem>>, vector<1x128xf32>,
    %c2_i32_323 = arith.constant 2 : i32
    %677 = arith.index_cast %c2_i32_323 : i32 to index
    %c0_324 = arith.constant 0 : index
    %678 = vector.load %arg8[%677, %c0_324] : memref<8x512xf32, #tpu.memory_space<vmem>>, vector<1x512xf32>
    %c0_325 = arith.constant 0 : index
    %c0_326 = arith.constant 0 : index
    %679 = vector.load %arg9[%c0_325, %c0_326] : memref<1x128xf32, #tpu.memory_space<vmem>>, vector<1x128xf32>
    %cst_327 = arith.constant dense<0.000000e+00> : vector<1x512xf32>
    %680 = tpu.matmul %679, %606, %cst_327 {dimension_numbers = #tpu.dot_dimension_numbers<[1], [0], [0], [1], [0, 0, 1, 1], [], []>} : vector<1x128xf32>, vector<128x512xf32>, vector<1x512xf32> -> vector<1x512xf32>
    %681 = arith.addf %678, %680 : vector<1x512xf32>
    %682 = vector.extract_strided_slice %681 {offsets = [0, 0], sizes = [1, 128], strides = [1, 1]} : vector<1x512xf32> to vector<1x128xf32>
    %683 = arith.negf %682 : vector<1x128xf32>
    %684 = math.exp %683 : vector<1x128xf32>
    %cst_328 = arith.constant 1.000000e+00 : f32
    %685 = vector.broadcast %cst_328 : f32 to vector<1x128xf32>
    %686 = arith.addf %685, %684 : vector<1x128xf32>
    %687 = arith.divf %685, %686 : vector<1x128xf32>
    %688 = vector.extract_strided_slice %681 {offsets = [0, 128], sizes = [1, 128], strides = [1, 1]} : vector<1x512xf32> to vector<1x128xf32>
    %689 = arith.negf %688 : vector<1x128xf32>
    %690 = math.exp %689 : vector<1x128xf32>
    %cst_329 = arith.constant 1.000000e+00 : f32
    %691 = vector.broadcast %cst_329 : f32 to vector<1x128xf32>
    %692 = arith.addf %691, %690 : vector<1x128xf32>
    %693 = arith.divf %691, %692 : vector<1x128xf32>
    %694 = vector.extract_strided_slice %681 {offsets = [0, 256], sizes = [1, 128], strides = [1, 1]} : vector<1x512xf32> to vector<1x128xf32>
    %695 = math.tanh %694 : vector<1x128xf32>
    %696 = vector.extract_strided_slice %681 {offsets = [0, 384], sizes = [1, 128], strides = [1, 1]} : vector<1x512xf32> to vector<1x128xf32>
    %697 = arith.negf %696 : vector<1x128xf32>
    %698 = math.exp %697 : vector<1x128xf32>
    %cst_330 = arith.constant 1.000000e+00 : f32
    %699 = vector.broadcast %cst_330 : f32 to vector<1x128xf32>
    %700 = arith.addf %699, %698 : vector<1x128xf32>
    %701 = arith.divf %699, %700 : vector<1x128xf32>
    %c0_331 = arith.constant 0 : index
    %c0_332 = arith.constant 0 : index
    %702 = vector.load %arg10[%c0_331, %c0_332] : memref<1x128xf32, #tpu.memory_space<vmem>>, vector<1x128xf32>
    %703 = arith.mulf %693, %702 : vector<1x128xf32>
    %704 = arith.mulf %687, %695 : vector<1x128xf32>
    %705 = arith.addf %703, %704 : vector<1x128xf32>
    %706 = math.tanh %705 : vector<1x128xf32>
    %707 = arith.mulf %701, %706 : vector<1x128xf32>
    %c0_333 = arith.constant 0 : index
    %c0_334 = arith.constant 0 : index
    %708 = vector.load %arg10[%c0_333, %c0_334] : memref<1x128xf32, #tpu.memory_space<vmem>>, vector<1x128xf32>
    tpu.vector_store %arg10[%c0_333, %c0_334], %705 {strides = array<i32>} : memref<1x128xf32, #tpu.memory_space<vmem>>, vector<1x128xf32>,
    %c0_335 = arith.constant 0 : index
    %c0_336 = arith.constant 0 : index
    %709 = vector.load %arg9[%c0_335, %c0_336] : memref<1x128xf32, #tpu.memory_space<vmem>>, vector<1x128xf32>
    tpu.vector_store %arg9[%c0_335, %c0_336], %707 {strides = array<i32>} : memref<1x128xf32, #tpu.memory_space<vmem>>, vector<1x128xf32>,
    %710 = arith.index_cast %c2_i32_323 : i32 to index
    %c0_337 = arith.constant 0 : index
    %711 = vector.load %arg7[%710, %c0_337] : memref<8x128xf32, #tpu.memory_space<vmem>>, vector<1x128xf32>
    tpu.vector_store %arg7[%710, %c0_337], %707 {strides = array<i32>} : memref<8x128xf32, #tpu.memory_space<vmem>>, vector<1x128xf32>,
    %c3_i32_338 = arith.constant 3 : i32
    %712 = arith.index_cast %c3_i32_338 : i32 to index
    %c0_339 = arith.constant 0 : index
    %713 = vector.load %arg8[%712, %c0_339] : memref<8x512xf32, #tpu.memory_space<vmem>>, vector<1x512xf32>
    %c0_340 = arith.constant 0 : index
    %c0_341 = arith.constant 0 : index
    %714 = vector.load %arg9[%c0_340, %c0_341] : memref<1x128xf32, #tpu.memory_space<vmem>>, vector<1x128xf32>
    %cst_342 = arith.constant dense<0.000000e+00> : vector<1x512xf32>
    %715 = tpu.matmul %714, %606, %cst_342 {dimension_numbers = #tpu.dot_dimension_numbers<[1], [0], [0], [1], [0, 0, 1, 1], [], []>} : vector<1x128xf32>, vector<128x512xf32>, vector<1x512xf32> -> vector<1x512xf32>
    %716 = arith.addf %713, %715 : vector<1x512xf32>
    %717 = vector.extract_strided_slice %716 {offsets = [0, 0], sizes = [1, 128], strides = [1, 1]} : vector<1x512xf32> to vector<1x128xf32>
    %718 = arith.negf %717 : vector<1x128xf32>
    %719 = math.exp %718 : vector<1x128xf32>
    %cst_343 = arith.constant 1.000000e+00 : f32
    %720 = vector.broadcast %cst_343 : f32 to vector<1x128xf32>
    %721 = arith.addf %720, %719 : vector<1x128xf32>
    %722 = arith.divf %720, %721 : vector<1x128xf32>
    %723 = vector.extract_strided_slice %716 {offsets = [0, 128], sizes = [1, 128], strides = [1, 1]} : vector<1x512xf32> to vector<1x128xf32>
    %724 = arith.negf %723 : vector<1x128xf32>
    %725 = math.exp %724 : vector<1x128xf32>
    %cst_344 = arith.constant 1.000000e+00 : f32
    %726 = vector.broadcast %cst_344 : f32 to vector<1x128xf32>
    %727 = arith.addf %726, %725 : vector<1x128xf32>
    %728 = arith.divf %726, %727 : vector<1x128xf32>
    %729 = vector.extract_strided_slice %716 {offsets = [0, 256], sizes = [1, 128], strides = [1, 1]} : vector<1x512xf32> to vector<1x128xf32>
    %730 = math.tanh %729 : vector<1x128xf32>
    %731 = vector.extract_strided_slice %716 {offsets = [0, 384], sizes = [1, 128], strides = [1, 1]} : vector<1x512xf32> to vector<1x128xf32>
    %732 = arith.negf %731 : vector<1x128xf32>
    %733 = math.exp %732 : vector<1x128xf32>
    %cst_345 = arith.constant 1.000000e+00 : f32
    %734 = vector.broadcast %cst_345 : f32 to vector<1x128xf32>
    %735 = arith.addf %734, %733 : vector<1x128xf32>
    %736 = arith.divf %734, %735 : vector<1x128xf32>
    %c0_346 = arith.constant 0 : index
    %c0_347 = arith.constant 0 : index
    %737 = vector.load %arg10[%c0_346, %c0_347] : memref<1x128xf32, #tpu.memory_space<vmem>>, vector<1x128xf32>
    %738 = arith.mulf %728, %737 : vector<1x128xf32>
    %739 = arith.mulf %722, %730 : vector<1x128xf32>
    %740 = arith.addf %738, %739 : vector<1x128xf32>
    %741 = math.tanh %740 : vector<1x128xf32>
    %742 = arith.mulf %736, %741 : vector<1x128xf32>
    %c0_348 = arith.constant 0 : index
    %c0_349 = arith.constant 0 : index
    %743 = vector.load %arg10[%c0_348, %c0_349] : memref<1x128xf32, #tpu.memory_space<vmem>>, vector<1x128xf32>
    tpu.vector_store %arg10[%c0_348, %c0_349], %740 {strides = array<i32>} : memref<1x128xf32, #tpu.memory_space<vmem>>, vector<1x128xf32>,
    %c0_350 = arith.constant 0 : index
    %c0_351 = arith.constant 0 : index
    %744 = vector.load %arg9[%c0_350, %c0_351] : memref<1x128xf32, #tpu.memory_space<vmem>>, vector<1x128xf32>
    tpu.vector_store %arg9[%c0_350, %c0_351], %742 {strides = array<i32>} : memref<1x128xf32, #tpu.memory_space<vmem>>, vector<1x128xf32>,
    %745 = arith.index_cast %c3_i32_338 : i32 to index
    %c0_352 = arith.constant 0 : index
    %746 = vector.load %arg7[%745, %c0_352] : memref<8x128xf32, #tpu.memory_space<vmem>>, vector<1x128xf32>
    tpu.vector_store %arg7[%745, %c0_352], %742 {strides = array<i32>} : memref<8x128xf32, #tpu.memory_space<vmem>>, vector<1x128xf32>,
    %c4_i32_353 = arith.constant 4 : i32
    %747 = arith.index_cast %c4_i32_353 : i32 to index
    %c0_354 = arith.constant 0 : index
    %748 = vector.load %arg8[%747, %c0_354] : memref<8x512xf32, #tpu.memory_space<vmem>>, vector<1x512xf32>
    %c0_355 = arith.constant 0 : index
    %c0_356 = arith.constant 0 : index
    %749 = vector.load %arg9[%c0_355, %c0_356] : memref<1x128xf32, #tpu.memory_space<vmem>>, vector<1x128xf32>
    %cst_357 = arith.constant dense<0.000000e+00> : vector<1x512xf32>
    %750 = tpu.matmul %749, %606, %cst_357 {dimension_numbers = #tpu.dot_dimension_numbers<[1], [0], [0], [1], [0, 0, 1, 1], [], []>} : vector<1x128xf32>, vector<128x512xf32>, vector<1x512xf32> -> vector<1x512xf32>
    %751 = arith.addf %748, %750 : vector<1x512xf32>
    %752 = vector.extract_strided_slice %751 {offsets = [0, 0], sizes = [1, 128], strides = [1, 1]} : vector<1x512xf32> to vector<1x128xf32>
    %753 = arith.negf %752 : vector<1x128xf32>
    %754 = math.exp %753 : vector<1x128xf32>
    %cst_358 = arith.constant 1.000000e+00 : f32
    %755 = vector.broadcast %cst_358 : f32 to vector<1x128xf32>
    %756 = arith.addf %755, %754 : vector<1x128xf32>
    %757 = arith.divf %755, %756 : vector<1x128xf32>
    %758 = vector.extract_strided_slice %751 {offsets = [0, 128], sizes = [1, 128], strides = [1, 1]} : vector<1x512xf32> to vector<1x128xf32>
    %759 = arith.negf %758 : vector<1x128xf32>
    %760 = math.exp %759 : vector<1x128xf32>
    %cst_359 = arith.constant 1.000000e+00 : f32
    %761 = vector.broadcast %cst_359 : f32 to vector<1x128xf32>
    %762 = arith.addf %761, %760 : vector<1x128xf32>
    %763 = arith.divf %761, %762 : vector<1x128xf32>
    %764 = vector.extract_strided_slice %751 {offsets = [0, 256], sizes = [1, 128], strides = [1, 1]} : vector<1x512xf32> to vector<1x128xf32>
    %765 = math.tanh %764 : vector<1x128xf32>
    %766 = vector.extract_strided_slice %751 {offsets = [0, 384], sizes = [1, 128], strides = [1, 1]} : vector<1x512xf32> to vector<1x128xf32>
    %767 = arith.negf %766 : vector<1x128xf32>
    %768 = math.exp %767 : vector<1x128xf32>
    %cst_360 = arith.constant 1.000000e+00 : f32
    %769 = vector.broadcast %cst_360 : f32 to vector<1x128xf32>
    %770 = arith.addf %769, %768 : vector<1x128xf32>
    %771 = arith.divf %769, %770 : vector<1x128xf32>
    %c0_361 = arith.constant 0 : index
    %c0_362 = arith.constant 0 : index
    %772 = vector.load %arg10[%c0_361, %c0_362] : memref<1x128xf32, #tpu.memory_space<vmem>>, vector<1x128xf32>
    %773 = arith.mulf %763, %772 : vector<1x128xf32>
    %774 = arith.mulf %757, %765 : vector<1x128xf32>
    %775 = arith.addf %773, %774 : vector<1x128xf32>
    %776 = math.tanh %775 : vector<1x128xf32>
    %777 = arith.mulf %771, %776 : vector<1x128xf32>
    %c0_363 = arith.constant 0 : index
    %c0_364 = arith.constant 0 : index
    %778 = vector.load %arg10[%c0_363, %c0_364] : memref<1x128xf32, #tpu.memory_space<vmem>>, vector<1x128xf32>
    tpu.vector_store %arg10[%c0_363, %c0_364], %775 {strides = array<i32>} : memref<1x128xf32, #tpu.memory_space<vmem>>, vector<1x128xf32>,
    %c0_365 = arith.constant 0 : index
    %c0_366 = arith.constant 0 : index
    %779 = vector.load %arg9[%c0_365, %c0_366] : memref<1x128xf32, #tpu.memory_space<vmem>>, vector<1x128xf32>
    tpu.vector_store %arg9[%c0_365, %c0_366], %777 {strides = array<i32>} : memref<1x128xf32, #tpu.memory_space<vmem>>, vector<1x128xf32>,
    %780 = arith.index_cast %c4_i32_353 : i32 to index
    %c0_367 = arith.constant 0 : index
    %781 = vector.load %arg7[%780, %c0_367] : memref<8x128xf32, #tpu.memory_space<vmem>>, vector<1x128xf32>
    tpu.vector_store %arg7[%780, %c0_367], %777 {strides = array<i32>} : memref<8x128xf32, #tpu.memory_space<vmem>>, vector<1x128xf32>,
    %c5_i32_368 = arith.constant 5 : i32
    %782 = arith.index_cast %c5_i32_368 : i32 to index
    %c0_369 = arith.constant 0 : index
    %783 = vector.load %arg8[%782, %c0_369] : memref<8x512xf32, #tpu.memory_space<vmem>>, vector<1x512xf32>
    %c0_370 = arith.constant 0 : index
    %c0_371 = arith.constant 0 : index
    %784 = vector.load %arg9[%c0_370, %c0_371] : memref<1x128xf32, #tpu.memory_space<vmem>>, vector<1x128xf32>
    %cst_372 = arith.constant dense<0.000000e+00> : vector<1x512xf32>
    %785 = tpu.matmul %784, %606, %cst_372 {dimension_numbers = #tpu.dot_dimension_numbers<[1], [0], [0], [1], [0, 0, 1, 1], [], []>} : vector<1x128xf32>, vector<128x512xf32>, vector<1x512xf32> -> vector<1x512xf32>
    %786 = arith.addf %783, %785 : vector<1x512xf32>
    %787 = vector.extract_strided_slice %786 {offsets = [0, 0], sizes = [1, 128], strides = [1, 1]} : vector<1x512xf32> to vector<1x128xf32>
    %788 = arith.negf %787 : vector<1x128xf32>
    %789 = math.exp %788 : vector<1x128xf32>
    %cst_373 = arith.constant 1.000000e+00 : f32
    %790 = vector.broadcast %cst_373 : f32 to vector<1x128xf32>
    %791 = arith.addf %790, %789 : vector<1x128xf32>
    %792 = arith.divf %790, %791 : vector<1x128xf32>
    %793 = vector.extract_strided_slice %786 {offsets = [0, 128], sizes = [1, 128], strides = [1, 1]} : vector<1x512xf32> to vector<1x128xf32>
    %794 = arith.negf %793 : vector<1x128xf32>
    %795 = math.exp %794 : vector<1x128xf32>
    %cst_374 = arith.constant 1.000000e+00 : f32
    %796 = vector.broadcast %cst_374 : f32 to vector<1x128xf32>
    %797 = arith.addf %796, %795 : vector<1x128xf32>
    %798 = arith.divf %796, %797 : vector<1x128xf32>
    %799 = vector.extract_strided_slice %786 {offsets = [0, 256], sizes = [1, 128], strides = [1, 1]} : vector<1x512xf32> to vector<1x128xf32>
    %800 = math.tanh %799 : vector<1x128xf32>
    %801 = vector.extract_strided_slice %786 {offsets = [0, 384], sizes = [1, 128], strides = [1, 1]} : vector<1x512xf32> to vector<1x128xf32>
    %802 = arith.negf %801 : vector<1x128xf32>
    %803 = math.exp %802 : vector<1x128xf32>
    %cst_375 = arith.constant 1.000000e+00 : f32
    %804 = vector.broadcast %cst_375 : f32 to vector<1x128xf32>
    %805 = arith.addf %804, %803 : vector<1x128xf32>
    %806 = arith.divf %804, %805 : vector<1x128xf32>
    %c0_376 = arith.constant 0 : index
    %c0_377 = arith.constant 0 : index
    %807 = vector.load %arg10[%c0_376, %c0_377] : memref<1x128xf32, #tpu.memory_space<vmem>>, vector<1x128xf32>
    %808 = arith.mulf %798, %807 : vector<1x128xf32>
    %809 = arith.mulf %792, %800 : vector<1x128xf32>
    %810 = arith.addf %808, %809 : vector<1x128xf32>
    %811 = math.tanh %810 : vector<1x128xf32>
    %812 = arith.mulf %806, %811 : vector<1x128xf32>
    %c0_378 = arith.constant 0 : index
    %c0_379 = arith.constant 0 : index
    %813 = vector.load %arg10[%c0_378, %c0_379] : memref<1x128xf32, #tpu.memory_space<vmem>>, vector<1x128xf32>
    tpu.vector_store %arg10[%c0_378, %c0_379], %810 {strides = array<i32>} : memref<1x128xf32, #tpu.memory_space<vmem>>, vector<1x128xf32>,
    %c0_380 = arith.constant 0 : index
    %c0_381 = arith.constant 0 : index
    %814 = vector.load %arg9[%c0_380, %c0_381] : memref<1x128xf32, #tpu.memory_space<vmem>>, vector<1x128xf32>
    tpu.vector_store %arg9[%c0_380, %c0_381], %812 {strides = array<i32>} : memref<1x128xf32, #tpu.memory_space<vmem>>, vector<1x128xf32>,
    %815 = arith.index_cast %c5_i32_368 : i32 to index
    %c0_382 = arith.constant 0 : index
    %816 = vector.load %arg7[%815, %c0_382] : memref<8x128xf32, #tpu.memory_space<vmem>>, vector<1x128xf32>
    tpu.vector_store %arg7[%815, %c0_382], %812 {strides = array<i32>} : memref<8x128xf32, #tpu.memory_space<vmem>>, vector<1x128xf32>,
    %c6_i32_383 = arith.constant 6 : i32
    %817 = arith.index_cast %c6_i32_383 : i32 to index
    %c0_384 = arith.constant 0 : index
    %818 = vector.load %arg8[%817, %c0_384] : memref<8x512xf32, #tpu.memory_space<vmem>>, vector<1x512xf32>
    %c0_385 = arith.constant 0 : index
    %c0_386 = arith.constant 0 : index
    %819 = vector.load %arg9[%c0_385, %c0_386] : memref<1x128xf32, #tpu.memory_space<vmem>>, vector<1x128xf32>
    %cst_387 = arith.constant dense<0.000000e+00> : vector<1x512xf32>
    %820 = tpu.matmul %819, %606, %cst_387 {dimension_numbers = #tpu.dot_dimension_numbers<[1], [0], [0], [1], [0, 0, 1, 1], [], []>} : vector<1x128xf32>, vector<128x512xf32>, vector<1x512xf32> -> vector<1x512xf32>
    %821 = arith.addf %818, %820 : vector<1x512xf32>
    %822 = vector.extract_strided_slice %821 {offsets = [0, 0], sizes = [1, 128], strides = [1, 1]} : vector<1x512xf32> to vector<1x128xf32>
    %823 = arith.negf %822 : vector<1x128xf32>
    %824 = math.exp %823 : vector<1x128xf32>
    %cst_388 = arith.constant 1.000000e+00 : f32
    %825 = vector.broadcast %cst_388 : f32 to vector<1x128xf32>
    %826 = arith.addf %825, %824 : vector<1x128xf32>
    %827 = arith.divf %825, %826 : vector<1x128xf32>
    %828 = vector.extract_strided_slice %821 {offsets = [0, 128], sizes = [1, 128], strides = [1, 1]} : vector<1x512xf32> to vector<1x128xf32>
    %829 = arith.negf %828 : vector<1x128xf32>
    %830 = math.exp %829 : vector<1x128xf32>
    %cst_389 = arith.constant 1.000000e+00 : f32
    %831 = vector.broadcast %cst_389 : f32 to vector<1x128xf32>
    %832 = arith.addf %831, %830 : vector<1x128xf32>
    %833 = arith.divf %831, %832 : vector<1x128xf32>
    %834 = vector.extract_strided_slice %821 {offsets = [0, 256], sizes = [1, 128], strides = [1, 1]} : vector<1x512xf32> to vector<1x128xf32>
    %835 = math.tanh %834 : vector<1x128xf32>
    %836 = vector.extract_strided_slice %821 {offsets = [0, 384], sizes = [1, 128], strides = [1, 1]} : vector<1x512xf32> to vector<1x128xf32>
    %837 = arith.negf %836 : vector<1x128xf32>
    %838 = math.exp %837 : vector<1x128xf32>
    %cst_390 = arith.constant 1.000000e+00 : f32
    %839 = vector.broadcast %cst_390 : f32 to vector<1x128xf32>
    %840 = arith.addf %839, %838 : vector<1x128xf32>
    %841 = arith.divf %839, %840 : vector<1x128xf32>
    %c0_391 = arith.constant 0 : index
    %c0_392 = arith.constant 0 : index
    %842 = vector.load %arg10[%c0_391, %c0_392] : memref<1x128xf32, #tpu.memory_space<vmem>>, vector<1x128xf32>
    %843 = arith.mulf %833, %842 : vector<1x128xf32>
    %844 = arith.mulf %827, %835 : vector<1x128xf32>
    %845 = arith.addf %843, %844 : vector<1x128xf32>
    %846 = math.tanh %845 : vector<1x128xf32>
    %847 = arith.mulf %841, %846 : vector<1x128xf32>
    %c0_393 = arith.constant 0 : index
    %c0_394 = arith.constant 0 : index
    %848 = vector.load %arg10[%c0_393, %c0_394] : memref<1x128xf32, #tpu.memory_space<vmem>>, vector<1x128xf32>
    tpu.vector_store %arg10[%c0_393, %c0_394], %845 {strides = array<i32>} : memref<1x128xf32, #tpu.memory_space<vmem>>, vector<1x128xf32>,
    %c0_395 = arith.constant 0 : index
    %c0_396 = arith.constant 0 : index
    %849 = vector.load %arg9[%c0_395, %c0_396] : memref<1x128xf32, #tpu.memory_space<vmem>>, vector<1x128xf32>
    tpu.vector_store %arg9[%c0_395, %c0_396], %847 {strides = array<i32>} : memref<1x128xf32, #tpu.memory_space<vmem>>, vector<1x128xf32>,
    %850 = arith.index_cast %c6_i32_383 : i32 to index
    %c0_397 = arith.constant 0 : index
    %851 = vector.load %arg7[%850, %c0_397] : memref<8x128xf32, #tpu.memory_space<vmem>>, vector<1x128xf32>
    tpu.vector_store %arg7[%850, %c0_397], %847 {strides = array<i32>} : memref<8x128xf32, #tpu.memory_space<vmem>>, vector<1x128xf32>,
    %c7_i32_398 = arith.constant 7 : i32
    %852 = arith.index_cast %c7_i32_398 : i32 to index
    %c0_399 = arith.constant 0 : index
    %853 = vector.load %arg8[%852, %c0_399] : memref<8x512xf32, #tpu.memory_space<vmem>>, vector<1x512xf32>
    %c0_400 = arith.constant 0 : index
    %c0_401 = arith.constant 0 : index
    %854 = vector.load %arg9[%c0_400, %c0_401] : memref<1x128xf32, #tpu.memory_space<vmem>>, vector<1x128xf32>
    %cst_402 = arith.constant dense<0.000000e+00> : vector<1x512xf32>
    %855 = tpu.matmul %854, %606, %cst_402 {dimension_numbers = #tpu.dot_dimension_numbers<[1], [0], [0], [1], [0, 0, 1, 1], [], []>} : vector<1x128xf32>, vector<128x512xf32>, vector<1x512xf32> -> vector<1x512xf32>
    %856 = arith.addf %853, %855 : vector<1x512xf32>
    %857 = vector.extract_strided_slice %856 {offsets = [0, 0], sizes = [1, 128], strides = [1, 1]} : vector<1x512xf32> to vector<1x128xf32>
    %858 = arith.negf %857 : vector<1x128xf32>
    %859 = math.exp %858 : vector<1x128xf32>
    %cst_403 = arith.constant 1.000000e+00 : f32
    %860 = vector.broadcast %cst_403 : f32 to vector<1x128xf32>
    %861 = arith.addf %860, %859 : vector<1x128xf32>
    %862 = arith.divf %860, %861 : vector<1x128xf32>
    %863 = vector.extract_strided_slice %856 {offsets = [0, 128], sizes = [1, 128], strides = [1, 1]} : vector<1x512xf32> to vector<1x128xf32>
    %864 = arith.negf %863 : vector<1x128xf32>
    %865 = math.exp %864 : vector<1x128xf32>
    %cst_404 = arith.constant 1.000000e+00 : f32
    %866 = vector.broadcast %cst_404 : f32 to vector<1x128xf32>
    %867 = arith.addf %866, %865 : vector<1x128xf32>
    %868 = arith.divf %866, %867 : vector<1x128xf32>
    %869 = vector.extract_strided_slice %856 {offsets = [0, 256], sizes = [1, 128], strides = [1, 1]} : vector<1x512xf32> to vector<1x128xf32>
    %870 = math.tanh %869 : vector<1x128xf32>
    %871 = vector.extract_strided_slice %856 {offsets = [0, 384], sizes = [1, 128], strides = [1, 1]} : vector<1x512xf32> to vector<1x128xf32>
    %872 = arith.negf %871 : vector<1x128xf32>
    %873 = math.exp %872 : vector<1x128xf32>
    %cst_405 = arith.constant 1.000000e+00 : f32
    %874 = vector.broadcast %cst_405 : f32 to vector<1x128xf32>
    %875 = arith.addf %874, %873 : vector<1x128xf32>
    %876 = arith.divf %874, %875 : vector<1x128xf32>
    %c0_406 = arith.constant 0 : index
    %c0_407 = arith.constant 0 : index
    %877 = vector.load %arg10[%c0_406, %c0_407] : memref<1x128xf32, #tpu.memory_space<vmem>>, vector<1x128xf32>
    %878 = arith.mulf %868, %877 : vector<1x128xf32>
    %879 = arith.mulf %862, %870 : vector<1x128xf32>
    %880 = arith.addf %878, %879 : vector<1x128xf32>
    %881 = math.tanh %880 : vector<1x128xf32>
    %882 = arith.mulf %876, %881 : vector<1x128xf32>
    %c0_408 = arith.constant 0 : index
    %c0_409 = arith.constant 0 : index
    %883 = vector.load %arg10[%c0_408, %c0_409] : memref<1x128xf32, #tpu.memory_space<vmem>>, vector<1x128xf32>
    tpu.vector_store %arg10[%c0_408, %c0_409], %880 {strides = array<i32>} : memref<1x128xf32, #tpu.memory_space<vmem>>, vector<1x128xf32>,
    %c0_410 = arith.constant 0 : index
    %c0_411 = arith.constant 0 : index
    %884 = vector.load %arg9[%c0_410, %c0_411] : memref<1x128xf32, #tpu.memory_space<vmem>>, vector<1x128xf32>
    tpu.vector_store %arg9[%c0_410, %c0_411], %882 {strides = array<i32>} : memref<1x128xf32, #tpu.memory_space<vmem>>, vector<1x128xf32>,
    %885 = arith.index_cast %c7_i32_398 : i32 to index
    %c0_412 = arith.constant 0 : index
    %886 = vector.load %arg7[%885, %c0_412] : memref<8x128xf32, #tpu.memory_space<vmem>>, vector<1x128xf32>
    tpu.vector_store %arg7[%885, %c0_412], %882 {strides = array<i32>} : memref<8x128xf32, #tpu.memory_space<vmem>>, vector<1x128xf32>,
    %c8_i32_413 = arith.constant 8 : i32
    %c0_414 = arith.constant 0 : index
    %c0_415 = arith.constant 0 : index
    %887 = vector.load %arg7[%c0_414, %c0_415] : memref<8x128xf32, #tpu.memory_space<vmem>>, vector<8x128xf32>
    %c0_416 = arith.constant 0 : index
    %c0_417 = arith.constant 0 : index
    %888 = vector.load %arg4[%c0_416, %c0_417] : memref<128x128xf32, #tpu.memory_space<vmem>>, vector<128x128xf32>
    %cst_418 = arith.constant dense<0.000000e+00> : vector<8x128xf32>
    %889 = tpu.matmul %887, %888, %cst_418 {dimension_numbers = #tpu.dot_dimension_numbers<[1], [0], [0], [1], [0, 0, 1, 1], [], []>} : vector<8x128xf32>, vector<128x128xf32>, vector<8x128xf32> -> vector<8x128xf32>
    %c0_419 = arith.constant 0 : index
    %c0_420 = arith.constant 0 : index
    %890 = vector.load %arg5[%c0_419, %c0_420] : memref<1x128xf32, #tpu.memory_space<vmem>>, vector<1x128xf32>
    %891 = vector.broadcast %890 : vector<1x128xf32> to vector<8x128xf32>
    %892 = arith.addf %889, %891 : vector<8x128xf32>
    %cst_421 = arith.constant dense<0xFF800000> : vector<8xf32>
    %893 = vector.multi_reduction <maximumf>, %892, %cst_421 [1] : vector<8x128xf32> to vector<8xf32>
    %894 = vector.shape_cast %893 : vector<8xf32> to vector<8x1xf32>
    %895 = vector.broadcast %894 : vector<8x1xf32> to vector<8x128xf32>
    %896 = arith.subf %892, %895 : vector<8x128xf32>
    %897 = math.exp %896 : vector<8x128xf32>
    %cst_422 = arith.constant dense<0.000000e+00> : vector<8xf32>
    %898 = vector.multi_reduction <add>, %897, %cst_422 [1] : vector<8x128xf32> to vector<8xf32>
    %899 = vector.shape_cast %898 : vector<8xf32> to vector<8x1xf32>
    %900 = math.log %899 : vector<8x1xf32>
    %901 = arith.addf %894, %900 : vector<8x1xf32>
    %902 = vector.broadcast %901 : vector<8x1xf32> to vector<8x128xf32>
    %903 = arith.subf %892, %902 : vector<8x128xf32>
    %c0_423 = arith.constant 0 : index
    %c0_424 = arith.constant 0 : index
    %904 = vector.load %arg6[%c0_423, %c0_424] : memref<8x128xf32, #tpu.memory_space<vmem>>, vector<8x128xf32>
    tpu.vector_store %arg6[%c0_423, %c0_424], %903 {strides = array<i32>} : memref<8x128xf32, #tpu.memory_space<vmem>>, vector<8x128xf32>,
    return
  }
}

</mosaic_0001>

<llo_original>
// kernel: rnn_lm_forward.1
$region0: #{rnn_lm_forward.1}
  #allocation0 [shape = 'u32[]', space=smem, size = 0x4, offset = 0x4, fixed_abs, tag = 'smem constant byte address 0x4 - core index']
  #allocation1 [shape = 'u32[144,128]{1,0:T(1,128)}', space=vmem, size = 0x12000, scoped, tag = 'internal scratch']
  #allocation2 [shape = 'f32[8,128]{1,0:T(8,128)}', space=vmem, size = 0x1000, scoped, tag = 'scratch operand']
  #allocation3 [shape = 'f32[8,512]{1,0:T(8,128)}', space=vmem, size = 0x4000, scoped, tag = 'scratch operand']
  #allocation4 [shape = 'f32[1,128]{1,0:T(1,128)}', space=vmem, size = 0x200, scoped, tag = 'scratch operand']
  #allocation5 [shape = 'f32[1,128]{1,0:T(1,128)}', space=vmem, size = 0x200, scoped, tag = 'scratch operand']
  %s0 = inlined_call_operand.vmem [shape: f32[8,128], index: 0, kind: input, shape index: {}]
  %s1 = inlined_call_operand.hbm [shape: f32[3,128,512], index: 1, kind: input, shape index: {}]
  %s2 = inlined_call_operand.hbm [shape: f32[3,128,512], index: 2, kind: input, shape index: {}]
  %s3 = inlined_call_operand.vmem [shape: f32[3,1,512], index: 3, kind: input, shape index: {}]
  %s4 = inlined_call_operand.hbm [shape: f32[128,128], index: 4, kind: input, shape index: {}]
  %s5 = inlined_call_operand.vmem [shape: f32[1,128], index: 5, kind: input, shape index: {}]
  %s6 = inlined_call_operand.hbm [shape: f32[8,128], index: 6, kind: output, shape index: {}]
  %s7 = sld [smem:[#allocation0]]
  $region46: #{rnn_lm_forward.1} parent=0
    _
  %s9 = ssub.s32 1, %s7
  %s10 = scalar_select 0, %s9, %s7
  $region1: #{rnn_lm_forward.1} parent=0
    #allocation6 [shape = 'u8[786432]{0}', space=vmem, size = 0xc0000, scoped, tag = 'input window, operand 1, single buffered']
    #allocation7 [shape = 's32[1]{0}', space=sflag, size = 0x4, scoped, tag = 'scoped memory for rnn_lm_forward.1']
    #allocation8 [shape = 's32[1]{0}', space=sflag, size = 0x4, scoped, tag = 'scoped memory for rnn_lm_forward.1']
    #allocation9 [shape = 'u8[786432]{0}', space=vmem, size = 0xc0000, scoped, tag = 'input window, operand 2, single buffered']
    #allocation10 [shape = 's32[1]{0}', space=sflag, size = 0x4, scoped, tag = 'scoped memory for rnn_lm_forward.1']
    #allocation11 [shape = 'u8[65536]{0}', space=vmem, size = 0x10000, scoped, tag = 'input window, operand 4, single buffered']
    #allocation12 [shape = 'u8[4096]{0}', space=vmem, size = 0x1000, scoped, tag = 'output window, operand 0, single buffered']
    %11 = vsyncpa [#allocation7], 0
    %12 = vsyncpa [#allocation10], 0
    %13 = vsyncpa [#allocation8], 0
    // Predicated region
    $region2: #{rnn_lm_forward.1} parent=1 // pred_check
      _
    $region3: #{rnn_lm_forward.1} parent=1 // pred_check_branch
      %15 = sbr.rel (0) target = $region5
    $region4: #{rnn_lm_forward.1} parent=1 // pred_region
      _
    $region5: #{rnn_lm_forward.1} parent=1 // pred_fallthru
      _
    // Predicated region
    $region6: #{rnn_lm_forward.1} parent=1 // pred_check
      _
    $region7: #{rnn_lm_forward.1} parent=1 // pred_check_branch
      %17 = sbr.rel (0) target = $region9
    $region8: #{rnn_lm_forward.1} parent=1 // pred_region
      %s19 = ssub.s32 24576, 24576
      %20 = vsyncadd [#allocation7], %s19
      %s21 = sshll.u32 [#allocation6], 4
      %s22 = int_to_ptr.vmem [resolvable:$true] %s21
      %27 = dma.hbm_to_vmem [thread:$0]  %s1, 24576, %s22, [#allocation7], 512, 512, 32
    $region9: #{rnn_lm_forward.1} parent=1 // pred_fallthru
      _
    // Predicated region
    $region10: #{rnn_lm_forward.1} parent=1 // pred_check
      _
    $region11: #{rnn_lm_forward.1} parent=1 // pred_check_branch
      %29 = sbr.rel (0) target = $region13
    $region12: #{rnn_lm_forward.1} parent=1 // pred_region
      %s31 = ssub.s32 24576, 24576
      %32 = vsyncadd [#allocation10], %s31
      %s33 = sshll.u32 [#allocation9], 4
      %s34 = int_to_ptr.vmem [resolvable:$true] %s33
      %39 = dma.hbm_to_vmem [thread:$0]  %s2, 24576, %s34, [#allocation10], 512, 512, 32
    $region13: #{rnn_lm_forward.1} parent=1 // pred_fallthru
      _
    // Predicated region
    $region14: #{rnn_lm_forward.1} parent=1 // pred_check
      _
    $region15: #{rnn_lm_forward.1} parent=1 // pred_check_branch
      %41 = sbr.rel (0) target = $region17
    $region16: #{rnn_lm_forward.1} parent=1 // pred_region
      _
    $region17: #{rnn_lm_forward.1} parent=1 // pred_fallthru
      _
    // Predicated region
    $region18: #{rnn_lm_forward.1} parent=1 // pred_check
      _
    $region19: #{rnn_lm_forward.1} parent=1 // pred_check_branch
      %43 = sbr.rel (0) target = $region21
    $region20: #{rnn_lm_forward.1} parent=1 // pred_region
      %s45 = ssub.s32 2048, 2048
      %46 = vsyncadd [#allocation10], %s45
      %s47 = sshll.u32 [#allocation11], 4
      %s48 = int_to_ptr.vmem [resolvable:$true] %s47
      %53 = dma.hbm_to_vmem [thread:$0]  %s4, 2048, %s48, [#allocation10], 128, 128, 8
    $region21: #{rnn_lm_forward.1} parent=1 // pred_fallthru
      _
    // Predicated region
    $region22: #{rnn_lm_forward.1} parent=1 // pred_check
      _
    $region23: #{rnn_lm_forward.1} parent=1 // pred_check_branch
      %55 = sbr.rel (0) target = $region25
    $region24: #{rnn_lm_forward.1} parent=1 // pred_region
      _
    $region25: #{rnn_lm_forward.1} parent=1 // pred_fallthru
      _
    // Predicated region
    $region26: #{rnn_lm_forward.1} parent=1 // pred_check
      _
    $region27: #{rnn_lm_forward.1} parent=1 // pred_check_branch
      %57 = sbr.rel (0) target = $region29
    $region28: #{rnn_lm_forward.1} parent=1 // pred_region
      %58 = dma.done [#allocation7], 24576
    $region29: #{rnn_lm_forward.1} parent=1 // pred_fallthru
      _
    // Predicated region
    $region30: #{rnn_lm_forward.1} parent=1 // pred_check
      _
    $region31: #{rnn_lm_forward.1} parent=1 // pred_check_branch
      %60 = sbr.rel (0) target = $region33
    $region32: #{rnn_lm_forward.1} parent=1 // pred_region
      %61 = dma.done [#allocation10], 24576
    $region33: #{rnn_lm_forward.1} parent=1 // pred_fallthru
      _
    // Predicated region
    $region34: #{rnn_lm_forward.1} parent=1 // pred_check
      _
    $region35: #{rnn_lm_forward.1} parent=1 // pred_check_branch
      %63 = sbr.rel (0) target = $region37
    $region36: #{rnn_lm_forward.1} parent=1 // pred_region
      %64 = dma.done [#allocation10], 2048
    $region37: #{rnn_lm_forward.1} parent=1 // pred_fallthru
      _
    %v65 = vld [vmem:[%s0] sm:$0xff]
    %66 = vst [vmem:[#allocation2] sm:$0xff] %v65
    %v67 = vld [vmem:[#allocation2] sm:$0xff]
    %v68 = vld [vmem:[#allocation6] sm:$0xff]
    %v69 = vld [vmem:[#allocation6 + $0x8] sm:$0xff]
    %v70 = vld [vmem:[#allocation6 + $0x10] sm:$0xff]
    %v71 = vld [vmem:[#allocation6 + $0x18] sm:$0xff]
    %v72 = vld [vmem:[#allocation6 + $0x20] sm:$0xff]
    %v73 = vld [vmem:[#allocation6 + $0x28] sm:$0xff]
    %v74 = vld [vmem:[#allocation6 + $0x30] sm:$0xff]
    %v75 = vld [vmem:[#allocation6 + $0x38] sm:$0xff]
    %v76 = vld [vmem:[#allocation6 + $0x40] sm:$0xff]
    %v77 = vld [vmem:[#allocation6 + $0x48] sm:$0xff]
    %v78 = vld [vmem:[#allocation6 + $0x50] sm:$0xff]
    %v79 = vld [vmem:[#allocation6 + $0x58] sm:$0xff]
    %v80 = vld [vmem:[#allocation6 + $0x60] sm:$0xff]
    %v81 = vld [vmem:[#allocation6 + $0x68] sm:$0xff]
    %v82 = vld [vmem:[#allocation6 + $0x70] sm:$0xff]
    %v83 = vld [vmem:[#allocation6 + $0x78] sm:$0xff]
    %v84 = vld [vmem:[#allocation6 + $0x80] sm:$0xff]
    %v85 = vld [vmem:[#allocation6 + $0x88] sm:$0xff]
    %v86 = vld [vmem:[#allocation6 + $0x90] sm:$0xff]
    %v87 = vld [vmem:[#allocation6 + $0x98] sm:$0xff]
    %v88 = vld [vmem:[#allocation6 + $0xa0] sm:$0xff]
    %v89 = vld [vmem:[#allocation6 + $0xa8] sm:$0xff]
    %v90 = vld [vmem:[#allocation6 + $0xb0] sm:$0xff]
    %v91 = vld [vmem:[#allocation6 + $0xb8] sm:$0xff]
    %v92 = vld [vmem:[#allocation6 + $0xc0] sm:$0xff]
    %v93 = vld [vmem:[#allocation6 + $0xc8] sm:$0xff]
    %v94 = vld [vmem:[#allocation6 + $0xd0] sm:$0xff]
    %v95 = vld [vmem:[#allocation6 + $0xd8] sm:$0xff]
    %v96 = vld [vmem:[#allocation6 + $0xe0] sm:$0xff]
    %v97 = vld [vmem:[#allocation6 + $0xe8] sm:$0xff]
    %v98 = vld [vmem:[#allocation6 + $0xf0] sm:$0xff]
    %v99 = vld [vmem:[#allocation6 + $0xf8] sm:$0xff]
    %v100 = vld [vmem:[#allocation6 + $0x100] sm:$0xff]
    %v101 = vld [vmem:[#allocation6 + $0x108] sm:$0xff]
    %v102 = vld [vmem:[#allocation6 + $0x110] sm:$0xff]
    %v103 = vld [vmem:[#allocation6 + $0x118] sm:$0xff]
    %v104 = vld [vmem:[#allocation6 + $0x120] sm:$0xff]
    %v105 = vld [vmem:[#allocation6 + $0x128] sm:$0xff]
    %v106 = vld [vmem:[#allocation6 + $0x130] sm:$0xff]
    %v107 = vld [vmem:[#allocation6 + $0x138] sm:$0xff]
    %v108 = vld [vmem:[#allocation6 + $0x140] sm:$0xff]
    %v109 = vld [vmem:[#allocation6 + $0x148] sm:$0xff]
    %v110 = vld [vmem:[#allocation6 + $0x150] sm:$0xff]
    %v111 = vld [vmem:[#allocation6 + $0x158] sm:$0xff]
    %v112 = vld [vmem:[#allocation6 + $0x160] sm:$0xff]
    %v113 = vld [vmem:[#allocation6 + $0x168] sm:$0xff]
    %v114 = vld [vmem:[#allocation6 + $0x170] sm:$0xff]
    %v115 = vld [vmem:[#allocation6 + $0x178] sm:$0xff]
    %v116 = vld [vmem:[#allocation6 + $0x180] sm:$0xff]
    %v117 = vld [vmem:[#allocation6 + $0x188] sm:$0xff]
    %v118 = vld [vmem:[#allocation6 + $0x190] sm:$0xff]
    %v119 = vld [vmem:[#allocation6 + $0x198] sm:$0xff]
    %v120 = vld [vmem:[#allocation6 + $0x1a0] sm:$0xff]
    %v121 = vld [vmem:[#allocation6 + $0x1a8] sm:$0xff]
    %v122 = vld [vmem:[#allocation6 + $0x1b0] sm:$0xff]
    %v123 = vld [vmem:[#allocation6 + $0x1b8] sm:$0xff]
    %v124 = vld [vmem:[#allocation6 + $0x1c0] sm:$0xff]
    %v125 = vld [vmem:[#allocation6 + $0x1c8] sm:$0xff]
    %v126 = vld [vmem:[#allocation6 + $0x1d0] sm:$0xff]
    %v127 = vld [vmem:[#allocation6 + $0x1d8] sm:$0xff]
    %v128 = vld [vmem:[#allocation6 + $0x1e0] sm:$0xff]
    %v129 = vld [vmem:[#allocation6 + $0x1e8] sm:$0xff]
    %v130 = vld [vmem:[#allocation6 + $0x1f0] sm:$0xff]
    %v131 = vld [vmem:[#allocation6 + $0x1f8] sm:$0xff]
    %v132 = vld [vmem:[%s3] sm:$0xf]
    %v134 = vlaneseq
    %v135 = vshrl.u32 %v134, 7
    %v136 = vsub.s32 0, %v135
    %v137 = vrot.slane %v132, %v136
    %v138 = vlaneseq
    %v139 = vshrl.u32 %v138, 7
    %v140 = vsub.s32 1, %v139
    %v141 = vrot.slane %v132, %v140
    %v142 = vlaneseq
    %v143 = vshrl.u32 %v142, 7
    %v144 = vsub.s32 2, %v143
    %v145 = vrot.slane %v132, %v144
    %v146 = vlaneseq
    %v147 = vshrl.u32 %v146, 7
    %v148 = vsub.s32 3, %v147
    %v149 = vrot.slane %v132, %v148
    %154 = vmatprep.subr.mxu0 %v69
    %155 = vmatpush1.msra.mxu0 %v68
    %156 = vmatprep.subr.mxu0 %v73
    %157 = vmatpush1.msra.mxu0 %v72
    %158 = vmatprep.subr.mxu0 %v77
    %159 = vmatpush1.msra.mxu0 %v76
    %160 = vmatprep.subr.mxu0 %v81
    %161 = vmatpush1.msra.mxu0 %v80
    %162 = vmatprep.subr.mxu0 %v85
    %163 = vmatpush1.msra.mxu0 %v84
    %164 = vmatprep.subr.mxu0 %v89
    %165 = vmatpush1.msra.mxu0 %v88
    %166 = vmatprep.subr.mxu0 %v93
    %167 = vmatpush1.msra.mxu0 %v92
    %168 = vmatprep.subr.mxu0 %v97
    %169 = vmatpush1.msra.mxu0 %v96
    %170 = vmatprep.subr.mxu0 %v101
    %171 = vmatpush1.msra.mxu0 %v100
    %172 = vmatprep.subr.mxu0 %v105
    %173 = vmatpush1.msra.mxu0 %v104
    %174 = vmatprep.subr.mxu0 %v109
    %175 = vmatpush1.msra.mxu0 %v108
    %176 = vmatprep.subr.mxu0 %v113
    %177 = vmatpush1.msra.mxu0 %v112
    %178 = vmatprep.subr.mxu0 %v117
    %179 = vmatpush1.msra.mxu0 %v116
    %180 = vmatprep.subr.mxu0 %v121
    %181 = vmatpush1.msra.mxu0 %v120
    %182 = vmatprep.subr.mxu0 %v125
    %183 = vmatpush1.msra.mxu0 %v124
    %184 = vmatprep.subr.mxu0 %v129
    %185 = vmatpush1.msra.mxu0 %v128
    %186 = vmatprep.subr.mxu0 0.0
    %187 = vmatpush1.msra.mxu0 0.0
    %188 = vmatprep.subr.mxu0 0.0
    %189 = vmatpush1.msra.mxu0 0.0
    %190 = vmatprep.subr.mxu0 0.0
    %191 = vmatpush1.msra.mxu0 0.0
    %192 = vmatprep.subr.mxu0 0.0
    %193 = vmatpush1.msra.mxu0 0.0
    %194 = vmatprep.subr.mxu0 0.0
    %195 = vmatpush1.msra.mxu0 0.0
    %196 = vmatprep.subr.mxu0 0.0
    %197 = vmatpush1.msra.mxu0 0.0
    %198 = vmatprep.subr.mxu0 0.0
    %199 = vmatpush1.msra.mxu0 0.0
    %200 = vmatprep.subr.mxu0 0.0
    %201 = vmatpush1.msra.mxu0 0.0
    %202 = vmatprep.subr.mxu0 0.0
    %203 = vmatpush1.msra.mxu0 0.0
    %204 = vmatprep.subr.mxu0 0.0
    %205 = vmatpush1.msra.mxu0 0.0
    %206 = vmatprep.subr.mxu0 0.0
    %207 = vmatpush1.msra.mxu0 0.0
    %208 = vmatprep.subr.mxu0 0.0
    %209 = vmatpush1.msra.mxu0 0.0
    %210 = vmatprep.subr.mxu0 0.0
    %211 = vmatpush1.msra.mxu0 0.0
    %212 = vmatprep.subr.mxu0 0.0
    %213 = vmatpush1.msra.mxu0 0.0
    %214 = vmatprep.subr.mxu0 0.0
    %215 = vmatpush1.msra.mxu0 0.0
    %216 = vmatprep.subr.mxu0 0.0
    %217 = vmatpush1.msra.mxu0 0.0
    %218 = vmatprep.mubr.f32.mxu0 0.0
    %219 = vmatmul.mubr.f32.gmra.mrb[0].mxu0 %v67
    %v220 = vpop.f32.mrb[0].mxu0
    %v221 = vadd.f32 %v137, %v220
    %v222 = vpop.f32.mrb[0].mxu0
    %v223 = vadd.f32 %v141, %v222
    %224 = vdwg.mxu0
    %225 = vmatprep.subr.mxu0 %v71
    %226 = vmatpush1.msra.mxu0 %v70
    %227 = vmatprep.subr.mxu0 %v75
    %228 = vmatpush1.msra.mxu0 %v74
    %229 = vmatprep.subr.mxu0 %v79
    %230 = vmatpush1.msra.mxu0 %v78
    %231 = vmatprep.subr.mxu0 %v83
    %232 = vmatpush1.msra.mxu0 %v82
    %233 = vmatprep.subr.mxu0 %v87
    %234 = vmatpush1.msra.mxu0 %v86
    %235 = vmatprep.subr.mxu0 %v91
    %236 = vmatpush1.msra.mxu0 %v90
    %237 = vmatprep.subr.mxu0 %v95
    %238 = vmatpush1.msra.mxu0 %v94
    %239 = vmatprep.subr.mxu0 %v99
    %240 = vmatpush1.msra.mxu0 %v98
    %241 = vmatprep.subr.mxu0 %v103
    %242 = vmatpush1.msra.mxu0 %v102
    %243 = vmatprep.subr.mxu0 %v107
    %244 = vmatpush1.msra.mxu0 %v106
    %245 = vmatprep.subr.mxu0 %v111
    %246 = vmatpush1.msra.mxu0 %v110
    %247 = vmatprep.subr.mxu0 %v115
    %248 = vmatpush1.msra.mxu0 %v114
    %249 = vmatprep.subr.mxu0 %v119
    %250 = vmatpush1.msra.mxu0 %v118
    %251 = vmatprep.subr.mxu0 %v123
    %252 = vmatpush1.msra.mxu0 %v122
    %253 = vmatprep.subr.mxu0 %v127
    %254 = vmatpush1.msra.mxu0 %v126
    %255 = vmatprep.subr.mxu0 %v131
    %256 = vmatpush1.msra.mxu0 %v130
    %257 = vmatprep.subr.mxu0 0.0
    %258 = vmatpush1.msra.mxu0 0.0
    %259 = vmatprep.subr.mxu0 0.0
    %260 = vmatpush1.msra.mxu0 0.0
    %261 = vmatprep.subr.mxu0 0.0
    %262 = vmatpush1.msra.mxu0 0.0
    %263 = vmatprep.subr.mxu0 0.0
    %264 = vmatpush1.msra.mxu0 0.0
    %265 = vmatprep.subr.mxu0 0.0
    %266 = vmatpush1.msra.mxu0 0.0
    %267 = vmatprep.subr.mxu0 0.0
    %268 = vmatpush1.msra.mxu0 0.0
    %269 = vmatprep.subr.mxu0 0.0
    %270 = vmatpush1.msra.mxu0 0.0
    %271 = vmatprep.subr.mxu0 0.0
    %272 = vmatpush1.msra.mxu0 0.0
    %273 = vmatprep.subr.mxu0 0.0
    %274 = vmatpush1.msra.mxu0 0.0
    %275 = vmatprep.subr.mxu0 0.0
    %276 = vmatpush1.msra.mxu0 0.0
    %277 = vmatprep.subr.mxu0 0.0
    %278 = vmatpush1.msra.mxu0 0.0
    %279 = vmatprep.subr.mxu0 0.0
    %280 = vmatpush1.msra.mxu0 0.0
    %281 = vmatprep.subr.mxu0 0.0
    %282 = vmatpush1.msra.mxu0 0.0
    %283 = vmatprep.subr.mxu0 0.0
    %284 = vmatpush1.msra.mxu0 0.0
    %285 = vmatprep.subr.mxu0 0.0
    %286 = vmatpush1.msra.mxu0 0.0
    %287 = vmatprep.subr.mxu0 0.0
    %288 = vmatpush1.msra.mxu0 0.0
    %289 = vmatprep.mubr.f32.mxu0 0.0
    %290 = vmatmul.mubr.f32.gmra.mrb[0].mxu0 %v67
    %v291 = vpop.f32.mrb[0].mxu0
    %v292 = vadd.f32 %v145, %v291
    %v293 = vpop.f32.mrb[0].mxu0
    %v294 = vadd.f32 %v149, %v293
    %295 = vdwg.mxu0
    %296 = vst [vmem:[#allocation3] sm:$0xff] %v221
    %297 = vst [vmem:[#allocation3 + $0x8] sm:$0xff] %v223
    %298 = vst [vmem:[#allocation3 + $0x10] sm:$0xff] %v292
    %299 = vst [vmem:[#allocation3 + $0x18] sm:$0xff] %v294
    %300 = vst [vmem:[#allocation4] sm:$0x1] 0.0
    %301 = vst [vmem:[#allocation5] sm:$0x1] 0.0
    %v302 = vld [vmem:[#allocation9] sm:$0xff]
    %v303 = vld [vmem:[#allocation9 + $0x8] sm:$0xff]
    %v304 = vld [vmem:[#allocation9 + $0x10] sm:$0xff]
    %v305 = vld [vmem:[#allocation9 + $0x18] sm:$0xff]
    %v306 = vld [vmem:[#allocation9 + $0x20] sm:$0xff]
    %v307 = vld [vmem:[#allocation9 + $0x28] sm:$0xff]
    %v308 = vld [vmem:[#allocation9 + $0x30] sm:$0xff]
    %v309 = vld [vmem:[#allocation9 + $0x38] sm:$0xff]
    %v310 = vld [vmem:[#allocation9 + $0x40] sm:$0xff]
    %v311 = vld [vmem:[#allocation9 + $0x48] sm:$0xff]
    %v312 = vld [vmem:[#allocation9 + $0x50] sm:$0xff]
    %v313 = vld [vmem:[#allocation9 + $0x58] sm:$0xff]
    %v314 = vld [vmem:[#allocation9 + $0x60] sm:$0xff]
    %v315 = vld [vmem:[#allocation9 + $0x68] sm:$0xff]
    %v316 = vld [vmem:[#allocation9 + $0x70] sm:$0xff]
    %v317 = vld [vmem:[#allocation9 + $0x78] sm:$0xff]
    %v318 = vld [vmem:[#allocation9 + $0x80] sm:$0xff]
    %v319 = vld [vmem:[#allocation9 + $0x88] sm:$0xff]
    %v320 = vld [vmem:[#allocation9 + $0x90] sm:$0xff]
    %v321 = vld [vmem:[#allocation9 + $0x98] sm:$0xff]
    %v322 = vld [vmem:[#allocation9 + $0xa0] sm:$0xff]
    %v323 = vld [vmem:[#allocation9 + $0xa8] sm:$0xff]
    %v324 = vld [vmem:[#allocation9 + $0xb0] sm:$0xff]
    %v325 = vld [vmem:[#allocation9 + $0xb8] sm:$0xff]
    %v326 = vld [vmem:[#allocation9 + $0xc0] sm:$0xff]
    %v327 = vld [vmem:[#allocation9 + $0xc8] sm:$0xff]
    %v328 = vld [vmem:[#allocation9 + $0xd0] sm:$0xff]
    %v329 = vld [vmem:[#allocation9 + $0xd8] sm:$0xff]
    %v330 = vld [vmem:[#allocation9 + $0xe0] sm:$0xff]
    %v331 = vld [vmem:[#allocation9 + $0xe8] sm:$0xff]
    %v332 = vld [vmem:[#allocation9 + $0xf0] sm:$0xff]
    %v333 = vld [vmem:[#allocation9 + $0xf8] sm:$0xff]
    %v334 = vld [vmem:[#allocation9 + $0x100] sm:$0xff]
    %v335 = vld [vmem:[#allocation9 + $0x108] sm:$0xff]
    %v336 = vld [vmem:[#allocation9 + $0x110] sm:$0xff]
    %v337 = vld [vmem:[#allocation9 + $0x118] sm:$0xff]
    %v338 = vld [vmem:[#allocation9 + $0x120] sm:$0xff]
    %v339 = vld [vmem:[#allocation9 + $0x128] sm:$0xff]
    %v340 = vld [vmem:[#allocation9 + $0x130] sm:$0xff]
    %v341 = vld [vmem:[#allocation9 + $0x138] sm:$0xff]
    %v342 = vld [vmem:[#allocation9 + $0x140] sm:$0xff]
    %v343 = vld [vmem:[#allocation9 + $0x148] sm:$0xff]
    %v344 = vld [vmem:[#allocation9 + $0x150] sm:$0xff]
    %v345 = vld [vmem:[#allocation9 + $0x158] sm:$0xff]
    %v346 = vld [vmem:[#allocation9 + $0x160] sm:$0xff]
    %v347 = vld [vmem:[#allocation9 + $0x168] sm:$0xff]
    %v348 = vld [vmem:[#allocation9 + $0x170] sm:$0xff]
    %v349 = vld [vmem:[#allocation9 + $0x178] sm:$0xff]
    %v350 = vld [vmem:[#allocation9 + $0x180] sm:$0xff]
    %v351 = vld [vmem:[#allocation9 + $0x188] sm:$0xff]
    %v352 = vld [vmem:[#allocation9 + $0x190] sm:$0xff]
    %v353 = vld [vmem:[#allocation9 + $0x198] sm:$0xff]
    %v354 = vld [vmem:[#allocation9 + $0x1a0] sm:$0xff]
    %v355 = vld [vmem:[#allocation9 + $0x1a8] sm:$0xff]
    %v356 = vld [vmem:[#allocation9 + $0x1b0] sm:$0xff]
    %v357 = vld [vmem:[#allocation9 + $0x1b8] sm:$0xff]
    %v358 = vld [vmem:[#allocation9 + $0x1c0] sm:$0xff]
    %v359 = vld [vmem:[#allocation9 + $0x1c8] sm:$0xff]
    %v360 = vld [vmem:[#allocation9 + $0x1d0] sm:$0xff]
    %v361 = vld [vmem:[#allocation9 + $0x1d8] sm:$0xff]
    %v362 = vld [vmem:[#allocation9 + $0x1e0] sm:$0xff]
    %v363 = vld [vmem:[#allocation9 + $0x1e8] sm:$0xff]
    %v364 = vld [vmem:[#allocation9 + $0x1f0] sm:$0xff]
    %v365 = vld [vmem:[#allocation9 + $0x1f8] sm:$0xff]
    %v366 = vld [vmem:[#allocation3] ss:$8 sm:$0xf]
    %v367 = vld [vmem:[#allocation4] sm:$0x1]
    %368 = vmatprep.subr.mxu0 %v303
    %369 = vmatpush1.msra.mxu0 %v302
    %370 = vmatprep.subr.mxu0 %v307
    %371 = vmatpush1.msra.mxu0 %v306
    %372 = vmatprep.subr.mxu0 %v311
    %373 = vmatpush1.msra.mxu0 %v310
    %374 = vmatprep.subr.mxu0 %v315
    %375 = vmatpush1.msra.mxu0 %v314
    %376 = vmatprep.subr.mxu0 %v319
    %377 = vmatpush1.msra.mxu0 %v318
    %378 = vmatprep.subr.mxu0 %v323
    %379 = vmatpush1.msra.mxu0 %v322
    %380 = vmatprep.subr.mxu0 %v327
    %381 = vmatpush1.msra.mxu0 %v326
    %382 = vmatprep.subr.mxu0 %v331
    %383 = vmatpush1.msra.mxu0 %v330
    %384 = vmatprep.subr.mxu0 %v335
    %385 = vmatpush1.msra.mxu0 %v334
    %386 = vmatprep.subr.mxu0 %v339
    %387 = vmatpush1.msra.mxu0 %v338
    %388 = vmatprep.subr.mxu0 %v343
    %389 = vmatpush1.msra.mxu0 %v342
    %390 = vmatprep.subr.mxu0 %v347
    %391 = vmatpush1.msra.mxu0 %v346
    %392 = vmatprep.subr.mxu0 %v351
    %393 = vmatpush1.msra.mxu0 %v350
    %394 = vmatprep.subr.mxu0 %v355
    %395 = vmatpush1.msra.mxu0 %v354
    %396 = vmatprep.subr.mxu0 %v359
    %397 = vmatpush1.msra.mxu0 %v358
    %398 = vmatprep.subr.mxu0 %v363
    %399 = vmatpush1.msra.mxu0 %v362
    %400 = vmatprep.subr.mxu0 0.0
    %401 = vmatpush1.msra.mxu0 0.0
    %402 = vmatprep.subr.mxu0 0.0
    %403 = vmatpush1.msra.mxu0 0.0
    %404 = vmatprep.subr.mxu0 0.0
    %405 = vmatpush1.msra.mxu0 0.0
    %406 = vmatprep.subr.mxu0 0.0
    %407 = vmatpush1.msra.mxu0 0.0
    %408 = vmatprep.subr.mxu0 0.0
    %409 = vmatpush1.msra.mxu0 0.0
    %410 = vmatprep.subr.mxu0 0.0
    %411 = vmatpush1.msra.mxu0 0.0
    %412 = vmatprep.subr.mxu0 0.0
    %413 = vmatpush1.msra.mxu0 0.0
    %414 = vmatprep.subr.mxu0 0.0
    %415 = vmatpush1.msra.mxu0 0.0
    %416 = vmatprep.subr.mxu0 0.0
    %417 = vmatpush1.msra.mxu0 0.0
    %418 = vmatprep.subr.mxu0 0.0
    %419 = vmatpush1.msra.mxu0 0.0
    %420 = vmatprep.subr.mxu0 0.0
    %421 = vmatpush1.msra.mxu0 0.0
    %422 = vmatprep.subr.mxu0 0.0
    %423 = vmatpush1.msra.mxu0 0.0
    %424 = vmatprep.subr.mxu0 0.0
    %425 = vmatpush1.msra.mxu0 0.0
    %426 = vmatprep.subr.mxu0 0.0
    %427 = vmatpush1.msra.mxu0 0.0
    %428 = vmatprep.subr.mxu0 0.0
    %429 = vmatpush1.msra.mxu0 0.0
    %430 = vmatprep.subr.mxu0 0.0
    %431 = vmatpush1.msra.mxu0 0.0
    %432 = vmatprep.mubr.f32.mxu0 0.0
    %433 = vmatmul.mubr.f32.gmra.mrb[0].mxu0 %v367
    %v434 = vpop.f32.mrb[0].mxu0
    %v435 = vadd.f32 0.0, %v434
    %v436 = vpop.f32.mrb[0].mxu0
    %v437 = vadd.f32 0.0, %v436
    %438 = vdwg.mxu0
    %439 = vmatprep.subr.mxu0 %v305
    %440 = vmatpush1.msra.mxu0 %v304
    %441 = vmatprep.subr.mxu0 %v309
    %442 = vmatpush1.msra.mxu0 %v308
    %443 = vmatprep.subr.mxu0 %v313
    %444 = vmatpush1.msra.mxu0 %v312
    %445 = vmatprep.subr.mxu0 %v317
    %446 = vmatpush1.msra.mxu0 %v316
    %447 = vmatprep.subr.mxu0 %v321
    %448 = vmatpush1.msra.mxu0 %v320
    %449 = vmatprep.subr.mxu0 %v325
    %450 = vmatpush1.msra.mxu0 %v324
    %451 = vmatprep.subr.mxu0 %v329
    %452 = vmatpush1.msra.mxu0 %v328
    %453 = vmatprep.subr.mxu0 %v333
    %454 = vmatpush1.msra.mxu0 %v332
    %455 = vmatprep.subr.mxu0 %v337
    %456 = vmatpush1.msra.mxu0 %v336
    %457 = vmatprep.subr.mxu0 %v341
    %458 = vmatpush1.msra.mxu0 %v340
    %459 = vmatprep.subr.mxu0 %v345
    %460 = vmatpush1.msra.mxu0 %v344
    %461 = vmatprep.subr.mxu0 %v349
    %462 = vmatpush1.msra.mxu0 %v348
    %463 = vmatprep.subr.mxu0 %v353
    %464 = vmatpush1.msra.mxu0 %v352
    %465 = vmatprep.subr.mxu0 %v357
    %466 = vmatpush1.msra.mxu0 %v356
    %467 = vmatprep.subr.mxu0 %v361
    %468 = vmatpush1.msra.mxu0 %v360
    %469 = vmatprep.subr.mxu0 %v365
    %470 = vmatpush1.msra.mxu0 %v364
    %471 = vmatprep.subr.mxu0 0.0
    %472 = vmatpush1.msra.mxu0 0.0
    %473 = vmatprep.subr.mxu0 0.0
    %474 = vmatpush1.msra.mxu0 0.0
    %475 = vmatprep.subr.mxu0 0.0
    %476 = vmatpush1.msra.mxu0 0.0
    %477 = vmatprep.subr.mxu0 0.0
    %478 = vmatpush1.msra.mxu0 0.0
    %479 = vmatprep.subr.mxu0 0.0
    %480 = vmatpush1.msra.mxu0 0.0
    %481 = vmatprep.subr.mxu0 0.0
    %482 = vmatpush1.msra.mxu0 0.0
    %483 = vmatprep.subr.mxu0 0.0
    %484 = vmatpush1.msra.mxu0 0.0
    %485 = vmatprep.subr.mxu0 0.0
    %486 = vmatpush1.msra.mxu0 0.0
    %487 = vmatprep.subr.mxu0 0.0
    %488 = vmatpush1.msra.mxu0 0.0
    %489 = vmatprep.subr.mxu0 0.0
    %490 = vmatpush1.msra.mxu0 0.0
    %491 = vmatprep.subr.mxu0 0.0
    %492 = vmatpush1.msra.mxu0 0.0
    %493 = vmatprep.subr.mxu0 0.0
    %494 = vmatpush1.msra.mxu0 0.0
    %495 = vmatprep.subr.mxu0 0.0
    %496 = vmatpush1.msra.mxu0 0.0
    %497 = vmatprep.subr.mxu0 0.0
    %498 = vmatpush1.msra.mxu0 0.0
    %499 = vmatprep.subr.mxu0 0.0
    %500 = vmatpush1.msra.mxu0 0.0
    %501 = vmatprep.subr.mxu0 0.0
    %502 = vmatpush1.msra.mxu0 0.0
    %503 = vmatprep.mubr.f32.mxu0 0.0
    %504 = vmatmul.mubr.f32.gmra.mrb[0].mxu0 %v367
    %v505 = vpop.f32.mrb[0].mxu0
    %v506 = vadd.f32 0.0, %v505
    %v507 = vpop.f32.mrb[0].mxu0
    %v508 = vadd.f32 0.0, %v507
    %509 = vdwg.mxu0
    %v514 = vcombine.low %v435, %v437
    %v515 = vcombine.low %v506, %v508
    %v517 = vunpack.c.l.s4 1966171168
    %v518 = vunpack.c.0.s8 %v517
    %v519 = vlaneseq
    %v520 = vshrl.u32 %v519, 7
    %v521 = vsub.s32 %v518, %v520
    %v522 = vrot.slane %v514, %v521
    %v524 = vunpack.c.l.s4 1966171168
    %v525 = vunpack.c.0.s8 %v524
    %v526 = vlaneseq
    %v527 = vshrl.u32 %v526, 7
    %v528 = vsub.s32 %v525, %v527
    %v529 = vrot.slane %v515, %v528
    %v530 = vcombine.low %v522, %v529
    %v532 = vunpack.c.l.s4 1966171168
    %v533 = vunpack.c.0.s8 %v532
    %v534 = vlaneseq
    %v535 = vshrl.u32 %v534, 7
    %v536 = vsub.s32 %v533, %v535
    %v537 = vrot.slane %v530, %v536
    %v539 = vadd.f32 %v366, %v537
    %v540 = vxor.u32 %v539, 2147483648
    %v541 = vmul.f32 %v540, 1.442695
    %v542 = vpow.pop %v541
    %v543 = vadd.f32 %v542, 1.0
    %v544 = vrcp.pop %v543
    %v545 = vmul.f32 1.0, %v544
    %v547 = vrot.slane %v539, 1
    %v549 = vxor.u32 %v547, 2147483648
    %v550 = vmul.f32 %v549, 1.442695
    %v551 = vpow.pop %v550
    %v552 = vadd.f32 %v551, 1.0
    %v553 = vrcp.pop %v552
    %v554 = vmul.f32 1.0, %v553
    %v555 = vrot.slane %v539, 2
    %v557 = vtanh.pop %v555
    %v558 = vrot.slane %v539, 3
    %v560 = vxor.u32 %v558, 2147483648
    %v561 = vmul.f32 %v560, 1.442695
    %v562 = vpow.pop %v561
    %v563 = vadd.f32 %v562, 1.0
    %v564 = vrcp.pop %v563
    %v565 = vmul.f32 1.0, %v564
    %v566 = vld [vmem:[#allocation5] sm:$0x1]
    %v567 = vmul.f32 %v554, %v566
    %v568 = vmul.f32 %v545, %v557
    %v569 = vadd.f32 %v567, %v568
    %v570 = vtanh.pop %v569
    %v571 = vmul.f32 %v565, %v570
    %572 = vst [vmem:[#allocation5] sm:$0x1] %v569
    %573 = vst [vmem:[#allocation4] sm:$0x1] %v571
    %574 = vst [vmem:[#allocation2] sm:$0x1] %v571
    %s575 = scalar_lea.vmem [#allocation3], 1
    %v576 = vld [vmem:[%s575] ss:$8 sm:$0xf]
    %v577 = vld [vmem:[#allocation4] sm:$0x1]
    %578 = vmatprep.subr.mxu0 %v303
    %579 = vmatpush1.msra.mxu0 %v302
    %580 = vmatprep.subr.mxu0 %v307
    %581 = vmatpush1.msra.mxu0 %v306
    %582 = vmatprep.subr.mxu0 %v311
    %583 = vmatpush1.msra.mxu0 %v310
    %584 = vmatprep.subr.mxu0 %v315
    %585 = vmatpush1.msra.mxu0 %v314
    %586 = vmatprep.subr.mxu0 %v319
    %587 = vmatpush1.msra.mxu0 %v318
    %588 = vmatprep.subr.mxu0 %v323
    %589 = vmatpush1.msra.mxu0 %v322
    %590 = vmatprep.subr.mxu0 %v327
    %591 = vmatpush1.msra.mxu0 %v326
    %592 = vmatprep.subr.mxu0 %v331
    %593 = vmatpush1.msra.mxu0 %v330
    %594 = vmatprep.subr.mxu0 %v335
    %595 = vmatpush1.msra.mxu0 %v334
    %596 = vmatprep.subr.mxu0 %v339
    %597 = vmatpush1.msra.mxu0 %v338
    %598 = vmatprep.subr.mxu0 %v343
    %599 = vmatpush1.msra.mxu0 %v342
    %600 = vmatprep.subr.mxu0 %v347
    %601 = vmatpush1.msra.mxu0 %v346
    %602 = vmatprep.subr.mxu0 %v351
    %603 = vmatpush1.msra.mxu0 %v350
    %604 = vmatprep.subr.mxu0 %v355
    %605 = vmatpush1.msra.mxu0 %v354
    %606 = vmatprep.subr.mxu0 %v359
    %607 = vmatpush1.msra.mxu0 %v358
    %608 = vmatprep.subr.mxu0 %v363
    %609 = vmatpush1.msra.mxu0 %v362
    %610 = vmatprep.subr.mxu0 0.0
    %611 = vmatpush1.msra.mxu0 0.0
    %612 = vmatprep.subr.mxu0 0.0
    %613 = vmatpush1.msra.mxu0 0.0
    %614 = vmatprep.subr.mxu0 0.0
    %615 = vmatpush1.msra.mxu0 0.0
    %616 = vmatprep.subr.mxu0 0.0
    %617 = vmatpush1.msra.mxu0 0.0
    %618 = vmatprep.subr.mxu0 0.0
    %619 = vmatpush1.msra.mxu0 0.0
    %620 = vmatprep.subr.mxu0 0.0
    %621 = vmatpush1.msra.mxu0 0.0
    %622 = vmatprep.subr.mxu0 0.0
    %623 = vmatpush1.msra.mxu0 0.0
    %624 = vmatprep.subr.mxu0 0.0
    %625 = vmatpush1.msra.mxu0 0.0
    %626 = vmatprep.subr.mxu0 0.0
    %627 = vmatpush1.msra.mxu0 0.0
    %628 = vmatprep.subr.mxu0 0.0
    %629 = vmatpush1.msra.mxu0 0.0
    %630 = vmatprep.subr.mxu0 0.0
    %631 = vmatpush1.msra.mxu0 0.0
    %632 = vmatprep.subr.mxu0 0.0
    %633 = vmatpush1.msra.mxu0 0.0
    %634 = vmatprep.subr.mxu0 0.0
    %635 = vmatpush1.msra.mxu0 0.0
    %636 = vmatprep.subr.mxu0 0.0
    %637 = vmatpush1.msra.mxu0 0.0
    %638 = vmatprep.subr.mxu0 0.0
    %639 = vmatpush1.msra.mxu0 0.0
    %640 = vmatprep.subr.mxu0 0.0
    %641 = vmatpush1.msra.mxu0 0.0
    %642 = vmatprep.mubr.f32.mxu0 0.0
    %643 = vmatmul.mubr.f32.gmra.mrb[0].mxu0 %v577
    %v644 = vpop.f32.mrb[0].mxu0
    %v645 = vadd.f32 0.0, %v644
    %v646 = vpop.f32.mrb[0].mxu0
    %v647 = vadd.f32 0.0, %v646
    %648 = vdwg.mxu0
    %649 = vmatprep.subr.mxu0 %v305
    %650 = vmatpush1.msra.mxu0 %v304
    %651 = vmatprep.subr.mxu0 %v309
    %652 = vmatpush1.msra.mxu0 %v308
    %653 = vmatprep.subr.mxu0 %v313
    %654 = vmatpush1.msra.mxu0 %v312
    %655 = vmatprep.subr.mxu0 %v317
    %656 = vmatpush1.msra.mxu0 %v316
    %657 = vmatprep.subr.mxu0 %v321
    %658 = vmatpush1.msra.mxu0 %v320
    %659 = vmatprep.subr.mxu0 %v325
    %660 = vmatpush1.msra.mxu0 %v324
    %661 = vmatprep.subr.mxu0 %v329
    %662 = vmatpush1.msra.mxu0 %v328
    %663 = vmatprep.subr.mxu0 %v333
    %664 = vmatpush1.msra.mxu0 %v332
    %665 = vmatprep.subr.mxu0 %v337
    %666 = vmatpush1.msra.mxu0 %v336
    %667 = vmatprep.subr.mxu0 %v341
    %668 = vmatpush1.msra.mxu0 %v340
    %669 = vmatprep.subr.mxu0 %v345
    %670 = vmatpush1.msra.mxu0 %v344
    %671 = vmatprep.subr.mxu0 %v349
    %672 = vmatpush1.msra.mxu0 %v348
    %673 = vmatprep.subr.mxu0 %v353
    %674 = vmatpush1.msra.mxu0 %v352
    %675 = vmatprep.subr.mxu0 %v357
    %676 = vmatpush1.msra.mxu0 %v356
    %677 = vmatprep.subr.mxu0 %v361
    %678 = vmatpush1.msra.mxu0 %v360
    %679 = vmatprep.subr.mxu0 %v365
    %680 = vmatpush1.msra.mxu0 %v364
    %681 = vmatprep.subr.mxu0 0.0
    %682 = vmatpush1.msra.mxu0 0.0
    %683 = vmatprep.subr.mxu0 0.0
    %684 = vmatpush1.msra.mxu0 0.0
    %685 = vmatprep.subr.mxu0 0.0
    %686 = vmatpush1.msra.mxu0 0.0
    %687 = vmatprep.subr.mxu0 0.0
    %688 = vmatpush1.msra.mxu0 0.0
    %689 = vmatprep.subr.mxu0 0.0
    %690 = vmatpush1.msra.mxu0 0.0
    %691 = vmatprep.subr.mxu0 0.0
    %692 = vmatpush1.msra.mxu0 0.0
    %693 = vmatprep.subr.mxu0 0.0
    %694 = vmatpush1.msra.mxu0 0.0
    %695 = vmatprep.subr.mxu0 0.0
    %696 = vmatpush1.msra.mxu0 0.0
    %697 = vmatprep.subr.mxu0 0.0
    %698 = vmatpush1.msra.mxu0 0.0
    %699 = vmatprep.subr.mxu0 0.0
    %700 = vmatpush1.msra.mxu0 0.0
    %701 = vmatprep.subr.mxu0 0.0
    %702 = vmatpush1.msra.mxu0 0.0
    %703 = vmatprep.subr.mxu0 0.0
    %704 = vmatpush1.msra.mxu0 0.0
    %705 = vmatprep.subr.mxu0 0.0
    %706 = vmatpush1.msra.mxu0 0.0
    %707 = vmatprep.subr.mxu0 0.0
    %708 = vmatpush1.msra.mxu0 0.0
    %709 = vmatprep.subr.mxu0 0.0
    %710 = vmatpush1.msra.mxu0 0.0
    %711 = vmatprep.subr.mxu0 0.0
    %712 = vmatpush1.msra.mxu0 0.0
    %713 = vmatprep.mubr.f32.mxu0 0.0
    %714 = vmatmul.mubr.f32.gmra.mrb[0].mxu0 %v577
    %v715 = vpop.f32.mrb[0].mxu0
    %v716 = vadd.f32 0.0, %v715
    %v717 = vpop.f32.mrb[0].mxu0
    %v718 = vadd.f32 0.0, %v717
    %719 = vdwg.mxu0
    %v724 = vcombine.low %v645, %v647
    %v725 = vcombine.low %v716, %v718
    %v727 = vunpack.c.l.s4 1966171168
    %v728 = vunpack.c.0.s8 %v727
    %v729 = vlaneseq
    %v730 = vshrl.u32 %v729, 7
    %v731 = vsub.s32 %v728, %v730
    %v732 = vrot.slane %v724, %v731
    %v734 = vunpack.c.l.s4 1966171168
    %v735 = vunpack.c.0.s8 %v734
    %v736 = vlaneseq
    %v737 = vshrl.u32 %v736, 7
    %v738 = vsub.s32 %v735, %v737
    %v739 = vrot.slane %v725, %v738
    %v740 = vcombine.low %v732, %v739
    %v742 = vunpack.c.l.s4 1966171168
    %v743 = vunpack.c.0.s8 %v742
    %v744 = vlaneseq
    %v745 = vshrl.u32 %v744, 7
    %v746 = vsub.s32 %v743, %v745
    %v747 = vrot.slane %v740, %v746
    %v749 = vadd.f32 %v576, %v747
    %v750 = vxor.u32 %v749, 2147483648
    %v751 = vmul.f32 %v750, 1.442695
    %v752 = vpow.pop %v751
    %v753 = vadd.f32 %v752, 1.0
    %v754 = vrcp.pop %v753
    %v755 = vmul.f32 1.0, %v754
    %v757 = vrot.slane %v749, 1
    %v759 = vxor.u32 %v757, 2147483648
    %v760 = vmul.f32 %v759, 1.442695
    %v761 = vpow.pop %v760
    %v762 = vadd.f32 %v761, 1.0
    %v763 = vrcp.pop %v762
    %v764 = vmul.f32 1.0, %v763
    %v765 = vrot.slane %v749, 2
    %v767 = vtanh.pop %v765
    %v768 = vrot.slane %v749, 3
    %v770 = vxor.u32 %v768, 2147483648
    %v771 = vmul.f32 %v770, 1.442695
    %v772 = vpow.pop %v771
    %v773 = vadd.f32 %v772, 1.0
    %v774 = vrcp.pop %v773
    %v775 = vmul.f32 1.0, %v774
    %v776 = vld [vmem:[#allocation5] sm:$0x1]
    %v777 = vmul.f32 %v764, %v776
    %v778 = vmul.f32 %v755, %v767
    %v779 = vadd.f32 %v777, %v778
    %v780 = vtanh.pop %v779
    %v781 = vmul.f32 %v775, %v780
    %782 = vst [vmem:[#allocation5] sm:$0x1] %v779
    %783 = vst [vmem:[#allocation4] sm:$0x1] %v781
    %784 = vst [vmem:[#allocation2 + $0x1] sm:$0x1] %v781
    %s785 = scalar_lea.vmem [#allocation3], 2
    %v786 = vld [vmem:[%s785] ss:$8 sm:$0xf]
    %v787 = vld [vmem:[#allocation4] sm:$0x1]
    %788 = vmatprep.subr.mxu0 %v303
    %789 = vmatpush1.msra.mxu0 %v302
    %790 = vmatprep.subr.mxu0 %v307
    %791 = vmatpush1.msra.mxu0 %v306
    %792 = vmatprep.subr.mxu0 %v311
    %793 = vmatpush1.msra.mxu0 %v310
    %794 = vmatprep.subr.mxu0 %v315
    %795 = vmatpush1.msra.mxu0 %v314
    %796 = vmatprep.subr.mxu0 %v319
    %797 = vmatpush1.msra.mxu0 %v318
    %798 = vmatprep.subr.mxu0 %v323
    %799 = vmatpush1.msra.mxu0 %v322
    %800 = vmatprep.subr.mxu0 %v327
    %801 = vmatpush1.msra.mxu0 %v326
    %802 = vmatprep.subr.mxu0 %v331
    %803 = vmatpush1.msra.mxu0 %v330
    %804 = vmatprep.subr.mxu0 %v335
    %805 = vmatpush1.msra.mxu0 %v334
    %806 = vmatprep.subr.mxu0 %v339
    %807 = vmatpush1.msra.mxu0 %v338
    %808 = vmatprep.subr.mxu0 %v343
    %809 = vmatpush1.msra.mxu0 %v342
    %810 = vmatprep.subr.mxu0 %v347
    %811 = vmatpush1.msra.mxu0 %v346
    %812 = vmatprep.subr.mxu0 %v351
    %813 = vmatpush1.msra.mxu0 %v350
    %814 = vmatprep.subr.mxu0 %v355
    %815 = vmatpush1.msra.mxu0 %v354
    %816 = vmatprep.subr.mxu0 %v359
    %817 = vmatpush1.msra.mxu0 %v358
    %818 = vmatprep.subr.mxu0 %v363
    %819 = vmatpush1.msra.mxu0 %v362
    %820 = vmatprep.subr.mxu0 0.0
    %821 = vmatpush1.msra.mxu0 0.0
    %822 = vmatprep.subr.mxu0 0.0
    %823 = vmatpush1.msra.mxu0 0.0
    %824 = vmatprep.subr.mxu0 0.0
    %825 = vmatpush1.msra.mxu0 0.0
    %826 = vmatprep.subr.mxu0 0.0
    %827 = vmatpush1.msra.mxu0 0.0
    %828 = vmatprep.subr.mxu0 0.0
    %829 = vmatpush1.msra.mxu0 0.0
    %830 = vmatprep.subr.mxu0 0.0
    %831 = vmatpush1.msra.mxu0 0.0
    %832 = vmatprep.subr.mxu0 0.0
    %833 = vmatpush1.msra.mxu0 0.0
    %834 = vmatprep.subr.mxu0 0.0
    %835 = vmatpush1.msra.mxu0 0.0
    %836 = vmatprep.subr.mxu0 0.0
    %837 = vmatpush1.msra.mxu0 0.0
    %838 = vmatprep.subr.mxu0 0.0
    %839 = vmatpush1.msra.mxu0 0.0
    %840 = vmatprep.subr.mxu0 0.0
    %841 = vmatpush1.msra.mxu0 0.0
    %842 = vmatprep.subr.mxu0 0.0
    %843 = vmatpush1.msra.mxu0 0.0
    %844 = vmatprep.subr.mxu0 0.0
    %845 = vmatpush1.msra.mxu0 0.0
    %846 = vmatprep.subr.mxu0 0.0
    %847 = vmatpush1.msra.mxu0 0.0
    %848 = vmatprep.subr.mxu0 0.0
    %849 = vmatpush1.msra.mxu0 0.0
    %850 = vmatprep.subr.mxu0 0.0
    %851 = vmatpush1.msra.mxu0 0.0
    %852 = vmatprep.mubr.f32.mxu0 0.0
    %853 = vmatmul.mubr.f32.gmra.mrb[0].mxu0 %v787
    %v854 = vpop.f32.mrb[0].mxu0
    %v855 = vadd.f32 0.0, %v854
    %v856 = vpop.f32.mrb[0].mxu0
    %v857 = vadd.f32 0.0, %v856
    %858 = vdwg.mxu0
    %859 = vmatprep.subr.mxu0 %v305
    %860 = vmatpush1.msra.mxu0 %v304
    %861 = vmatprep.subr.mxu0 %v309
    %862 = vmatpush1.msra.mxu0 %v308
    %863 = vmatprep.subr.mxu0 %v313
    %864 = vmatpush1.msra.mxu0 %v312
    %865 = vmatprep.subr.mxu0 %v317
    %866 = vmatpush1.msra.mxu0 %v316
    %867 = vmatprep.subr.mxu0 %v321
    %868 = vmatpush1.msra.mxu0 %v320
    %869 = vmatprep.subr.mxu0 %v325
    %870 = vmatpush1.msra.mxu0 %v324
    %871 = vmatprep.subr.mxu0 %v329
    %872 = vmatpush1.msra.mxu0 %v328
    %873 = vmatprep.subr.mxu0 %v333
    %874 = vmatpush1.msra.mxu0 %v332
    %875 = vmatprep.subr.mxu0 %v337
    %876 = vmatpush1.msra.mxu0 %v336
    %877 = vmatprep.subr.mxu0 %v341
    %878 = vmatpush1.msra.mxu0 %v340
    %879 = vmatprep.subr.mxu0 %v345
    %880 = vmatpush1.msra.mxu0 %v344
    %881 = vmatprep.subr.mxu0 %v349
    %882 = vmatpush1.msra.mxu0 %v348
    %883 = vmatprep.subr.mxu0 %v353
    %884 = vmatpush1.msra.mxu0 %v352
    %885 = vmatprep.subr.mxu0 %v357
    %886 = vmatpush1.msra.mxu0 %v356
    %887 = vmatprep.subr.mxu0 %v361
    %888 = vmatpush1.msra.mxu0 %v360
    %889 = vmatprep.subr.mxu0 %v365
    %890 = vmatpush1.msra.mxu0 %v364
    %891 = vmatprep.subr.mxu0 0.0
    %892 = vmatpush1.msra.mxu0 0.0
    %893 = vmatprep.subr.mxu0 0.0
    %894 = vmatpush1.msra.mxu0 0.0
    %895 = vmatprep.subr.mxu0 0.0
    %896 = vmatpush1.msra.mxu0 0.0
    %897 = vmatprep.subr.mxu0 0.0
    %898 = vmatpush1.msra.mxu0 0.0
    %899 = vmatprep.subr.mxu0 0.0
    %900 = vmatpush1.msra.mxu0 0.0
    %901 = vmatprep.subr.mxu0 0.0
    %902 = vmatpush1.msra.mxu0 0.0
    %903 = vmatprep.subr.mxu0 0.0
    %904 = vmatpush1.msra.mxu0 0.0
    %905 = vmatprep.subr.mxu0 0.0
    %906 = vmatpush1.msra.mxu0 0.0
    %907 = vmatprep.subr.mxu0 0.0
    %908 = vmatpush1.msra.mxu0 0.0
    %909 = vmatprep.subr.mxu0 0.0
    %910 = vmatpush1.msra.mxu0 0.0
    %911 = vmatprep.subr.mxu0 0.0
    %912 = vmatpush1.msra.mxu0 0.0
    %913 = vmatprep.subr.mxu0 0.0
    %914 = vmatpush1.msra.mxu0 0.0
    %915 = vmatprep.subr.mxu0 0.0
    %916 = vmatpush1.msra.mxu0 0.0
    %917 = vmatprep.subr.mxu0 0.0
    %918 = vmatpush1.msra.mxu0 0.0
    %919 = vmatprep.subr.mxu0 0.0
    %920 = vmatpush1.msra.mxu0 0.0
    %921 = vmatprep.subr.mxu0 0.0
    %922 = vmatpush1.msra.mxu0 0.0
    %923 = vmatprep.mubr.f32.mxu0 0.0
    %924 = vmatmul.mubr.f32.gmra.mrb[0].mxu0 %v787
    %v925 = vpop.f32.mrb[0].mxu0
    %v926 = vadd.f32 0.0, %v925
    %v927 = vpop.f32.mrb[0].mxu0
    %v928 = vadd.f32 0.0, %v927
    %929 = vdwg.mxu0
    %v934 = vcombine.low %v855, %v857
    %v935 = vcombine.low %v926, %v928
    %v937 = vunpack.c.l.s4 1966171168
    %v938 = vunpack.c.0.s8 %v937
    %v939 = vlaneseq
    %v940 = vshrl.u32 %v939, 7
    %v941 = vsub.s32 %v938, %v940
    %v942 = vrot.slane %v934, %v941
    %v944 = vunpack.c.l.s4 1966171168
    %v945 = vunpack.c.0.s8 %v944
    %v946 = vlaneseq
    %v947 = vshrl.u32 %v946, 7
    %v948 = vsub.s32 %v945, %v947
    %v949 = vrot.slane %v935, %v948
    %v950 = vcombine.low %v942, %v949
    %v952 = vunpack.c.l.s4 1966171168
    %v953 = vunpack.c.0.s8 %v952
    %v954 = vlaneseq
    %v955 = vshrl.u32 %v954, 7
    %v956 = vsub.s32 %v953, %v955
    %v957 = vrot.slane %v950, %v956
    %v959 = vadd.f32 %v786, %v957
    %v960 = vxor.u32 %v959, 2147483648
    %v961 = vmul.f32 %v960, 1.442695
    %v962 = vpow.pop %v961
    %v963 = vadd.f32 %v962, 1.0
    %v964 = vrcp.pop %v963
    %v965 = vmul.f32 1.0, %v964
    %v967 = vrot.slane %v959, 1
    %v969 = vxor.u32 %v967, 2147483648
    %v970 = vmul.f32 %v969, 1.442695
    %v971 = vpow.pop %v970
    %v972 = vadd.f32 %v971, 1.0
    %v973 = vrcp.pop %v972
    %v974 = vmul.f32 1.0, %v973
    %v975 = vrot.slane %v959, 2
    %v977 = vtanh.pop %v975
    %v978 = vrot.slane %v959, 3
    %v980 = vxor.u32 %v978, 2147483648
    %v981 = vmul.f32 %v980, 1.442695
    %v982 = vpow.pop %v981
    %v983 = vadd.f32 %v982, 1.0
    %v984 = vrcp.pop %v983
    %v985 = vmul.f32 1.0, %v984
    %v986 = vld [vmem:[#allocation5] sm:$0x1]
    %v987 = vmul.f32 %v974, %v986
    %v988 = vmul.f32 %v965, %v977
    %v989 = vadd.f32 %v987, %v988
    %v990 = vtanh.pop %v989
    %v991 = vmul.f32 %v985, %v990
    %992 = vst [vmem:[#allocation5] sm:$0x1] %v989
    %993 = vst [vmem:[#allocation4] sm:$0x1] %v991
    %994 = vst [vmem:[#allocation2 + $0x2] sm:$0x1] %v991
    %s995 = scalar_lea.vmem [#allocation3], 3
    %v996 = vld [vmem:[%s995] ss:$8 sm:$0xf]
    %v997 = vld [vmem:[#allocation4] sm:$0x1]
    %998 = vmatprep.subr.mxu0 %v303
    %999 = vmatpush1.msra.mxu0 %v302
    %1000 = vmatprep.subr.mxu0 %v307
    %1001 = vmatpush1.msra.mxu0 %v306
    %1002 = vmatprep.subr.mxu0 %v311
    %1003 = vmatpush1.msra.mxu0 %v310
    %1004 = vmatprep.subr.mxu0 %v315
    %1005 = vmatpush1.msra.mxu0 %v314
    %1006 = vmatprep.subr.mxu0 %v319
    %1007 = vmatpush1.msra.mxu0 %v318
    %1008 = vmatprep.subr.mxu0 %v323
    %1009 = vmatpush1.msra.mxu0 %v322
    %1010 = vmatprep.subr.mxu0 %v327
    %1011 = vmatpush1.msra.mxu0 %v326
    %1012 = vmatprep.subr.mxu0 %v331
    %1013 = vmatpush1.msra.mxu0 %v330
    %1014 = vmatprep.subr.mxu0 %v335
    %1015 = vmatpush1.msra.mxu0 %v334
    %1016 = vmatprep.subr.mxu0 %v339
    %1017 = vmatpush1.msra.mxu0 %v338
    %1018 = vmatprep.subr.mxu0 %v343
    %1019 = vmatpush1.msra.mxu0 %v342
    %1020 = vmatprep.subr.mxu0 %v347
    %1021 = vmatpush1.msra.mxu0 %v346
    %1022 = vmatprep.subr.mxu0 %v351
    %1023 = vmatpush1.msra.mxu0 %v350
    %1024 = vmatprep.subr.mxu0 %v355
    %1025 = vmatpush1.msra.mxu0 %v354
    %1026 = vmatprep.subr.mxu0 %v359
    %1027 = vmatpush1.msra.mxu0 %v358
    %1028 = vmatprep.subr.mxu0 %v363
    %1029 = vmatpush1.msra.mxu0 %v362
    %1030 = vmatprep.subr.mxu0 0.0
    %1031 = vmatpush1.msra.mxu0 0.0
    %1032 = vmatprep.subr.mxu0 0.0
    %1033 = vmatpush1.msra.mxu0 0.0
    %1034 = vmatprep.subr.mxu0 0.0
    %1035 = vmatpush1.msra.mxu0 0.0
    %1036 = vmatprep.subr.mxu0 0.0
    %1037 = vmatpush1.msra.mxu0 0.0
    %1038 = vmatprep.subr.mxu0 0.0
    %1039 = vmatpush1.msra.mxu0 0.0
    %1040 = vmatprep.subr.mxu0 0.0
    %1041 = vmatpush1.msra.mxu0 0.0
    %1042 = vmatprep.subr.mxu0 0.0
    %1043 = vmatpush1.msra.mxu0 0.0
    %1044 = vmatprep.subr.mxu0 0.0
    %1045 = vmatpush1.msra.mxu0 0.0
    %1046 = vmatprep.subr.mxu0 0.0
    %1047 = vmatpush1.msra.mxu0 0.0
    %1048 = vmatprep.subr.mxu0 0.0
    %1049 = vmatpush1.msra.mxu0 0.0
    %1050 = vmatprep.subr.mxu0 0.0
    %1051 = vmatpush1.msra.mxu0 0.0
    %1052 = vmatprep.subr.mxu0 0.0
    %1053 = vmatpush1.msra.mxu0 0.0
    %1054 = vmatprep.subr.mxu0 0.0
    %1055 = vmatpush1.msra.mxu0 0.0
    %1056 = vmatprep.subr.mxu0 0.0
    %1057 = vmatpush1.msra.mxu0 0.0
    %1058 = vmatprep.subr.mxu0 0.0
    %1059 = vmatpush1.msra.mxu0 0.0
    %1060 = vmatprep.subr.mxu0 0.0
    %1061 = vmatpush1.msra.mxu0 0.0
    %1062 = vmatprep.mubr.f32.mxu0 0.0
    %1063 = vmatmul.mubr.f32.gmra.mrb[0].mxu0 %v997
    %v1064 = vpop.f32.mrb[0].mxu0
    %v1065 = vadd.f32 0.0, %v1064
    %v1066 = vpop.f32.mrb[0].mxu0
    %v1067 = vadd.f32 0.0, %v1066
    %1068 = vdwg.mxu0
    %1069 = vmatprep.subr.mxu0 %v305
    %1070 = vmatpush1.msra.mxu0 %v304
    %1071 = vmatprep.subr.mxu0 %v309
    %1072 = vmatpush1.msra.mxu0 %v308
    %1073 = vmatprep.subr.mxu0 %v313
    %1074 = vmatpush1.msra.mxu0 %v312
    %1075 = vmatprep.subr.mxu0 %v317
    %1076 = vmatpush1.msra.mxu0 %v316
    %1077 = vmatprep.subr.mxu0 %v321
    %1078 = vmatpush1.msra.mxu0 %v320
    %1079 = vmatprep.subr.mxu0 %v325
    %1080 = vmatpush1.msra.mxu0 %v324
    %1081 = vmatprep.subr.mxu0 %v329
    %1082 = vmatpush1.msra.mxu0 %v328
    %1083 = vmatprep.subr.mxu0 %v333
    %1084 = vmatpush1.msra.mxu0 %v332
    %1085 = vmatprep.subr.mxu0 %v337
    %1086 = vmatpush1.msra.mxu0 %v336
    %1087 = vmatprep.subr.mxu0 %v341
    %1088 = vmatpush1.msra.mxu0 %v340
    %1089 = vmatprep.subr.mxu0 %v345
    %1090 = vmatpush1.msra.mxu0 %v344
    %1091 = vmatprep.subr.mxu0 %v349
    %1092 = vmatpush1.msra.mxu0 %v348
    %1093 = vmatprep.subr.mxu0 %v353
    %1094 = vmatpush1.msra.mxu0 %v352
    %1095 = vmatprep.subr.mxu0 %v357
    %1096 = vmatpush1.msra.mxu0 %v356
    %1097 = vmatprep.subr.mxu0 %v361
    %1098 = vmatpush1.msra.mxu0 %v360
    %1099 = vmatprep.subr.mxu0 %v365
    %1100 = vmatpush1.msra.mxu0 %v364
    %1101 = vmatprep.subr.mxu0 0.0
    %1102 = vmatpush1.msra.mxu0 0.0
    %1103 = vmatprep.subr.mxu0 0.0
    %1104 = vmatpush1.msra.mxu0 0.0
    %1105 = vmatprep.subr.mxu0 0.0
    %1106 = vmatpush1.msra.mxu0 0.0
    %1107 = vmatprep.subr.mxu0 0.0
    %1108 = vmatpush1.msra.mxu0 0.0
    %1109 = vmatprep.subr.mxu0 0.0
    %1110 = vmatpush1.msra.mxu0 0.0
    %1111 = vmatprep.subr.mxu0 0.0
    %1112 = vmatpush1.msra.mxu0 0.0
    %1113 = vmatprep.subr.mxu0 0.0
    %1114 = vmatpush1.msra.mxu0 0.0
    %1115 = vmatprep.subr.mxu0 0.0
    %1116 = vmatpush1.msra.mxu0 0.0
    %1117 = vmatprep.subr.mxu0 0.0
    %1118 = vmatpush1.msra.mxu0 0.0
    %1119 = vmatprep.subr.mxu0 0.0
    %1120 = vmatpush1.msra.mxu0 0.0
    %1121 = vmatprep.subr.mxu0 0.0
    %1122 = vmatpush1.msra.mxu0 0.0
    %1123 = vmatprep.subr.mxu0 0.0
    %1124 = vmatpush1.msra.mxu0 0.0
    %1125 = vmatprep.subr.mxu0 0.0
    %1126 = vmatpush1.msra.mxu0 0.0
    %1127 = vmatprep.subr.mxu0 0.0
    %1128 = vmatpush1.msra.mxu0 0.0
    %1129 = vmatprep.subr.mxu0 0.0
    %1130 = vmatpush1.msra.mxu0 0.0
    %1131 = vmatprep.subr.mxu0 0.0
    %1132 = vmatpush1.msra.mxu0 0.0
    %1133 = vmatprep.mubr.f32.mxu0 0.0
    %1134 = vmatmul.mubr.f32.gmra.mrb[0].mxu0 %v997
    %v1135 = vpop.f32.mrb[0].mxu0
    %v1136 = vadd.f32 0.0, %v1135
    %v1137 = vpop.f32.mrb[0].mxu0
    %v1138 = vadd.f32 0.0, %v1137
    %1139 = vdwg.mxu0
    %v1144 = vcombine.low %v1065, %v1067
    %v1145 = vcombine.low %v1136, %v1138
    %v1147 = vunpack.c.l.s4 1966171168
    %v1148 = vunpack.c.0.s8 %v1147
    %v1149 = vlaneseq
    %v1150 = vshrl.u32 %v1149, 7
    %v1151 = vsub.s32 %v1148, %v1150
    %v1152 = vrot.slane %v1144, %v1151
    %v1154 = vunpack.c.l.s4 1966171168
    %v1155 = vunpack.c.0.s8 %v1154
    %v1156 = vlaneseq
    %v1157 = vshrl.u32 %v1156, 7
    %v1158 = vsub.s32 %v1155, %v1157
    %v1159 = vrot.slane %v1145, %v1158
    %v1160 = vcombine.low %v1152, %v1159
    %v1162 = vunpack.c.l.s4 1966171168
    %v1163 = vunpack.c.0.s8 %v1162
    %v1164 = vlaneseq
    %v1165 = vshrl.u32 %v1164, 7
    %v1166 = vsub.s32 %v1163, %v1165
    %v1167 = vrot.slane %v1160, %v1166
    %v1169 = vadd.f32 %v996, %v1167
    %v1170 = vxor.u32 %v1169, 2147483648
    %v1171 = vmul.f32 %v1170, 1.442695
    %v1172 = vpow.pop %v1171
    %v1173 = vadd.f32 %v1172, 1.0
    %v1174 = vrcp.pop %v1173
    %v1175 = vmul.f32 1.0, %v1174
    %v1177 = vrot.slane %v1169, 1
    %v1179 = vxor.u32 %v1177, 2147483648
    %v1180 = vmul.f32 %v1179, 1.442695
    %v1181 = vpow.pop %v1180
    %v1182 = vadd.f32 %v1181, 1.0
    %v1183 = vrcp.pop %v1182
    %v1184 = vmul.f32 1.0, %v1183
    %v1185 = vrot.slane %v1169, 2
    %v1187 = vtanh.pop %v1185
    %v1188 = vrot.slane %v1169, 3
    %v1190 = vxor.u32 %v1188, 2147483648
    %v1191 = vmul.f32 %v1190, 1.442695
    %v1192 = vpow.pop %v1191
    %v1193 = vadd.f32 %v1192, 1.0
    %v1194 = vrcp.pop %v1193
    %v1195 = vmul.f32 1.0, %v1194
    %v1196 = vld [vmem:[#allocation5] sm:$0x1]
    %v1197 = vmul.f32 %v1184, %v1196
    %v1198 = vmul.f32 %v1175, %v1187
    %v1199 = vadd.f32 %v1197, %v1198
    %v1200 = vtanh.pop %v1199
    %v1201 = vmul.f32 %v1195, %v1200
    %1202 = vst [vmem:[#allocation5] sm:$0x1] %v1199
    %1203 = vst [vmem:[#allocation4] sm:$0x1] %v1201
    %1204 = vst [vmem:[#allocation2 + $0x3] sm:$0x1] %v1201
    %s1205 = scalar_lea.vmem [#allocation3], 4
    %v1206 = vld [vmem:[%s1205] ss:$8 sm:$0xf]
    %v1207 = vld [vmem:[#allocation4] sm:$0x1]
    %1208 = vmatprep.subr.mxu0 %v303
    %1209 = vmatpush1.msra.mxu0 %v302
    %1210 = vmatprep.subr.mxu0 %v307
    %1211 = vmatpush1.msra.mxu0 %v306
    %1212 = vmatprep.subr.mxu0 %v311
    %1213 = vmatpush1.msra.mxu0 %v310
    %1214 = vmatprep.subr.mxu0 %v315
    %1215 = vmatpush1.msra.mxu0 %v314
    %1216 = vmatprep.subr.mxu0 %v319
    %1217 = vmatpush1.msra.mxu0 %v318
    %1218 = vmatprep.subr.mxu0 %v323
    %1219 = vmatpush1.msra.mxu0 %v322
    %1220 = vmatprep.subr.mxu0 %v327
    %1221 = vmatpush1.msra.mxu0 %v326
    %1222 = vmatprep.subr.mxu0 %v331
    %1223 = vmatpush1.msra.mxu0 %v330
    %1224 = vmatprep.subr.mxu0 %v335
    %1225 = vmatpush1.msra.mxu0 %v334
    %1226 = vmatprep.subr.mxu0 %v339
    %1227 = vmatpush1.msra.mxu0 %v338
    %1228 = vmatprep.subr.mxu0 %v343
    %1229 = vmatpush1.msra.mxu0 %v342
    %1230 = vmatprep.subr.mxu0 %v347
    %1231 = vmatpush1.msra.mxu0 %v346
    %1232 = vmatprep.subr.mxu0 %v351
    %1233 = vmatpush1.msra.mxu0 %v350
    %1234 = vmatprep.subr.mxu0 %v355
    %1235 = vmatpush1.msra.mxu0 %v354
    %1236 = vmatprep.subr.mxu0 %v359
    %1237 = vmatpush1.msra.mxu0 %v358
    %1238 = vmatprep.subr.mxu0 %v363
    %1239 = vmatpush1.msra.mxu0 %v362
    %1240 = vmatprep.subr.mxu0 0.0
    %1241 = vmatpush1.msra.mxu0 0.0
    %1242 = vmatprep.subr.mxu0 0.0
    %1243 = vmatpush1.msra.mxu0 0.0
    %1244 = vmatprep.subr.mxu0 0.0
    %1245 = vmatpush1.msra.mxu0 0.0
    %1246 = vmatprep.subr.mxu0 0.0
    %1247 = vmatpush1.msra.mxu0 0.0
    %1248 = vmatprep.subr.mxu0 0.0
    %1249 = vmatpush1.msra.mxu0 0.0
    %1250 = vmatprep.subr.mxu0 0.0
    %1251 = vmatpush1.msra.mxu0 0.0
    %1252 = vmatprep.subr.mxu0 0.0
    %1253 = vmatpush1.msra.mxu0 0.0
    %1254 = vmatprep.subr.mxu0 0.0
    %1255 = vmatpush1.msra.mxu0 0.0
    %1256 = vmatprep.subr.mxu0 0.0
    %1257 = vmatpush1.msra.mxu0 0.0
    %1258 = vmatprep.subr.mxu0 0.0
    %1259 = vmatpush1.msra.mxu0 0.0
    %1260 = vmatprep.subr.mxu0 0.0
    %1261 = vmatpush1.msra.mxu0 0.0
    %1262 = vmatprep.subr.mxu0 0.0
    %1263 = vmatpush1.msra.mxu0 0.0
    %1264 = vmatprep.subr.mxu0 0.0
    %1265 = vmatpush1.msra.mxu0 0.0
    %1266 = vmatprep.subr.mxu0 0.0
    %1267 = vmatpush1.msra.mxu0 0.0
    %1268 = vmatprep.subr.mxu0 0.0
    %1269 = vmatpush1.msra.mxu0 0.0
    %1270 = vmatprep.subr.mxu0 0.0
    %1271 = vmatpush1.msra.mxu0 0.0
    %1272 = vmatprep.mubr.f32.mxu0 0.0
    %1273 = vmatmul.mubr.f32.gmra.mrb[0].mxu0 %v1207
    %v1274 = vpop.f32.mrb[0].mxu0
    %v1275 = vadd.f32 0.0, %v1274
    %v1276 = vpop.f32.mrb[0].mxu0
    %v1277 = vadd.f32 0.0, %v1276
    %1278 = vdwg.mxu0
    %1279 = vmatprep.subr.mxu0 %v305
    %1280 = vmatpush1.msra.mxu0 %v304
    %1281 = vmatprep.subr.mxu0 %v309
    %1282 = vmatpush1.msra.mxu0 %v308
    %1283 = vmatprep.subr.mxu0 %v313
    %1284 = vmatpush1.msra.mxu0 %v312
    %1285 = vmatprep.subr.mxu0 %v317
    %1286 = vmatpush1.msra.mxu0 %v316
    %1287 = vmatprep.subr.mxu0 %v321
    %1288 = vmatpush1.msra.mxu0 %v320
    %1289 = vmatprep.subr.mxu0 %v325
    %1290 = vmatpush1.msra.mxu0 %v324
    %1291 = vmatprep.subr.mxu0 %v329
    %1292 = vmatpush1.msra.mxu0 %v328
    %1293 = vmatprep.subr.mxu0 %v333
    %1294 = vmatpush1.msra.mxu0 %v332
    %1295 = vmatprep.subr.mxu0 %v337
    %1296 = vmatpush1.msra.mxu0 %v336
    %1297 = vmatprep.subr.mxu0 %v341
    %1298 = vmatpush1.msra.mxu0 %v340
    %1299 = vmatprep.subr.mxu0 %v345
    %1300 = vmatpush1.msra.mxu0 %v344
    %1301 = vmatprep.subr.mxu0 %v349
    %1302 = vmatpush1.msra.mxu0 %v348
    %1303 = vmatprep.subr.mxu0 %v353
    %1304 = vmatpush1.msra.mxu0 %v352
    %1305 = vmatprep.subr.mxu0 %v357
    %1306 = vmatpush1.msra.mxu0 %v356
    %1307 = vmatprep.subr.mxu0 %v361
    %1308 = vmatpush1.msra.mxu0 %v360
    %1309 = vmatprep.subr.mxu0 %v365
    %1310 = vmatpush1.msra.mxu0 %v364
    %1311 = vmatprep.subr.mxu0 0.0
    %1312 = vmatpush1.msra.mxu0 0.0
    %1313 = vmatprep.subr.mxu0 0.0
    %1314 = vmatpush1.msra.mxu0 0.0
    %1315 = vmatprep.subr.mxu0 0.0
    %1316 = vmatpush1.msra.mxu0 0.0
    %1317 = vmatprep.subr.mxu0 0.0
    %1318 = vmatpush1.msra.mxu0 0.0
    %1319 = vmatprep.subr.mxu0 0.0
    %1320 = vmatpush1.msra.mxu0 0.0
    %1321 = vmatprep.subr.mxu0 0.0
    %1322 = vmatpush1.msra.mxu0 0.0
    %1323 = vmatprep.subr.mxu0 0.0
    %1324 = vmatpush1.msra.mxu0 0.0
    %1325 = vmatprep.subr.mxu0 0.0
    %1326 = vmatpush1.msra.mxu0 0.0
    %1327 = vmatprep.subr.mxu0 0.0
    %1328 = vmatpush1.msra.mxu0 0.0
    %1329 = vmatprep.subr.mxu0 0.0
    %1330 = vmatpush1.msra.mxu0 0.0
    %1331 = vmatprep.subr.mxu0 0.0
    %1332 = vmatpush1.msra.mxu0 0.0
    %1333 = vmatprep.subr.mxu0 0.0
    %1334 = vmatpush1.msra.mxu0 0.0
    %1335 = vmatprep.subr.mxu0 0.0
    %1336 = vmatpush1.msra.mxu0 0.0
    %1337 = vmatprep.subr.mxu0 0.0
    %1338 = vmatpush1.msra.mxu0 0.0
    %1339 = vmatprep.subr.mxu0 0.0
    %1340 = vmatpush1.msra.mxu0 0.0
    %1341 = vmatprep.subr.mxu0 0.0
    %1342 = vmatpush1.msra.mxu0 0.0
    %1343 = vmatprep.mubr.f32.mxu0 0.0
    %1344 = vmatmul.mubr.f32.gmra.mrb[0].mxu0 %v1207
    %v1345 = vpop.f32.mrb[0].mxu0
    %v1346 = vadd.f32 0.0, %v1345
    %v1347 = vpop.f32.mrb[0].mxu0
    %v1348 = vadd.f32 0.0, %v1347
    %1349 = vdwg.mxu0
    %v1354 = vcombine.low %v1275, %v1277
    %v1355 = vcombine.low %v1346, %v1348
    %v1357 = vunpack.c.l.s4 1966171168
    %v1358 = vunpack.c.0.s8 %v1357
    %v1359 = vlaneseq
    %v1360 = vshrl.u32 %v1359, 7
    %v1361 = vsub.s32 %v1358, %v1360
    %v1362 = vrot.slane %v1354, %v1361
    %v1364 = vunpack.c.l.s4 1966171168
    %v1365 = vunpack.c.0.s8 %v1364
    %v1366 = vlaneseq
    %v1367 = vshrl.u32 %v1366, 7
    %v1368 = vsub.s32 %v1365, %v1367
    %v1369 = vrot.slane %v1355, %v1368
    %v1370 = vcombine.low %v1362, %v1369
    %v1372 = vunpack.c.l.s4 1966171168
    %v1373 = vunpack.c.0.s8 %v1372
    %v1374 = vlaneseq
    %v1375 = vshrl.u32 %v1374, 7
    %v1376 = vsub.s32 %v1373, %v1375
    %v1377 = vrot.slane %v1370, %v1376
    %v1379 = vadd.f32 %v1206, %v1377
    %v1380 = vxor.u32 %v1379, 2147483648
    %v1381 = vmul.f32 %v1380, 1.442695
    %v1382 = vpow.pop %v1381
    %v1383 = vadd.f32 %v1382, 1.0
    %v1384 = vrcp.pop %v1383
    %v1385 = vmul.f32 1.0, %v1384
    %v1387 = vrot.slane %v1379, 1
    %v1389 = vxor.u32 %v1387, 2147483648
    %v1390 = vmul.f32 %v1389, 1.442695
    %v1391 = vpow.pop %v1390
    %v1392 = vadd.f32 %v1391, 1.0
    %v1393 = vrcp.pop %v1392
    %v1394 = vmul.f32 1.0, %v1393
    %v1395 = vrot.slane %v1379, 2
    %v1397 = vtanh.pop %v1395
    %v1398 = vrot.slane %v1379, 3
    %v1400 = vxor.u32 %v1398, 2147483648
    %v1401 = vmul.f32 %v1400, 1.442695
    %v1402 = vpow.pop %v1401
    %v1403 = vadd.f32 %v1402, 1.0
    %v1404 = vrcp.pop %v1403
    %v1405 = vmul.f32 1.0, %v1404
    %v1406 = vld [vmem:[#allocation5] sm:$0x1]
    %v1407 = vmul.f32 %v1394, %v1406
    %v1408 = vmul.f32 %v1385, %v1397
    %v1409 = vadd.f32 %v1407, %v1408
    %v1410 = vtanh.pop %v1409
    %v1411 = vmul.f32 %v1405, %v1410
    %1412 = vst [vmem:[#allocation5] sm:$0x1] %v1409
    %1413 = vst [vmem:[#allocation4] sm:$0x1] %v1411
    %1414 = vst [vmem:[#allocation2 + $0x4] sm:$0x1] %v1411
    %s1415 = scalar_lea.vmem [#allocation3], 5
    %v1416 = vld [vmem:[%s1415] ss:$8 sm:$0xf]
    %v1417 = vld [vmem:[#allocation4] sm:$0x1]
    %1418 = vmatprep.subr.mxu0 %v303
    %1419 = vmatpush1.msra.mxu0 %v302
    %1420 = vmatprep.subr.mxu0 %v307
    %1421 = vmatpush1.msra.mxu0 %v306
    %1422 = vmatprep.subr.mxu0 %v311
    %1423 = vmatpush1.msra.mxu0 %v310
    %1424 = vmatprep.subr.mxu0 %v315
    %1425 = vmatpush1.msra.mxu0 %v314
    %1426 = vmatprep.subr.mxu0 %v319
    %1427 = vmatpush1.msra.mxu0 %v318
    %1428 = vmatprep.subr.mxu0 %v323
    %1429 = vmatpush1.msra.mxu0 %v322
    %1430 = vmatprep.subr.mxu0 %v327
    %1431 = vmatpush1.msra.mxu0 %v326
    %1432 = vmatprep.subr.mxu0 %v331
    %1433 = vmatpush1.msra.mxu0 %v330
    %1434 = vmatprep.subr.mxu0 %v335
    %1435 = vmatpush1.msra.mxu0 %v334
    %1436 = vmatprep.subr.mxu0 %v339
    %1437 = vmatpush1.msra.mxu0 %v338
    %1438 = vmatprep.subr.mxu0 %v343
    %1439 = vmatpush1.msra.mxu0 %v342
    %1440 = vmatprep.subr.mxu0 %v347
    %1441 = vmatpush1.msra.mxu0 %v346
    %1442 = vmatprep.subr.mxu0 %v351
    %1443 = vmatpush1.msra.mxu0 %v350
    %1444 = vmatprep.subr.mxu0 %v355
    %1445 = vmatpush1.msra.mxu0 %v354
    %1446 = vmatprep.subr.mxu0 %v359
    %1447 = vmatpush1.msra.mxu0 %v358
    %1448 = vmatprep.subr.mxu0 %v363
    %1449 = vmatpush1.msra.mxu0 %v362
    %1450 = vmatprep.subr.mxu0 0.0
    %1451 = vmatpush1.msra.mxu0 0.0
    %1452 = vmatprep.subr.mxu0 0.0
    %1453 = vmatpush1.msra.mxu0 0.0
    %1454 = vmatprep.subr.mxu0 0.0
    %1455 = vmatpush1.msra.mxu0 0.0
    %1456 = vmatprep.subr.mxu0 0.0
    %1457 = vmatpush1.msra.mxu0 0.0
    %1458 = vmatprep.subr.mxu0 0.0
    %1459 = vmatpush1.msra.mxu0 0.0
    %1460 = vmatprep.subr.mxu0 0.0
    %1461 = vmatpush1.msra.mxu0 0.0
    %1462 = vmatprep.subr.mxu0 0.0
    %1463 = vmatpush1.msra.mxu0 0.0
    %1464 = vmatprep.subr.mxu0 0.0
    %1465 = vmatpush1.msra.mxu0 0.0
    %1466 = vmatprep.subr.mxu0 0.0
    %1467 = vmatpush1.msra.mxu0 0.0
    %1468 = vmatprep.subr.mxu0 0.0
    %1469 = vmatpush1.msra.mxu0 0.0
    %1470 = vmatprep.subr.mxu0 0.0
    %1471 = vmatpush1.msra.mxu0 0.0
    %1472 = vmatprep.subr.mxu0 0.0
    %1473 = vmatpush1.msra.mxu0 0.0
    %1474 = vmatprep.subr.mxu0 0.0
    %1475 = vmatpush1.msra.mxu0 0.0
    %1476 = vmatprep.subr.mxu0 0.0
    %1477 = vmatpush1.msra.mxu0 0.0
    %1478 = vmatprep.subr.mxu0 0.0
    %1479 = vmatpush1.msra.mxu0 0.0
    %1480 = vmatprep.subr.mxu0 0.0
    %1481 = vmatpush1.msra.mxu0 0.0
    %1482 = vmatprep.mubr.f32.mxu0 0.0
    %1483 = vmatmul.mubr.f32.gmra.mrb[0].mxu0 %v1417
    %v1484 = vpop.f32.mrb[0].mxu0
    %v1485 = vadd.f32 0.0, %v1484
    %v1486 = vpop.f32.mrb[0].mxu0
    %v1487 = vadd.f32 0.0, %v1486
    %1488 = vdwg.mxu0
    %1489 = vmatprep.subr.mxu0 %v305
    %1490 = vmatpush1.msra.mxu0 %v304
    %1491 = vmatprep.subr.mxu0 %v309
    %1492 = vmatpush1.msra.mxu0 %v308
    %1493 = vmatprep.subr.mxu0 %v313
    %1494 = vmatpush1.msra.mxu0 %v312
    %1495 = vmatprep.subr.mxu0 %v317
    %1496 = vmatpush1.msra.mxu0 %v316
    %1497 = vmatprep.subr.mxu0 %v321
    %1498 = vmatpush1.msra.mxu0 %v320
    %1499 = vmatprep.subr.mxu0 %v325
    %1500 = vmatpush1.msra.mxu0 %v324
    %1501 = vmatprep.subr.mxu0 %v329
    %1502 = vmatpush1.msra.mxu0 %v328
    %1503 = vmatprep.subr.mxu0 %v333
    %1504 = vmatpush1.msra.mxu0 %v332
    %1505 = vmatprep.subr.mxu0 %v337
    %1506 = vmatpush1.msra.mxu0 %v336
    %1507 = vmatprep.subr.mxu0 %v341
    %1508 = vmatpush1.msra.mxu0 %v340
    %1509 = vmatprep.subr.mxu0 %v345
    %1510 = vmatpush1.msra.mxu0 %v344
    %1511 = vmatprep.subr.mxu0 %v349
    %1512 = vmatpush1.msra.mxu0 %v348
    %1513 = vmatprep.subr.mxu0 %v353
    %1514 = vmatpush1.msra.mxu0 %v352
    %1515 = vmatprep.subr.mxu0 %v357
    %1516 = vmatpush1.msra.mxu0 %v356
    %1517 = vmatprep.subr.mxu0 %v361
    %1518 = vmatpush1.msra.mxu0 %v360
    %1519 = vmatprep.subr.mxu0 %v365
    %1520 = vmatpush1.msra.mxu0 %v364
    %1521 = vmatprep.subr.mxu0 0.0
    %1522 = vmatpush1.msra.mxu0 0.0
    %1523 = vmatprep.subr.mxu0 0.0
    %1524 = vmatpush1.msra.mxu0 0.0
    %1525 = vmatprep.subr.mxu0 0.0
    %1526 = vmatpush1.msra.mxu0 0.0
    %1527 = vmatprep.subr.mxu0 0.0
    %1528 = vmatpush1.msra.mxu0 0.0
    %1529 = vmatprep.subr.mxu0 0.0
    %1530 = vmatpush1.msra.mxu0 0.0
    %1531 = vmatprep.subr.mxu0 0.0
    %1532 = vmatpush1.msra.mxu0 0.0
    %1533 = vmatprep.subr.mxu0 0.0
    %1534 = vmatpush1.msra.mxu0 0.0
    %1535 = vmatprep.subr.mxu0 0.0
    %1536 = vmatpush1.msra.mxu0 0.0
    %1537 = vmatprep.subr.mxu0 0.0
    %1538 = vmatpush1.msra.mxu0 0.0
    %1539 = vmatprep.subr.mxu0 0.0
    %1540 = vmatpush1.msra.mxu0 0.0
    %1541 = vmatprep.subr.mxu0 0.0
    %1542 = vmatpush1.msra.mxu0 0.0
    %1543 = vmatprep.subr.mxu0 0.0
    %1544 = vmatpush1.msra.mxu0 0.0
    %1545 = vmatprep.subr.mxu0 0.0
    %1546 = vmatpush1.msra.mxu0 0.0
    %1547 = vmatprep.subr.mxu0 0.0
    %1548 = vmatpush1.msra.mxu0 0.0
    %1549 = vmatprep.subr.mxu0 0.0
    %1550 = vmatpush1.msra.mxu0 0.0
    %1551 = vmatprep.subr.mxu0 0.0
    %1552 = vmatpush1.msra.mxu0 0.0
    %1553 = vmatprep.mubr.f32.mxu0 0.0
    %1554 = vmatmul.mubr.f32.gmra.mrb[0].mxu0 %v1417
    %v1555 = vpop.f32.mrb[0].mxu0
    %v1556 = vadd.f32 0.0, %v1555
    %v1557 = vpop.f32.mrb[0].mxu0
    %v1558 = vadd.f32 0.0, %v1557
    %1559 = vdwg.mxu0
    %v1564 = vcombine.low %v1485, %v1487
    %v1565 = vcombine.low %v1556, %v1558
    %v1567 = vunpack.c.l.s4 1966171168
    %v1568 = vunpack.c.0.s8 %v1567
    %v1569 = vlaneseq
    %v1570 = vshrl.u32 %v1569, 7
    %v1571 = vsub.s32 %v1568, %v1570
    %v1572 = vrot.slane %v1564, %v1571
    %v1574 = vunpack.c.l.s4 1966171168
    %v1575 = vunpack.c.0.s8 %v1574
    %v1576 = vlaneseq
    %v1577 = vshrl.u32 %v1576, 7
    %v1578 = vsub.s32 %v1575, %v1577
    %v1579 = vrot.slane %v1565, %v1578
    %v1580 = vcombine.low %v1572, %v1579
    %v1582 = vunpack.c.l.s4 1966171168
    %v1583 = vunpack.c.0.s8 %v1582
    %v1584 = vlaneseq
    %v1585 = vshrl.u32 %v1584, 7
    %v1586 = vsub.s32 %v1583, %v1585
    %v1587 = vrot.slane %v1580, %v1586
    %v1589 = vadd.f32 %v1416, %v1587
    %v1590 = vxor.u32 %v1589, 2147483648
    %v1591 = vmul.f32 %v1590, 1.442695
    %v1592 = vpow.pop %v1591
    %v1593 = vadd.f32 %v1592, 1.0
    %v1594 = vrcp.pop %v1593
    %v1595 = vmul.f32 1.0, %v1594
    %v1597 = vrot.slane %v1589, 1
    %v1599 = vxor.u32 %v1597, 2147483648
    %v1600 = vmul.f32 %v1599, 1.442695
    %v1601 = vpow.pop %v1600
    %v1602 = vadd.f32 %v1601, 1.0
    %v1603 = vrcp.pop %v1602
    %v1604 = vmul.f32 1.0, %v1603
    %v1605 = vrot.slane %v1589, 2
    %v1607 = vtanh.pop %v1605
    %v1608 = vrot.slane %v1589, 3
    %v1610 = vxor.u32 %v1608, 2147483648
    %v1611 = vmul.f32 %v1610, 1.442695
    %v1612 = vpow.pop %v1611
    %v1613 = vadd.f32 %v1612, 1.0
    %v1614 = vrcp.pop %v1613
    %v1615 = vmul.f32 1.0, %v1614
    %v1616 = vld [vmem:[#allocation5] sm:$0x1]
    %v1617 = vmul.f32 %v1604, %v1616
    %v1618 = vmul.f32 %v1595, %v1607
    %v1619 = vadd.f32 %v1617, %v1618
    %v1620 = vtanh.pop %v1619
    %v1621 = vmul.f32 %v1615, %v1620
    %1622 = vst [vmem:[#allocation5] sm:$0x1] %v1619
    %1623 = vst [vmem:[#allocation4] sm:$0x1] %v1621
    %1624 = vst [vmem:[#allocation2 + $0x5] sm:$0x1] %v1621
    %s1625 = scalar_lea.vmem [#allocation3], 6
    %v1626 = vld [vmem:[%s1625] ss:$8 sm:$0xf]
    %v1627 = vld [vmem:[#allocation4] sm:$0x1]
    %1628 = vmatprep.subr.mxu0 %v303
    %1629 = vmatpush1.msra.mxu0 %v302
    %1630 = vmatprep.subr.mxu0 %v307
    %1631 = vmatpush1.msra.mxu0 %v306
    %1632 = vmatprep.subr.mxu0 %v311
    %1633 = vmatpush1.msra.mxu0 %v310
    %1634 = vmatprep.subr.mxu0 %v315
    %1635 = vmatpush1.msra.mxu0 %v314
    %1636 = vmatprep.subr.mxu0 %v319
    %1637 = vmatpush1.msra.mxu0 %v318
    %1638 = vmatprep.subr.mxu0 %v323
    %1639 = vmatpush1.msra.mxu0 %v322
    %1640 = vmatprep.subr.mxu0 %v327
    %1641 = vmatpush1.msra.mxu0 %v326
    %1642 = vmatprep.subr.mxu0 %v331
    %1643 = vmatpush1.msra.mxu0 %v330
    %1644 = vmatprep.subr.mxu0 %v335
    %1645 = vmatpush1.msra.mxu0 %v334
    %1646 = vmatprep.subr.mxu0 %v339
    %1647 = vmatpush1.msra.mxu0 %v338
    %1648 = vmatprep.subr.mxu0 %v343
    %1649 = vmatpush1.msra.mxu0 %v342
    %1650 = vmatprep.subr.mxu0 %v347
    %1651 = vmatpush1.msra.mxu0 %v346
    %1652 = vmatprep.subr.mxu0 %v351
    %1653 = vmatpush1.msra.mxu0 %v350
    %1654 = vmatprep.subr.mxu0 %v355
    %1655 = vmatpush1.msra.mxu0 %v354
    %1656 = vmatprep.subr.mxu0 %v359
    %1657 = vmatpush1.msra.mxu0 %v358
    %1658 = vmatprep.subr.mxu0 %v363
    %1659 = vmatpush1.msra.mxu0 %v362
    %1660 = vmatprep.subr.mxu0 0.0
    %1661 = vmatpush1.msra.mxu0 0.0
    %1662 = vmatprep.subr.mxu0 0.0
    %1663 = vmatpush1.msra.mxu0 0.0
    %1664 = vmatprep.subr.mxu0 0.0
    %1665 = vmatpush1.msra.mxu0 0.0
    %1666 = vmatprep.subr.mxu0 0.0
    %1667 = vmatpush1.msra.mxu0 0.0
    %1668 = vmatprep.subr.mxu0 0.0
    %1669 = vmatpush1.msra.mxu0 0.0
    %1670 = vmatprep.subr.mxu0 0.0
    %1671 = vmatpush1.msra.mxu0 0.0
    %1672 = vmatprep.subr.mxu0 0.0
    %1673 = vmatpush1.msra.mxu0 0.0
    %1674 = vmatprep.subr.mxu0 0.0
    %1675 = vmatpush1.msra.mxu0 0.0
    %1676 = vmatprep.subr.mxu0 0.0
    %1677 = vmatpush1.msra.mxu0 0.0
    %1678 = vmatprep.subr.mxu0 0.0
    %1679 = vmatpush1.msra.mxu0 0.0
    %1680 = vmatprep.subr.mxu0 0.0
    %1681 = vmatpush1.msra.mxu0 0.0
    %1682 = vmatprep.subr.mxu0 0.0
    %1683 = vmatpush1.msra.mxu0 0.0
    %1684 = vmatprep.subr.mxu0 0.0
    %1685 = vmatpush1.msra.mxu0 0.0
    %1686 = vmatprep.subr.mxu0 0.0
    %1687 = vmatpush1.msra.mxu0 0.0
    %1688 = vmatprep.subr.mxu0 0.0
    %1689 = vmatpush1.msra.mxu0 0.0
    %1690 = vmatprep.subr.mxu0 0.0
    %1691 = vmatpush1.msra.mxu0 0.0
    %1692 = vmatprep.mubr.f32.mxu0 0.0
    %1693 = vmatmul.mubr.f32.gmra.mrb[0].mxu0 %v1627
    %v1694 = vpop.f32.mrb[0].mxu0
    %v1695 = vadd.f32 0.0, %v1694
    %v1696 = vpop.f32.mrb[0].mxu0
    %v1697 = vadd.f32 0.0, %v1696
    %1698 = vdwg.mxu0
    %1699 = vmatprep.subr.mxu0 %v305
    %1700 = vmatpush1.msra.mxu0 %v304
    %1701 = vmatprep.subr.mxu0 %v309
    %1702 = vmatpush1.msra.mxu0 %v308
    %1703 = vmatprep.subr.mxu0 %v313
    %1704 = vmatpush1.msra.mxu0 %v312
    %1705 = vmatprep.subr.mxu0 %v317
    %1706 = vmatpush1.msra.mxu0 %v316
    %1707 = vmatprep.subr.mxu0 %v321
    %1708 = vmatpush1.msra.mxu0 %v320
    %1709 = vmatprep.subr.mxu0 %v325
    %1710 = vmatpush1.msra.mxu0 %v324
    %1711 = vmatprep.subr.mxu0 %v329
    %1712 = vmatpush1.msra.mxu0 %v328
    %1713 = vmatprep.subr.mxu0 %v333
    %1714 = vmatpush1.msra.mxu0 %v332
    %1715 = vmatprep.subr.mxu0 %v337
    %1716 = vmatpush1.msra.mxu0 %v336
    %1717 = vmatprep.subr.mxu0 %v341
    %1718 = vmatpush1.msra.mxu0 %v340
    %1719 = vmatprep.subr.mxu0 %v345
    %1720 = vmatpush1.msra.mxu0 %v344
    %1721 = vmatprep.subr.mxu0 %v349
    %1722 = vmatpush1.msra.mxu0 %v348
    %1723 = vmatprep.subr.mxu0 %v353
    %1724 = vmatpush1.msra.mxu0 %v352
    %1725 = vmatprep.subr.mxu0 %v357
    %1726 = vmatpush1.msra.mxu0 %v356
    %1727 = vmatprep.subr.mxu0 %v361
    %1728 = vmatpush1.msra.mxu0 %v360
    %1729 = vmatprep.subr.mxu0 %v365
    %1730 = vmatpush1.msra.mxu0 %v364
    %1731 = vmatprep.subr.mxu0 0.0
    %1732 = vmatpush1.msra.mxu0 0.0
    %1733 = vmatprep.subr.mxu0 0.0
    %1734 = vmatpush1.msra.mxu0 0.0
    %1735 = vmatprep.subr.mxu0 0.0
    %1736 = vmatpush1.msra.mxu0 0.0
    %1737 = vmatprep.subr.mxu0 0.0
    %1738 = vmatpush1.msra.mxu0 0.0
    %1739 = vmatprep.subr.mxu0 0.0
    %1740 = vmatpush1.msra.mxu0 0.0
    %1741 = vmatprep.subr.mxu0 0.0
    %1742 = vmatpush1.msra.mxu0 0.0
    %1743 = vmatprep.subr.mxu0 0.0
    %1744 = vmatpush1.msra.mxu0 0.0
    %1745 = vmatprep.subr.mxu0 0.0
    %1746 = vmatpush1.msra.mxu0 0.0
    %1747 = vmatprep.subr.mxu0 0.0
    %1748 = vmatpush1.msra.mxu0 0.0
    %1749 = vmatprep.subr.mxu0 0.0
    %1750 = vmatpush1.msra.mxu0 0.0
    %1751 = vmatprep.subr.mxu0 0.0
    %1752 = vmatpush1.msra.mxu0 0.0
    %1753 = vmatprep.subr.mxu0 0.0
    %1754 = vmatpush1.msra.mxu0 0.0
    %1755 = vmatprep.subr.mxu0 0.0
    %1756 = vmatpush1.msra.mxu0 0.0
    %1757 = vmatprep.subr.mxu0 0.0
    %1758 = vmatpush1.msra.mxu0 0.0
    %1759 = vmatprep.subr.mxu0 0.0
    %1760 = vmatpush1.msra.mxu0 0.0
    %1761 = vmatprep.subr.mxu0 0.0
    %1762 = vmatpush1.msra.mxu0 0.0
    %1763 = vmatprep.mubr.f32.mxu0 0.0
    %1764 = vmatmul.mubr.f32.gmra.mrb[0].mxu0 %v1627
    %v1765 = vpop.f32.mrb[0].mxu0
    %v1766 = vadd.f32 0.0, %v1765
    %v1767 = vpop.f32.mrb[0].mxu0
    %v1768 = vadd.f32 0.0, %v1767
    %1769 = vdwg.mxu0
    %v1774 = vcombine.low %v1695, %v1697
    %v1775 = vcombine.low %v1766, %v1768
    %v1777 = vunpack.c.l.s4 1966171168
    %v1778 = vunpack.c.0.s8 %v1777
    %v1779 = vlaneseq
    %v1780 = vshrl.u32 %v1779, 7
    %v1781 = vsub.s32 %v1778, %v1780
    %v1782 = vrot.slane %v1774, %v1781
    %v1784 = vunpack.c.l.s4 1966171168
    %v1785 = vunpack.c.0.s8 %v1784
    %v1786 = vlaneseq
    %v1787 = vshrl.u32 %v1786, 7
    %v1788 = vsub.s32 %v1785, %v1787
    %v1789 = vrot.slane %v1775, %v1788
    %v1790 = vcombine.low %v1782, %v1789
    %v1792 = vunpack.c.l.s4 1966171168
    %v1793 = vunpack.c.0.s8 %v1792
    %v1794 = vlaneseq
    %v1795 = vshrl.u32 %v1794, 7
    %v1796 = vsub.s32 %v1793, %v1795
    %v1797 = vrot.slane %v1790, %v1796
    %v1799 = vadd.f32 %v1626, %v1797
    %v1800 = vxor.u32 %v1799, 2147483648
    %v1801 = vmul.f32 %v1800, 1.442695
    %v1802 = vpow.pop %v1801
    %v1803 = vadd.f32 %v1802, 1.0
    %v1804 = vrcp.pop %v1803
    %v1805 = vmul.f32 1.0, %v1804
    %v1807 = vrot.slane %v1799, 1
    %v1809 = vxor.u32 %v1807, 2147483648
    %v1810 = vmul.f32 %v1809, 1.442695
    %v1811 = vpow.pop %v1810
    %v1812 = vadd.f32 %v1811, 1.0
    %v1813 = vrcp.pop %v1812
    %v1814 = vmul.f32 1.0, %v1813
    %v1815 = vrot.slane %v1799, 2
    %v1817 = vtanh.pop %v1815
    %v1818 = vrot.slane %v1799, 3
    %v1820 = vxor.u32 %v1818, 2147483648
    %v1821 = vmul.f32 %v1820, 1.442695
    %v1822 = vpow.pop %v1821
    %v1823 = vadd.f32 %v1822, 1.0
    %v1824 = vrcp.pop %v1823
    %v1825 = vmul.f32 1.0, %v1824
    %v1826 = vld [vmem:[#allocation5] sm:$0x1]
    %v1827 = vmul.f32 %v1814, %v1826
    %v1828 = vmul.f32 %v1805, %v1817
    %v1829 = vadd.f32 %v1827, %v1828
    %v1830 = vtanh.pop %v1829
    %v1831 = vmul.f32 %v1825, %v1830
    %1832 = vst [vmem:[#allocation5] sm:$0x1] %v1829
    %1833 = vst [vmem:[#allocation4] sm:$0x1] %v1831
    %1834 = vst [vmem:[#allocation2 + $0x6] sm:$0x1] %v1831
    %s1835 = scalar_lea.vmem [#allocation3], 7
    %v1836 = vld [vmem:[%s1835] ss:$8 sm:$0xf]
    %v1837 = vld [vmem:[#allocation4] sm:$0x1]
    %1838 = vmatprep.subr.mxu0 %v303
    %1839 = vmatpush1.msra.mxu0 %v302
    %1840 = vmatprep.subr.mxu0 %v307
    %1841 = vmatpush1.msra.mxu0 %v306
    %1842 = vmatprep.subr.mxu0 %v311
    %1843 = vmatpush1.msra.mxu0 %v310
    %1844 = vmatprep.subr.mxu0 %v315
    %1845 = vmatpush1.msra.mxu0 %v314
    %1846 = vmatprep.subr.mxu0 %v319
    %1847 = vmatpush1.msra.mxu0 %v318
    %1848 = vmatprep.subr.mxu0 %v323
    %1849 = vmatpush1.msra.mxu0 %v322
    %1850 = vmatprep.subr.mxu0 %v327
    %1851 = vmatpush1.msra.mxu0 %v326
    %1852 = vmatprep.subr.mxu0 %v331
    %1853 = vmatpush1.msra.mxu0 %v330
    %1854 = vmatprep.subr.mxu0 %v335
    %1855 = vmatpush1.msra.mxu0 %v334
    %1856 = vmatprep.subr.mxu0 %v339
    %1857 = vmatpush1.msra.mxu0 %v338
    %1858 = vmatprep.subr.mxu0 %v343
    %1859 = vmatpush1.msra.mxu0 %v342
    %1860 = vmatprep.subr.mxu0 %v347
    %1861 = vmatpush1.msra.mxu0 %v346
    %1862 = vmatprep.subr.mxu0 %v351
    %1863 = vmatpush1.msra.mxu0 %v350
    %1864 = vmatprep.subr.mxu0 %v355
    %1865 = vmatpush1.msra.mxu0 %v354
    %1866 = vmatprep.subr.mxu0 %v359
    %1867 = vmatpush1.msra.mxu0 %v358
    %1868 = vmatprep.subr.mxu0 %v363
    %1869 = vmatpush1.msra.mxu0 %v362
    %1870 = vmatprep.subr.mxu0 0.0
    %1871 = vmatpush1.msra.mxu0 0.0
    %1872 = vmatprep.subr.mxu0 0.0
    %1873 = vmatpush1.msra.mxu0 0.0
    %1874 = vmatprep.subr.mxu0 0.0
    %1875 = vmatpush1.msra.mxu0 0.0
    %1876 = vmatprep.subr.mxu0 0.0
    %1877 = vmatpush1.msra.mxu0 0.0
    %1878 = vmatprep.subr.mxu0 0.0
    %1879 = vmatpush1.msra.mxu0 0.0
    %1880 = vmatprep.subr.mxu0 0.0
    %1881 = vmatpush1.msra.mxu0 0.0
    %1882 = vmatprep.subr.mxu0 0.0
    %1883 = vmatpush1.msra.mxu0 0.0
    %1884 = vmatprep.subr.mxu0 0.0
    %1885 = vmatpush1.msra.mxu0 0.0
    %1886 = vmatprep.subr.mxu0 0.0
    %1887 = vmatpush1.msra.mxu0 0.0
    %1888 = vmatprep.subr.mxu0 0.0
    %1889 = vmatpush1.msra.mxu0 0.0
    %1890 = vmatprep.subr.mxu0 0.0
    %1891 = vmatpush1.msra.mxu0 0.0
    %1892 = vmatprep.subr.mxu0 0.0
    %1893 = vmatpush1.msra.mxu0 0.0
    %1894 = vmatprep.subr.mxu0 0.0
    %1895 = vmatpush1.msra.mxu0 0.0
    %1896 = vmatprep.subr.mxu0 0.0
    %1897 = vmatpush1.msra.mxu0 0.0
    %1898 = vmatprep.subr.mxu0 0.0
    %1899 = vmatpush1.msra.mxu0 0.0
    %1900 = vmatprep.subr.mxu0 0.0
    %1901 = vmatpush1.msra.mxu0 0.0
    %1902 = vmatprep.mubr.f32.mxu0 0.0
    %1903 = vmatmul.mubr.f32.gmra.mrb[0].mxu0 %v1837
    %v1904 = vpop.f32.mrb[0].mxu0
    %v1905 = vadd.f32 0.0, %v1904
    %v1906 = vpop.f32.mrb[0].mxu0
    %v1907 = vadd.f32 0.0, %v1906
    %1908 = vdwg.mxu0
    %1909 = vmatprep.subr.mxu0 %v305
    %1910 = vmatpush1.msra.mxu0 %v304
    %1911 = vmatprep.subr.mxu0 %v309
    %1912 = vmatpush1.msra.mxu0 %v308
    %1913 = vmatprep.subr.mxu0 %v313
    %1914 = vmatpush1.msra.mxu0 %v312
    %1915 = vmatprep.subr.mxu0 %v317
    %1916 = vmatpush1.msra.mxu0 %v316
    %1917 = vmatprep.subr.mxu0 %v321
    %1918 = vmatpush1.msra.mxu0 %v320
    %1919 = vmatprep.subr.mxu0 %v325
    %1920 = vmatpush1.msra.mxu0 %v324
    %1921 = vmatprep.subr.mxu0 %v329
    %1922 = vmatpush1.msra.mxu0 %v328
    %1923 = vmatprep.subr.mxu0 %v333
    %1924 = vmatpush1.msra.mxu0 %v332
    %1925 = vmatprep.subr.mxu0 %v337
    %1926 = vmatpush1.msra.mxu0 %v336
    %1927 = vmatprep.subr.mxu0 %v341
    %1928 = vmatpush1.msra.mxu0 %v340
    %1929 = vmatprep.subr.mxu0 %v345
    %1930 = vmatpush1.msra.mxu0 %v344
    %1931 = vmatprep.subr.mxu0 %v349
    %1932 = vmatpush1.msra.mxu0 %v348
    %1933 = vmatprep.subr.mxu0 %v353
    %1934 = vmatpush1.msra.mxu0 %v352
    %1935 = vmatprep.subr.mxu0 %v357
    %1936 = vmatpush1.msra.mxu0 %v356
    %1937 = vmatprep.subr.mxu0 %v361
    %1938 = vmatpush1.msra.mxu0 %v360
    %1939 = vmatprep.subr.mxu0 %v365
    %1940 = vmatpush1.msra.mxu0 %v364
    %1941 = vmatprep.subr.mxu0 0.0
    %1942 = vmatpush1.msra.mxu0 0.0
    %1943 = vmatprep.subr.mxu0 0.0
    %1944 = vmatpush1.msra.mxu0 0.0
    %1945 = vmatprep.subr.mxu0 0.0
    %1946 = vmatpush1.msra.mxu0 0.0
    %1947 = vmatprep.subr.mxu0 0.0
    %1948 = vmatpush1.msra.mxu0 0.0
    %1949 = vmatprep.subr.mxu0 0.0
    %1950 = vmatpush1.msra.mxu0 0.0
    %1951 = vmatprep.subr.mxu0 0.0
    %1952 = vmatpush1.msra.mxu0 0.0
    %1953 = vmatprep.subr.mxu0 0.0
    %1954 = vmatpush1.msra.mxu0 0.0
    %1955 = vmatprep.subr.mxu0 0.0
    %1956 = vmatpush1.msra.mxu0 0.0
    %1957 = vmatprep.subr.mxu0 0.0
    %1958 = vmatpush1.msra.mxu0 0.0
    %1959 = vmatprep.subr.mxu0 0.0
    %1960 = vmatpush1.msra.mxu0 0.0
    %1961 = vmatprep.subr.mxu0 0.0
    %1962 = vmatpush1.msra.mxu0 0.0
    %1963 = vmatprep.subr.mxu0 0.0
    %1964 = vmatpush1.msra.mxu0 0.0
    %1965 = vmatprep.subr.mxu0 0.0
    %1966 = vmatpush1.msra.mxu0 0.0
    %1967 = vmatprep.subr.mxu0 0.0
    %1968 = vmatpush1.msra.mxu0 0.0
    %1969 = vmatprep.subr.mxu0 0.0
    %1970 = vmatpush1.msra.mxu0 0.0
    %1971 = vmatprep.subr.mxu0 0.0
    %1972 = vmatpush1.msra.mxu0 0.0
    %1973 = vmatprep.mubr.f32.mxu0 0.0
    %1974 = vmatmul.mubr.f32.gmra.mrb[0].mxu0 %v1837
    %v1975 = vpop.f32.mrb[0].mxu0
    %v1976 = vadd.f32 0.0, %v1975
    %v1977 = vpop.f32.mrb[0].mxu0
    %v1978 = vadd.f32 0.0, %v1977
    %1979 = vdwg.mxu0
    %v1984 = vcombine.low %v1905, %v1907
    %v1985 = vcombine.low %v1976, %v1978
    %v1987 = vunpack.c.l.s4 1966171168
    %v1988 = vunpack.c.0.s8 %v1987
    %v1989 = vlaneseq
    %v1990 = vshrl.u32 %v1989, 7
    %v1991 = vsub.s32 %v1988, %v1990
    %v1992 = vrot.slane %v1984, %v1991
    %v1994 = vunpack.c.l.s4 1966171168
    %v1995 = vunpack.c.0.s8 %v1994
    %v1996 = vlaneseq
    %v1997 = vshrl.u32 %v1996, 7
    %v1998 = vsub.s32 %v1995, %v1997
    %v1999 = vrot.slane %v1985, %v1998
    %v2000 = vcombine.low %v1992, %v1999
    %v2002 = vunpack.c.l.s4 1966171168
    %v2003 = vunpack.c.0.s8 %v2002
    %v2004 = vlaneseq
    %v2005 = vshrl.u32 %v2004, 7
    %v2006 = vsub.s32 %v2003, %v2005
    %v2007 = vrot.slane %v2000, %v2006
    %v2009 = vadd.f32 %v1836, %v2007
    %v2010 = vxor.u32 %v2009, 2147483648
    %v2011 = vmul.f32 %v2010, 1.442695
    %v2012 = vpow.pop %v2011
    %v2013 = vadd.f32 %v2012, 1.0
    %v2014 = vrcp.pop %v2013
    %v2015 = vmul.f32 1.0, %v2014
    %v2017 = vrot.slane %v2009, 1
    %v2019 = vxor.u32 %v2017, 2147483648
    %v2020 = vmul.f32 %v2019, 1.442695
    %v2021 = vpow.pop %v2020
    %v2022 = vadd.f32 %v2021, 1.0
    %v2023 = vrcp.pop %v2022
    %v2024 = vmul.f32 1.0, %v2023
    %v2025 = vrot.slane %v2009, 2
    %v2027 = vtanh.pop %v2025
    %v2028 = vrot.slane %v2009, 3
    %v2030 = vxor.u32 %v2028, 2147483648
    %v2031 = vmul.f32 %v2030, 1.442695
    %v2032 = vpow.pop %v2031
    %v2033 = vadd.f32 %v2032, 1.0
    %v2034 = vrcp.pop %v2033
    %v2035 = vmul.f32 1.0, %v2034
    %v2036 = vld [vmem:[#allocation5] sm:$0x1]
    %v2037 = vmul.f32 %v2024, %v2036
    %v2038 = vmul.f32 %v2015, %v2027
    %v2039 = vadd.f32 %v2037, %v2038
    %v2040 = vtanh.pop %v2039
    %v2041 = vmul.f32 %v2035, %v2040
    %2042 = vst [vmem:[#allocation5] sm:$0x1] %v2039
    %2043 = vst [vmem:[#allocation4] sm:$0x1] %v2041
    %2044 = vst [vmem:[#allocation2 + $0x7] sm:$0x1] %v2041
    %v2045 = vld [vmem:[#allocation2] sm:$0xff]
    %s2046 = scalar_lea.vmem [#allocation6], 512
    %v2047 = vld [vmem:[%s2046] sm:$0xff]
    %v2048 = vld [vmem:[%s2046 + $0x8] sm:$0xff]
    %v2049 = vld [vmem:[%s2046 + $0x10] sm:$0xff]
    %v2050 = vld [vmem:[%s2046 + $0x18] sm:$0xff]
    %v2051 = vld [vmem:[%s2046 + $0x20] sm:$0xff]
    %v2052 = vld [vmem:[%s2046 + $0x28] sm:$0xff]
    %v2053 = vld [vmem:[%s2046 + $0x30] sm:$0xff]
    %v2054 = vld [vmem:[%s2046 + $0x38] sm:$0xff]
    %v2055 = vld [vmem:[%s2046 + $0x40] sm:$0xff]
    %v2056 = vld [vmem:[%s2046 + $0x48] sm:$0xff]
    %v2057 = vld [vmem:[%s2046 + $0x50] sm:$0xff]
    %v2058 = vld [vmem:[%s2046 + $0x58] sm:$0xff]
    %v2059 = vld [vmem:[%s2046 + $0x60] sm:$0xff]
    %v2060 = vld [vmem:[%s2046 + $0x68] sm:$0xff]
    %v2061 = vld [vmem:[%s2046 + $0x70] sm:$0xff]
    %v2062 = vld [vmem:[%s2046 + $0x78] sm:$0xff]
    %v2063 = vld [vmem:[%s2046 + $0x80] sm:$0xff]
    %v2064 = vld [vmem:[%s2046 + $0x88] sm:$0xff]
    %v2065 = vld [vmem:[%s2046 + $0x90] sm:$0xff]
    %v2066 = vld [vmem:[%s2046 + $0x98] sm:$0xff]
    %v2067 = vld [vmem:[%s2046 + $0xa0] sm:$0xff]
    %v2068 = vld [vmem:[%s2046 + $0xa8] sm:$0xff]
    %v2069 = vld [vmem:[%s2046 + $0xb0] sm:$0xff]
    %v2070 = vld [vmem:[%s2046 + $0xb8] sm:$0xff]
    %v2071 = vld [vmem:[%s2046 + $0xc0] sm:$0xff]
    %v2072 = vld [vmem:[%s2046 + $0xc8] sm:$0xff]
    %v2073 = vld [vmem:[%s2046 + $0xd0] sm:$0xff]
    %v2074 = vld [vmem:[%s2046 + $0xd8] sm:$0xff]
    %v2075 = vld [vmem:[%s2046 + $0xe0] sm:$0xff]
    %v2076 = vld [vmem:[%s2046 + $0xe8] sm:$0xff]
    %v2077 = vld [vmem:[%s2046 + $0xf0] sm:$0xff]
    %v2078 = vld [vmem:[%s2046 + $0xf8] sm:$0xff]
    %v2079 = vld [vmem:[%s2046 + $0x100] sm:$0xff]
    %v2080 = vld [vmem:[%s2046 + $0x108] sm:$0xff]
    %v2081 = vld [vmem:[%s2046 + $0x110] sm:$0xff]
    %v2082 = vld [vmem:[%s2046 + $0x118] sm:$0xff]
    %v2083 = vld [vmem:[%s2046 + $0x120] sm:$0xff]
    %v2084 = vld [vmem:[%s2046 + $0x128] sm:$0xff]
    %v2085 = vld [vmem:[%s2046 + $0x130] sm:$0xff]
    %v2086 = vld [vmem:[%s2046 + $0x138] sm:$0xff]
    %v2087 = vld [vmem:[%s2046 + $0x140] sm:$0xff]
    %v2088 = vld [vmem:[%s2046 + $0x148] sm:$0xff]
    %v2089 = vld [vmem:[%s2046 + $0x150] sm:$0xff]
    %v2090 = vld [vmem:[%s2046 + $0x158] sm:$0xff]
    %v2091 = vld [vmem:[%s2046 + $0x160] sm:$0xff]
    %v2092 = vld [vmem:[%s2046 + $0x168] sm:$0xff]
    %v2093 = vld [vmem:[%s2046 + $0x170] sm:$0xff]
    %v2094 = vld [vmem:[%s2046 + $0x178] sm:$0xff]
    %v2095 = vld [vmem:[%s2046 + $0x180] sm:$0xff]
    %v2096 = vld [vmem:[%s2046 + $0x188] sm:$0xff]
    %v2097 = vld [vmem:[%s2046 + $0x190] sm:$0xff]
    %v2098 = vld [vmem:[%s2046 + $0x198] sm:$0xff]
    %v2099 = vld [vmem:[%s2046 + $0x1a0] sm:$0xff]
    %v2100 = vld [vmem:[%s2046 + $0x1a8] sm:$0xff]
    %v2101 = vld [vmem:[%s2046 + $0x1b0] sm:$0xff]
    %v2102 = vld [vmem:[%s2046 + $0x1b8] sm:$0xff]
    %v2103 = vld [vmem:[%s2046 + $0x1c0] sm:$0xff]
    %v2104 = vld [vmem:[%s2046 + $0x1c8] sm:$0xff]
    %v2105 = vld [vmem:[%s2046 + $0x1d0] sm:$0xff]
    %v2106 = vld [vmem:[%s2046 + $0x1d8] sm:$0xff]
    %v2107 = vld [vmem:[%s2046 + $0x1e0] sm:$0xff]
    %v2108 = vld [vmem:[%s2046 + $0x1e8] sm:$0xff]
    %v2109 = vld [vmem:[%s2046 + $0x1f0] sm:$0xff]
    %v2110 = vld [vmem:[%s2046 + $0x1f8] sm:$0xff]
    %s2111 = scalar_lea.vmem %s3, 4
    %v2112 = vld [vmem:[%s2111] sm:$0xf]
    %v2114 = vlaneseq
    %v2115 = vshrl.u32 %v2114, 7
    %v2116 = vsub.s32 0, %v2115
    %v2117 = vrot.slane %v2112, %v2116
    %v2118 = vlaneseq
    %v2119 = vshrl.u32 %v2118, 7
    %v2120 = vsub.s32 1, %v2119
    %v2121 = vrot.slane %v2112, %v2120
    %v2122 = vlaneseq
    %v2123 = vshrl.u32 %v2122, 7
    %v2124 = vsub.s32 2, %v2123
    %v2125 = vrot.slane %v2112, %v2124
    %v2126 = vlaneseq
    %v2127 = vshrl.u32 %v2126, 7
    %v2128 = vsub.s32 3, %v2127
    %v2129 = vrot.slane %v2112, %v2128
    %2134 = vmatprep.subr.mxu0 %v2048
    %2135 = vmatpush1.msra.mxu0 %v2047
    %2136 = vmatprep.subr.mxu0 %v2052
    %2137 = vmatpush1.msra.mxu0 %v2051
    %2138 = vmatprep.subr.mxu0 %v2056
    %2139 = vmatpush1.msra.mxu0 %v2055
    %2140 = vmatprep.subr.mxu0 %v2060
    %2141 = vmatpush1.msra.mxu0 %v2059
    %2142 = vmatprep.subr.mxu0 %v2064
    %2143 = vmatpush1.msra.mxu0 %v2063
    %2144 = vmatprep.subr.mxu0 %v2068
    %2145 = vmatpush1.msra.mxu0 %v2067
    %2146 = vmatprep.subr.mxu0 %v2072
    %2147 = vmatpush1.msra.mxu0 %v2071
    %2148 = vmatprep.subr.mxu0 %v2076
    %2149 = vmatpush1.msra.mxu0 %v2075
    %2150 = vmatprep.subr.mxu0 %v2080
    %2151 = vmatpush1.msra.mxu0 %v2079
    %2152 = vmatprep.subr.mxu0 %v2084
    %2153 = vmatpush1.msra.mxu0 %v2083
    %2154 = vmatprep.subr.mxu0 %v2088
    %2155 = vmatpush1.msra.mxu0 %v2087
    %2156 = vmatprep.subr.mxu0 %v2092
    %2157 = vmatpush1.msra.mxu0 %v2091
    %2158 = vmatprep.subr.mxu0 %v2096
    %2159 = vmatpush1.msra.mxu0 %v2095
    %2160 = vmatprep.subr.mxu0 %v2100
    %2161 = vmatpush1.msra.mxu0 %v2099
    %2162 = vmatprep.subr.mxu0 %v2104
    %2163 = vmatpush1.msra.mxu0 %v2103
    %2164 = vmatprep.subr.mxu0 %v2108
    %2165 = vmatpush1.msra.mxu0 %v2107
    %2166 = vmatprep.subr.mxu0 0.0
    %2167 = vmatpush1.msra.mxu0 0.0
    %2168 = vmatprep.subr.mxu0 0.0
    %2169 = vmatpush1.msra.mxu0 0.0
    %2170 = vmatprep.subr.mxu0 0.0
    %2171 = vmatpush1.msra.mxu0 0.0
    %2172 = vmatprep.subr.mxu0 0.0
    %2173 = vmatpush1.msra.mxu0 0.0
    %2174 = vmatprep.subr.mxu0 0.0
    %2175 = vmatpush1.msra.mxu0 0.0
    %2176 = vmatprep.subr.mxu0 0.0
    %2177 = vmatpush1.msra.mxu0 0.0
    %2178 = vmatprep.subr.mxu0 0.0
    %2179 = vmatpush1.msra.mxu0 0.0
    %2180 = vmatprep.subr.mxu0 0.0
    %2181 = vmatpush1.msra.mxu0 0.0
    %2182 = vmatprep.subr.mxu0 0.0
    %2183 = vmatpush1.msra.mxu0 0.0
    %2184 = vmatprep.subr.mxu0 0.0
    %2185 = vmatpush1.msra.mxu0 0.0
    %2186 = vmatprep.subr.mxu0 0.0
    %2187 = vmatpush1.msra.mxu0 0.0
    %2188 = vmatprep.subr.mxu0 0.0
    %2189 = vmatpush1.msra.mxu0 0.0
    %2190 = vmatprep.subr.mxu0 0.0
    %2191 = vmatpush1.msra.mxu0 0.0
    %2192 = vmatprep.subr.mxu0 0.0
    %2193 = vmatpush1.msra.mxu0 0.0
    %2194 = vmatprep.subr.mxu0 0.0
    %2195 = vmatpush1.msra.mxu0 0.0
    %2196 = vmatprep.subr.mxu0 0.0
    %2197 = vmatpush1.msra.mxu0 0.0
    %2198 = vmatprep.mubr.f32.mxu0 0.0
    %2199 = vmatmul.mubr.f32.gmra.mrb[0].mxu0 %v2045
    %v2200 = vpop.f32.mrb[0].mxu0
    %v2201 = vadd.f32 %v2117, %v2200
    %v2202 = vpop.f32.mrb[0].mxu0
    %v2203 = vadd.f32 %v2121, %v2202
    %2204 = vdwg.mxu0
    %2205 = vmatprep.subr.mxu0 %v2050
    %2206 = vmatpush1.msra.mxu0 %v2049
    %2207 = vmatprep.subr.mxu0 %v2054
    %2208 = vmatpush1.msra.mxu0 %v2053
    %2209 = vmatprep.subr.mxu0 %v2058
    %2210 = vmatpush1.msra.mxu0 %v2057
    %2211 = vmatprep.subr.mxu0 %v2062
    %2212 = vmatpush1.msra.mxu0 %v2061
    %2213 = vmatprep.subr.mxu0 %v2066
    %2214 = vmatpush1.msra.mxu0 %v2065
    %2215 = vmatprep.subr.mxu0 %v2070
    %2216 = vmatpush1.msra.mxu0 %v2069
    %2217 = vmatprep.subr.mxu0 %v2074
    %2218 = vmatpush1.msra.mxu0 %v2073
    %2219 = vmatprep.subr.mxu0 %v2078
    %2220 = vmatpush1.msra.mxu0 %v2077
    %2221 = vmatprep.subr.mxu0 %v2082
    %2222 = vmatpush1.msra.mxu0 %v2081
    %2223 = vmatprep.subr.mxu0 %v2086
    %2224 = vmatpush1.msra.mxu0 %v2085
    %2225 = vmatprep.subr.mxu0 %v2090
    %2226 = vmatpush1.msra.mxu0 %v2089
    %2227 = vmatprep.subr.mxu0 %v2094
    %2228 = vmatpush1.msra.mxu0 %v2093
    %2229 = vmatprep.subr.mxu0 %v2098
    %2230 = vmatpush1.msra.mxu0 %v2097
    %2231 = vmatprep.subr.mxu0 %v2102
    %2232 = vmatpush1.msra.mxu0 %v2101
    %2233 = vmatprep.subr.mxu0 %v2106
    %2234 = vmatpush1.msra.mxu0 %v2105
    %2235 = vmatprep.subr.mxu0 %v2110
    %2236 = vmatpush1.msra.mxu0 %v2109
    %2237 = vmatprep.subr.mxu0 0.0
    %2238 = vmatpush1.msra.mxu0 0.0
    %2239 = vmatprep.subr.mxu0 0.0
    %2240 = vmatpush1.msra.mxu0 0.0
    %2241 = vmatprep.subr.mxu0 0.0
    %2242 = vmatpush1.msra.mxu0 0.0
    %2243 = vmatprep.subr.mxu0 0.0
    %2244 = vmatpush1.msra.mxu0 0.0
    %2245 = vmatprep.subr.mxu0 0.0
    %2246 = vmatpush1.msra.mxu0 0.0
    %2247 = vmatprep.subr.mxu0 0.0
    %2248 = vmatpush1.msra.mxu0 0.0
    %2249 = vmatprep.subr.mxu0 0.0
    %2250 = vmatpush1.msra.mxu0 0.0
    %2251 = vmatprep.subr.mxu0 0.0
    %2252 = vmatpush1.msra.mxu0 0.0
    %2253 = vmatprep.subr.mxu0 0.0
    %2254 = vmatpush1.msra.mxu0 0.0
    %2255 = vmatprep.subr.mxu0 0.0
    %2256 = vmatpush1.msra.mxu0 0.0
    %2257 = vmatprep.subr.mxu0 0.0
    %2258 = vmatpush1.msra.mxu0 0.0
    %2259 = vmatprep.subr.mxu0 0.0
    %2260 = vmatpush1.msra.mxu0 0.0
    %2261 = vmatprep.subr.mxu0 0.0
    %2262 = vmatpush1.msra.mxu0 0.0
    %2263 = vmatprep.subr.mxu0 0.0
    %2264 = vmatpush1.msra.mxu0 0.0
    %2265 = vmatprep.subr.mxu0 0.0
    %2266 = vmatpush1.msra.mxu0 0.0
    %2267 = vmatprep.subr.mxu0 0.0
    %2268 = vmatpush1.msra.mxu0 0.0
    %2269 = vmatprep.mubr.f32.mxu0 0.0
    %2270 = vmatmul.mubr.f32.gmra.mrb[0].mxu0 %v2045
    %v2271 = vpop.f32.mrb[0].mxu0
    %v2272 = vadd.f32 %v2125, %v2271
    %v2273 = vpop.f32.mrb[0].mxu0
    %v2274 = vadd.f32 %v2129, %v2273
    %2275 = vdwg.mxu0
    %2276 = vst [vmem:[#allocation3] sm:$0xff] %v2201
    %2277 = vst [vmem:[#allocation3 + $0x8] sm:$0xff] %v2203
    %2278 = vst [vmem:[#allocation3 + $0x10] sm:$0xff] %v2272
    %2279 = vst [vmem:[#allocation3 + $0x18] sm:$0xff] %v2274
    %2280 = vst [vmem:[#allocation4] sm:$0x1] 0.0
    %2281 = vst [vmem:[#allocation5] sm:$0x1] 0.0
    %s2282 = scalar_lea.vmem [#allocation9], 512
    %v2283 = vld [vmem:[%s2282] sm:$0xff]
    %v2284 = vld [vmem:[%s2282 + $0x8] sm:$0xff]
    %v2285 = vld [vmem:[%s2282 + $0x10] sm:$0xff]
    %v2286 = vld [vmem:[%s2282 + $0x18] sm:$0xff]
    %v2287 = vld [vmem:[%s2282 + $0x20] sm:$0xff]
    %v2288 = vld [vmem:[%s2282 + $0x28] sm:$0xff]
    %v2289 = vld [vmem:[%s2282 + $0x30] sm:$0xff]
    %v2290 = vld [vmem:[%s2282 + $0x38] sm:$0xff]
    %v2291 = vld [vmem:[%s2282 + $0x40] sm:$0xff]
    %v2292 = vld [vmem:[%s2282 + $0x48] sm:$0xff]
    %v2293 = vld [vmem:[%s2282 + $0x50] sm:$0xff]
    %v2294 = vld [vmem:[%s2282 + $0x58] sm:$0xff]
    %v2295 = vld [vmem:[%s2282 + $0x60] sm:$0xff]
    %v2296 = vld [vmem:[%s2282 + $0x68] sm:$0xff]
    %v2297 = vld [vmem:[%s2282 + $0x70] sm:$0xff]
    %v2298 = vld [vmem:[%s2282 + $0x78] sm:$0xff]
    %v2299 = vld [vmem:[%s2282 + $0x80] sm:$0xff]
    %v2300 = vld [vmem:[%s2282 + $0x88] sm:$0xff]
    %v2301 = vld [vmem:[%s2282 + $0x90] sm:$0xff]
    %v2302 = vld [vmem:[%s2282 + $0x98] sm:$0xff]
    %v2303 = vld [vmem:[%s2282 + $0xa0] sm:$0xff]
    %v2304 = vld [vmem:[%s2282 + $0xa8] sm:$0xff]
    %v2305 = vld [vmem:[%s2282 + $0xb0] sm:$0xff]
    %v2306 = vld [vmem:[%s2282 + $0xb8] sm:$0xff]
    %v2307 = vld [vmem:[%s2282 + $0xc0] sm:$0xff]
    %v2308 = vld [vmem:[%s2282 + $0xc8] sm:$0xff]
    %v2309 = vld [vmem:[%s2282 + $0xd0] sm:$0xff]
    %v2310 = vld [vmem:[%s2282 + $0xd8] sm:$0xff]
    %v2311 = vld [vmem:[%s2282 + $0xe0] sm:$0xff]
    %v2312 = vld [vmem:[%s2282 + $0xe8] sm:$0xff]
    %v2313 = vld [vmem:[%s2282 + $0xf0] sm:$0xff]
    %v2314 = vld [vmem:[%s2282 + $0xf8] sm:$0xff]
    %v2315 = vld [vmem:[%s2282 + $0x100] sm:$0xff]
    %v2316 = vld [vmem:[%s2282 + $0x108] sm:$0xff]
    %v2317 = vld [vmem:[%s2282 + $0x110] sm:$0xff]
    %v2318 = vld [vmem:[%s2282 + $0x118] sm:$0xff]
    %v2319 = vld [vmem:[%s2282 + $0x120] sm:$0xff]
    %v2320 = vld [vmem:[%s2282 + $0x128] sm:$0xff]
    %v2321 = vld [vmem:[%s2282 + $0x130] sm:$0xff]
    %v2322 = vld [vmem:[%s2282 + $0x138] sm:$0xff]
    %v2323 = vld [vmem:[%s2282 + $0x140] sm:$0xff]
    %v2324 = vld [vmem:[%s2282 + $0x148] sm:$0xff]
    %v2325 = vld [vmem:[%s2282 + $0x150] sm:$0xff]
    %v2326 = vld [vmem:[%s2282 + $0x158] sm:$0xff]
    %v2327 = vld [vmem:[%s2282 + $0x160] sm:$0xff]
    %v2328 = vld [vmem:[%s2282 + $0x168] sm:$0xff]
    %v2329 = vld [vmem:[%s2282 + $0x170] sm:$0xff]
    %v2330 = vld [vmem:[%s2282 + $0x178] sm:$0xff]
    %v2331 = vld [vmem:[%s2282 + $0x180] sm:$0xff]
    %v2332 = vld [vmem:[%s2282 + $0x188] sm:$0xff]
    %v2333 = vld [vmem:[%s2282 + $0x190] sm:$0xff]
    %v2334 = vld [vmem:[%s2282 + $0x198] sm:$0xff]
    %v2335 = vld [vmem:[%s2282 + $0x1a0] sm:$0xff]
    %v2336 = vld [vmem:[%s2282 + $0x1a8] sm:$0xff]
    %v2337 = vld [vmem:[%s2282 + $0x1b0] sm:$0xff]
    %v2338 = vld [vmem:[%s2282 + $0x1b8] sm:$0xff]
    %v2339 = vld [vmem:[%s2282 + $0x1c0] sm:$0xff]
    %v2340 = vld [vmem:[%s2282 + $0x1c8] sm:$0xff]
    %v2341 = vld [vmem:[%s2282 + $0x1d0] sm:$0xff]
    %v2342 = vld [vmem:[%s2282 + $0x1d8] sm:$0xff]
    %v2343 = vld [vmem:[%s2282 + $0x1e0] sm:$0xff]
    %v2344 = vld [vmem:[%s2282 + $0x1e8] sm:$0xff]
    %v2345 = vld [vmem:[%s2282 + $0x1f0] sm:$0xff]
    %v2346 = vld [vmem:[%s2282 + $0x1f8] sm:$0xff]
    %v2347 = vld [vmem:[#allocation3] ss:$8 sm:$0xf]
    %v2348 = vld [vmem:[#allocation4] sm:$0x1]
    %2349 = vmatprep.subr.mxu0 %v2284
    %2350 = vmatpush1.msra.mxu0 %v2283
    %2351 = vmatprep.subr.mxu0 %v2288
    %2352 = vmatpush1.msra.mxu0 %v2287
    %2353 = vmatprep.subr.mxu0 %v2292
    %2354 = vmatpush1.msra.mxu0 %v2291
    %2355 = vmatprep.subr.mxu0 %v2296
    %2356 = vmatpush1.msra.mxu0 %v2295
    %2357 = vmatprep.subr.mxu0 %v2300
    %2358 = vmatpush1.msra.mxu0 %v2299
    %2359 = vmatprep.subr.mxu0 %v2304
    %2360 = vmatpush1.msra.mxu0 %v2303
    %2361 = vmatprep.subr.mxu0 %v2308
    %2362 = vmatpush1.msra.mxu0 %v2307
    %2363 = vmatprep.subr.mxu0 %v2312
    %2364 = vmatpush1.msra.mxu0 %v2311
    %2365 = vmatprep.subr.mxu0 %v2316
    %2366 = vmatpush1.msra.mxu0 %v2315
    %2367 = vmatprep.subr.mxu0 %v2320
    %2368 = vmatpush1.msra.mxu0 %v2319
    %2369 = vmatprep.subr.mxu0 %v2324
    %2370 = vmatpush1.msra.mxu0 %v2323
    %2371 = vmatprep.subr.mxu0 %v2328
    %2372 = vmatpush1.msra.mxu0 %v2327
    %2373 = vmatprep.subr.mxu0 %v2332
    %2374 = vmatpush1.msra.mxu0 %v2331
    %2375 = vmatprep.subr.mxu0 %v2336
    %2376 = vmatpush1.msra.mxu0 %v2335
    %2377 = vmatprep.subr.mxu0 %v2340
    %2378 = vmatpush1.msra.mxu0 %v2339
    %2379 = vmatprep.subr.mxu0 %v2344
    %2380 = vmatpush1.msra.mxu0 %v2343
    %2381 = vmatprep.subr.mxu0 0.0
    %2382 = vmatpush1.msra.mxu0 0.0
    %2383 = vmatprep.subr.mxu0 0.0
    %2384 = vmatpush1.msra.mxu0 0.0
    %2385 = vmatprep.subr.mxu0 0.0
    %2386 = vmatpush1.msra.mxu0 0.0
    %2387 = vmatprep.subr.mxu0 0.0
    %2388 = vmatpush1.msra.mxu0 0.0
    %2389 = vmatprep.subr.mxu0 0.0
    %2390 = vmatpush1.msra.mxu0 0.0
    %2391 = vmatprep.subr.mxu0 0.0
    %2392 = vmatpush1.msra.mxu0 0.0
    %2393 = vmatprep.subr.mxu0 0.0
    %2394 = vmatpush1.msra.mxu0 0.0
    %2395 = vmatprep.subr.mxu0 0.0
    %2396 = vmatpush1.msra.mxu0 0.0
    %2397 = vmatprep.subr.mxu0 0.0
    %2398 = vmatpush1.msra.mxu0 0.0
    %2399 = vmatprep.subr.mxu0 0.0
    %2400 = vmatpush1.msra.mxu0 0.0
    %2401 = vmatprep.subr.mxu0 0.0
    %2402 = vmatpush1.msra.mxu0 0.0
    %2403 = vmatprep.subr.mxu0 0.0
    %2404 = vmatpush1.msra.mxu0 0.0
    %2405 = vmatprep.subr.mxu0 0.0
    %2406 = vmatpush1.msra.mxu0 0.0
    %2407 = vmatprep.subr.mxu0 0.0
    %2408 = vmatpush1.msra.mxu0 0.0
    %2409 = vmatprep.subr.mxu0 0.0
    %2410 = vmatpush1.msra.mxu0 0.0
    %2411 = vmatprep.subr.mxu0 0.0
    %2412 = vmatpush1.msra.mxu0 0.0
    %2413 = vmatprep.mubr.f32.mxu0 0.0
    %2414 = vmatmul.mubr.f32.gmra.mrb[0].mxu0 %v2348
    %v2415 = vpop.f32.mrb[0].mxu0
    %v2416 = vadd.f32 0.0, %v2415
    %v2417 = vpop.f32.mrb[0].mxu0
    %v2418 = vadd.f32 0.0, %v2417
    %2419 = vdwg.mxu0
    %2420 = vmatprep.subr.mxu0 %v2286
    %2421 = vmatpush1.msra.mxu0 %v2285
    %2422 = vmatprep.subr.mxu0 %v2290
    %2423 = vmatpush1.msra.mxu0 %v2289
    %2424 = vmatprep.subr.mxu0 %v2294
    %2425 = vmatpush1.msra.mxu0 %v2293
    %2426 = vmatprep.subr.mxu0 %v2298
    %2427 = vmatpush1.msra.mxu0 %v2297
    %2428 = vmatprep.subr.mxu0 %v2302
    %2429 = vmatpush1.msra.mxu0 %v2301
    %2430 = vmatprep.subr.mxu0 %v2306
    %2431 = vmatpush1.msra.mxu0 %v2305
    %2432 = vmatprep.subr.mxu0 %v2310
    %2433 = vmatpush1.msra.mxu0 %v2309
    %2434 = vmatprep.subr.mxu0 %v2314
    %2435 = vmatpush1.msra.mxu0 %v2313
    %2436 = vmatprep.subr.mxu0 %v2318
    %2437 = vmatpush1.msra.mxu0 %v2317
    %2438 = vmatprep.subr.mxu0 %v2322
    %2439 = vmatpush1.msra.mxu0 %v2321
    %2440 = vmatprep.subr.mxu0 %v2326
    %2441 = vmatpush1.msra.mxu0 %v2325
    %2442 = vmatprep.subr.mxu0 %v2330
    %2443 = vmatpush1.msra.mxu0 %v2329
    %2444 = vmatprep.subr.mxu0 %v2334
    %2445 = vmatpush1.msra.mxu0 %v2333
    %2446 = vmatprep.subr.mxu0 %v2338
    %2447 = vmatpush1.msra.mxu0 %v2337
    %2448 = vmatprep.subr.mxu0 %v2342
    %2449 = vmatpush1.msra.mxu0 %v2341
    %2450 = vmatprep.subr.mxu0 %v2346
    %2451 = vmatpush1.msra.mxu0 %v2345
    %2452 = vmatprep.subr.mxu0 0.0
    %2453 = vmatpush1.msra.mxu0 0.0
    %2454 = vmatprep.subr.mxu0 0.0
    %2455 = vmatpush1.msra.mxu0 0.0
    %2456 = vmatprep.subr.mxu0 0.0
    %2457 = vmatpush1.msra.mxu0 0.0
    %2458 = vmatprep.subr.mxu0 0.0
    %2459 = vmatpush1.msra.mxu0 0.0
    %2460 = vmatprep.subr.mxu0 0.0
    %2461 = vmatpush1.msra.mxu0 0.0
    %2462 = vmatprep.subr.mxu0 0.0
    %2463 = vmatpush1.msra.mxu0 0.0
    %2464 = vmatprep.subr.mxu0 0.0
    %2465 = vmatpush1.msra.mxu0 0.0
    %2466 = vmatprep.subr.mxu0 0.0
    %2467 = vmatpush1.msra.mxu0 0.0
    %2468 = vmatprep.subr.mxu0 0.0
    %2469 = vmatpush1.msra.mxu0 0.0
    %2470 = vmatprep.subr.mxu0 0.0
    %2471 = vmatpush1.msra.mxu0 0.0
    %2472 = vmatprep.subr.mxu0 0.0
    %2473 = vmatpush1.msra.mxu0 0.0
    %2474 = vmatprep.subr.mxu0 0.0
    %2475 = vmatpush1.msra.mxu0 0.0
    %2476 = vmatprep.subr.mxu0 0.0
    %2477 = vmatpush1.msra.mxu0 0.0
    %2478 = vmatprep.subr.mxu0 0.0
    %2479 = vmatpush1.msra.mxu0 0.0
    %2480 = vmatprep.subr.mxu0 0.0
    %2481 = vmatpush1.msra.mxu0 0.0
    %2482 = vmatprep.subr.mxu0 0.0
    %2483 = vmatpush1.msra.mxu0 0.0
    %2484 = vmatprep.mubr.f32.mxu0 0.0
    %2485 = vmatmul.mubr.f32.gmra.mrb[0].mxu0 %v2348
    %v2486 = vpop.f32.mrb[0].mxu0
    %v2487 = vadd.f32 0.0, %v2486
    %v2488 = vpop.f32.mrb[0].mxu0
    %v2489 = vadd.f32 0.0, %v2488
    %2490 = vdwg.mxu0
    %v2495 = vcombine.low %v2416, %v2418
    %v2496 = vcombine.low %v2487, %v2489
    %v2498 = vunpack.c.l.s4 1966171168
    %v2499 = vunpack.c.0.s8 %v2498
    %v2500 = vlaneseq
    %v2501 = vshrl.u32 %v2500, 7
    %v2502 = vsub.s32 %v2499, %v2501
    %v2503 = vrot.slane %v2495, %v2502
    %v2505 = vunpack.c.l.s4 1966171168
    %v2506 = vunpack.c.0.s8 %v2505
    %v2507 = vlaneseq
    %v2508 = vshrl.u32 %v2507, 7
    %v2509 = vsub.s32 %v2506, %v2508
    %v2510 = vrot.slane %v2496, %v2509
    %v2511 = vcombine.low %v2503, %v2510
    %v2513 = vunpack.c.l.s4 1966171168
    %v2514 = vunpack.c.0.s8 %v2513
    %v2515 = vlaneseq
    %v2516 = vshrl.u32 %v2515, 7
    %v2517 = vsub.s32 %v2514, %v2516
    %v2518 = vrot.slane %v2511, %v2517
    %v2520 = vadd.f32 %v2347, %v2518
    %v2521 = vxor.u32 %v2520, 2147483648
    %v2522 = vmul.f32 %v2521, 1.442695
    %v2523 = vpow.pop %v2522
    %v2524 = vadd.f32 %v2523, 1.0
    %v2525 = vrcp.pop %v2524
    %v2526 = vmul.f32 1.0, %v2525
    %v2528 = vrot.slane %v2520, 1
    %v2530 = vxor.u32 %v2528, 2147483648
    %v2531 = vmul.f32 %v2530, 1.442695
    %v2532 = vpow.pop %v2531
    %v2533 = vadd.f32 %v2532, 1.0
    %v2534 = vrcp.pop %v2533
    %v2535 = vmul.f32 1.0, %v2534
    %v2536 = vrot.slane %v2520, 2
    %v2538 = vtanh.pop %v2536
    %v2539 = vrot.slane %v2520, 3
    %v2541 = vxor.u32 %v2539, 2147483648
    %v2542 = vmul.f32 %v2541, 1.442695
    %v2543 = vpow.pop %v2542
    %v2544 = vadd.f32 %v2543, 1.0
    %v2545 = vrcp.pop %v2544
    %v2546 = vmul.f32 1.0, %v2545
    %v2547 = vld [vmem:[#allocation5] sm:$0x1]
    %v2548 = vmul.f32 %v2535, %v2547
    %v2549 = vmul.f32 %v2526, %v2538
    %v2550 = vadd.f32 %v2548, %v2549
    %v2551 = vtanh.pop %v2550
    %v2552 = vmul.f32 %v2546, %v2551
    %2553 = vst [vmem:[#allocation5] sm:$0x1] %v2550
    %2554 = vst [vmem:[#allocation4] sm:$0x1] %v2552
    %2555 = vst [vmem:[#allocation2] sm:$0x1] %v2552
    %v2556 = vld [vmem:[%s575] ss:$8 sm:$0xf]
    %v2557 = vld [vmem:[#allocation4] sm:$0x1]
    %2558 = vmatprep.subr.mxu0 %v2284
    %2559 = vmatpush1.msra.mxu0 %v2283
    %2560 = vmatprep.subr.mxu0 %v2288
    %2561 = vmatpush1.msra.mxu0 %v2287
    %2562 = vmatprep.subr.mxu0 %v2292
    %2563 = vmatpush1.msra.mxu0 %v2291
    %2564 = vmatprep.subr.mxu0 %v2296
    %2565 = vmatpush1.msra.mxu0 %v2295
    %2566 = vmatprep.subr.mxu0 %v2300
    %2567 = vmatpush1.msra.mxu0 %v2299
    %2568 = vmatprep.subr.mxu0 %v2304
    %2569 = vmatpush1.msra.mxu0 %v2303
    %2570 = vmatprep.subr.mxu0 %v2308
    %2571 = vmatpush1.msra.mxu0 %v2307
    %2572 = vmatprep.subr.mxu0 %v2312
    %2573 = vmatpush1.msra.mxu0 %v2311
    %2574 = vmatprep.subr.mxu0 %v2316
    %2575 = vmatpush1.msra.mxu0 %v2315
    %2576 = vmatprep.subr.mxu0 %v2320
    %2577 = vmatpush1.msra.mxu0 %v2319
    %2578 = vmatprep.subr.mxu0 %v2324
    %2579 = vmatpush1.msra.mxu0 %v2323
    %2580 = vmatprep.subr.mxu0 %v2328
    %2581 = vmatpush1.msra.mxu0 %v2327
    %2582 = vmatprep.subr.mxu0 %v2332
    %2583 = vmatpush1.msra.mxu0 %v2331
    %2584 = vmatprep.subr.mxu0 %v2336
    %2585 = vmatpush1.msra.mxu0 %v2335
    %2586 = vmatprep.subr.mxu0 %v2340
    %2587 = vmatpush1.msra.mxu0 %v2339
    %2588 = vmatprep.subr.mxu0 %v2344
    %2589 = vmatpush1.msra.mxu0 %v2343
    %2590 = vmatprep.subr.mxu0 0.0
    %2591 = vmatpush1.msra.mxu0 0.0
    %2592 = vmatprep.subr.mxu0 0.0
    %2593 = vmatpush1.msra.mxu0 0.0
    %2594 = vmatprep.subr.mxu0 0.0
    %2595 = vmatpush1.msra.mxu0 0.0
    %2596 = vmatprep.subr.mxu0 0.0
    %2597 = vmatpush1.msra.mxu0 0.0
    %2598 = vmatprep.subr.mxu0 0.0
    %2599 = vmatpush1.msra.mxu0 0.0
    %2600 = vmatprep.subr.mxu0 0.0
    %2601 = vmatpush1.msra.mxu0 0.0
    %2602 = vmatprep.subr.mxu0 0.0
    %2603 = vmatpush1.msra.mxu0 0.0
    %2604 = vmatprep.subr.mxu0 0.0
    %2605 = vmatpush1.msra.mxu0 0.0
    %2606 = vmatprep.subr.mxu0 0.0
    %2607 = vmatpush1.msra.mxu0 0.0
    %2608 = vmatprep.subr.mxu0 0.0
    %2609 = vmatpush1.msra.mxu0 0.0
    %2610 = vmatprep.subr.mxu0 0.0
    %2611 = vmatpush1.msra.mxu0 0.0
    %2612 = vmatprep.subr.mxu0 0.0
    %2613 = vmatpush1.msra.mxu0 0.0
    %2614 = vmatprep.subr.mxu0 0.0
    %2615 = vmatpush1.msra.mxu0 0.0
    %2616 = vmatprep.subr.mxu0 0.0
    %2617 = vmatpush1.msra.mxu0 0.0
    %2618 = vmatprep.subr.mxu0 0.0
    %2619 = vmatpush1.msra.mxu0 0.0
    %2620 = vmatprep.subr.mxu0 0.0
    %2621 = vmatpush1.msra.mxu0 0.0
    %2622 = vmatprep.mubr.f32.mxu0 0.0
    %2623 = vmatmul.mubr.f32.gmra.mrb[0].mxu0 %v2557
    %v2624 = vpop.f32.mrb[0].mxu0
    %v2625 = vadd.f32 0.0, %v2624
    %v2626 = vpop.f32.mrb[0].mxu0
    %v2627 = vadd.f32 0.0, %v2626
    %2628 = vdwg.mxu0
    %2629 = vmatprep.subr.mxu0 %v2286
    %2630 = vmatpush1.msra.mxu0 %v2285
    %2631 = vmatprep.subr.mxu0 %v2290
    %2632 = vmatpush1.msra.mxu0 %v2289
    %2633 = vmatprep.subr.mxu0 %v2294
    %2634 = vmatpush1.msra.mxu0 %v2293
    %2635 = vmatprep.subr.mxu0 %v2298
    %2636 = vmatpush1.msra.mxu0 %v2297
    %2637 = vmatprep.subr.mxu0 %v2302
    %2638 = vmatpush1.msra.mxu0 %v2301
    %2639 = vmatprep.subr.mxu0 %v2306
    %2640 = vmatpush1.msra.mxu0 %v2305
    %2641 = vmatprep.subr.mxu0 %v2310
    %2642 = vmatpush1.msra.mxu0 %v2309
    %2643 = vmatprep.subr.mxu0 %v2314
    %2644 = vmatpush1.msra.mxu0 %v2313
    %2645 = vmatprep.subr.mxu0 %v2318
    %2646 = vmatpush1.msra.mxu0 %v2317
    %2647 = vmatprep.subr.mxu0 %v2322
    %2648 = vmatpush1.msra.mxu0 %v2321
    %2649 = vmatprep.subr.mxu0 %v2326
    %2650 = vmatpush1.msra.mxu0 %v2325
    %2651 = vmatprep.subr.mxu0 %v2330
    %2652 = vmatpush1.msra.mxu0 %v2329
    %2653 = vmatprep.subr.mxu0 %v2334
    %2654 = vmatpush1.msra.mxu0 %v2333
    %2655 = vmatprep.subr.mxu0 %v2338
    %2656 = vmatpush1.msra.mxu0 %v2337
    %2657 = vmatprep.subr.mxu0 %v2342
    %2658 = vmatpush1.msra.mxu0 %v2341
    %2659 = vmatprep.subr.mxu0 %v2346
    %2660 = vmatpush1.msra.mxu0 %v2345
    %2661 = vmatprep.subr.mxu0 0.0
    %2662 = vmatpush1.msra.mxu0 0.0
    %2663 = vmatprep.subr.mxu0 0.0
    %2664 = vmatpush1.msra.mxu0 0.0
    %2665 = vmatprep.subr.mxu0 0.0
    %2666 = vmatpush1.msra.mxu0 0.0
    %2667 = vmatprep.subr.mxu0 0.0
    %2668 = vmatpush1.msra.mxu0 0.0
    %2669 = vmatprep.subr.mxu0 0.0
    %2670 = vmatpush1.msra.mxu0 0.0
    %2671 = vmatprep.subr.mxu0 0.0
    %2672 = vmatpush1.msra.mxu0 0.0
    %2673 = vmatprep.subr.mxu0 0.0
    %2674 = vmatpush1.msra.mxu0 0.0
    %2675 = vmatprep.subr.mxu0 0.0
    %2676 = vmatpush1.msra.mxu0 0.0
    %2677 = vmatprep.subr.mxu0 0.0
    %2678 = vmatpush1.msra.mxu0 0.0
    %2679 = vmatprep.subr.mxu0 0.0
    %2680 = vmatpush1.msra.mxu0 0.0
    %2681 = vmatprep.subr.mxu0 0.0
    %2682 = vmatpush1.msra.mxu0 0.0
    %2683 = vmatprep.subr.mxu0 0.0
    %2684 = vmatpush1.msra.mxu0 0.0
    %2685 = vmatprep.subr.mxu0 0.0
    %2686 = vmatpush1.msra.mxu0 0.0
    %2687 = vmatprep.subr.mxu0 0.0
    %2688 = vmatpush1.msra.mxu0 0.0
    %2689 = vmatprep.subr.mxu0 0.0
    %2690 = vmatpush1.msra.mxu0 0.0
    %2691 = vmatprep.subr.mxu0 0.0
    %2692 = vmatpush1.msra.mxu0 0.0
    %2693 = vmatprep.mubr.f32.mxu0 0.0
    %2694 = vmatmul.mubr.f32.gmra.mrb[0].mxu0 %v2557
    %v2695 = vpop.f32.mrb[0].mxu0
    %v2696 = vadd.f32 0.0, %v2695
    %v2697 = vpop.f32.mrb[0].mxu0
    %v2698 = vadd.f32 0.0, %v2697
    %2699 = vdwg.mxu0
    %v2704 = vcombine.low %v2625, %v2627
    %v2705 = vcombine.low %v2696, %v2698
    %v2707 = vunpack.c.l.s4 1966171168
    %v2708 = vunpack.c.0.s8 %v2707
    %v2709 = vlaneseq
    %v2710 = vshrl.u32 %v2709, 7
    %v2711 = vsub.s32 %v2708, %v2710
    %v2712 = vrot.slane %v2704, %v2711
    %v2714 = vunpack.c.l.s4 1966171168
    %v2715 = vunpack.c.0.s8 %v2714
    %v2716 = vlaneseq
    %v2717 = vshrl.u32 %v2716, 7
    %v2718 = vsub.s32 %v2715, %v2717
    %v2719 = vrot.slane %v2705, %v2718
    %v2720 = vcombine.low %v2712, %v2719
    %v2722 = vunpack.c.l.s4 1966171168
    %v2723 = vunpack.c.0.s8 %v2722
    %v2724 = vlaneseq
    %v2725 = vshrl.u32 %v2724, 7
    %v2726 = vsub.s32 %v2723, %v2725
    %v2727 = vrot.slane %v2720, %v2726
    %v2729 = vadd.f32 %v2556, %v2727
    %v2730 = vxor.u32 %v2729, 2147483648
    %v2731 = vmul.f32 %v2730, 1.442695
    %v2732 = vpow.pop %v2731
    %v2733 = vadd.f32 %v2732, 1.0
    %v2734 = vrcp.pop %v2733
    %v2735 = vmul.f32 1.0, %v2734
    %v2737 = vrot.slane %v2729, 1
    %v2739 = vxor.u32 %v2737, 2147483648
    %v2740 = vmul.f32 %v2739, 1.442695
    %v2741 = vpow.pop %v2740
    %v2742 = vadd.f32 %v2741, 1.0
    %v2743 = vrcp.pop %v2742
    %v2744 = vmul.f32 1.0, %v2743
    %v2745 = vrot.slane %v2729, 2
    %v2747 = vtanh.pop %v2745
    %v2748 = vrot.slane %v2729, 3
    %v2750 = vxor.u32 %v2748, 2147483648
    %v2751 = vmul.f32 %v2750, 1.442695
    %v2752 = vpow.pop %v2751
    %v2753 = vadd.f32 %v2752, 1.0
    %v2754 = vrcp.pop %v2753
    %v2755 = vmul.f32 1.0, %v2754
    %v2756 = vld [vmem:[#allocation5] sm:$0x1]
    %v2757 = vmul.f32 %v2744, %v2756
    %v2758 = vmul.f32 %v2735, %v2747
    %v2759 = vadd.f32 %v2757, %v2758
    %v2760 = vtanh.pop %v2759
    %v2761 = vmul.f32 %v2755, %v2760
    %2762 = vst [vmem:[#allocation5] sm:$0x1] %v2759
    %2763 = vst [vmem:[#allocation4] sm:$0x1] %v2761
    %2764 = vst [vmem:[#allocation2 + $0x1] sm:$0x1] %v2761
    %v2765 = vld [vmem:[%s785] ss:$8 sm:$0xf]
    %v2766 = vld [vmem:[#allocation4] sm:$0x1]
    %2767 = vmatprep.subr.mxu0 %v2284
    %2768 = vmatpush1.msra.mxu0 %v2283
    %2769 = vmatprep.subr.mxu0 %v2288
    %2770 = vmatpush1.msra.mxu0 %v2287
    %2771 = vmatprep.subr.mxu0 %v2292
    %2772 = vmatpush1.msra.mxu0 %v2291
    %2773 = vmatprep.subr.mxu0 %v2296
    %2774 = vmatpush1.msra.mxu0 %v2295
    %2775 = vmatprep.subr.mxu0 %v2300
    %2776 = vmatpush1.msra.mxu0 %v2299
    %2777 = vmatprep.subr.mxu0 %v2304
    %2778 = vmatpush1.msra.mxu0 %v2303
    %2779 = vmatprep.subr.mxu0 %v2308
    %2780 = vmatpush1.msra.mxu0 %v2307
    %2781 = vmatprep.subr.mxu0 %v2312
    %2782 = vmatpush1.msra.mxu0 %v2311
    %2783 = vmatprep.subr.mxu0 %v2316
    %2784 = vmatpush1.msra.mxu0 %v2315
    %2785 = vmatprep.subr.mxu0 %v2320
    %2786 = vmatpush1.msra.mxu0 %v2319
    %2787 = vmatprep.subr.mxu0 %v2324
    %2788 = vmatpush1.msra.mxu0 %v2323
    %2789 = vmatprep.subr.mxu0 %v2328
    %2790 = vmatpush1.msra.mxu0 %v2327
    %2791 = vmatprep.subr.mxu0 %v2332
    %2792 = vmatpush1.msra.mxu0 %v2331
    %2793 = vmatprep.subr.mxu0 %v2336
    %2794 = vmatpush1.msra.mxu0 %v2335
    %2795 = vmatprep.subr.mxu0 %v2340
    %2796 = vmatpush1.msra.mxu0 %v2339
    %2797 = vmatprep.subr.mxu0 %v2344
    %2798 = vmatpush1.msra.mxu0 %v2343
    %2799 = vmatprep.subr.mxu0 0.0
    %2800 = vmatpush1.msra.mxu0 0.0
    %2801 = vmatprep.subr.mxu0 0.0
    %2802 = vmatpush1.msra.mxu0 0.0
    %2803 = vmatprep.subr.mxu0 0.0
    %2804 = vmatpush1.msra.mxu0 0.0
    %2805 = vmatprep.subr.mxu0 0.0
    %2806 = vmatpush1.msra.mxu0 0.0
    %2807 = vmatprep.subr.mxu0 0.0
    %2808 = vmatpush1.msra.mxu0 0.0
    %2809 = vmatprep.subr.mxu0 0.0
    %2810 = vmatpush1.msra.mxu0 0.0
    %2811 = vmatprep.subr.mxu0 0.0
    %2812 = vmatpush1.msra.mxu0 0.0
    %2813 = vmatprep.subr.mxu0 0.0
    %2814 = vmatpush1.msra.mxu0 0.0
    %2815 = vmatprep.subr.mxu0 0.0
    %2816 = vmatpush1.msra.mxu0 0.0
    %2817 = vmatprep.subr.mxu0 0.0
    %2818 = vmatpush1.msra.mxu0 0.0
    %2819 = vmatprep.subr.mxu0 0.0
    %2820 = vmatpush1.msra.mxu0 0.0
    %2821 = vmatprep.subr.mxu0 0.0
    %2822 = vmatpush1.msra.mxu0 0.0
    %2823 = vmatprep.subr.mxu0 0.0
    %2824 = vmatpush1.msra.mxu0 0.0
    %2825 = vmatprep.subr.mxu0 0.0
    %2826 = vmatpush1.msra.mxu0 0.0
    %2827 = vmatprep.subr.mxu0 0.0
    %2828 = vmatpush1.msra.mxu0 0.0
    %2829 = vmatprep.subr.mxu0 0.0
    %2830 = vmatpush1.msra.mxu0 0.0
    %2831 = vmatprep.mubr.f32.mxu0 0.0
    %2832 = vmatmul.mubr.f32.gmra.mrb[0].mxu0 %v2766
    %v2833 = vpop.f32.mrb[0].mxu0
    %v2834 = vadd.f32 0.0, %v2833
    %v2835 = vpop.f32.mrb[0].mxu0
    %v2836 = vadd.f32 0.0, %v2835
    %2837 = vdwg.mxu0
    %2838 = vmatprep.subr.mxu0 %v2286
    %2839 = vmatpush1.msra.mxu0 %v2285
    %2840 = vmatprep.subr.mxu0 %v2290
    %2841 = vmatpush1.msra.mxu0 %v2289
    %2842 = vmatprep.subr.mxu0 %v2294
    %2843 = vmatpush1.msra.mxu0 %v2293
    %2844 = vmatprep.subr.mxu0 %v2298
    %2845 = vmatpush1.msra.mxu0 %v2297
    %2846 = vmatprep.subr.mxu0 %v2302
    %2847 = vmatpush1.msra.mxu0 %v2301
    %2848 = vmatprep.subr.mxu0 %v2306
    %2849 = vmatpush1.msra.mxu0 %v2305
    %2850 = vmatprep.subr.mxu0 %v2310
    %2851 = vmatpush1.msra.mxu0 %v2309
    %2852 = vmatprep.subr.mxu0 %v2314
    %2853 = vmatpush1.msra.mxu0 %v2313
    %2854 = vmatprep.subr.mxu0 %v2318
    %2855 = vmatpush1.msra.mxu0 %v2317
    %2856 = vmatprep.subr.mxu0 %v2322
    %2857 = vmatpush1.msra.mxu0 %v2321
    %2858 = vmatprep.subr.mxu0 %v2326
    %2859 = vmatpush1.msra.mxu0 %v2325
    %2860 = vmatprep.subr.mxu0 %v2330
    %2861 = vmatpush1.msra.mxu0 %v2329
    %2862 = vmatprep.subr.mxu0 %v2334
    %2863 = vmatpush1.msra.mxu0 %v2333
    %2864 = vmatprep.subr.mxu0 %v2338
    %2865 = vmatpush1.msra.mxu0 %v2337
    %2866 = vmatprep.subr.mxu0 %v2342
    %2867 = vmatpush1.msra.mxu0 %v2341
    %2868 = vmatprep.subr.mxu0 %v2346
    %2869 = vmatpush1.msra.mxu0 %v2345
    %2870 = vmatprep.subr.mxu0 0.0
    %2871 = vmatpush1.msra.mxu0 0.0
    %2872 = vmatprep.subr.mxu0 0.0
    %2873 = vmatpush1.msra.mxu0 0.0
    %2874 = vmatprep.subr.mxu0 0.0
    %2875 = vmatpush1.msra.mxu0 0.0
    %2876 = vmatprep.subr.mxu0 0.0
    %2877 = vmatpush1.msra.mxu0 0.0
    %2878 = vmatprep.subr.mxu0 0.0
    %2879 = vmatpush1.msra.mxu0 0.0
    %2880 = vmatprep.subr.mxu0 0.0
    %2881 = vmatpush1.msra.mxu0 0.0
    %2882 = vmatprep.subr.mxu0 0.0
    %2883 = vmatpush1.msra.mxu0 0.0
    %2884 = vmatprep.subr.mxu0 0.0
    %2885 = vmatpush1.msra.mxu0 0.0
    %2886 = vmatprep.subr.mxu0 0.0
    %2887 = vmatpush1.msra.mxu0 0.0
    %2888 = vmatprep.subr.mxu0 0.0
    %2889 = vmatpush1.msra.mxu0 0.0
    %2890 = vmatprep.subr.mxu0 0.0
    %2891 = vmatpush1.msra.mxu0 0.0
    %2892 = vmatprep.subr.mxu0 0.0
    %2893 = vmatpush1.msra.mxu0 0.0
    %2894 = vmatprep.subr.mxu0 0.0
    %2895 = vmatpush1.msra.mxu0 0.0
    %2896 = vmatprep.subr.mxu0 0.0
    %2897 = vmatpush1.msra.mxu0 0.0
    %2898 = vmatprep.subr.mxu0 0.0
    %2899 = vmatpush1.msra.mxu0 0.0
    %2900 = vmatprep.subr.mxu0 0.0
    %2901 = vmatpush1.msra.mxu0 0.0
    %2902 = vmatprep.mubr.f32.mxu0 0.0
    %2903 = vmatmul.mubr.f32.gmra.mrb[0].mxu0 %v2766
    %v2904 = vpop.f32.mrb[0].mxu0
    %v2905 = vadd.f32 0.0, %v2904
    %v2906 = vpop.f32.mrb[0].mxu0
    %v2907 = vadd.f32 0.0, %v2906
    %2908 = vdwg.mxu0
    %v2913 = vcombine.low %v2834, %v2836
    %v2914 = vcombine.low %v2905, %v2907
    %v2916 = vunpack.c.l.s4 1966171168
    %v2917 = vunpack.c.0.s8 %v2916
    %v2918 = vlaneseq
    %v2919 = vshrl.u32 %v2918, 7
    %v2920 = vsub.s32 %v2917, %v2919
    %v2921 = vrot.slane %v2913, %v2920
    %v2923 = vunpack.c.l.s4 1966171168
    %v2924 = vunpack.c.0.s8 %v2923
    %v2925 = vlaneseq
    %v2926 = vshrl.u32 %v2925, 7
    %v2927 = vsub.s32 %v2924, %v2926
    %v2928 = vrot.slane %v2914, %v2927
    %v2929 = vcombine.low %v2921, %v2928
    %v2931 = vunpack.c.l.s4 1966171168
    %v2932 = vunpack.c.0.s8 %v2931
    %v2933 = vlaneseq
    %v2934 = vshrl.u32 %v2933, 7
    %v2935 = vsub.s32 %v2932, %v2934
    %v2936 = vrot.slane %v2929, %v2935
    %v2938 = vadd.f32 %v2765, %v2936
    %v2939 = vxor.u32 %v2938, 2147483648
    %v2940 = vmul.f32 %v2939, 1.442695
    %v2941 = vpow.pop %v2940
    %v2942 = vadd.f32 %v2941, 1.0
    %v2943 = vrcp.pop %v2942
    %v2944 = vmul.f32 1.0, %v2943
    %v2946 = vrot.slane %v2938, 1
    %v2948 = vxor.u32 %v2946, 2147483648
    %v2949 = vmul.f32 %v2948, 1.442695
    %v2950 = vpow.pop %v2949
    %v2951 = vadd.f32 %v2950, 1.0
    %v2952 = vrcp.pop %v2951
    %v2953 = vmul.f32 1.0, %v2952
    %v2954 = vrot.slane %v2938, 2
    %v2956 = vtanh.pop %v2954
    %v2957 = vrot.slane %v2938, 3
    %v2959 = vxor.u32 %v2957, 2147483648
    %v2960 = vmul.f32 %v2959, 1.442695
    %v2961 = vpow.pop %v2960
    %v2962 = vadd.f32 %v2961, 1.0
    %v2963 = vrcp.pop %v2962
    %v2964 = vmul.f32 1.0, %v2963
    %v2965 = vld [vmem:[#allocation5] sm:$0x1]
    %v2966 = vmul.f32 %v2953, %v2965
    %v2967 = vmul.f32 %v2944, %v2956
    %v2968 = vadd.f32 %v2966, %v2967
    %v2969 = vtanh.pop %v2968
    %v2970 = vmul.f32 %v2964, %v2969
    %2971 = vst [vmem:[#allocation5] sm:$0x1] %v2968
    %2972 = vst [vmem:[#allocation4] sm:$0x1] %v2970
    %2973 = vst [vmem:[#allocation2 + $0x2] sm:$0x1] %v2970
    %v2974 = vld [vmem:[%s995] ss:$8 sm:$0xf]
    %v2975 = vld [vmem:[#allocation4] sm:$0x1]
    %2976 = vmatprep.subr.mxu0 %v2284
    %2977 = vmatpush1.msra.mxu0 %v2283
    %2978 = vmatprep.subr.mxu0 %v2288
    %2979 = vmatpush1.msra.mxu0 %v2287
    %2980 = vmatprep.subr.mxu0 %v2292
    %2981 = vmatpush1.msra.mxu0 %v2291
    %2982 = vmatprep.subr.mxu0 %v2296
    %2983 = vmatpush1.msra.mxu0 %v2295
    %2984 = vmatprep.subr.mxu0 %v2300
    %2985 = vmatpush1.msra.mxu0 %v2299
    %2986 = vmatprep.subr.mxu0 %v2304
    %2987 = vmatpush1.msra.mxu0 %v2303
    %2988 = vmatprep.subr.mxu0 %v2308
    %2989 = vmatpush1.msra.mxu0 %v2307
    %2990 = vmatprep.subr.mxu0 %v2312
    %2991 = vmatpush1.msra.mxu0 %v2311
    %2992 = vmatprep.subr.mxu0 %v2316
    %2993 = vmatpush1.msra.mxu0 %v2315
    %2994 = vmatprep.subr.mxu0 %v2320
    %2995 = vmatpush1.msra.mxu0 %v2319
    %2996 = vmatprep.subr.mxu0 %v2324
    %2997 = vmatpush1.msra.mxu0 %v2323
    %2998 = vmatprep.subr.mxu0 %v2328
    %2999 = vmatpush1.msra.mxu0 %v2327
    %3000 = vmatprep.subr.mxu0 %v2332
    %3001 = vmatpush1.msra.mxu0 %v2331
    %3002 = vmatprep.subr.mxu0 %v2336
    %3003 = vmatpush1.msra.mxu0 %v2335
    %3004 = vmatprep.subr.mxu0 %v2340
    %3005 = vmatpush1.msra.mxu0 %v2339
    %3006 = vmatprep.subr.mxu0 %v2344
    %3007 = vmatpush1.msra.mxu0 %v2343
    %3008 = vmatprep.subr.mxu0 0.0
    %3009 = vmatpush1.msra.mxu0 0.0
    %3010 = vmatprep.subr.mxu0 0.0
    %3011 = vmatpush1.msra.mxu0 0.0
    %3012 = vmatprep.subr.mxu0 0.0
    %3013 = vmatpush1.msra.mxu0 0.0
    %3014 = vmatprep.subr.mxu0 0.0
    %3015 = vmatpush1.msra.mxu0 0.0
    %3016 = vmatprep.subr.mxu0 0.0
    %3017 = vmatpush1.msra.mxu0 0.0
    %3018 = vmatprep.subr.mxu0 0.0
    %3019 = vmatpush1.msra.mxu0 0.0
    %3020 = vmatprep.subr.mxu0 0.0
    %3021 = vmatpush1.msra.mxu0 0.0
    %3022 = vmatprep.subr.mxu0 0.0
    %3023 = vmatpush1.msra.mxu0 0.0
    %3024 = vmatprep.subr.mxu0 0.0
    %3025 = vmatpush1.msra.mxu0 0.0
    %3026 = vmatprep.subr.mxu0 0.0
    %3027 = vmatpush1.msra.mxu0 0.0
    %3028 = vmatprep.subr.mxu0 0.0
    %3029 = vmatpush1.msra.mxu0 0.0
    %3030 = vmatprep.subr.mxu0 0.0
    %3031 = vmatpush1.msra.mxu0 0.0
    %3032 = vmatprep.subr.mxu0 0.0
    %3033 = vmatpush1.msra.mxu0 0.0
    %3034 = vmatprep.subr.mxu0 0.0
    %3035 = vmatpush1.msra.mxu0 0.0
    %3036 = vmatprep.subr.mxu0 0.0
    %3037 = vmatpush1.msra.mxu0 0.0
    %3038 = vmatprep.subr.mxu0 0.0
    %3039 = vmatpush1.msra.mxu0 0.0
    %3040 = vmatprep.mubr.f32.mxu0 0.0
    %3041 = vmatmul.mubr.f32.gmra.mrb[0].mxu0 %v2975
    %v3042 = vpop.f32.mrb[0].mxu0
    %v3043 = vadd.f32 0.0, %v3042
    %v3044 = vpop.f32.mrb[0].mxu0
    %v3045 = vadd.f32 0.0, %v3044
    %3046 = vdwg.mxu0
    %3047 = vmatprep.subr.mxu0 %v2286
    %3048 = vmatpush1.msra.mxu0 %v2285
    %3049 = vmatprep.subr.mxu0 %v2290
    %3050 = vmatpush1.msra.mxu0 %v2289
    %3051 = vmatprep.subr.mxu0 %v2294
    %3052 = vmatpush1.msra.mxu0 %v2293
    %3053 = vmatprep.subr.mxu0 %v2298
    %3054 = vmatpush1.msra.mxu0 %v2297
    %3055 = vmatprep.subr.mxu0 %v2302
    %3056 = vmatpush1.msra.mxu0 %v2301
    %3057 = vmatprep.subr.mxu0 %v2306
    %3058 = vmatpush1.msra.mxu0 %v2305
    %3059 = vmatprep.subr.mxu0 %v2310
    %3060 = vmatpush1.msra.mxu0 %v2309
    %3061 = vmatprep.subr.mxu0 %v2314
    %3062 = vmatpush1.msra.mxu0 %v2313
    %3063 = vmatprep.subr.mxu0 %v2318
    %3064 = vmatpush1.msra.mxu0 %v2317
    %3065 = vmatprep.subr.mxu0 %v2322
    %3066 = vmatpush1.msra.mxu0 %v2321
    %3067 = vmatprep.subr.mxu0 %v2326
    %3068 = vmatpush1.msra.mxu0 %v2325
    %3069 = vmatprep.subr.mxu0 %v2330
    %3070 = vmatpush1.msra.mxu0 %v2329
    %3071 = vmatprep.subr.mxu0 %v2334
    %3072 = vmatpush1.msra.mxu0 %v2333
    %3073 = vmatprep.subr.mxu0 %v2338
    %3074 = vmatpush1.msra.mxu0 %v2337
    %3075 = vmatprep.subr.mxu0 %v2342
    %3076 = vmatpush1.msra.mxu0 %v2341
    %3077 = vmatprep.subr.mxu0 %v2346
    %3078 = vmatpush1.msra.mxu0 %v2345
    %3079 = vmatprep.subr.mxu0 0.0
    %3080 = vmatpush1.msra.mxu0 0.0
    %3081 = vmatprep.subr.mxu0 0.0
    %3082 = vmatpush1.msra.mxu0 0.0
    %3083 = vmatprep.subr.mxu0 0.0
    %3084 = vmatpush1.msra.mxu0 0.0
    %3085 = vmatprep.subr.mxu0 0.0
    %3086 = vmatpush1.msra.mxu0 0.0
    %3087 = vmatprep.subr.mxu0 0.0
    %3088 = vmatpush1.msra.mxu0 0.0
    %3089 = vmatprep.subr.mxu0 0.0
    %3090 = vmatpush1.msra.mxu0 0.0
    %3091 = vmatprep.subr.mxu0 0.0
    %3092 = vmatpush1.msra.mxu0 0.0
    %3093 = vmatprep.subr.mxu0 0.0
    %3094 = vmatpush1.msra.mxu0 0.0
    %3095 = vmatprep.subr.mxu0 0.0
    %3096 = vmatpush1.msra.mxu0 0.0
    %3097 = vmatprep.subr.mxu0 0.0
    %3098 = vmatpush1.msra.mxu0 0.0
    %3099 = vmatprep.subr.mxu0 0.0
    %3100 = vmatpush1.msra.mxu0 0.0
    %3101 = vmatprep.subr.mxu0 0.0
    %3102 = vmatpush1.msra.mxu0 0.0
    %3103 = vmatprep.subr.mxu0 0.0
    %3104 = vmatpush1.msra.mxu0 0.0
    %3105 = vmatprep.subr.mxu0 0.0
    %3106 = vmatpush1.msra.mxu0 0.0
    %3107 = vmatprep.subr.mxu0 0.0
    %3108 = vmatpush1.msra.mxu0 0.0
    %3109 = vmatprep.subr.mxu0 0.0
    %3110 = vmatpush1.msra.mxu0 0.0
    %3111 = vmatprep.mubr.f32.mxu0 0.0
    %3112 = vmatmul.mubr.f32.gmra.mrb[0].mxu0 %v2975
    %v3113 = vpop.f32.mrb[0].mxu0
    %v3114 = vadd.f32 0.0, %v3113
    %v3115 = vpop.f32.mrb[0].mxu0
    %v3116 = vadd.f32 0.0, %v3115
    %3117 = vdwg.mxu0
    %v3122 = vcombine.low %v3043, %v3045
    %v3123 = vcombine.low %v3114, %v3116
    %v3125 = vunpack.c.l.s4 1966171168
    %v3126 = vunpack.c.0.s8 %v3125
    %v3127 = vlaneseq
    %v3128 = vshrl.u32 %v3127, 7
    %v3129 = vsub.s32 %v3126, %v3128
    %v3130 = vrot.slane %v3122, %v3129
    %v3132 = vunpack.c.l.s4 1966171168
    %v3133 = vunpack.c.0.s8 %v3132
    %v3134 = vlaneseq
    %v3135 = vshrl.u32 %v3134, 7
    %v3136 = vsub.s32 %v3133, %v3135
    %v3137 = vrot.slane %v3123, %v3136
    %v3138 = vcombine.low %v3130, %v3137
    %v3140 = vunpack.c.l.s4 1966171168
    %v3141 = vunpack.c.0.s8 %v3140
    %v3142 = vlaneseq
    %v3143 = vshrl.u32 %v3142, 7
    %v3144 = vsub.s32 %v3141, %v3143
    %v3145 = vrot.slane %v3138, %v3144
    %v3147 = vadd.f32 %v2974, %v3145
    %v3148 = vxor.u32 %v3147, 2147483648
    %v3149 = vmul.f32 %v3148, 1.442695
    %v3150 = vpow.pop %v3149
    %v3151 = vadd.f32 %v3150, 1.0
    %v3152 = vrcp.pop %v3151
    %v3153 = vmul.f32 1.0, %v3152
    %v3155 = vrot.slane %v3147, 1
    %v3157 = vxor.u32 %v3155, 2147483648
    %v3158 = vmul.f32 %v3157, 1.442695
    %v3159 = vpow.pop %v3158
    %v3160 = vadd.f32 %v3159, 1.0
    %v3161 = vrcp.pop %v3160
    %v3162 = vmul.f32 1.0, %v3161
    %v3163 = vrot.slane %v3147, 2
    %v3165 = vtanh.pop %v3163
    %v3166 = vrot.slane %v3147, 3
    %v3168 = vxor.u32 %v3166, 2147483648
    %v3169 = vmul.f32 %v3168, 1.442695
    %v3170 = vpow.pop %v3169
    %v3171 = vadd.f32 %v3170, 1.0
    %v3172 = vrcp.pop %v3171
    %v3173 = vmul.f32 1.0, %v3172
    %v3174 = vld [vmem:[#allocation5] sm:$0x1]
    %v3175 = vmul.f32 %v3162, %v3174
    %v3176 = vmul.f32 %v3153, %v3165
    %v3177 = vadd.f32 %v3175, %v3176
    %v3178 = vtanh.pop %v3177
    %v3179 = vmul.f32 %v3173, %v3178
    %3180 = vst [vmem:[#allocation5] sm:$0x1] %v3177
    %3181 = vst [vmem:[#allocation4] sm:$0x1] %v3179
    %3182 = vst [vmem:[#allocation2 + $0x3] sm:$0x1] %v3179
    %v3183 = vld [vmem:[%s1205] ss:$8 sm:$0xf]
    %v3184 = vld [vmem:[#allocation4] sm:$0x1]
    %3185 = vmatprep.subr.mxu0 %v2284
    %3186 = vmatpush1.msra.mxu0 %v2283
    %3187 = vmatprep.subr.mxu0 %v2288
    %3188 = vmatpush1.msra.mxu0 %v2287
    %3189 = vmatprep.subr.mxu0 %v2292
    %3190 = vmatpush1.msra.mxu0 %v2291
    %3191 = vmatprep.subr.mxu0 %v2296
    %3192 = vmatpush1.msra.mxu0 %v2295
    %3193 = vmatprep.subr.mxu0 %v2300
    %3194 = vmatpush1.msra.mxu0 %v2299
    %3195 = vmatprep.subr.mxu0 %v2304
    %3196 = vmatpush1.msra.mxu0 %v2303
    %3197 = vmatprep.subr.mxu0 %v2308
    %3198 = vmatpush1.msra.mxu0 %v2307
    %3199 = vmatprep.subr.mxu0 %v2312
    %3200 = vmatpush1.msra.mxu0 %v2311
    %3201 = vmatprep.subr.mxu0 %v2316
    %3202 = vmatpush1.msra.mxu0 %v2315
    %3203 = vmatprep.subr.mxu0 %v2320
    %3204 = vmatpush1.msra.mxu0 %v2319
    %3205 = vmatprep.subr.mxu0 %v2324
    %3206 = vmatpush1.msra.mxu0 %v2323
    %3207 = vmatprep.subr.mxu0 %v2328
    %3208 = vmatpush1.msra.mxu0 %v2327
    %3209 = vmatprep.subr.mxu0 %v2332
    %3210 = vmatpush1.msra.mxu0 %v2331
    %3211 = vmatprep.subr.mxu0 %v2336
    %3212 = vmatpush1.msra.mxu0 %v2335
    %3213 = vmatprep.subr.mxu0 %v2340
    %3214 = vmatpush1.msra.mxu0 %v2339
    %3215 = vmatprep.subr.mxu0 %v2344
    %3216 = vmatpush1.msra.mxu0 %v2343
    %3217 = vmatprep.subr.mxu0 0.0
    %3218 = vmatpush1.msra.mxu0 0.0
    %3219 = vmatprep.subr.mxu0 0.0
    %3220 = vmatpush1.msra.mxu0 0.0
    %3221 = vmatprep.subr.mxu0 0.0
    %3222 = vmatpush1.msra.mxu0 0.0
    %3223 = vmatprep.subr.mxu0 0.0
    %3224 = vmatpush1.msra.mxu0 0.0
    %3225 = vmatprep.subr.mxu0 0.0
    %3226 = vmatpush1.msra.mxu0 0.0
    %3227 = vmatprep.subr.mxu0 0.0
    %3228 = vmatpush1.msra.mxu0 0.0
    %3229 = vmatprep.subr.mxu0 0.0
    %3230 = vmatpush1.msra.mxu0 0.0
    %3231 = vmatprep.subr.mxu0 0.0
    %3232 = vmatpush1.msra.mxu0 0.0
    %3233 = vmatprep.subr.mxu0 0.0
    %3234 = vmatpush1.msra.mxu0 0.0
    %3235 = vmatprep.subr.mxu0 0.0
    %3236 = vmatpush1.msra.mxu0 0.0
    %3237 = vmatprep.subr.mxu0 0.0
    %3238 = vmatpush1.msra.mxu0 0.0
    %3239 = vmatprep.subr.mxu0 0.0
    %3240 = vmatpush1.msra.mxu0 0.0
    %3241 = vmatprep.subr.mxu0 0.0
    %3242 = vmatpush1.msra.mxu0 0.0
    %3243 = vmatprep.subr.mxu0 0.0
    %3244 = vmatpush1.msra.mxu0 0.0
    %3245 = vmatprep.subr.mxu0 0.0
    %3246 = vmatpush1.msra.mxu0 0.0
    %3247 = vmatprep.subr.mxu0 0.0
    %3248 = vmatpush1.msra.mxu0 0.0
    %3249 = vmatprep.mubr.f32.mxu0 0.0
    %3250 = vmatmul.mubr.f32.gmra.mrb[0].mxu0 %v3184
    %v3251 = vpop.f32.mrb[0].mxu0
    %v3252 = vadd.f32 0.0, %v3251
    %v3253 = vpop.f32.mrb[0].mxu0
    %v3254 = vadd.f32 0.0, %v3253
    %3255 = vdwg.mxu0
    %3256 = vmatprep.subr.mxu0 %v2286
    %3257 = vmatpush1.msra.mxu0 %v2285
    %3258 = vmatprep.subr.mxu0 %v2290
    %3259 = vmatpush1.msra.mxu0 %v2289
    %3260 = vmatprep.subr.mxu0 %v2294
    %3261 = vmatpush1.msra.mxu0 %v2293
    %3262 = vmatprep.subr.mxu0 %v2298
    %3263 = vmatpush1.msra.mxu0 %v2297
    %3264 = vmatprep.subr.mxu0 %v2302
    %3265 = vmatpush1.msra.mxu0 %v2301
    %3266 = vmatprep.subr.mxu0 %v2306
    %3267 = vmatpush1.msra.mxu0 %v2305
    %3268 = vmatprep.subr.mxu0 %v2310
    %3269 = vmatpush1.msra.mxu0 %v2309
    %3270 = vmatprep.subr.mxu0 %v2314
    %3271 = vmatpush1.msra.mxu0 %v2313
    %3272 = vmatprep.subr.mxu0 %v2318
    %3273 = vmatpush1.msra.mxu0 %v2317
    %3274 = vmatprep.subr.mxu0 %v2322
    %3275 = vmatpush1.msra.mxu0 %v2321
    %3276 = vmatprep.subr.mxu0 %v2326
    %3277 = vmatpush1.msra.mxu0 %v2325
    %3278 = vmatprep.subr.mxu0 %v2330
    %3279 = vmatpush1.msra.mxu0 %v2329
    %3280 = vmatprep.subr.mxu0 %v2334
    %3281 = vmatpush1.msra.mxu0 %v2333
    %3282 = vmatprep.subr.mxu0 %v2338
    %3283 = vmatpush1.msra.mxu0 %v2337
    %3284 = vmatprep.subr.mxu0 %v2342
    %3285 = vmatpush1.msra.mxu0 %v2341
    %3286 = vmatprep.subr.mxu0 %v2346
    %3287 = vmatpush1.msra.mxu0 %v2345
    %3288 = vmatprep.subr.mxu0 0.0
    %3289 = vmatpush1.msra.mxu0 0.0
    %3290 = vmatprep.subr.mxu0 0.0
    %3291 = vmatpush1.msra.mxu0 0.0
    %3292 = vmatprep.subr.mxu0 0.0
    %3293 = vmatpush1.msra.mxu0 0.0
    %3294 = vmatprep.subr.mxu0 0.0
    %3295 = vmatpush1.msra.mxu0 0.0
    %3296 = vmatprep.subr.mxu0 0.0
    %3297 = vmatpush1.msra.mxu0 0.0
    %3298 = vmatprep.subr.mxu0 0.0
    %3299 = vmatpush1.msra.mxu0 0.0
    %3300 = vmatprep.subr.mxu0 0.0
    %3301 = vmatpush1.msra.mxu0 0.0
    %3302 = vmatprep.subr.mxu0 0.0
    %3303 = vmatpush1.msra.mxu0 0.0
    %3304 = vmatprep.subr.mxu0 0.0
    %3305 = vmatpush1.msra.mxu0 0.0
    %3306 = vmatprep.subr.mxu0 0.0
    %3307 = vmatpush1.msra.mxu0 0.0
    %3308 = vmatprep.subr.mxu0 0.0
    %3309 = vmatpush1.msra.mxu0 0.0
    %3310 = vmatprep.subr.mxu0 0.0
    %3311 = vmatpush1.msra.mxu0 0.0
    %3312 = vmatprep.subr.mxu0 0.0
    %3313 = vmatpush1.msra.mxu0 0.0
    %3314 = vmatprep.subr.mxu0 0.0
    %3315 = vmatpush1.msra.mxu0 0.0
    %3316 = vmatprep.subr.mxu0 0.0
    %3317 = vmatpush1.msra.mxu0 0.0
    %3318 = vmatprep.subr.mxu0 0.0
    %3319 = vmatpush1.msra.mxu0 0.0
    %3320 = vmatprep.mubr.f32.mxu0 0.0
    %3321 = vmatmul.mubr.f32.gmra.mrb[0].mxu0 %v3184
    %v3322 = vpop.f32.mrb[0].mxu0
    %v3323 = vadd.f32 0.0, %v3322
    %v3324 = vpop.f32.mrb[0].mxu0
    %v3325 = vadd.f32 0.0, %v3324
    %3326 = vdwg.mxu0
    %v3331 = vcombine.low %v3252, %v3254
    %v3332 = vcombine.low %v3323, %v3325
    %v3334 = vunpack.c.l.s4 1966171168
    %v3335 = vunpack.c.0.s8 %v3334
    %v3336 = vlaneseq
    %v3337 = vshrl.u32 %v3336, 7
    %v3338 = vsub.s32 %v3335, %v3337
    %v3339 = vrot.slane %v3331, %v3338
    %v3341 = vunpack.c.l.s4 1966171168
    %v3342 = vunpack.c.0.s8 %v3341
    %v3343 = vlaneseq
    %v3344 = vshrl.u32 %v3343, 7
    %v3345 = vsub.s32 %v3342, %v3344
    %v3346 = vrot.slane %v3332, %v3345
    %v3347 = vcombine.low %v3339, %v3346
    %v3349 = vunpack.c.l.s4 1966171168
    %v3350 = vunpack.c.0.s8 %v3349
    %v3351 = vlaneseq
    %v3352 = vshrl.u32 %v3351, 7
    %v3353 = vsub.s32 %v3350, %v3352
    %v3354 = vrot.slane %v3347, %v3353
    %v3356 = vadd.f32 %v3183, %v3354
    %v3357 = vxor.u32 %v3356, 2147483648
    %v3358 = vmul.f32 %v3357, 1.442695
    %v3359 = vpow.pop %v3358
    %v3360 = vadd.f32 %v3359, 1.0
    %v3361 = vrcp.pop %v3360
    %v3362 = vmul.f32 1.0, %v3361
    %v3364 = vrot.slane %v3356, 1
    %v3366 = vxor.u32 %v3364, 2147483648
    %v3367 = vmul.f32 %v3366, 1.442695
    %v3368 = vpow.pop %v3367
    %v3369 = vadd.f32 %v3368, 1.0
    %v3370 = vrcp.pop %v3369
    %v3371 = vmul.f32 1.0, %v3370
    %v3372 = vrot.slane %v3356, 2
    %v3374 = vtanh.pop %v3372
    %v3375 = vrot.slane %v3356, 3
    %v3377 = vxor.u32 %v3375, 2147483648
    %v3378 = vmul.f32 %v3377, 1.442695
    %v3379 = vpow.pop %v3378
    %v3380 = vadd.f32 %v3379, 1.0
    %v3381 = vrcp.pop %v3380
    %v3382 = vmul.f32 1.0, %v3381
    %v3383 = vld [vmem:[#allocation5] sm:$0x1]
    %v3384 = vmul.f32 %v3371, %v3383
    %v3385 = vmul.f32 %v3362, %v3374
    %v3386 = vadd.f32 %v3384, %v3385
    %v3387 = vtanh.pop %v3386
    %v3388 = vmul.f32 %v3382, %v3387
    %3389 = vst [vmem:[#allocation5] sm:$0x1] %v3386
    %3390 = vst [vmem:[#allocation4] sm:$0x1] %v3388
    %3391 = vst [vmem:[#allocation2 + $0x4] sm:$0x1] %v3388
    %v3392 = vld [vmem:[%s1415] ss:$8 sm:$0xf]
    %v3393 = vld [vmem:[#allocation4] sm:$0x1]
    %3394 = vmatprep.subr.mxu0 %v2284
    %3395 = vmatpush1.msra.mxu0 %v2283
    %3396 = vmatprep.subr.mxu0 %v2288
    %3397 = vmatpush1.msra.mxu0 %v2287
    %3398 = vmatprep.subr.mxu0 %v2292
    %3399 = vmatpush1.msra.mxu0 %v2291
    %3400 = vmatprep.subr.mxu0 %v2296
    %3401 = vmatpush1.msra.mxu0 %v2295
    %3402 = vmatprep.subr.mxu0 %v2300
    %3403 = vmatpush1.msra.mxu0 %v2299
    %3404 = vmatprep.subr.mxu0 %v2304
    %3405 = vmatpush1.msra.mxu0 %v2303
    %3406 = vmatprep.subr.mxu0 %v2308
    %3407 = vmatpush1.msra.mxu0 %v2307
    %3408 = vmatprep.subr.mxu0 %v2312
    %3409 = vmatpush1.msra.mxu0 %v2311
    %3410 = vmatprep.subr.mxu0 %v2316
    %3411 = vmatpush1.msra.mxu0 %v2315
    %3412 = vmatprep.subr.mxu0 %v2320
    %3413 = vmatpush1.msra.mxu0 %v2319
    %3414 = vmatprep.subr.mxu0 %v2324
    %3415 = vmatpush1.msra.mxu0 %v2323
    %3416 = vmatprep.subr.mxu0 %v2328
    %3417 = vmatpush1.msra.mxu0 %v2327
    %3418 = vmatprep.subr.mxu0 %v2332
    %3419 = vmatpush1.msra.mxu0 %v2331
    %3420 = vmatprep.subr.mxu0 %v2336
    %3421 = vmatpush1.msra.mxu0 %v2335
    %3422 = vmatprep.subr.mxu0 %v2340
    %3423 = vmatpush1.msra.mxu0 %v2339
    %3424 = vmatprep.subr.mxu0 %v2344
    %3425 = vmatpush1.msra.mxu0 %v2343
    %3426 = vmatprep.subr.mxu0 0.0
    %3427 = vmatpush1.msra.mxu0 0.0
    %3428 = vmatprep.subr.mxu0 0.0
    %3429 = vmatpush1.msra.mxu0 0.0
    %3430 = vmatprep.subr.mxu0 0.0
    %3431 = vmatpush1.msra.mxu0 0.0
    %3432 = vmatprep.subr.mxu0 0.0
    %3433 = vmatpush1.msra.mxu0 0.0
    %3434 = vmatprep.subr.mxu0 0.0
    %3435 = vmatpush1.msra.mxu0 0.0
    %3436 = vmatprep.subr.mxu0 0.0
    %3437 = vmatpush1.msra.mxu0 0.0
    %3438 = vmatprep.subr.mxu0 0.0
    %3439 = vmatpush1.msra.mxu0 0.0
    %3440 = vmatprep.subr.mxu0 0.0
    %3441 = vmatpush1.msra.mxu0 0.0
    %3442 = vmatprep.subr.mxu0 0.0
    %3443 = vmatpush1.msra.mxu0 0.0
    %3444 = vmatprep.subr.mxu0 0.0
    %3445 = vmatpush1.msra.mxu0 0.0
    %3446 = vmatprep.subr.mxu0 0.0
    %3447 = vmatpush1.msra.mxu0 0.0
    %3448 = vmatprep.subr.mxu0 0.0
    %3449 = vmatpush1.msra.mxu0 0.0
    %3450 = vmatprep.subr.mxu0 0.0
    %3451 = vmatpush1.msra.mxu0 0.0
    %3452 = vmatprep.subr.mxu0 0.0
    %3453 = vmatpush1.msra.mxu0 0.0
    %3454 = vmatprep.subr.mxu0 0.0
    %3455 = vmatpush1.msra.mxu0 0.0
    %3456 = vmatprep.subr.mxu0 0.0
    %3457 = vmatpush1.msra.mxu0 0.0
    %3458 = vmatprep.mubr.f32.mxu0 0.0
    %3459 = vmatmul.mubr.f32.gmra.mrb[0].mxu0 %v3393
    %v3460 = vpop.f32.mrb[0].mxu0
    %v3461 = vadd.f32 0.0, %v3460
    %v3462 = vpop.f32.mrb[0].mxu0
    %v3463 = vadd.f32 0.0, %v3462
    %3464 = vdwg.mxu0
    %3465 = vmatprep.subr.mxu0 %v2286
    %3466 = vmatpush1.msra.mxu0 %v2285
    %3467 = vmatprep.subr.mxu0 %v2290
    %3468 = vmatpush1.msra.mxu0 %v2289
    %3469 = vmatprep.subr.mxu0 %v2294
    %3470 = vmatpush1.msra.mxu0 %v2293
    %3471 = vmatprep.subr.mxu0 %v2298
    %3472 = vmatpush1.msra.mxu0 %v2297
    %3473 = vmatprep.subr.mxu0 %v2302
    %3474 = vmatpush1.msra.mxu0 %v2301
    %3475 = vmatprep.subr.mxu0 %v2306
    %3476 = vmatpush1.msra.mxu0 %v2305
    %3477 = vmatprep.subr.mxu0 %v2310
    %3478 = vmatpush1.msra.mxu0 %v2309
    %3479 = vmatprep.subr.mxu0 %v2314
    %3480 = vmatpush1.msra.mxu0 %v2313
    %3481 = vmatprep.subr.mxu0 %v2318
    %3482 = vmatpush1.msra.mxu0 %v2317
    %3483 = vmatprep.subr.mxu0 %v2322
    %3484 = vmatpush1.msra.mxu0 %v2321
    %3485 = vmatprep.subr.mxu0 %v2326
    %3486 = vmatpush1.msra.mxu0 %v2325
    %3487 = vmatprep.subr.mxu0 %v2330
    %3488 = vmatpush1.msra.mxu0 %v2329
    %3489 = vmatprep.subr.mxu0 %v2334
    %3490 = vmatpush1.msra.mxu0 %v2333
    %3491 = vmatprep.subr.mxu0 %v2338
    %3492 = vmatpush1.msra.mxu0 %v2337
    %3493 = vmatprep.subr.mxu0 %v2342
    %3494 = vmatpush1.msra.mxu0 %v2341
    %3495 = vmatprep.subr.mxu0 %v2346
    %3496 = vmatpush1.msra.mxu0 %v2345
    %3497 = vmatprep.subr.mxu0 0.0
    %3498 = vmatpush1.msra.mxu0 0.0
    %3499 = vmatprep.subr.mxu0 0.0
    %3500 = vmatpush1.msra.mxu0 0.0
    %3501 = vmatprep.subr.mxu0 0.0
    %3502 = vmatpush1.msra.mxu0 0.0
    %3503 = vmatprep.subr.mxu0 0.0
    %3504 = vmatpush1.msra.mxu0 0.0
    %3505 = vmatprep.subr.mxu0 0.0
    %3506 = vmatpush1.msra.mxu0 0.0
    %3507 = vmatprep.subr.mxu0 0.0
    %3508 = vmatpush1.msra.mxu0 0.0
    %3509 = vmatprep.subr.mxu0 0.0
    %3510 = vmatpush1.msra.mxu0 0.0
    %3511 = vmatprep.subr.mxu0 0.0
    %3512 = vmatpush1.msra.mxu0 0.0
    %3513 = vmatprep.subr.mxu0 0.0
    %3514 = vmatpush1.msra.mxu0 0.0
    %3515 = vmatprep.subr.mxu0 0.0
    %3516 = vmatpush1.msra.mxu0 0.0
    %3517 = vmatprep.subr.mxu0 0.0
    %3518 = vmatpush1.msra.mxu0 0.0
    %3519 = vmatprep.subr.mxu0 0.0
    %3520 = vmatpush1.msra.mxu0 0.0
    %3521 = vmatprep.subr.mxu0 0.0
    %3522 = vmatpush1.msra.mxu0 0.0
    %3523 = vmatprep.subr.mxu0 0.0
    %3524 = vmatpush1.msra.mxu0 0.0
    %3525 = vmatprep.subr.mxu0 0.0
    %3526 = vmatpush1.msra.mxu0 0.0
    %3527 = vmatprep.subr.mxu0 0.0
    %3528 = vmatpush1.msra.mxu0 0.0
    %3529 = vmatprep.mubr.f32.mxu0 0.0
    %3530 = vmatmul.mubr.f32.gmra.mrb[0].mxu0 %v3393
    %v3531 = vpop.f32.mrb[0].mxu0
    %v3532 = vadd.f32 0.0, %v3531
    %v3533 = vpop.f32.mrb[0].mxu0
    %v3534 = vadd.f32 0.0, %v3533
    %3535 = vdwg.mxu0
    %v3540 = vcombine.low %v3461, %v3463
    %v3541 = vcombine.low %v3532, %v3534
    %v3543 = vunpack.c.l.s4 1966171168
    %v3544 = vunpack.c.0.s8 %v3543
    %v3545 = vlaneseq
    %v3546 = vshrl.u32 %v3545, 7
    %v3547 = vsub.s32 %v3544, %v3546
    %v3548 = vrot.slane %v3540, %v3547
    %v3550 = vunpack.c.l.s4 1966171168
    %v3551 = vunpack.c.0.s8 %v3550
    %v3552 = vlaneseq
    %v3553 = vshrl.u32 %v3552, 7
    %v3554 = vsub.s32 %v3551, %v3553
    %v3555 = vrot.slane %v3541, %v3554
    %v3556 = vcombine.low %v3548, %v3555
    %v3558 = vunpack.c.l.s4 1966171168
    %v3559 = vunpack.c.0.s8 %v3558
    %v3560 = vlaneseq
    %v3561 = vshrl.u32 %v3560, 7
    %v3562 = vsub.s32 %v3559, %v3561
    %v3563 = vrot.slane %v3556, %v3562
    %v3565 = vadd.f32 %v3392, %v3563
    %v3566 = vxor.u32 %v3565, 2147483648
    %v3567 = vmul.f32 %v3566, 1.442695
    %v3568 = vpow.pop %v3567
    %v3569 = vadd.f32 %v3568, 1.0
    %v3570 = vrcp.pop %v3569
    %v3571 = vmul.f32 1.0, %v3570
    %v3573 = vrot.slane %v3565, 1
    %v3575 = vxor.u32 %v3573, 2147483648
    %v3576 = vmul.f32 %v3575, 1.442695
    %v3577 = vpow.pop %v3576
    %v3578 = vadd.f32 %v3577, 1.0
    %v3579 = vrcp.pop %v3578
    %v3580 = vmul.f32 1.0, %v3579
    %v3581 = vrot.slane %v3565, 2
    %v3583 = vtanh.pop %v3581
    %v3584 = vrot.slane %v3565, 3
    %v3586 = vxor.u32 %v3584, 2147483648
    %v3587 = vmul.f32 %v3586, 1.442695
    %v3588 = vpow.pop %v3587
    %v3589 = vadd.f32 %v3588, 1.0
    %v3590 = vrcp.pop %v3589
    %v3591 = vmul.f32 1.0, %v3590
    %v3592 = vld [vmem:[#allocation5] sm:$0x1]
    %v3593 = vmul.f32 %v3580, %v3592
    %v3594 = vmul.f32 %v3571, %v3583
    %v3595 = vadd.f32 %v3593, %v3594
    %v3596 = vtanh.pop %v3595
    %v3597 = vmul.f32 %v3591, %v3596
    %3598 = vst [vmem:[#allocation5] sm:$0x1] %v3595
    %3599 = vst [vmem:[#allocation4] sm:$0x1] %v3597
    %3600 = vst [vmem:[#allocation2 + $0x5] sm:$0x1] %v3597
    %v3601 = vld [vmem:[%s1625] ss:$8 sm:$0xf]
    %v3602 = vld [vmem:[#allocation4] sm:$0x1]
    %3603 = vmatprep.subr.mxu0 %v2284
    %3604 = vmatpush1.msra.mxu0 %v2283
    %3605 = vmatprep.subr.mxu0 %v2288
    %3606 = vmatpush1.msra.mxu0 %v2287
    %3607 = vmatprep.subr.mxu0 %v2292
    %3608 = vmatpush1.msra.mxu0 %v2291
    %3609 = vmatprep.subr.mxu0 %v2296
    %3610 = vmatpush1.msra.mxu0 %v2295
    %3611 = vmatprep.subr.mxu0 %v2300
    %3612 = vmatpush1.msra.mxu0 %v2299
    %3613 = vmatprep.subr.mxu0 %v2304
    %3614 = vmatpush1.msra.mxu0 %v2303
    %3615 = vmatprep.subr.mxu0 %v2308
    %3616 = vmatpush1.msra.mxu0 %v2307
    %3617 = vmatprep.subr.mxu0 %v2312
    %3618 = vmatpush1.msra.mxu0 %v2311
    %3619 = vmatprep.subr.mxu0 %v2316
    %3620 = vmatpush1.msra.mxu0 %v2315
    %3621 = vmatprep.subr.mxu0 %v2320
    %3622 = vmatpush1.msra.mxu0 %v2319
    %3623 = vmatprep.subr.mxu0 %v2324
    %3624 = vmatpush1.msra.mxu0 %v2323
    %3625 = vmatprep.subr.mxu0 %v2328
    %3626 = vmatpush1.msra.mxu0 %v2327
    %3627 = vmatprep.subr.mxu0 %v2332
    %3628 = vmatpush1.msra.mxu0 %v2331
    %3629 = vmatprep.subr.mxu0 %v2336
    %3630 = vmatpush1.msra.mxu0 %v2335
    %3631 = vmatprep.subr.mxu0 %v2340
    %3632 = vmatpush1.msra.mxu0 %v2339
    %3633 = vmatprep.subr.mxu0 %v2344
    %3634 = vmatpush1.msra.mxu0 %v2343
    %3635 = vmatprep.subr.mxu0 0.0
    %3636 = vmatpush1.msra.mxu0 0.0
    %3637 = vmatprep.subr.mxu0 0.0
    %3638 = vmatpush1.msra.mxu0 0.0
    %3639 = vmatprep.subr.mxu0 0.0
    %3640 = vmatpush1.msra.mxu0 0.0
    %3641 = vmatprep.subr.mxu0 0.0
    %3642 = vmatpush1.msra.mxu0 0.0
    %3643 = vmatprep.subr.mxu0 0.0
    %3644 = vmatpush1.msra.mxu0 0.0
    %3645 = vmatprep.subr.mxu0 0.0
    %3646 = vmatpush1.msra.mxu0 0.0
    %3647 = vmatprep.subr.mxu0 0.0
    %3648 = vmatpush1.msra.mxu0 0.0
    %3649 = vmatprep.subr.mxu0 0.0
    %3650 = vmatpush1.msra.mxu0 0.0
    %3651 = vmatprep.subr.mxu0 0.0
    %3652 = vmatpush1.msra.mxu0 0.0
    %3653 = vmatprep.subr.mxu0 0.0
    %3654 = vmatpush1.msra.mxu0 0.0
    %3655 = vmatprep.subr.mxu0 0.0
    %3656 = vmatpush1.msra.mxu0 0.0
    %3657 = vmatprep.subr.mxu0 0.0
    %3658 = vmatpush1.msra.mxu0 0.0
    %3659 = vmatprep.subr.mxu0 0.0
    %3660 = vmatpush1.msra.mxu0 0.0
    %3661 = vmatprep.subr.mxu0 0.0
    %3662 = vmatpush1.msra.mxu0 0.0
    %3663 = vmatprep.subr.mxu0 0.0
    %3664 = vmatpush1.msra.mxu0 0.0
    %3665 = vmatprep.subr.mxu0 0.0
    %3666 = vmatpush1.msra.mxu0 0.0
    %3667 = vmatprep.mubr.f32.mxu0 0.0
    %3668 = vmatmul.mubr.f32.gmra.mrb[0].mxu0 %v3602
    %v3669 = vpop.f32.mrb[0].mxu0
    %v3670 = vadd.f32 0.0, %v3669
    %v3671 = vpop.f32.mrb[0].mxu0
    %v3672 = vadd.f32 0.0, %v3671
    %3673 = vdwg.mxu0
    %3674 = vmatprep.subr.mxu0 %v2286
    %3675 = vmatpush1.msra.mxu0 %v2285
    %3676 = vmatprep.subr.mxu0 %v2290
    %3677 = vmatpush1.msra.mxu0 %v2289
    %3678 = vmatprep.subr.mxu0 %v2294
    %3679 = vmatpush1.msra.mxu0 %v2293
    %3680 = vmatprep.subr.mxu0 %v2298
    %3681 = vmatpush1.msra.mxu0 %v2297
    %3682 = vmatprep.subr.mxu0 %v2302
    %3683 = vmatpush1.msra.mxu0 %v2301
    %3684 = vmatprep.subr.mxu0 %v2306
    %3685 = vmatpush1.msra.mxu0 %v2305
    %3686 = vmatprep.subr.mxu0 %v2310
    %3687 = vmatpush1.msra.mxu0 %v2309
    %3688 = vmatprep.subr.mxu0 %v2314
    %3689 = vmatpush1.msra.mxu0 %v2313
    %3690 = vmatprep.subr.mxu0 %v2318
    %3691 = vmatpush1.msra.mxu0 %v2317
    %3692 = vmatprep.subr.mxu0 %v2322
    %3693 = vmatpush1.msra.mxu0 %v2321
    %3694 = vmatprep.subr.mxu0 %v2326
    %3695 = vmatpush1.msra.mxu0 %v2325
    %3696 = vmatprep.subr.mxu0 %v2330
    %3697 = vmatpush1.msra.mxu0 %v2329
    %3698 = vmatprep.subr.mxu0 %v2334
    %3699 = vmatpush1.msra.mxu0 %v2333
    %3700 = vmatprep.subr.mxu0 %v2338
    %3701 = vmatpush1.msra.mxu0 %v2337
    %3702 = vmatprep.subr.mxu0 %v2342
    %3703 = vmatpush1.msra.mxu0 %v2341
    %3704 = vmatprep.subr.mxu0 %v2346
    %3705 = vmatpush1.msra.mxu0 %v2345
    %3706 = vmatprep.subr.mxu0 0.0
    %3707 = vmatpush1.msra.mxu0 0.0
    %3708 = vmatprep.subr.mxu0 0.0
    %3709 = vmatpush1.msra.mxu0 0.0
    %3710 = vmatprep.subr.mxu0 0.0
    %3711 = vmatpush1.msra.mxu0 0.0
    %3712 = vmatprep.subr.mxu0 0.0
    %3713 = vmatpush1.msra.mxu0 0.0
    %3714 = vmatprep.subr.mxu0 0.0
    %3715 = vmatpush1.msra.mxu0 0.0
    %3716 = vmatprep.subr.mxu0 0.0
    %3717 = vmatpush1.msra.mxu0 0.0
    %3718 = vmatprep.subr.mxu0 0.0
    %3719 = vmatpush1.msra.mxu0 0.0
    %3720 = vmatprep.subr.mxu0 0.0
    %3721 = vmatpush1.msra.mxu0 0.0
    %3722 = vmatprep.subr.mxu0 0.0
    %3723 = vmatpush1.msra.mxu0 0.0
    %3724 = vmatprep.subr.mxu0 0.0
    %3725 = vmatpush1.msra.mxu0 0.0
    %3726 = vmatprep.subr.mxu0 0.0
    %3727 = vmatpush1.msra.mxu0 0.0
    %3728 = vmatprep.subr.mxu0 0.0
    %3729 = vmatpush1.msra.mxu0 0.0
    %3730 = vmatprep.subr.mxu0 0.0
    %3731 = vmatpush1.msra.mxu0 0.0
    %3732 = vmatprep.subr.mxu0 0.0
    %3733 = vmatpush1.msra.mxu0 0.0
    %3734 = vmatprep.subr.mxu0 0.0
    %3735 = vmatpush1.msra.mxu0 0.0
    %3736 = vmatprep.subr.mxu0 0.0
    %3737 = vmatpush1.msra.mxu0 0.0
    %3738 = vmatprep.mubr.f32.mxu0 0.0
    %3739 = vmatmul.mubr.f32.gmra.mrb[0].mxu0 %v3602
    %v3740 = vpop.f32.mrb[0].mxu0
    %v3741 = vadd.f32 0.0, %v3740
    %v3742 = vpop.f32.mrb[0].mxu0
    %v3743 = vadd.f32 0.0, %v3742
    %3744 = vdwg.mxu0
    %v3749 = vcombine.low %v3670, %v3672
    %v3750 = vcombine.low %v3741, %v3743
    %v3752 = vunpack.c.l.s4 1966171168
    %v3753 = vunpack.c.0.s8 %v3752
    %v3754 = vlaneseq
    %v3755 = vshrl.u32 %v3754, 7
    %v3756 = vsub.s32 %v3753, %v3755
    %v3757 = vrot.slane %v3749, %v3756
    %v3759 = vunpack.c.l.s4 1966171168
    %v3760 = vunpack.c.0.s8 %v3759
    %v3761 = vlaneseq
    %v3762 = vshrl.u32 %v3761, 7
    %v3763 = vsub.s32 %v3760, %v3762
    %v3764 = vrot.slane %v3750, %v3763
    %v3765 = vcombine.low %v3757, %v3764
    %v3767 = vunpack.c.l.s4 1966171168
    %v3768 = vunpack.c.0.s8 %v3767
    %v3769 = vlaneseq
    %v3770 = vshrl.u32 %v3769, 7
    %v3771 = vsub.s32 %v3768, %v3770
    %v3772 = vrot.slane %v3765, %v3771
    %v3774 = vadd.f32 %v3601, %v3772
    %v3775 = vxor.u32 %v3774, 2147483648
    %v3776 = vmul.f32 %v3775, 1.442695
    %v3777 = vpow.pop %v3776
    %v3778 = vadd.f32 %v3777, 1.0
    %v3779 = vrcp.pop %v3778
    %v3780 = vmul.f32 1.0, %v3779
    %v3782 = vrot.slane %v3774, 1
    %v3784 = vxor.u32 %v3782, 2147483648
    %v3785 = vmul.f32 %v3784, 1.442695
    %v3786 = vpow.pop %v3785
    %v3787 = vadd.f32 %v3786, 1.0
    %v3788 = vrcp.pop %v3787
    %v3789 = vmul.f32 1.0, %v3788
    %v3790 = vrot.slane %v3774, 2
    %v3792 = vtanh.pop %v3790
    %v3793 = vrot.slane %v3774, 3
    %v3795 = vxor.u32 %v3793, 2147483648
    %v3796 = vmul.f32 %v3795, 1.442695
    %v3797 = vpow.pop %v3796
    %v3798 = vadd.f32 %v3797, 1.0
    %v3799 = vrcp.pop %v3798
    %v3800 = vmul.f32 1.0, %v3799
    %v3801 = vld [vmem:[#allocation5] sm:$0x1]
    %v3802 = vmul.f32 %v3789, %v3801
    %v3803 = vmul.f32 %v3780, %v3792
    %v3804 = vadd.f32 %v3802, %v3803
    %v3805 = vtanh.pop %v3804
    %v3806 = vmul.f32 %v3800, %v3805
    %3807 = vst [vmem:[#allocation5] sm:$0x1] %v3804
    %3808 = vst [vmem:[#allocation4] sm:$0x1] %v3806
    %3809 = vst [vmem:[#allocation2 + $0x6] sm:$0x1] %v3806
    %v3810 = vld [vmem:[%s1835] ss:$8 sm:$0xf]
    %v3811 = vld [vmem:[#allocation4] sm:$0x1]
    %3812 = vmatprep.subr.mxu0 %v2284
    %3813 = vmatpush1.msra.mxu0 %v2283
    %3814 = vmatprep.subr.mxu0 %v2288
    %3815 = vmatpush1.msra.mxu0 %v2287
    %3816 = vmatprep.subr.mxu0 %v2292
    %3817 = vmatpush1.msra.mxu0 %v2291
    %3818 = vmatprep.subr.mxu0 %v2296
    %3819 = vmatpush1.msra.mxu0 %v2295
    %3820 = vmatprep.subr.mxu0 %v2300
    %3821 = vmatpush1.msra.mxu0 %v2299
    %3822 = vmatprep.subr.mxu0 %v2304
    %3823 = vmatpush1.msra.mxu0 %v2303
    %3824 = vmatprep.subr.mxu0 %v2308
    %3825 = vmatpush1.msra.mxu0 %v2307
    %3826 = vmatprep.subr.mxu0 %v2312
    %3827 = vmatpush1.msra.mxu0 %v2311
    %3828 = vmatprep.subr.mxu0 %v2316
    %3829 = vmatpush1.msra.mxu0 %v2315
    %3830 = vmatprep.subr.mxu0 %v2320
    %3831 = vmatpush1.msra.mxu0 %v2319
    %3832 = vmatprep.subr.mxu0 %v2324
    %3833 = vmatpush1.msra.mxu0 %v2323
    %3834 = vmatprep.subr.mxu0 %v2328
    %3835 = vmatpush1.msra.mxu0 %v2327
    %3836 = vmatprep.subr.mxu0 %v2332
    %3837 = vmatpush1.msra.mxu0 %v2331
    %3838 = vmatprep.subr.mxu0 %v2336
    %3839 = vmatpush1.msra.mxu0 %v2335
    %3840 = vmatprep.subr.mxu0 %v2340
    %3841 = vmatpush1.msra.mxu0 %v2339
    %3842 = vmatprep.subr.mxu0 %v2344
    %3843 = vmatpush1.msra.mxu0 %v2343
    %3844 = vmatprep.subr.mxu0 0.0
    %3845 = vmatpush1.msra.mxu0 0.0
    %3846 = vmatprep.subr.mxu0 0.0
    %3847 = vmatpush1.msra.mxu0 0.0
    %3848 = vmatprep.subr.mxu0 0.0
    %3849 = vmatpush1.msra.mxu0 0.0
    %3850 = vmatprep.subr.mxu0 0.0
    %3851 = vmatpush1.msra.mxu0 0.0
    %3852 = vmatprep.subr.mxu0 0.0
    %3853 = vmatpush1.msra.mxu0 0.0
    %3854 = vmatprep.subr.mxu0 0.0
    %3855 = vmatpush1.msra.mxu0 0.0
    %3856 = vmatprep.subr.mxu0 0.0
    %3857 = vmatpush1.msra.mxu0 0.0
    %3858 = vmatprep.subr.mxu0 0.0
    %3859 = vmatpush1.msra.mxu0 0.0
    %3860 = vmatprep.subr.mxu0 0.0
    %3861 = vmatpush1.msra.mxu0 0.0
    %3862 = vmatprep.subr.mxu0 0.0
    %3863 = vmatpush1.msra.mxu0 0.0
    %3864 = vmatprep.subr.mxu0 0.0
    %3865 = vmatpush1.msra.mxu0 0.0
    %3866 = vmatprep.subr.mxu0 0.0
    %3867 = vmatpush1.msra.mxu0 0.0
    %3868 = vmatprep.subr.mxu0 0.0
    %3869 = vmatpush1.msra.mxu0 0.0
    %3870 = vmatprep.subr.mxu0 0.0
    %3871 = vmatpush1.msra.mxu0 0.0
    %3872 = vmatprep.subr.mxu0 0.0
    %3873 = vmatpush1.msra.mxu0 0.0
    %3874 = vmatprep.subr.mxu0 0.0
    %3875 = vmatpush1.msra.mxu0 0.0
    %3876 = vmatprep.mubr.f32.mxu0 0.0
    %3877 = vmatmul.mubr.f32.gmra.mrb[0].mxu0 %v3811
    %v3878 = vpop.f32.mrb[0].mxu0
    %v3879 = vadd.f32 0.0, %v3878
    %v3880 = vpop.f32.mrb[0].mxu0
    %v3881 = vadd.f32 0.0, %v3880
    %3882 = vdwg.mxu0
    %3883 = vmatprep.subr.mxu0 %v2286
    %3884 = vmatpush1.msra.mxu0 %v2285
    %3885 = vmatprep.subr.mxu0 %v2290
    %3886 = vmatpush1.msra.mxu0 %v2289
    %3887 = vmatprep.subr.mxu0 %v2294
    %3888 = vmatpush1.msra.mxu0 %v2293
    %3889 = vmatprep.subr.mxu0 %v2298
    %3890 = vmatpush1.msra.mxu0 %v2297
    %3891 = vmatprep.subr.mxu0 %v2302
    %3892 = vmatpush1.msra.mxu0 %v2301
    %3893 = vmatprep.subr.mxu0 %v2306
    %3894 = vmatpush1.msra.mxu0 %v2305
    %3895 = vmatprep.subr.mxu0 %v2310
    %3896 = vmatpush1.msra.mxu0 %v2309
    %3897 = vmatprep.subr.mxu0 %v2314
    %3898 = vmatpush1.msra.mxu0 %v2313
    %3899 = vmatprep.subr.mxu0 %v2318
    %3900 = vmatpush1.msra.mxu0 %v2317
    %3901 = vmatprep.subr.mxu0 %v2322
    %3902 = vmatpush1.msra.mxu0 %v2321
    %3903 = vmatprep.subr.mxu0 %v2326
    %3904 = vmatpush1.msra.mxu0 %v2325
    %3905 = vmatprep.subr.mxu0 %v2330
    %3906 = vmatpush1.msra.mxu0 %v2329
    %3907 = vmatprep.subr.mxu0 %v2334
    %3908 = vmatpush1.msra.mxu0 %v2333
    %3909 = vmatprep.subr.mxu0 %v2338
    %3910 = vmatpush1.msra.mxu0 %v2337
    %3911 = vmatprep.subr.mxu0 %v2342
    %3912 = vmatpush1.msra.mxu0 %v2341
    %3913 = vmatprep.subr.mxu0 %v2346
    %3914 = vmatpush1.msra.mxu0 %v2345
    %3915 = vmatprep.subr.mxu0 0.0
    %3916 = vmatpush1.msra.mxu0 0.0
    %3917 = vmatprep.subr.mxu0 0.0
    %3918 = vmatpush1.msra.mxu0 0.0
    %3919 = vmatprep.subr.mxu0 0.0
    %3920 = vmatpush1.msra.mxu0 0.0
    %3921 = vmatprep.subr.mxu0 0.0
    %3922 = vmatpush1.msra.mxu0 0.0
    %3923 = vmatprep.subr.mxu0 0.0
    %3924 = vmatpush1.msra.mxu0 0.0
    %3925 = vmatprep.subr.mxu0 0.0
    %3926 = vmatpush1.msra.mxu0 0.0
    %3927 = vmatprep.subr.mxu0 0.0
    %3928 = vmatpush1.msra.mxu0 0.0
    %3929 = vmatprep.subr.mxu0 0.0
    %3930 = vmatpush1.msra.mxu0 0.0
    %3931 = vmatprep.subr.mxu0 0.0
    %3932 = vmatpush1.msra.mxu0 0.0
    %3933 = vmatprep.subr.mxu0 0.0
    %3934 = vmatpush1.msra.mxu0 0.0
    %3935 = vmatprep.subr.mxu0 0.0
    %3936 = vmatpush1.msra.mxu0 0.0
    %3937 = vmatprep.subr.mxu0 0.0
    %3938 = vmatpush1.msra.mxu0 0.0
    %3939 = vmatprep.subr.mxu0 0.0
    %3940 = vmatpush1.msra.mxu0 0.0
    %3941 = vmatprep.subr.mxu0 0.0
    %3942 = vmatpush1.msra.mxu0 0.0
    %3943 = vmatprep.subr.mxu0 0.0
    %3944 = vmatpush1.msra.mxu0 0.0
    %3945 = vmatprep.subr.mxu0 0.0
    %3946 = vmatpush1.msra.mxu0 0.0
    %3947 = vmatprep.mubr.f32.mxu0 0.0
    %3948 = vmatmul.mubr.f32.gmra.mrb[0].mxu0 %v3811
    %v3949 = vpop.f32.mrb[0].mxu0
    %v3950 = vadd.f32 0.0, %v3949
    %v3951 = vpop.f32.mrb[0].mxu0
    %v3952 = vadd.f32 0.0, %v3951
    %3953 = vdwg.mxu0
    %v3958 = vcombine.low %v3879, %v3881
    %v3959 = vcombine.low %v3950, %v3952
    %v3961 = vunpack.c.l.s4 1966171168
    %v3962 = vunpack.c.0.s8 %v3961
    %v3963 = vlaneseq
    %v3964 = vshrl.u32 %v3963, 7
    %v3965 = vsub.s32 %v3962, %v3964
    %v3966 = vrot.slane %v3958, %v3965
    %v3968 = vunpack.c.l.s4 1966171168
    %v3969 = vunpack.c.0.s8 %v3968
    %v3970 = vlaneseq
    %v3971 = vshrl.u32 %v3970, 7
    %v3972 = vsub.s32 %v3969, %v3971
    %v3973 = vrot.slane %v3959, %v3972
    %v3974 = vcombine.low %v3966, %v3973
    %v3976 = vunpack.c.l.s4 1966171168
    %v3977 = vunpack.c.0.s8 %v3976
    %v3978 = vlaneseq
    %v3979 = vshrl.u32 %v3978, 7
    %v3980 = vsub.s32 %v3977, %v3979
    %v3981 = vrot.slane %v3974, %v3980
    %v3983 = vadd.f32 %v3810, %v3981
    %v3984 = vxor.u32 %v3983, 2147483648
    %v3985 = vmul.f32 %v3984, 1.442695
    %v3986 = vpow.pop %v3985
    %v3987 = vadd.f32 %v3986, 1.0
    %v3988 = vrcp.pop %v3987
    %v3989 = vmul.f32 1.0, %v3988
    %v3991 = vrot.slane %v3983, 1
    %v3993 = vxor.u32 %v3991, 2147483648
    %v3994 = vmul.f32 %v3993, 1.442695
    %v3995 = vpow.pop %v3994
    %v3996 = vadd.f32 %v3995, 1.0
    %v3997 = vrcp.pop %v3996
    %v3998 = vmul.f32 1.0, %v3997
    %v3999 = vrot.slane %v3983, 2
    %v4001 = vtanh.pop %v3999
    %v4002 = vrot.slane %v3983, 3
    %v4004 = vxor.u32 %v4002, 2147483648
    %v4005 = vmul.f32 %v4004, 1.442695
    %v4006 = vpow.pop %v4005
    %v4007 = vadd.f32 %v4006, 1.0
    %v4008 = vrcp.pop %v4007
    %v4009 = vmul.f32 1.0, %v4008
    %v4010 = vld [vmem:[#allocation5] sm:$0x1]
    %v4011 = vmul.f32 %v3998, %v4010
    %v4012 = vmul.f32 %v3989, %v4001
    %v4013 = vadd.f32 %v4011, %v4012
    %v4014 = vtanh.pop %v4013
    %v4015 = vmul.f32 %v4009, %v4014
    %4016 = vst [vmem:[#allocation5] sm:$0x1] %v4013
    %4017 = vst [vmem:[#allocation4] sm:$0x1] %v4015
    %4018 = vst [vmem:[#allocation2 + $0x7] sm:$0x1] %v4015
    %v4019 = vld [vmem:[#allocation2] sm:$0xff]
    %s4020 = scalar_lea.vmem [#allocation6], 1024
    %v4021 = vld [vmem:[%s4020] sm:$0xff]
    %v4022 = vld [vmem:[%s4020 + $0x8] sm:$0xff]
    %v4023 = vld [vmem:[%s4020 + $0x10] sm:$0xff]
    %v4024 = vld [vmem:[%s4020 + $0x18] sm:$0xff]
    %v4025 = vld [vmem:[%s4020 + $0x20] sm:$0xff]
    %v4026 = vld [vmem:[%s4020 + $0x28] sm:$0xff]
    %v4027 = vld [vmem:[%s4020 + $0x30] sm:$0xff]
    %v4028 = vld [vmem:[%s4020 + $0x38] sm:$0xff]
    %v4029 = vld [vmem:[%s4020 + $0x40] sm:$0xff]
    %v4030 = vld [vmem:[%s4020 + $0x48] sm:$0xff]
    %v4031 = vld [vmem:[%s4020 + $0x50] sm:$0xff]
    %v4032 = vld [vmem:[%s4020 + $0x58] sm:$0xff]
    %v4033 = vld [vmem:[%s4020 + $0x60] sm:$0xff]
    %v4034 = vld [vmem:[%s4020 + $0x68] sm:$0xff]
    %v4035 = vld [vmem:[%s4020 + $0x70] sm:$0xff]
    %v4036 = vld [vmem:[%s4020 + $0x78] sm:$0xff]
    %v4037 = vld [vmem:[%s4020 + $0x80] sm:$0xff]
    %v4038 = vld [vmem:[%s4020 + $0x88] sm:$0xff]
    %v4039 = vld [vmem:[%s4020 + $0x90] sm:$0xff]
    %v4040 = vld [vmem:[%s4020 + $0x98] sm:$0xff]
    %v4041 = vld [vmem:[%s4020 + $0xa0] sm:$0xff]
    %v4042 = vld [vmem:[%s4020 + $0xa8] sm:$0xff]
    %v4043 = vld [vmem:[%s4020 + $0xb0] sm:$0xff]
    %v4044 = vld [vmem:[%s4020 + $0xb8] sm:$0xff]
    %v4045 = vld [vmem:[%s4020 + $0xc0] sm:$0xff]
    %v4046 = vld [vmem:[%s4020 + $0xc8] sm:$0xff]
    %v4047 = vld [vmem:[%s4020 + $0xd0] sm:$0xff]
    %v4048 = vld [vmem:[%s4020 + $0xd8] sm:$0xff]
    %v4049 = vld [vmem:[%s4020 + $0xe0] sm:$0xff]
    %v4050 = vld [vmem:[%s4020 + $0xe8] sm:$0xff]
    %v4051 = vld [vmem:[%s4020 + $0xf0] sm:$0xff]
    %v4052 = vld [vmem:[%s4020 + $0xf8] sm:$0xff]
    %v4053 = vld [vmem:[%s4020 + $0x100] sm:$0xff]
    %v4054 = vld [vmem:[%s4020 + $0x108] sm:$0xff]
    %v4055 = vld [vmem:[%s4020 + $0x110] sm:$0xff]
    %v4056 = vld [vmem:[%s4020 + $0x118] sm:$0xff]
    %v4057 = vld [vmem:[%s4020 + $0x120] sm:$0xff]
    %v4058 = vld [vmem:[%s4020 + $0x128] sm:$0xff]
    %v4059 = vld [vmem:[%s4020 + $0x130] sm:$0xff]
    %v4060 = vld [vmem:[%s4020 + $0x138] sm:$0xff]
    %v4061 = vld [vmem:[%s4020 + $0x140] sm:$0xff]
    %v4062 = vld [vmem:[%s4020 + $0x148] sm:$0xff]
    %v4063 = vld [vmem:[%s4020 + $0x150] sm:$0xff]
    %v4064 = vld [vmem:[%s4020 + $0x158] sm:$0xff]
    %v4065 = vld [vmem:[%s4020 + $0x160] sm:$0xff]
    %v4066 = vld [vmem:[%s4020 + $0x168] sm:$0xff]
    %v4067 = vld [vmem:[%s4020 + $0x170] sm:$0xff]
    %v4068 = vld [vmem:[%s4020 + $0x178] sm:$0xff]
    %v4069 = vld [vmem:[%s4020 + $0x180] sm:$0xff]
    %v4070 = vld [vmem:[%s4020 + $0x188] sm:$0xff]
    %v4071 = vld [vmem:[%s4020 + $0x190] sm:$0xff]
    %v4072 = vld [vmem:[%s4020 + $0x198] sm:$0xff]
    %v4073 = vld [vmem:[%s4020 + $0x1a0] sm:$0xff]
    %v4074 = vld [vmem:[%s4020 + $0x1a8] sm:$0xff]
    %v4075 = vld [vmem:[%s4020 + $0x1b0] sm:$0xff]
    %v4076 = vld [vmem:[%s4020 + $0x1b8] sm:$0xff]
    %v4077 = vld [vmem:[%s4020 + $0x1c0] sm:$0xff]
    %v4078 = vld [vmem:[%s4020 + $0x1c8] sm:$0xff]
    %v4079 = vld [vmem:[%s4020 + $0x1d0] sm:$0xff]
    %v4080 = vld [vmem:[%s4020 + $0x1d8] sm:$0xff]
    %v4081 = vld [vmem:[%s4020 + $0x1e0] sm:$0xff]
    %v4082 = vld [vmem:[%s4020 + $0x1e8] sm:$0xff]
    %v4083 = vld [vmem:[%s4020 + $0x1f0] sm:$0xff]
    %v4084 = vld [vmem:[%s4020 + $0x1f8] sm:$0xff]
    %s4085 = scalar_lea.vmem %s3, 8
    %v4086 = vld [vmem:[%s4085] sm:$0xf]
    %v4088 = vlaneseq
    %v4089 = vshrl.u32 %v4088, 7
    %v4090 = vsub.s32 0, %v4089
    %v4091 = vrot.slane %v4086, %v4090
    %v4092 = vlaneseq
    %v4093 = vshrl.u32 %v4092, 7
    %v4094 = vsub.s32 1, %v4093
    %v4095 = vrot.slane %v4086, %v4094
    %v4096 = vlaneseq
    %v4097 = vshrl.u32 %v4096, 7
    %v4098 = vsub.s32 2, %v4097
    %v4099 = vrot.slane %v4086, %v4098
    %v4100 = vlaneseq
    %v4101 = vshrl.u32 %v4100, 7
    %v4102 = vsub.s32 3, %v4101
    %v4103 = vrot.slane %v4086, %v4102
    %4108 = vmatprep.subr.mxu0 %v4022
    %4109 = vmatpush1.msra.mxu0 %v4021
    %4110 = vmatprep.subr.mxu0 %v4026
    %4111 = vmatpush1.msra.mxu0 %v4025
    %4112 = vmatprep.subr.mxu0 %v4030
    %4113 = vmatpush1.msra.mxu0 %v4029
    %4114 = vmatprep.subr.mxu0 %v4034
    %4115 = vmatpush1.msra.mxu0 %v4033
    %4116 = vmatprep.subr.mxu0 %v4038
    %4117 = vmatpush1.msra.mxu0 %v4037
    %4118 = vmatprep.subr.mxu0 %v4042
    %4119 = vmatpush1.msra.mxu0 %v4041
    %4120 = vmatprep.subr.mxu0 %v4046
    %4121 = vmatpush1.msra.mxu0 %v4045
    %4122 = vmatprep.subr.mxu0 %v4050
    %4123 = vmatpush1.msra.mxu0 %v4049
    %4124 = vmatprep.subr.mxu0 %v4054
    %4125 = vmatpush1.msra.mxu0 %v4053
    %4126 = vmatprep.subr.mxu0 %v4058
    %4127 = vmatpush1.msra.mxu0 %v4057
    %4128 = vmatprep.subr.mxu0 %v4062
    %4129 = vmatpush1.msra.mxu0 %v4061
    %4130 = vmatprep.subr.mxu0 %v4066
    %4131 = vmatpush1.msra.mxu0 %v4065
    %4132 = vmatprep.subr.mxu0 %v4070
    %4133 = vmatpush1.msra.mxu0 %v4069
    %4134 = vmatprep.subr.mxu0 %v4074
    %4135 = vmatpush1.msra.mxu0 %v4073
    %4136 = vmatprep.subr.mxu0 %v4078
    %4137 = vmatpush1.msra.mxu0 %v4077
    %4138 = vmatprep.subr.mxu0 %v4082
    %4139 = vmatpush1.msra.mxu0 %v4081
    %4140 = vmatprep.subr.mxu0 0.0
    %4141 = vmatpush1.msra.mxu0 0.0
    %4142 = vmatprep.subr.mxu0 0.0
    %4143 = vmatpush1.msra.mxu0 0.0
    %4144 = vmatprep.subr.mxu0 0.0
    %4145 = vmatpush1.msra.mxu0 0.0
    %4146 = vmatprep.subr.mxu0 0.0
    %4147 = vmatpush1.msra.mxu0 0.0
    %4148 = vmatprep.subr.mxu0 0.0
    %4149 = vmatpush1.msra.mxu0 0.0
    %4150 = vmatprep.subr.mxu0 0.0
    %4151 = vmatpush1.msra.mxu0 0.0
    %4152 = vmatprep.subr.mxu0 0.0
    %4153 = vmatpush1.msra.mxu0 0.0
    %4154 = vmatprep.subr.mxu0 0.0
    %4155 = vmatpush1.msra.mxu0 0.0
    %4156 = vmatprep.subr.mxu0 0.0
    %4157 = vmatpush1.msra.mxu0 0.0
    %4158 = vmatprep.subr.mxu0 0.0
    %4159 = vmatpush1.msra.mxu0 0.0
    %4160 = vmatprep.subr.mxu0 0.0
    %4161 = vmatpush1.msra.mxu0 0.0
    %4162 = vmatprep.subr.mxu0 0.0
    %4163 = vmatpush1.msra.mxu0 0.0
    %4164 = vmatprep.subr.mxu0 0.0
    %4165 = vmatpush1.msra.mxu0 0.0
    %4166 = vmatprep.subr.mxu0 0.0
    %4167 = vmatpush1.msra.mxu0 0.0
    %4168 = vmatprep.subr.mxu0 0.0
    %4169 = vmatpush1.msra.mxu0 0.0
    %4170 = vmatprep.subr.mxu0 0.0
    %4171 = vmatpush1.msra.mxu0 0.0
    %4172 = vmatprep.mubr.f32.mxu0 0.0
    %4173 = vmatmul.mubr.f32.gmra.mrb[0].mxu0 %v4019
    %v4174 = vpop.f32.mrb[0].mxu0
    %v4175 = vadd.f32 %v4091, %v4174
    %v4176 = vpop.f32.mrb[0].mxu0
    %v4177 = vadd.f32 %v4095, %v4176
    %4178 = vdwg.mxu0
    %4179 = vmatprep.subr.mxu0 %v4024
    %4180 = vmatpush1.msra.mxu0 %v4023
    %4181 = vmatprep.subr.mxu0 %v4028
    %4182 = vmatpush1.msra.mxu0 %v4027
    %4183 = vmatprep.subr.mxu0 %v4032
    %4184 = vmatpush1.msra.mxu0 %v4031
    %4185 = vmatprep.subr.mxu0 %v4036
    %4186 = vmatpush1.msra.mxu0 %v4035
    %4187 = vmatprep.subr.mxu0 %v4040
    %4188 = vmatpush1.msra.mxu0 %v4039
    %4189 = vmatprep.subr.mxu0 %v4044
    %4190 = vmatpush1.msra.mxu0 %v4043
    %4191 = vmatprep.subr.mxu0 %v4048
    %4192 = vmatpush1.msra.mxu0 %v4047
    %4193 = vmatprep.subr.mxu0 %v4052
    %4194 = vmatpush1.msra.mxu0 %v4051
    %4195 = vmatprep.subr.mxu0 %v4056
    %4196 = vmatpush1.msra.mxu0 %v4055
    %4197 = vmatprep.subr.mxu0 %v4060
    %4198 = vmatpush1.msra.mxu0 %v4059
    %4199 = vmatprep.subr.mxu0 %v4064
    %4200 = vmatpush1.msra.mxu0 %v4063
    %4201 = vmatprep.subr.mxu0 %v4068
    %4202 = vmatpush1.msra.mxu0 %v4067
    %4203 = vmatprep.subr.mxu0 %v4072
    %4204 = vmatpush1.msra.mxu0 %v4071
    %4205 = vmatprep.subr.mxu0 %v4076
    %4206 = vmatpush1.msra.mxu0 %v4075
    %4207 = vmatprep.subr.mxu0 %v4080
    %4208 = vmatpush1.msra.mxu0 %v4079
    %4209 = vmatprep.subr.mxu0 %v4084
    %4210 = vmatpush1.msra.mxu0 %v4083
    %4211 = vmatprep.subr.mxu0 0.0
    %4212 = vmatpush1.msra.mxu0 0.0
    %4213 = vmatprep.subr.mxu0 0.0
    %4214 = vmatpush1.msra.mxu0 0.0
    %4215 = vmatprep.subr.mxu0 0.0
    %4216 = vmatpush1.msra.mxu0 0.0
    %4217 = vmatprep.subr.mxu0 0.0
    %4218 = vmatpush1.msra.mxu0 0.0
    %4219 = vmatprep.subr.mxu0 0.0
    %4220 = vmatpush1.msra.mxu0 0.0
    %4221 = vmatprep.subr.mxu0 0.0
    %4222 = vmatpush1.msra.mxu0 0.0
    %4223 = vmatprep.subr.mxu0 0.0
    %4224 = vmatpush1.msra.mxu0 0.0
    %4225 = vmatprep.subr.mxu0 0.0
    %4226 = vmatpush1.msra.mxu0 0.0
    %4227 = vmatprep.subr.mxu0 0.0
    %4228 = vmatpush1.msra.mxu0 0.0
    %4229 = vmatprep.subr.mxu0 0.0
    %4230 = vmatpush1.msra.mxu0 0.0
    %4231 = vmatprep.subr.mxu0 0.0
    %4232 = vmatpush1.msra.mxu0 0.0
    %4233 = vmatprep.subr.mxu0 0.0
    %4234 = vmatpush1.msra.mxu0 0.0
    %4235 = vmatprep.subr.mxu0 0.0
    %4236 = vmatpush1.msra.mxu0 0.0
    %4237 = vmatprep.subr.mxu0 0.0
    %4238 = vmatpush1.msra.mxu0 0.0
    %4239 = vmatprep.subr.mxu0 0.0
    %4240 = vmatpush1.msra.mxu0 0.0
    %4241 = vmatprep.subr.mxu0 0.0
    %4242 = vmatpush1.msra.mxu0 0.0
    %4243 = vmatprep.mubr.f32.mxu0 0.0
    %4244 = vmatmul.mubr.f32.gmra.mrb[0].mxu0 %v4019
    %v4245 = vpop.f32.mrb[0].mxu0
    %v4246 = vadd.f32 %v4099, %v4245
    %v4247 = vpop.f32.mrb[0].mxu0
    %v4248 = vadd.f32 %v4103, %v4247
    %4249 = vdwg.mxu0
    %4250 = vst [vmem:[#allocation3] sm:$0xff] %v4175
    %4251 = vst [vmem:[#allocation3 + $0x8] sm:$0xff] %v4177
    %4252 = vst [vmem:[#allocation3 + $0x10] sm:$0xff] %v4246
    %4253 = vst [vmem:[#allocation3 + $0x18] sm:$0xff] %v4248
    %4254 = vst [vmem:[#allocation4] sm:$0x1] 0.0
    %4255 = vst [vmem:[#allocation5] sm:$0x1] 0.0
    %s4256 = scalar_lea.vmem [#allocation9], 1024
    %v4257 = vld [vmem:[%s4256] sm:$0xff]
    %v4258 = vld [vmem:[%s4256 + $0x8] sm:$0xff]
    %v4259 = vld [vmem:[%s4256 + $0x10] sm:$0xff]
    %v4260 = vld [vmem:[%s4256 + $0x18] sm:$0xff]
    %v4261 = vld [vmem:[%s4256 + $0x20] sm:$0xff]
    %v4262 = vld [vmem:[%s4256 + $0x28] sm:$0xff]
    %v4263 = vld [vmem:[%s4256 + $0x30] sm:$0xff]
    %v4264 = vld [vmem:[%s4256 + $0x38] sm:$0xff]
    %v4265 = vld [vmem:[%s4256 + $0x40] sm:$0xff]
    %v4266 = vld [vmem:[%s4256 + $0x48] sm:$0xff]
    %v4267 = vld [vmem:[%s4256 + $0x50] sm:$0xff]
    %v4268 = vld [vmem:[%s4256 + $0x58] sm:$0xff]
    %v4269 = vld [vmem:[%s4256 + $0x60] sm:$0xff]
    %v4270 = vld [vmem:[%s4256 + $0x68] sm:$0xff]
    %v4271 = vld [vmem:[%s4256 + $0x70] sm:$0xff]
    %v4272 = vld [vmem:[%s4256 + $0x78] sm:$0xff]
    %v4273 = vld [vmem:[%s4256 + $0x80] sm:$0xff]
    %v4274 = vld [vmem:[%s4256 + $0x88] sm:$0xff]
    %v4275 = vld [vmem:[%s4256 + $0x90] sm:$0xff]
    %v4276 = vld [vmem:[%s4256 + $0x98] sm:$0xff]
    %v4277 = vld [vmem:[%s4256 + $0xa0] sm:$0xff]
    %v4278 = vld [vmem:[%s4256 + $0xa8] sm:$0xff]
    %v4279 = vld [vmem:[%s4256 + $0xb0] sm:$0xff]
    %v4280 = vld [vmem:[%s4256 + $0xb8] sm:$0xff]
    %v4281 = vld [vmem:[%s4256 + $0xc0] sm:$0xff]
    %v4282 = vld [vmem:[%s4256 + $0xc8] sm:$0xff]
    %v4283 = vld [vmem:[%s4256 + $0xd0] sm:$0xff]
    %v4284 = vld [vmem:[%s4256 + $0xd8] sm:$0xff]
    %v4285 = vld [vmem:[%s4256 + $0xe0] sm:$0xff]
    %v4286 = vld [vmem:[%s4256 + $0xe8] sm:$0xff]
    %v4287 = vld [vmem:[%s4256 + $0xf0] sm:$0xff]
    %v4288 = vld [vmem:[%s4256 + $0xf8] sm:$0xff]
    %v4289 = vld [vmem:[%s4256 + $0x100] sm:$0xff]
    %v4290 = vld [vmem:[%s4256 + $0x108] sm:$0xff]
    %v4291 = vld [vmem:[%s4256 + $0x110] sm:$0xff]
    %v4292 = vld [vmem:[%s4256 + $0x118] sm:$0xff]
    %v4293 = vld [vmem:[%s4256 + $0x120] sm:$0xff]
    %v4294 = vld [vmem:[%s4256 + $0x128] sm:$0xff]
    %v4295 = vld [vmem:[%s4256 + $0x130] sm:$0xff]
    %v4296 = vld [vmem:[%s4256 + $0x138] sm:$0xff]
    %v4297 = vld [vmem:[%s4256 + $0x140] sm:$0xff]
    %v4298 = vld [vmem:[%s4256 + $0x148] sm:$0xff]
    %v4299 = vld [vmem:[%s4256 + $0x150] sm:$0xff]
    %v4300 = vld [vmem:[%s4256 + $0x158] sm:$0xff]
    %v4301 = vld [vmem:[%s4256 + $0x160] sm:$0xff]
    %v4302 = vld [vmem:[%s4256 + $0x168] sm:$0xff]
    %v4303 = vld [vmem:[%s4256 + $0x170] sm:$0xff]
    %v4304 = vld [vmem:[%s4256 + $0x178] sm:$0xff]
    %v4305 = vld [vmem:[%s4256 + $0x180] sm:$0xff]
    %v4306 = vld [vmem:[%s4256 + $0x188] sm:$0xff]
    %v4307 = vld [vmem:[%s4256 + $0x190] sm:$0xff]
    %v4308 = vld [vmem:[%s4256 + $0x198] sm:$0xff]
    %v4309 = vld [vmem:[%s4256 + $0x1a0] sm:$0xff]
    %v4310 = vld [vmem:[%s4256 + $0x1a8] sm:$0xff]
    %v4311 = vld [vmem:[%s4256 + $0x1b0] sm:$0xff]
    %v4312 = vld [vmem:[%s4256 + $0x1b8] sm:$0xff]
    %v4313 = vld [vmem:[%s4256 + $0x1c0] sm:$0xff]
    %v4314 = vld [vmem:[%s4256 + $0x1c8] sm:$0xff]
    %v4315 = vld [vmem:[%s4256 + $0x1d0] sm:$0xff]
    %v4316 = vld [vmem:[%s4256 + $0x1d8] sm:$0xff]
    %v4317 = vld [vmem:[%s4256 + $0x1e0] sm:$0xff]
    %v4318 = vld [vmem:[%s4256 + $0x1e8] sm:$0xff]
    %v4319 = vld [vmem:[%s4256 + $0x1f0] sm:$0xff]
    %v4320 = vld [vmem:[%s4256 + $0x1f8] sm:$0xff]
    %v4321 = vld [vmem:[#allocation3] ss:$8 sm:$0xf]
    %v4322 = vld [vmem:[#allocation4] sm:$0x1]
    %4323 = vmatprep.subr.mxu0 %v4258
    %4324 = vmatpush1.msra.mxu0 %v4257
    %4325 = vmatprep.subr.mxu0 %v4262
    %4326 = vmatpush1.msra.mxu0 %v4261
    %4327 = vmatprep.subr.mxu0 %v4266
    %4328 = vmatpush1.msra.mxu0 %v4265
    %4329 = vmatprep.subr.mxu0 %v4270
    %4330 = vmatpush1.msra.mxu0 %v4269
    %4331 = vmatprep.subr.mxu0 %v4274
    %4332 = vmatpush1.msra.mxu0 %v4273
    %4333 = vmatprep.subr.mxu0 %v4278
    %4334 = vmatpush1.msra.mxu0 %v4277
    %4335 = vmatprep.subr.mxu0 %v4282
    %4336 = vmatpush1.msra.mxu0 %v4281
    %4337 = vmatprep.subr.mxu0 %v4286
    %4338 = vmatpush1.msra.mxu0 %v4285
    %4339 = vmatprep.subr.mxu0 %v4290
    %4340 = vmatpush1.msra.mxu0 %v4289
    %4341 = vmatprep.subr.mxu0 %v4294
    %4342 = vmatpush1.msra.mxu0 %v4293
    %4343 = vmatprep.subr.mxu0 %v4298
    %4344 = vmatpush1.msra.mxu0 %v4297
    %4345 = vmatprep.subr.mxu0 %v4302
    %4346 = vmatpush1.msra.mxu0 %v4301
    %4347 = vmatprep.subr.mxu0 %v4306
    %4348 = vmatpush1.msra.mxu0 %v4305
    %4349 = vmatprep.subr.mxu0 %v4310
    %4350 = vmatpush1.msra.mxu0 %v4309
    %4351 = vmatprep.subr.mxu0 %v4314
    %4352 = vmatpush1.msra.mxu0 %v4313
    %4353 = vmatprep.subr.mxu0 %v4318
    %4354 = vmatpush1.msra.mxu0 %v4317
    %4355 = vmatprep.subr.mxu0 0.0
    %4356 = vmatpush1.msra.mxu0 0.0
    %4357 = vmatprep.subr.mxu0 0.0
    %4358 = vmatpush1.msra.mxu0 0.0
    %4359 = vmatprep.subr.mxu0 0.0
    %4360 = vmatpush1.msra.mxu0 0.0
    %4361 = vmatprep.subr.mxu0 0.0
    %4362 = vmatpush1.msra.mxu0 0.0
    %4363 = vmatprep.subr.mxu0 0.0
    %4364 = vmatpush1.msra.mxu0 0.0
    %4365 = vmatprep.subr.mxu0 0.0
    %4366 = vmatpush1.msra.mxu0 0.0
    %4367 = vmatprep.subr.mxu0 0.0
    %4368 = vmatpush1.msra.mxu0 0.0
    %4369 = vmatprep.subr.mxu0 0.0
    %4370 = vmatpush1.msra.mxu0 0.0
    %4371 = vmatprep.subr.mxu0 0.0
    %4372 = vmatpush1.msra.mxu0 0.0
    %4373 = vmatprep.subr.mxu0 0.0
    %4374 = vmatpush1.msra.mxu0 0.0
    %4375 = vmatprep.subr.mxu0 0.0
    %4376 = vmatpush1.msra.mxu0 0.0
    %4377 = vmatprep.subr.mxu0 0.0
    %4378 = vmatpush1.msra.mxu0 0.0
    %4379 = vmatprep.subr.mxu0 0.0
    %4380 = vmatpush1.msra.mxu0 0.0
    %4381 = vmatprep.subr.mxu0 0.0
    %4382 = vmatpush1.msra.mxu0 0.0
    %4383 = vmatprep.subr.mxu0 0.0
    %4384 = vmatpush1.msra.mxu0 0.0
    %4385 = vmatprep.subr.mxu0 0.0
    %4386 = vmatpush1.msra.mxu0 0.0
    %4387 = vmatprep.mubr.f32.mxu0 0.0
    %4388 = vmatmul.mubr.f32.gmra.mrb[0].mxu0 %v4322
    %v4389 = vpop.f32.mrb[0].mxu0
    %v4390 = vadd.f32 0.0, %v4389
    %v4391 = vpop.f32.mrb[0].mxu0
    %v4392 = vadd.f32 0.0, %v4391
    %4393 = vdwg.mxu0
    %4394 = vmatprep.subr.mxu0 %v4260
    %4395 = vmatpush1.msra.mxu0 %v4259
    %4396 = vmatprep.subr.mxu0 %v4264
    %4397 = vmatpush1.msra.mxu0 %v4263
    %4398 = vmatprep.subr.mxu0 %v4268
    %4399 = vmatpush1.msra.mxu0 %v4267
    %4400 = vmatprep.subr.mxu0 %v4272
    %4401 = vmatpush1.msra.mxu0 %v4271
    %4402 = vmatprep.subr.mxu0 %v4276
    %4403 = vmatpush1.msra.mxu0 %v4275
    %4404 = vmatprep.subr.mxu0 %v4280
    %4405 = vmatpush1.msra.mxu0 %v4279
    %4406 = vmatprep.subr.mxu0 %v4284
    %4407 = vmatpush1.msra.mxu0 %v4283
    %4408 = vmatprep.subr.mxu0 %v4288
    %4409 = vmatpush1.msra.mxu0 %v4287
    %4410 = vmatprep.subr.mxu0 %v4292
    %4411 = vmatpush1.msra.mxu0 %v4291
    %4412 = vmatprep.subr.mxu0 %v4296
    %4413 = vmatpush1.msra.mxu0 %v4295
    %4414 = vmatprep.subr.mxu0 %v4300
    %4415 = vmatpush1.msra.mxu0 %v4299
    %4416 = vmatprep.subr.mxu0 %v4304
    %4417 = vmatpush1.msra.mxu0 %v4303
    %4418 = vmatprep.subr.mxu0 %v4308
    %4419 = vmatpush1.msra.mxu0 %v4307
    %4420 = vmatprep.subr.mxu0 %v4312
    %4421 = vmatpush1.msra.mxu0 %v4311
    %4422 = vmatprep.subr.mxu0 %v4316
    %4423 = vmatpush1.msra.mxu0 %v4315
    %4424 = vmatprep.subr.mxu0 %v4320
    %4425 = vmatpush1.msra.mxu0 %v4319
    %4426 = vmatprep.subr.mxu0 0.0
    %4427 = vmatpush1.msra.mxu0 0.0
    %4428 = vmatprep.subr.mxu0 0.0
    %4429 = vmatpush1.msra.mxu0 0.0
    %4430 = vmatprep.subr.mxu0 0.0
    %4431 = vmatpush1.msra.mxu0 0.0
    %4432 = vmatprep.subr.mxu0 0.0
    %4433 = vmatpush1.msra.mxu0 0.0
    %4434 = vmatprep.subr.mxu0 0.0
    %4435 = vmatpush1.msra.mxu0 0.0
    %4436 = vmatprep.subr.mxu0 0.0
    %4437 = vmatpush1.msra.mxu0 0.0
    %4438 = vmatprep.subr.mxu0 0.0
    %4439 = vmatpush1.msra.mxu0 0.0
    %4440 = vmatprep.subr.mxu0 0.0
    %4441 = vmatpush1.msra.mxu0 0.0
    %4442 = vmatprep.subr.mxu0 0.0
    %4443 = vmatpush1.msra.mxu0 0.0
    %4444 = vmatprep.subr.mxu0 0.0
    %4445 = vmatpush1.msra.mxu0 0.0
    %4446 = vmatprep.subr.mxu0 0.0
    %4447 = vmatpush1.msra.mxu0 0.0
    %4448 = vmatprep.subr.mxu0 0.0
    %4449 = vmatpush1.msra.mxu0 0.0
    %4450 = vmatprep.subr.mxu0 0.0
    %4451 = vmatpush1.msra.mxu0 0.0
    %4452 = vmatprep.subr.mxu0 0.0
    %4453 = vmatpush1.msra.mxu0 0.0
    %4454 = vmatprep.subr.mxu0 0.0
    %4455 = vmatpush1.msra.mxu0 0.0
    %4456 = vmatprep.subr.mxu0 0.0
    %4457 = vmatpush1.msra.mxu0 0.0
    %4458 = vmatprep.mubr.f32.mxu0 0.0
    %4459 = vmatmul.mubr.f32.gmra.mrb[0].mxu0 %v4322
    %v4460 = vpop.f32.mrb[0].mxu0
    %v4461 = vadd.f32 0.0, %v4460
    %v4462 = vpop.f32.mrb[0].mxu0
    %v4463 = vadd.f32 0.0, %v4462
    %4464 = vdwg.mxu0
    %v4469 = vcombine.low %v4390, %v4392
    %v4470 = vcombine.low %v4461, %v4463
    %v4472 = vunpack.c.l.s4 1966171168
    %v4473 = vunpack.c.0.s8 %v4472
    %v4474 = vlaneseq
    %v4475 = vshrl.u32 %v4474, 7
    %v4476 = vsub.s32 %v4473, %v4475
    %v4477 = vrot.slane %v4469, %v4476
    %v4479 = vunpack.c.l.s4 1966171168
    %v4480 = vunpack.c.0.s8 %v4479
    %v4481 = vlaneseq
    %v4482 = vshrl.u32 %v4481, 7
    %v4483 = vsub.s32 %v4480, %v4482
    %v4484 = vrot.slane %v4470, %v4483
    %v4485 = vcombine.low %v4477, %v4484
    %v4487 = vunpack.c.l.s4 1966171168
    %v4488 = vunpack.c.0.s8 %v4487
    %v4489 = vlaneseq
    %v4490 = vshrl.u32 %v4489, 7
    %v4491 = vsub.s32 %v4488, %v4490
    %v4492 = vrot.slane %v4485, %v4491
    %v4494 = vadd.f32 %v4321, %v4492
    %v4495 = vxor.u32 %v4494, 2147483648
    %v4496 = vmul.f32 %v4495, 1.442695
    %v4497 = vpow.pop %v4496
    %v4498 = vadd.f32 %v4497, 1.0
    %v4499 = vrcp.pop %v4498
    %v4500 = vmul.f32 1.0, %v4499
    %v4502 = vrot.slane %v4494, 1
    %v4504 = vxor.u32 %v4502, 2147483648
    %v4505 = vmul.f32 %v4504, 1.442695
    %v4506 = vpow.pop %v4505
    %v4507 = vadd.f32 %v4506, 1.0
    %v4508 = vrcp.pop %v4507
    %v4509 = vmul.f32 1.0, %v4508
    %v4510 = vrot.slane %v4494, 2
    %v4512 = vtanh.pop %v4510
    %v4513 = vrot.slane %v4494, 3
    %v4515 = vxor.u32 %v4513, 2147483648
    %v4516 = vmul.f32 %v4515, 1.442695
    %v4517 = vpow.pop %v4516
    %v4518 = vadd.f32 %v4517, 1.0
    %v4519 = vrcp.pop %v4518
    %v4520 = vmul.f32 1.0, %v4519
    %v4521 = vld [vmem:[#allocation5] sm:$0x1]
    %v4522 = vmul.f32 %v4509, %v4521
    %v4523 = vmul.f32 %v4500, %v4512
    %v4524 = vadd.f32 %v4522, %v4523
    %v4525 = vtanh.pop %v4524
    %v4526 = vmul.f32 %v4520, %v4525
    %4527 = vst [vmem:[#allocation5] sm:$0x1] %v4524
    %4528 = vst [vmem:[#allocation4] sm:$0x1] %v4526
    %4529 = vst [vmem:[#allocation2] sm:$0x1] %v4526
    %v4530 = vld [vmem:[%s575] ss:$8 sm:$0xf]
    %v4531 = vld [vmem:[#allocation4] sm:$0x1]
    %4532 = vmatprep.subr.mxu0 %v4258
    %4533 = vmatpush1.msra.mxu0 %v4257
    %4534 = vmatprep.subr.mxu0 %v4262
    %4535 = vmatpush1.msra.mxu0 %v4261
    %4536 = vmatprep.subr.mxu0 %v4266
    %4537 = vmatpush1.msra.mxu0 %v4265
    %4538 = vmatprep.subr.mxu0 %v4270
    %4539 = vmatpush1.msra.mxu0 %v4269
    %4540 = vmatprep.subr.mxu0 %v4274
    %4541 = vmatpush1.msra.mxu0 %v4273
    %4542 = vmatprep.subr.mxu0 %v4278
    %4543 = vmatpush1.msra.mxu0 %v4277
    %4544 = vmatprep.subr.mxu0 %v4282
    %4545 = vmatpush1.msra.mxu0 %v4281
    %4546 = vmatprep.subr.mxu0 %v4286
    %4547 = vmatpush1.msra.mxu0 %v4285
    %4548 = vmatprep.subr.mxu0 %v4290
    %4549 = vmatpush1.msra.mxu0 %v4289
    %4550 = vmatprep.subr.mxu0 %v4294
    %4551 = vmatpush1.msra.mxu0 %v4293
    %4552 = vmatprep.subr.mxu0 %v4298
    %4553 = vmatpush1.msra.mxu0 %v4297
    %4554 = vmatprep.subr.mxu0 %v4302
    %4555 = vmatpush1.msra.mxu0 %v4301
    %4556 = vmatprep.subr.mxu0 %v4306
    %4557 = vmatpush1.msra.mxu0 %v4305
    %4558 = vmatprep.subr.mxu0 %v4310
    %4559 = vmatpush1.msra.mxu0 %v4309
    %4560 = vmatprep.subr.mxu0 %v4314
    %4561 = vmatpush1.msra.mxu0 %v4313
    %4562 = vmatprep.subr.mxu0 %v4318
    %4563 = vmatpush1.msra.mxu0 %v4317
    %4564 = vmatprep.subr.mxu0 0.0
    %4565 = vmatpush1.msra.mxu0 0.0
    %4566 = vmatprep.subr.mxu0 0.0
    %4567 = vmatpush1.msra.mxu0 0.0
    %4568 = vmatprep.subr.mxu0 0.0
    %4569 = vmatpush1.msra.mxu0 0.0
    %4570 = vmatprep.subr.mxu0 0.0
    %4571 = vmatpush1.msra.mxu0 0.0
    %4572 = vmatprep.subr.mxu0 0.0
    %4573 = vmatpush1.msra.mxu0 0.0
    %4574 = vmatprep.subr.mxu0 0.0
    %4575 = vmatpush1.msra.mxu0 0.0
    %4576 = vmatprep.subr.mxu0 0.0
    %4577 = vmatpush1.msra.mxu0 0.0
    %4578 = vmatprep.subr.mxu0 0.0
    %4579 = vmatpush1.msra.mxu0 0.0
    %4580 = vmatprep.subr.mxu0 0.0
    %4581 = vmatpush1.msra.mxu0 0.0
    %4582 = vmatprep.subr.mxu0 0.0
    %4583 = vmatpush1.msra.mxu0 0.0
    %4584 = vmatprep.subr.mxu0 0.0
    %4585 = vmatpush1.msra.mxu0 0.0
    %4586 = vmatprep.subr.mxu0 0.0
    %4587 = vmatpush1.msra.mxu0 0.0
    %4588 = vmatprep.subr.mxu0 0.0
    %4589 = vmatpush1.msra.mxu0 0.0
    %4590 = vmatprep.subr.mxu0 0.0
    %4591 = vmatpush1.msra.mxu0 0.0
    %4592 = vmatprep.subr.mxu0 0.0
    %4593 = vmatpush1.msra.mxu0 0.0
    %4594 = vmatprep.subr.mxu0 0.0
    %4595 = vmatpush1.msra.mxu0 0.0
    %4596 = vmatprep.mubr.f32.mxu0 0.0
    %4597 = vmatmul.mubr.f32.gmra.mrb[0].mxu0 %v4531
    %v4598 = vpop.f32.mrb[0].mxu0
    %v4599 = vadd.f32 0.0, %v4598
    %v4600 = vpop.f32.mrb[0].mxu0
    %v4601 = vadd.f32 0.0, %v4600
    %4602 = vdwg.mxu0
    %4603 = vmatprep.subr.mxu0 %v4260
    %4604 = vmatpush1.msra.mxu0 %v4259
    %4605 = vmatprep.subr.mxu0 %v4264
    %4606 = vmatpush1.msra.mxu0 %v4263
    %4607 = vmatprep.subr.mxu0 %v4268
    %4608 = vmatpush1.msra.mxu0 %v4267
    %4609 = vmatprep.subr.mxu0 %v4272
    %4610 = vmatpush1.msra.mxu0 %v4271
    %4611 = vmatprep.subr.mxu0 %v4276
    %4612 = vmatpush1.msra.mxu0 %v4275
    %4613 = vmatprep.subr.mxu0 %v4280
    %4614 = vmatpush1.msra.mxu0 %v4279
    %4615 = vmatprep.subr.mxu0 %v4284
    %4616 = vmatpush1.msra.mxu0 %v4283
    %4617 = vmatprep.subr.mxu0 %v4288
    %4618 = vmatpush1.msra.mxu0 %v4287
    %4619 = vmatprep.subr.mxu0 %v4292
    %4620 = vmatpush1.msra.mxu0 %v4291
    %4621 = vmatprep.subr.mxu0 %v4296
    %4622 = vmatpush1.msra.mxu0 %v4295
    %4623 = vmatprep.subr.mxu0 %v4300
    %4624 = vmatpush1.msra.mxu0 %v4299
    %4625 = vmatprep.subr.mxu0 %v4304
    %4626 = vmatpush1.msra.mxu0 %v4303
    %4627 = vmatprep.subr.mxu0 %v4308
    %4628 = vmatpush1.msra.mxu0 %v4307
    %4629 = vmatprep.subr.mxu0 %v4312
    %4630 = vmatpush1.msra.mxu0 %v4311
    %4631 = vmatprep.subr.mxu0 %v4316
    %4632 = vmatpush1.msra.mxu0 %v4315
    %4633 = vmatprep.subr.mxu0 %v4320
    %4634 = vmatpush1.msra.mxu0 %v4319
    %4635 = vmatprep.subr.mxu0 0.0
    %4636 = vmatpush1.msra.mxu0 0.0
    %4637 = vmatprep.subr.mxu0 0.0
    %4638 = vmatpush1.msra.mxu0 0.0
    %4639 = vmatprep.subr.mxu0 0.0
    %4640 = vmatpush1.msra.mxu0 0.0
    %4641 = vmatprep.subr.mxu0 0.0
    %4642 = vmatpush1.msra.mxu0 0.0
    %4643 = vmatprep.subr.mxu0 0.0
    %4644 = vmatpush1.msra.mxu0 0.0
    %4645 = vmatprep.subr.mxu0 0.0
    %4646 = vmatpush1.msra.mxu0 0.0
    %4647 = vmatprep.subr.mxu0 0.0
    %4648 = vmatpush1.msra.mxu0 0.0
    %4649 = vmatprep.subr.mxu0 0.0
    %4650 = vmatpush1.msra.mxu0 0.0
    %4651 = vmatprep.subr.mxu0 0.0
    %4652 = vmatpush1.msra.mxu0 0.0
    %4653 = vmatprep.subr.mxu0 0.0
    %4654 = vmatpush1.msra.mxu0 0.0
    %4655 = vmatprep.subr.mxu0 0.0
    %4656 = vmatpush1.msra.mxu0 0.0
    %4657 = vmatprep.subr.mxu0 0.0
    %4658 = vmatpush1.msra.mxu0 0.0
    %4659 = vmatprep.subr.mxu0 0.0
    %4660 = vmatpush1.msra.mxu0 0.0
    %4661 = vmatprep.subr.mxu0 0.0
    %4662 = vmatpush1.msra.mxu0 0.0
    %4663 = vmatprep.subr.mxu0 0.0
    %4664 = vmatpush1.msra.mxu0 0.0
    %4665 = vmatprep.subr.mxu0 0.0
    %4666 = vmatpush1.msra.mxu0 0.0
    %4667 = vmatprep.mubr.f32.mxu0 0.0
    %4668 = vmatmul.mubr.f32.gmra.mrb[0].mxu0 %v4531
    %v4669 = vpop.f32.mrb[0].mxu0
    %v4670 = vadd.f32 0.0, %v4669
    %v4671 = vpop.f32.mrb[0].mxu0
    %v4672 = vadd.f32 0.0, %v4671
    %4673 = vdwg.mxu0
    %v4678 = vcombine.low %v4599, %v4601
    %v4679 = vcombine.low %v4670, %v4672
    %v4681 = vunpack.c.l.s4 1966171168
    %v4682 = vunpack.c.0.s8 %v4681
    %v4683 = vlaneseq
    %v4684 = vshrl.u32 %v4683, 7
    %v4685 = vsub.s32 %v4682, %v4684
    %v4686 = vrot.slane %v4678, %v4685
    %v4688 = vunpack.c.l.s4 1966171168
    %v4689 = vunpack.c.0.s8 %v4688
    %v4690 = vlaneseq
    %v4691 = vshrl.u32 %v4690, 7
    %v4692 = vsub.s32 %v4689, %v4691
    %v4693 = vrot.slane %v4679, %v4692
    %v4694 = vcombine.low %v4686, %v4693
    %v4696 = vunpack.c.l.s4 1966171168
    %v4697 = vunpack.c.0.s8 %v4696
    %v4698 = vlaneseq
    %v4699 = vshrl.u32 %v4698, 7
    %v4700 = vsub.s32 %v4697, %v4699
    %v4701 = vrot.slane %v4694, %v4700
    %v4703 = vadd.f32 %v4530, %v4701
    %v4704 = vxor.u32 %v4703, 2147483648
    %v4705 = vmul.f32 %v4704, 1.442695
    %v4706 = vpow.pop %v4705
    %v4707 = vadd.f32 %v4706, 1.0
    %v4708 = vrcp.pop %v4707
    %v4709 = vmul.f32 1.0, %v4708
    %v4711 = vrot.slane %v4703, 1
    %v4713 = vxor.u32 %v4711, 2147483648
    %v4714 = vmul.f32 %v4713, 1.442695
    %v4715 = vpow.pop %v4714
    %v4716 = vadd.f32 %v4715, 1.0
    %v4717 = vrcp.pop %v4716
    %v4718 = vmul.f32 1.0, %v4717
    %v4719 = vrot.slane %v4703, 2
    %v4721 = vtanh.pop %v4719
    %v4722 = vrot.slane %v4703, 3
    %v4724 = vxor.u32 %v4722, 2147483648
    %v4725 = vmul.f32 %v4724, 1.442695
    %v4726 = vpow.pop %v4725
    %v4727 = vadd.f32 %v4726, 1.0
    %v4728 = vrcp.pop %v4727
    %v4729 = vmul.f32 1.0, %v4728
    %v4730 = vld [vmem:[#allocation5] sm:$0x1]
    %v4731 = vmul.f32 %v4718, %v4730
    %v4732 = vmul.f32 %v4709, %v4721
    %v4733 = vadd.f32 %v4731, %v4732
    %v4734 = vtanh.pop %v4733
    %v4735 = vmul.f32 %v4729, %v4734
    %4736 = vst [vmem:[#allocation5] sm:$0x1] %v4733
    %4737 = vst [vmem:[#allocation4] sm:$0x1] %v4735
    %4738 = vst [vmem:[#allocation2 + $0x1] sm:$0x1] %v4735
    %v4739 = vld [vmem:[%s785] ss:$8 sm:$0xf]
    %v4740 = vld [vmem:[#allocation4] sm:$0x1]
    %4741 = vmatprep.subr.mxu0 %v4258
    %4742 = vmatpush1.msra.mxu0 %v4257
    %4743 = vmatprep.subr.mxu0 %v4262
    %4744 = vmatpush1.msra.mxu0 %v4261
    %4745 = vmatprep.subr.mxu0 %v4266
    %4746 = vmatpush1.msra.mxu0 %v4265
    %4747 = vmatprep.subr.mxu0 %v4270
    %4748 = vmatpush1.msra.mxu0 %v4269
    %4749 = vmatprep.subr.mxu0 %v4274
    %4750 = vmatpush1.msra.mxu0 %v4273
    %4751 = vmatprep.subr.mxu0 %v4278
    %4752 = vmatpush1.msra.mxu0 %v4277
    %4753 = vmatprep.subr.mxu0 %v4282
    %4754 = vmatpush1.msra.mxu0 %v4281
    %4755 = vmatprep.subr.mxu0 %v4286
    %4756 = vmatpush1.msra.mxu0 %v4285
    %4757 = vmatprep.subr.mxu0 %v4290
    %4758 = vmatpush1.msra.mxu0 %v4289
    %4759 = vmatprep.subr.mxu0 %v4294
    %4760 = vmatpush1.msra.mxu0 %v4293
    %4761 = vmatprep.subr.mxu0 %v4298
    %4762 = vmatpush1.msra.mxu0 %v4297
    %4763 = vmatprep.subr.mxu0 %v4302
    %4764 = vmatpush1.msra.mxu0 %v4301
    %4765 = vmatprep.subr.mxu0 %v4306
    %4766 = vmatpush1.msra.mxu0 %v4305
    %4767 = vmatprep.subr.mxu0 %v4310
    %4768 = vmatpush1.msra.mxu0 %v4309
    %4769 = vmatprep.subr.mxu0 %v4314
    %4770 = vmatpush1.msra.mxu0 %v4313
    %4771 = vmatprep.subr.mxu0 %v4318
    %4772 = vmatpush1.msra.mxu0 %v4317
    %4773 = vmatprep.subr.mxu0 0.0
    %4774 = vmatpush1.msra.mxu0 0.0
    %4775 = vmatprep.subr.mxu0 0.0
    %4776 = vmatpush1.msra.mxu0 0.0
    %4777 = vmatprep.subr.mxu0 0.0
    %4778 = vmatpush1.msra.mxu0 0.0
    %4779 = vmatprep.subr.mxu0 0.0
    %4780 = vmatpush1.msra.mxu0 0.0
    %4781 = vmatprep.subr.mxu0 0.0
    %4782 = vmatpush1.msra.mxu0 0.0
    %4783 = vmatprep.subr.mxu0 0.0
    %4784 = vmatpush1.msra.mxu0 0.0
    %4785 = vmatprep.subr.mxu0 0.0
    %4786 = vmatpush1.msra.mxu0 0.0
    %4787 = vmatprep.subr.mxu0 0.0
    %4788 = vmatpush1.msra.mxu0 0.0
    %4789 = vmatprep.subr.mxu0 0.0
    %4790 = vmatpush1.msra.mxu0 0.0
    %4791 = vmatprep.subr.mxu0 0.0
    %4792 = vmatpush1.msra.mxu0 0.0
    %4793 = vmatprep.subr.mxu0 0.0
    %4794 = vmatpush1.msra.mxu0 0.0
    %4795 = vmatprep.subr.mxu0 0.0
    %4796 = vmatpush1.msra.mxu0 0.0
    %4797 = vmatprep.subr.mxu0 0.0
    %4798 = vmatpush1.msra.mxu0 0.0
    %4799 = vmatprep.subr.mxu0 0.0
    %4800 = vmatpush1.msra.mxu0 0.0
    %4801 = vmatprep.subr.mxu0 0.0
    %4802 = vmatpush1.msra.mxu0 0.0
    %4803 = vmatprep.subr.mxu0 0.0
    %4804 = vmatpush1.msra.mxu0 0.0
    %4805 = vmatprep.mubr.f32.mxu0 0.0
    %4806 = vmatmul.mubr.f32.gmra.mrb[0].mxu0 %v4740
    %v4807 = vpop.f32.mrb[0].mxu0
    %v4808 = vadd.f32 0.0, %v4807
    %v4809 = vpop.f32.mrb[0].mxu0
    %v4810 = vadd.f32 0.0, %v4809
    %4811 = vdwg.mxu0
    %4812 = vmatprep.subr.mxu0 %v4260
    %4813 = vmatpush1.msra.mxu0 %v4259
    %4814 = vmatprep.subr.mxu0 %v4264
    %4815 = vmatpush1.msra.mxu0 %v4263
    %4816 = vmatprep.subr.mxu0 %v4268
    %4817 = vmatpush1.msra.mxu0 %v4267
    %4818 = vmatprep.subr.mxu0 %v4272
    %4819 = vmatpush1.msra.mxu0 %v4271
    %4820 = vmatprep.subr.mxu0 %v4276
    %4821 = vmatpush1.msra.mxu0 %v4275
    %4822 = vmatprep.subr.mxu0 %v4280
    %4823 = vmatpush1.msra.mxu0 %v4279
    %4824 = vmatprep.subr.mxu0 %v4284
    %4825 = vmatpush1.msra.mxu0 %v4283
    %4826 = vmatprep.subr.mxu0 %v4288
    %4827 = vmatpush1.msra.mxu0 %v4287
    %4828 = vmatprep.subr.mxu0 %v4292
    %4829 = vmatpush1.msra.mxu0 %v4291
    %4830 = vmatprep.subr.mxu0 %v4296
    %4831 = vmatpush1.msra.mxu0 %v4295
    %4832 = vmatprep.subr.mxu0 %v4300
    %4833 = vmatpush1.msra.mxu0 %v4299
    %4834 = vmatprep.subr.mxu0 %v4304
    %4835 = vmatpush1.msra.mxu0 %v4303
    %4836 = vmatprep.subr.mxu0 %v4308
    %4837 = vmatpush1.msra.mxu0 %v4307
    %4838 = vmatprep.subr.mxu0 %v4312
    %4839 = vmatpush1.msra.mxu0 %v4311
    %4840 = vmatprep.subr.mxu0 %v4316
    %4841 = vmatpush1.msra.mxu0 %v4315
    %4842 = vmatprep.subr.mxu0 %v4320
    %4843 = vmatpush1.msra.mxu0 %v4319
    %4844 = vmatprep.subr.mxu0 0.0
    %4845 = vmatpush1.msra.mxu0 0.0
    %4846 = vmatprep.subr.mxu0 0.0
    %4847 = vmatpush1.msra.mxu0 0.0
    %4848 = vmatprep.subr.mxu0 0.0
    %4849 = vmatpush1.msra.mxu0 0.0
    %4850 = vmatprep.subr.mxu0 0.0
    %4851 = vmatpush1.msra.mxu0 0.0
    %4852 = vmatprep.subr.mxu0 0.0
    %4853 = vmatpush1.msra.mxu0 0.0
    %4854 = vmatprep.subr.mxu0 0.0
    %4855 = vmatpush1.msra.mxu0 0.0
    %4856 = vmatprep.subr.mxu0 0.0
    %4857 = vmatpush1.msra.mxu0 0.0
    %4858 = vmatprep.subr.mxu0 0.0
    %4859 = vmatpush1.msra.mxu0 0.0
    %4860 = vmatprep.subr.mxu0 0.0
    %4861 = vmatpush1.msra.mxu0 0.0
    %4862 = vmatprep.subr.mxu0 0.0
    %4863 = vmatpush1.msra.mxu0 0.0
    %4864 = vmatprep.subr.mxu0 0.0
    %4865 = vmatpush1.msra.mxu0 0.0
    %4866 = vmatprep.subr.mxu0 0.0
    %4867 = vmatpush1.msra.mxu0 0.0
    %4868 = vmatprep.subr.mxu0 0.0
    %4869 = vmatpush1.msra.mxu0 0.0
    %4870 = vmatprep.subr.mxu0 0.0
    %4871 = vmatpush1.msra.mxu0 0.0
    %4872 = vmatprep.subr.mxu0 0.0
    %4873 = vmatpush1.msra.mxu0 0.0
    %4874 = vmatprep.subr.mxu0 0.0
    %4875 = vmatpush1.msra.mxu0 0.0
    %4876 = vmatprep.mubr.f32.mxu0 0.0
    %4877 = vmatmul.mubr.f32.gmra.mrb[0].mxu0 %v4740
    %v4878 = vpop.f32.mrb[0].mxu0
    %v4879 = vadd.f32 0.0, %v4878
    %v4880 = vpop.f32.mrb[0].mxu0
    %v4881 = vadd.f32 0.0, %v4880
    %4882 = vdwg.mxu0
    %v4887 = vcombine.low %v4808, %v4810
    %v4888 = vcombine.low %v4879, %v4881
    %v4890 = vunpack.c.l.s4 1966171168
    %v4891 = vunpack.c.0.s8 %v4890
    %v4892 = vlaneseq
    %v4893 = vshrl.u32 %v4892, 7
    %v4894 = vsub.s32 %v4891, %v4893
    %v4895 = vrot.slane %v4887, %v4894
    %v4897 = vunpack.c.l.s4 1966171168
    %v4898 = vunpack.c.0.s8 %v4897
    %v4899 = vlaneseq
    %v4900 = vshrl.u32 %v4899, 7
    %v4901 = vsub.s32 %v4898, %v4900
    %v4902 = vrot.slane %v4888, %v4901
    %v4903 = vcombine.low %v4895, %v4902
    %v4905 = vunpack.c.l.s4 1966171168
    %v4906 = vunpack.c.0.s8 %v4905
    %v4907 = vlaneseq
    %v4908 = vshrl.u32 %v4907, 7
    %v4909 = vsub.s32 %v4906, %v4908
    %v4910 = vrot.slane %v4903, %v4909
    %v4912 = vadd.f32 %v4739, %v4910
    %v4913 = vxor.u32 %v4912, 2147483648
    %v4914 = vmul.f32 %v4913, 1.442695
    %v4915 = vpow.pop %v4914
    %v4916 = vadd.f32 %v4915, 1.0
    %v4917 = vrcp.pop %v4916
    %v4918 = vmul.f32 1.0, %v4917
    %v4920 = vrot.slane %v4912, 1
    %v4922 = vxor.u32 %v4920, 2147483648
    %v4923 = vmul.f32 %v4922, 1.442695
    %v4924 = vpow.pop %v4923
    %v4925 = vadd.f32 %v4924, 1.0
    %v4926 = vrcp.pop %v4925
    %v4927 = vmul.f32 1.0, %v4926
    %v4928 = vrot.slane %v4912, 2
    %v4930 = vtanh.pop %v4928
    %v4931 = vrot.slane %v4912, 3
    %v4933 = vxor.u32 %v4931, 2147483648
    %v4934 = vmul.f32 %v4933, 1.442695
    %v4935 = vpow.pop %v4934
    %v4936 = vadd.f32 %v4935, 1.0
    %v4937 = vrcp.pop %v4936
    %v4938 = vmul.f32 1.0, %v4937
    %v4939 = vld [vmem:[#allocation5] sm:$0x1]
    %v4940 = vmul.f32 %v4927, %v4939
    %v4941 = vmul.f32 %v4918, %v4930
    %v4942 = vadd.f32 %v4940, %v4941
    %v4943 = vtanh.pop %v4942
    %v4944 = vmul.f32 %v4938, %v4943
    %4945 = vst [vmem:[#allocation5] sm:$0x1] %v4942
    %4946 = vst [vmem:[#allocation4] sm:$0x1] %v4944
    %4947 = vst [vmem:[#allocation2 + $0x2] sm:$0x1] %v4944
    %v4948 = vld [vmem:[%s995] ss:$8 sm:$0xf]
    %v4949 = vld [vmem:[#allocation4] sm:$0x1]
    %4950 = vmatprep.subr.mxu0 %v4258
    %4951 = vmatpush1.msra.mxu0 %v4257
    %4952 = vmatprep.subr.mxu0 %v4262
    %4953 = vmatpush1.msra.mxu0 %v4261
    %4954 = vmatprep.subr.mxu0 %v4266
    %4955 = vmatpush1.msra.mxu0 %v4265
    %4956 = vmatprep.subr.mxu0 %v4270
    %4957 = vmatpush1.msra.mxu0 %v4269
    %4958 = vmatprep.subr.mxu0 %v4274
    %4959 = vmatpush1.msra.mxu0 %v4273
    %4960 = vmatprep.subr.mxu0 %v4278
    %4961 = vmatpush1.msra.mxu0 %v4277
    %4962 = vmatprep.subr.mxu0 %v4282
    %4963 = vmatpush1.msra.mxu0 %v4281
    %4964 = vmatprep.subr.mxu0 %v4286
    %4965 = vmatpush1.msra.mxu0 %v4285
    %4966 = vmatprep.subr.mxu0 %v4290
    %4967 = vmatpush1.msra.mxu0 %v4289
    %4968 = vmatprep.subr.mxu0 %v4294
    %4969 = vmatpush1.msra.mxu0 %v4293
    %4970 = vmatprep.subr.mxu0 %v4298
    %4971 = vmatpush1.msra.mxu0 %v4297
    %4972 = vmatprep.subr.mxu0 %v4302
    %4973 = vmatpush1.msra.mxu0 %v4301
    %4974 = vmatprep.subr.mxu0 %v4306
    %4975 = vmatpush1.msra.mxu0 %v4305
    %4976 = vmatprep.subr.mxu0 %v4310
    %4977 = vmatpush1.msra.mxu0 %v4309
    %4978 = vmatprep.subr.mxu0 %v4314
    %4979 = vmatpush1.msra.mxu0 %v4313
    %4980 = vmatprep.subr.mxu0 %v4318
    %4981 = vmatpush1.msra.mxu0 %v4317
    %4982 = vmatprep.subr.mxu0 0.0
    %4983 = vmatpush1.msra.mxu0 0.0
    %4984 = vmatprep.subr.mxu0 0.0
    %4985 = vmatpush1.msra.mxu0 0.0
    %4986 = vmatprep.subr.mxu0 0.0
    %4987 = vmatpush1.msra.mxu0 0.0
    %4988 = vmatprep.subr.mxu0 0.0
    %4989 = vmatpush1.msra.mxu0 0.0
    %4990 = vmatprep.subr.mxu0 0.0
    %4991 = vmatpush1.msra.mxu0 0.0
    %4992 = vmatprep.subr.mxu0 0.0
    %4993 = vmatpush1.msra.mxu0 0.0
    %4994 = vmatprep.subr.mxu0 0.0
    %4995 = vmatpush1.msra.mxu0 0.0
    %4996 = vmatprep.subr.mxu0 0.0
    %4997 = vmatpush1.msra.mxu0 0.0
    %4998 = vmatprep.subr.mxu0 0.0
    %4999 = vmatpush1.msra.mxu0 0.0
    %5000 = vmatprep.subr.mxu0 0.0
    %5001 = vmatpush1.msra.mxu0 0.0
    %5002 = vmatprep.subr.mxu0 0.0
    %5003 = vmatpush1.msra.mxu0 0.0
    %5004 = vmatprep.subr.mxu0 0.0
    %5005 = vmatpush1.msra.mxu0 0.0
    %5006 = vmatprep.subr.mxu0 0.0
    %5007 = vmatpush1.msra.mxu0 0.0
    %5008 = vmatprep.subr.mxu0 0.0
    %5009 = vmatpush1.msra.mxu0 0.0
    %5010 = vmatprep.subr.mxu0 0.0
    %5011 = vmatpush1.msra.mxu0 0.0
    %5012 = vmatprep.subr.mxu0 0.0
    %5013 = vmatpush1.msra.mxu0 0.0
    %5014 = vmatprep.mubr.f32.mxu0 0.0
    %5015 = vmatmul.mubr.f32.gmra.mrb[0].mxu0 %v4949
    %v5016 = vpop.f32.mrb[0].mxu0
    %v5017 = vadd.f32 0.0, %v5016
    %v5018 = vpop.f32.mrb[0].mxu0
    %v5019 = vadd.f32 0.0, %v5018
    %5020 = vdwg.mxu0
    %5021 = vmatprep.subr.mxu0 %v4260
    %5022 = vmatpush1.msra.mxu0 %v4259
    %5023 = vmatprep.subr.mxu0 %v4264
    %5024 = vmatpush1.msra.mxu0 %v4263
    %5025 = vmatprep.subr.mxu0 %v4268
    %5026 = vmatpush1.msra.mxu0 %v4267
    %5027 = vmatprep.subr.mxu0 %v4272
    %5028 = vmatpush1.msra.mxu0 %v4271
    %5029 = vmatprep.subr.mxu0 %v4276
    %5030 = vmatpush1.msra.mxu0 %v4275
    %5031 = vmatprep.subr.mxu0 %v4280
    %5032 = vmatpush1.msra.mxu0 %v4279
    %5033 = vmatprep.subr.mxu0 %v4284
    %5034 = vmatpush1.msra.mxu0 %v4283
    %5035 = vmatprep.subr.mxu0 %v4288
    %5036 = vmatpush1.msra.mxu0 %v4287
    %5037 = vmatprep.subr.mxu0 %v4292
    %5038 = vmatpush1.msra.mxu0 %v4291
    %5039 = vmatprep.subr.mxu0 %v4296
    %5040 = vmatpush1.msra.mxu0 %v4295
    %5041 = vmatprep.subr.mxu0 %v4300
    %5042 = vmatpush1.msra.mxu0 %v4299
    %5043 = vmatprep.subr.mxu0 %v4304
    %5044 = vmatpush1.msra.mxu0 %v4303
    %5045 = vmatprep.subr.mxu0 %v4308
    %5046 = vmatpush1.msra.mxu0 %v4307
    %5047 = vmatprep.subr.mxu0 %v4312
    %5048 = vmatpush1.msra.mxu0 %v4311
    %5049 = vmatprep.subr.mxu0 %v4316
    %5050 = vmatpush1.msra.mxu0 %v4315
    %5051 = vmatprep.subr.mxu0 %v4320
    %5052 = vmatpush1.msra.mxu0 %v4319
    %5053 = vmatprep.subr.mxu0 0.0
    %5054 = vmatpush1.msra.mxu0 0.0
    %5055 = vmatprep.subr.mxu0 0.0
    %5056 = vmatpush1.msra.mxu0 0.0
    %5057 = vmatprep.subr.mxu0 0.0
    %5058 = vmatpush1.msra.mxu0 0.0
    %5059 = vmatprep.subr.mxu0 0.0
    %5060 = vmatpush1.msra.mxu0 0.0
    %5061 = vmatprep.subr.mxu0 0.0
    %5062 = vmatpush1.msra.mxu0 0.0
    %5063 = vmatprep.subr.mxu0 0.0
    %5064 = vmatpush1.msra.mxu0 0.0
    %5065 = vmatprep.subr.mxu0 0.0
    %5066 = vmatpush1.msra.mxu0 0.0
    %5067 = vmatprep.subr.mxu0 0.0
    %5068 = vmatpush1.msra.mxu0 0.0
    %5069 = vmatprep.subr.mxu0 0.0
    %5070 = vmatpush1.msra.mxu0 0.0
    %5071 = vmatprep.subr.mxu0 0.0
    %5072 = vmatpush1.msra.mxu0 0.0
    %5073 = vmatprep.subr.mxu0 0.0
    %5074 = vmatpush1.msra.mxu0 0.0
    %5075 = vmatprep.subr.mxu0 0.0
    %5076 = vmatpush1.msra.mxu0 0.0
    %5077 = vmatprep.subr.mxu0 0.0
    %5078 = vmatpush1.msra.mxu0 0.0
    %5079 = vmatprep.subr.mxu0 0.0
    %5080 = vmatpush1.msra.mxu0 0.0
    %5081 = vmatprep.subr.mxu0 0.0
    %5082 = vmatpush1.msra.mxu0 0.0
    %5083 = vmatprep.subr.mxu0 0.0
    %5084 = vmatpush1.msra.mxu0 0.0
    %5085 = vmatprep.mubr.f32.mxu0 0.0
    %5086 = vmatmul.mubr.f32.gmra.mrb[0].mxu0 %v4949
    %v5087 = vpop.f32.mrb[0].mxu0
    %v5088 = vadd.f32 0.0, %v5087
    %v5089 = vpop.f32.mrb[0].mxu0
    %v5090 = vadd.f32 0.0, %v5089
    %5091 = vdwg.mxu0
    %v5096 = vcombine.low %v5017, %v5019
    %v5097 = vcombine.low %v5088, %v5090
    %v5099 = vunpack.c.l.s4 1966171168
    %v5100 = vunpack.c.0.s8 %v5099
    %v5101 = vlaneseq
    %v5102 = vshrl.u32 %v5101, 7
    %v5103 = vsub.s32 %v5100, %v5102
    %v5104 = vrot.slane %v5096, %v5103
    %v5106 = vunpack.c.l.s4 1966171168
    %v5107 = vunpack.c.0.s8 %v5106
    %v5108 = vlaneseq
    %v5109 = vshrl.u32 %v5108, 7
    %v5110 = vsub.s32 %v5107, %v5109
    %v5111 = vrot.slane %v5097, %v5110
    %v5112 = vcombine.low %v5104, %v5111
    %v5114 = vunpack.c.l.s4 1966171168
    %v5115 = vunpack.c.0.s8 %v5114
    %v5116 = vlaneseq
    %v5117 = vshrl.u32 %v5116, 7
    %v5118 = vsub.s32 %v5115, %v5117
    %v5119 = vrot.slane %v5112, %v5118
    %v5121 = vadd.f32 %v4948, %v5119
    %v5122 = vxor.u32 %v5121, 2147483648
    %v5123 = vmul.f32 %v5122, 1.442695
    %v5124 = vpow.pop %v5123
    %v5125 = vadd.f32 %v5124, 1.0
    %v5126 = vrcp.pop %v5125
    %v5127 = vmul.f32 1.0, %v5126
    %v5129 = vrot.slane %v5121, 1
    %v5131 = vxor.u32 %v5129, 2147483648
    %v5132 = vmul.f32 %v5131, 1.442695
    %v5133 = vpow.pop %v5132
    %v5134 = vadd.f32 %v5133, 1.0
    %v5135 = vrcp.pop %v5134
    %v5136 = vmul.f32 1.0, %v5135
    %v5137 = vrot.slane %v5121, 2
    %v5139 = vtanh.pop %v5137
    %v5140 = vrot.slane %v5121, 3
    %v5142 = vxor.u32 %v5140, 2147483648
    %v5143 = vmul.f32 %v5142, 1.442695
    %v5144 = vpow.pop %v5143
    %v5145 = vadd.f32 %v5144, 1.0
    %v5146 = vrcp.pop %v5145
    %v5147 = vmul.f32 1.0, %v5146
    %v5148 = vld [vmem:[#allocation5] sm:$0x1]
    %v5149 = vmul.f32 %v5136, %v5148
    %v5150 = vmul.f32 %v5127, %v5139
    %v5151 = vadd.f32 %v5149, %v5150
    %v5152 = vtanh.pop %v5151
    %v5153 = vmul.f32 %v5147, %v5152
    %5154 = vst [vmem:[#allocation5] sm:$0x1] %v5151
    %5155 = vst [vmem:[#allocation4] sm:$0x1] %v5153
    %5156 = vst [vmem:[#allocation2 + $0x3] sm:$0x1] %v5153
    %v5157 = vld [vmem:[%s1205] ss:$8 sm:$0xf]
    %v5158 = vld [vmem:[#allocation4] sm:$0x1]
    %5159 = vmatprep.subr.mxu0 %v4258
    %5160 = vmatpush1.msra.mxu0 %v4257
    %5161 = vmatprep.subr.mxu0 %v4262
    %5162 = vmatpush1.msra.mxu0 %v4261
    %5163 = vmatprep.subr.mxu0 %v4266
    %5164 = vmatpush1.msra.mxu0 %v4265
    %5165 = vmatprep.subr.mxu0 %v4270
    %5166 = vmatpush1.msra.mxu0 %v4269
    %5167 = vmatprep.subr.mxu0 %v4274
    %5168 = vmatpush1.msra.mxu0 %v4273
    %5169 = vmatprep.subr.mxu0 %v4278
    %5170 = vmatpush1.msra.mxu0 %v4277
    %5171 = vmatprep.subr.mxu0 %v4282
    %5172 = vmatpush1.msra.mxu0 %v4281
    %5173 = vmatprep.subr.mxu0 %v4286
    %5174 = vmatpush1.msra.mxu0 %v4285
    %5175 = vmatprep.subr.mxu0 %v4290
    %5176 = vmatpush1.msra.mxu0 %v4289
    %5177 = vmatprep.subr.mxu0 %v4294
    %5178 = vmatpush1.msra.mxu0 %v4293
    %5179 = vmatprep.subr.mxu0 %v4298
    %5180 = vmatpush1.msra.mxu0 %v4297
    %5181 = vmatprep.subr.mxu0 %v4302
    %5182 = vmatpush1.msra.mxu0 %v4301
    %5183 = vmatprep.subr.mxu0 %v4306
    %5184 = vmatpush1.msra.mxu0 %v4305
    %5185 = vmatprep.subr.mxu0 %v4310
    %5186 = vmatpush1.msra.mxu0 %v4309
    %5187 = vmatprep.subr.mxu0 %v4314
    %5188 = vmatpush1.msra.mxu0 %v4313
    %5189 = vmatprep.subr.mxu0 %v4318
    %5190 = vmatpush1.msra.mxu0 %v4317
    %5191 = vmatprep.subr.mxu0 0.0
    %5192 = vmatpush1.msra.mxu0 0.0
    %5193 = vmatprep.subr.mxu0 0.0
    %5194 = vmatpush1.msra.mxu0 0.0
    %5195 = vmatprep.subr.mxu0 0.0
    %5196 = vmatpush1.msra.mxu0 0.0
    %5197 = vmatprep.subr.mxu0 0.0
    %5198 = vmatpush1.msra.mxu0 0.0
    %5199 = vmatprep.subr.mxu0 0.0
    %5200 = vmatpush1.msra.mxu0 0.0
    %5201 = vmatprep.subr.mxu0 0.0
    %5202 = vmatpush1.msra.mxu0 0.0
    %5203 = vmatprep.subr.mxu0 0.0
    %5204 = vmatpush1.msra.mxu0 0.0
    %5205 = vmatprep.subr.mxu0 0.0
    %5206 = vmatpush1.msra.mxu0 0.0
    %5207 = vmatprep.subr.mxu0 0.0
    %5208 = vmatpush1.msra.mxu0 0.0
    %5209 = vmatprep.subr.mxu0 0.0
    %5210 = vmatpush1.msra.mxu0 0.0
    %5211 = vmatprep.subr.mxu0 0.0
    %5212 = vmatpush1.msra.mxu0 0.0
    %5213 = vmatprep.subr.mxu0 0.0
    %5214 = vmatpush1.msra.mxu0 0.0
    %5215 = vmatprep.subr.mxu0 0.0
    %5216 = vmatpush1.msra.mxu0 0.0
    %5217 = vmatprep.subr.mxu0 0.0
    %5218 = vmatpush1.msra.mxu0 0.0
    %5219 = vmatprep.subr.mxu0 0.0
    %5220 = vmatpush1.msra.mxu0 0.0
    %5221 = vmatprep.subr.mxu0 0.0
    %5222 = vmatpush1.msra.mxu0 0.0
    %5223 = vmatprep.mubr.f32.mxu0 0.0
    %5224 = vmatmul.mubr.f32.gmra.mrb[0].mxu0 %v5158
    %v5225 = vpop.f32.mrb[0].mxu0
    %v5226 = vadd.f32 0.0, %v5225
    %v5227 = vpop.f32.mrb[0].mxu0
    %v5228 = vadd.f32 0.0, %v5227
    %5229 = vdwg.mxu0
    %5230 = vmatprep.subr.mxu0 %v4260
    %5231 = vmatpush1.msra.mxu0 %v4259
    %5232 = vmatprep.subr.mxu0 %v4264
    %5233 = vmatpush1.msra.mxu0 %v4263
    %5234 = vmatprep.subr.mxu0 %v4268
    %5235 = vmatpush1.msra.mxu0 %v4267
    %5236 = vmatprep.subr.mxu0 %v4272
    %5237 = vmatpush1.msra.mxu0 %v4271
    %5238 = vmatprep.subr.mxu0 %v4276
    %5239 = vmatpush1.msra.mxu0 %v4275
    %5240 = vmatprep.subr.mxu0 %v4280
    %5241 = vmatpush1.msra.mxu0 %v4279
    %5242 = vmatprep.subr.mxu0 %v4284
    %5243 = vmatpush1.msra.mxu0 %v4283
    %5244 = vmatprep.subr.mxu0 %v4288
    %5245 = vmatpush1.msra.mxu0 %v4287
    %5246 = vmatprep.subr.mxu0 %v4292
    %5247 = vmatpush1.msra.mxu0 %v4291
    %5248 = vmatprep.subr.mxu0 %v4296
    %5249 = vmatpush1.msra.mxu0 %v4295
    %5250 = vmatprep.subr.mxu0 %v4300
    %5251 = vmatpush1.msra.mxu0 %v4299
    %5252 = vmatprep.subr.mxu0 %v4304
    %5253 = vmatpush1.msra.mxu0 %v4303
    %5254 = vmatprep.subr.mxu0 %v4308
    %5255 = vmatpush1.msra.mxu0 %v4307
    %5256 = vmatprep.subr.mxu0 %v4312
    %5257 = vmatpush1.msra.mxu0 %v4311
    %5258 = vmatprep.subr.mxu0 %v4316
    %5259 = vmatpush1.msra.mxu0 %v4315
    %5260 = vmatprep.subr.mxu0 %v4320
    %5261 = vmatpush1.msra.mxu0 %v4319
    %5262 = vmatprep.subr.mxu0 0.0
    %5263 = vmatpush1.msra.mxu0 0.0
    %5264 = vmatprep.subr.mxu0 0.0
    %5265 = vmatpush1.msra.mxu0 0.0
    %5266 = vmatprep.subr.mxu0 0.0
    %5267 = vmatpush1.msra.mxu0 0.0
    %5268 = vmatprep.subr.mxu0 0.0
    %5269 = vmatpush1.msra.mxu0 0.0
    %5270 = vmatprep.subr.mxu0 0.0
    %5271 = vmatpush1.msra.mxu0 0.0
    %5272 = vmatprep.subr.mxu0 0.0
    %5273 = vmatpush1.msra.mxu0 0.0
    %5274 = vmatprep.subr.mxu0 0.0
    %5275 = vmatpush1.msra.mxu0 0.0
    %5276 = vmatprep.subr.mxu0 0.0
    %5277 = vmatpush1.msra.mxu0 0.0
    %5278 = vmatprep.subr.mxu0 0.0
    %5279 = vmatpush1.msra.mxu0 0.0
    %5280 = vmatprep.subr.mxu0 0.0
    %5281 = vmatpush1.msra.mxu0 0.0
    %5282 = vmatprep.subr.mxu0 0.0
    %5283 = vmatpush1.msra.mxu0 0.0
    %5284 = vmatprep.subr.mxu0 0.0
    %5285 = vmatpush1.msra.mxu0 0.0
    %5286 = vmatprep.subr.mxu0 0.0
    %5287 = vmatpush1.msra.mxu0 0.0
    %5288 = vmatprep.subr.mxu0 0.0
    %5289 = vmatpush1.msra.mxu0 0.0
    %5290 = vmatprep.subr.mxu0 0.0
    %5291 = vmatpush1.msra.mxu0 0.0
    %5292 = vmatprep.subr.mxu0 0.0
    %5293 = vmatpush1.msra.mxu0 0.0
    %5294 = vmatprep.mubr.f32.mxu0 0.0
    %5295 = vmatmul.mubr.f32.gmra.mrb[0].mxu0 %v5158
    %v5296 = vpop.f32.mrb[0].mxu0
    %v5297 = vadd.f32 0.0, %v5296
    %v5298 = vpop.f32.mrb[0].mxu0
    %v5299 = vadd.f32 0.0, %v5298
    %5300 = vdwg.mxu0
    %v5305 = vcombine.low %v5226, %v5228
    %v5306 = vcombine.low %v5297, %v5299
    %v5308 = vunpack.c.l.s4 1966171168
    %v5309 = vunpack.c.0.s8 %v5308
    %v5310 = vlaneseq
    %v5311 = vshrl.u32 %v5310, 7
    %v5312 = vsub.s32 %v5309, %v5311
    %v5313 = vrot.slane %v5305, %v5312
    %v5315 = vunpack.c.l.s4 1966171168
    %v5316 = vunpack.c.0.s8 %v5315
    %v5317 = vlaneseq
    %v5318 = vshrl.u32 %v5317, 7
    %v5319 = vsub.s32 %v5316, %v5318
    %v5320 = vrot.slane %v5306, %v5319
    %v5321 = vcombine.low %v5313, %v5320
    %v5323 = vunpack.c.l.s4 1966171168
    %v5324 = vunpack.c.0.s8 %v5323
    %v5325 = vlaneseq
    %v5326 = vshrl.u32 %v5325, 7
    %v5327 = vsub.s32 %v5324, %v5326
    %v5328 = vrot.slane %v5321, %v5327
    %v5330 = vadd.f32 %v5157, %v5328
    %v5331 = vxor.u32 %v5330, 2147483648
    %v5332 = vmul.f32 %v5331, 1.442695
    %v5333 = vpow.pop %v5332
    %v5334 = vadd.f32 %v5333, 1.0
    %v5335 = vrcp.pop %v5334
    %v5336 = vmul.f32 1.0, %v5335
    %v5338 = vrot.slane %v5330, 1
    %v5340 = vxor.u32 %v5338, 2147483648
    %v5341 = vmul.f32 %v5340, 1.442695
    %v5342 = vpow.pop %v5341
    %v5343 = vadd.f32 %v5342, 1.0
    %v5344 = vrcp.pop %v5343
    %v5345 = vmul.f32 1.0, %v5344
    %v5346 = vrot.slane %v5330, 2
    %v5348 = vtanh.pop %v5346
    %v5349 = vrot.slane %v5330, 3
    %v5351 = vxor.u32 %v5349, 2147483648
    %v5352 = vmul.f32 %v5351, 1.442695
    %v5353 = vpow.pop %v5352
    %v5354 = vadd.f32 %v5353, 1.0
    %v5355 = vrcp.pop %v5354
    %v5356 = vmul.f32 1.0, %v5355
    %v5357 = vld [vmem:[#allocation5] sm:$0x1]
    %v5358 = vmul.f32 %v5345, %v5357
    %v5359 = vmul.f32 %v5336, %v5348
    %v5360 = vadd.f32 %v5358, %v5359
    %v5361 = vtanh.pop %v5360
    %v5362 = vmul.f32 %v5356, %v5361
    %5363 = vst [vmem:[#allocation5] sm:$0x1] %v5360
    %5364 = vst [vmem:[#allocation4] sm:$0x1] %v5362
    %5365 = vst [vmem:[#allocation2 + $0x4] sm:$0x1] %v5362
    %v5366 = vld [vmem:[%s1415] ss:$8 sm:$0xf]
    %v5367 = vld [vmem:[#allocation4] sm:$0x1]
    %5368 = vmatprep.subr.mxu0 %v4258
    %5369 = vmatpush1.msra.mxu0 %v4257
    %5370 = vmatprep.subr.mxu0 %v4262
    %5371 = vmatpush1.msra.mxu0 %v4261
    %5372 = vmatprep.subr.mxu0 %v4266
    %5373 = vmatpush1.msra.mxu0 %v4265
    %5374 = vmatprep.subr.mxu0 %v4270
    %5375 = vmatpush1.msra.mxu0 %v4269
    %5376 = vmatprep.subr.mxu0 %v4274
    %5377 = vmatpush1.msra.mxu0 %v4273
    %5378 = vmatprep.subr.mxu0 %v4278
    %5379 = vmatpush1.msra.mxu0 %v4277
    %5380 = vmatprep.subr.mxu0 %v4282
    %5381 = vmatpush1.msra.mxu0 %v4281
    %5382 = vmatprep.subr.mxu0 %v4286
    %5383 = vmatpush1.msra.mxu0 %v4285
    %5384 = vmatprep.subr.mxu0 %v4290
    %5385 = vmatpush1.msra.mxu0 %v4289
    %5386 = vmatprep.subr.mxu0 %v4294
    %5387 = vmatpush1.msra.mxu0 %v4293
    %5388 = vmatprep.subr.mxu0 %v4298
    %5389 = vmatpush1.msra.mxu0 %v4297
    %5390 = vmatprep.subr.mxu0 %v4302
    %5391 = vmatpush1.msra.mxu0 %v4301
    %5392 = vmatprep.subr.mxu0 %v4306
    %5393 = vmatpush1.msra.mxu0 %v4305
    %5394 = vmatprep.subr.mxu0 %v4310
    %5395 = vmatpush1.msra.mxu0 %v4309
    %5396 = vmatprep.subr.mxu0 %v4314
    %5397 = vmatpush1.msra.mxu0 %v4313
    %5398 = vmatprep.subr.mxu0 %v4318
    %5399 = vmatpush1.msra.mxu0 %v4317
    %5400 = vmatprep.subr.mxu0 0.0
    %5401 = vmatpush1.msra.mxu0 0.0
    %5402 = vmatprep.subr.mxu0 0.0
    %5403 = vmatpush1.msra.mxu0 0.0
    %5404 = vmatprep.subr.mxu0 0.0
    %5405 = vmatpush1.msra.mxu0 0.0
    %5406 = vmatprep.subr.mxu0 0.0
    %5407 = vmatpush1.msra.mxu0 0.0
    %5408 = vmatprep.subr.mxu0 0.0
    %5409 = vmatpush1.msra.mxu0 0.0
    %5410 = vmatprep.subr.mxu0 0.0
    %5411 = vmatpush1.msra.mxu0 0.0
    %5412 = vmatprep.subr.mxu0 0.0
    %5413 = vmatpush1.msra.mxu0 0.0
    %5414 = vmatprep.subr.mxu0 0.0
    %5415 = vmatpush1.msra.mxu0 0.0
    %5416 = vmatprep.subr.mxu0 0.0
    %5417 = vmatpush1.msra.mxu0 0.0
    %5418 = vmatprep.subr.mxu0 0.0
    %5419 = vmatpush1.msra.mxu0 0.0
    %5420 = vmatprep.subr.mxu0 0.0
    %5421 = vmatpush1.msra.mxu0 0.0
    %5422 = vmatprep.subr.mxu0 0.0
    %5423 = vmatpush1.msra.mxu0 0.0
    %5424 = vmatprep.subr.mxu0 0.0
    %5425 = vmatpush1.msra.mxu0 0.0
    %5426 = vmatprep.subr.mxu0 0.0
    %5427 = vmatpush1.msra.mxu0 0.0
    %5428 = vmatprep.subr.mxu0 0.0
    %5429 = vmatpush1.msra.mxu0 0.0
    %5430 = vmatprep.subr.mxu0 0.0
    %5431 = vmatpush1.msra.mxu0 0.0
    %5432 = vmatprep.mubr.f32.mxu0 0.0
    %5433 = vmatmul.mubr.f32.gmra.mrb[0].mxu0 %v5367
    %v5434 = vpop.f32.mrb[0].mxu0
    %v5435 = vadd.f32 0.0, %v5434
    %v5436 = vpop.f32.mrb[0].mxu0
    %v5437 = vadd.f32 0.0, %v5436
    %5438 = vdwg.mxu0
    %5439 = vmatprep.subr.mxu0 %v4260
    %5440 = vmatpush1.msra.mxu0 %v4259
    %5441 = vmatprep.subr.mxu0 %v4264
    %5442 = vmatpush1.msra.mxu0 %v4263
    %5443 = vmatprep.subr.mxu0 %v4268
    %5444 = vmatpush1.msra.mxu0 %v4267
    %5445 = vmatprep.subr.mxu0 %v4272
    %5446 = vmatpush1.msra.mxu0 %v4271
    %5447 = vmatprep.subr.mxu0 %v4276
    %5448 = vmatpush1.msra.mxu0 %v4275
    %5449 = vmatprep.subr.mxu0 %v4280
    %5450 = vmatpush1.msra.mxu0 %v4279
    %5451 = vmatprep.subr.mxu0 %v4284
    %5452 = vmatpush1.msra.mxu0 %v4283
    %5453 = vmatprep.subr.mxu0 %v4288
    %5454 = vmatpush1.msra.mxu0 %v4287
    %5455 = vmatprep.subr.mxu0 %v4292
    %5456 = vmatpush1.msra.mxu0 %v4291
    %5457 = vmatprep.subr.mxu0 %v4296
    %5458 = vmatpush1.msra.mxu0 %v4295
    %5459 = vmatprep.subr.mxu0 %v4300
    %5460 = vmatpush1.msra.mxu0 %v4299
    %5461 = vmatprep.subr.mxu0 %v4304
    %5462 = vmatpush1.msra.mxu0 %v4303
    %5463 = vmatprep.subr.mxu0 %v4308
    %5464 = vmatpush1.msra.mxu0 %v4307
    %5465 = vmatprep.subr.mxu0 %v4312
    %5466 = vmatpush1.msra.mxu0 %v4311
    %5467 = vmatprep.subr.mxu0 %v4316
    %5468 = vmatpush1.msra.mxu0 %v4315
    %5469 = vmatprep.subr.mxu0 %v4320
    %5470 = vmatpush1.msra.mxu0 %v4319
    %5471 = vmatprep.subr.mxu0 0.0
    %5472 = vmatpush1.msra.mxu0 0.0
    %5473 = vmatprep.subr.mxu0 0.0
    %5474 = vmatpush1.msra.mxu0 0.0
    %5475 = vmatprep.subr.mxu0 0.0
    %5476 = vmatpush1.msra.mxu0 0.0
    %5477 = vmatprep.subr.mxu0 0.0
    %5478 = vmatpush1.msra.mxu0 0.0
    %5479 = vmatprep.subr.mxu0 0.0
    %5480 = vmatpush1.msra.mxu0 0.0
    %5481 = vmatprep.subr.mxu0 0.0
    %5482 = vmatpush1.msra.mxu0 0.0
    %5483 = vmatprep.subr.mxu0 0.0
    %5484 = vmatpush1.msra.mxu0 0.0
    %5485 = vmatprep.subr.mxu0 0.0
    %5486 = vmatpush1.msra.mxu0 0.0
    %5487 = vmatprep.subr.mxu0 0.0
    %5488 = vmatpush1.msra.mxu0 0.0
    %5489 = vmatprep.subr.mxu0 0.0
    %5490 = vmatpush1.msra.mxu0 0.0
    %5491 = vmatprep.subr.mxu0 0.0
    %5492 = vmatpush1.msra.mxu0 0.0
    %5493 = vmatprep.subr.mxu0 0.0
    %5494 = vmatpush1.msra.mxu0 0.0
    %5495 = vmatprep.subr.mxu0 0.0
    %5496 = vmatpush1.msra.mxu0 0.0
    %5497 = vmatprep.subr.mxu0 0.0
    %5498 = vmatpush1.msra.mxu0 0.0
    %5499 = vmatprep.subr.mxu0 0.0
    %5500 = vmatpush1.msra.mxu0 0.0
    %5501 = vmatprep.subr.mxu0 0.0
    %5502 = vmatpush1.msra.mxu0 0.0
    %5503 = vmatprep.mubr.f32.mxu0 0.0
    %5504 = vmatmul.mubr.f32.gmra.mrb[0].mxu0 %v5367
    %v5505 = vpop.f32.mrb[0].mxu0
    %v5506 = vadd.f32 0.0, %v5505
    %v5507 = vpop.f32.mrb[0].mxu0
    %v5508 = vadd.f32 0.0, %v5507
    %5509 = vdwg.mxu0
    %v5514 = vcombine.low %v5435, %v5437
    %v5515 = vcombine.low %v5506, %v5508
    %v5517 = vunpack.c.l.s4 1966171168
    %v5518 = vunpack.c.0.s8 %v5517
    %v5519 = vlaneseq
    %v5520 = vshrl.u32 %v5519, 7
    %v5521 = vsub.s32 %v5518, %v5520
    %v5522 = vrot.slane %v5514, %v5521
    %v5524 = vunpack.c.l.s4 1966171168
    %v5525 = vunpack.c.0.s8 %v5524
    %v5526 = vlaneseq
    %v5527 = vshrl.u32 %v5526, 7
    %v5528 = vsub.s32 %v5525, %v5527
    %v5529 = vrot.slane %v5515, %v5528
    %v5530 = vcombine.low %v5522, %v5529
    %v5532 = vunpack.c.l.s4 1966171168
    %v5533 = vunpack.c.0.s8 %v5532
    %v5534 = vlaneseq
    %v5535 = vshrl.u32 %v5534, 7
    %v5536 = vsub.s32 %v5533, %v5535
    %v5537 = vrot.slane %v5530, %v5536
    %v5539 = vadd.f32 %v5366, %v5537
    %v5540 = vxor.u32 %v5539, 2147483648
    %v5541 = vmul.f32 %v5540, 1.442695
    %v5542 = vpow.pop %v5541
    %v5543 = vadd.f32 %v5542, 1.0
    %v5544 = vrcp.pop %v5543
    %v5545 = vmul.f32 1.0, %v5544
    %v5547 = vrot.slane %v5539, 1
    %v5549 = vxor.u32 %v5547, 2147483648
    %v5550 = vmul.f32 %v5549, 1.442695
    %v5551 = vpow.pop %v5550
    %v5552 = vadd.f32 %v5551, 1.0
    %v5553 = vrcp.pop %v5552
    %v5554 = vmul.f32 1.0, %v5553
    %v5555 = vrot.slane %v5539, 2
    %v5557 = vtanh.pop %v5555
    %v5558 = vrot.slane %v5539, 3
    %v5560 = vxor.u32 %v5558, 2147483648
    %v5561 = vmul.f32 %v5560, 1.442695
    %v5562 = vpow.pop %v5561
    %v5563 = vadd.f32 %v5562, 1.0
    %v5564 = vrcp.pop %v5563
    %v5565 = vmul.f32 1.0, %v5564
    %v5566 = vld [vmem:[#allocation5] sm:$0x1]
    %v5567 = vmul.f32 %v5554, %v5566
    %v5568 = vmul.f32 %v5545, %v5557
    %v5569 = vadd.f32 %v5567, %v5568
    %v5570 = vtanh.pop %v5569
    %v5571 = vmul.f32 %v5565, %v5570
    %5572 = vst [vmem:[#allocation5] sm:$0x1] %v5569
    %5573 = vst [vmem:[#allocation4] sm:$0x1] %v5571
    %5574 = vst [vmem:[#allocation2 + $0x5] sm:$0x1] %v5571
    %v5575 = vld [vmem:[%s1625] ss:$8 sm:$0xf]
    %v5576 = vld [vmem:[#allocation4] sm:$0x1]
    %5577 = vmatprep.subr.mxu0 %v4258
    %5578 = vmatpush1.msra.mxu0 %v4257
    %5579 = vmatprep.subr.mxu0 %v4262
    %5580 = vmatpush1.msra.mxu0 %v4261
    %5581 = vmatprep.subr.mxu0 %v4266
    %5582 = vmatpush1.msra.mxu0 %v4265
    %5583 = vmatprep.subr.mxu0 %v4270
    %5584 = vmatpush1.msra.mxu0 %v4269
    %5585 = vmatprep.subr.mxu0 %v4274
    %5586 = vmatpush1.msra.mxu0 %v4273
    %5587 = vmatprep.subr.mxu0 %v4278
    %5588 = vmatpush1.msra.mxu0 %v4277
    %5589 = vmatprep.subr.mxu0 %v4282
    %5590 = vmatpush1.msra.mxu0 %v4281
    %5591 = vmatprep.subr.mxu0 %v4286
    %5592 = vmatpush1.msra.mxu0 %v4285
    %5593 = vmatprep.subr.mxu0 %v4290
    %5594 = vmatpush1.msra.mxu0 %v4289
    %5595 = vmatprep.subr.mxu0 %v4294
    %5596 = vmatpush1.msra.mxu0 %v4293
    %5597 = vmatprep.subr.mxu0 %v4298
    %5598 = vmatpush1.msra.mxu0 %v4297
    %5599 = vmatprep.subr.mxu0 %v4302
    %5600 = vmatpush1.msra.mxu0 %v4301
    %5601 = vmatprep.subr.mxu0 %v4306
    %5602 = vmatpush1.msra.mxu0 %v4305
    %5603 = vmatprep.subr.mxu0 %v4310
    %5604 = vmatpush1.msra.mxu0 %v4309
    %5605 = vmatprep.subr.mxu0 %v4314
    %5606 = vmatpush1.msra.mxu0 %v4313
    %5607 = vmatprep.subr.mxu0 %v4318
    %5608 = vmatpush1.msra.mxu0 %v4317
    %5609 = vmatprep.subr.mxu0 0.0
    %5610 = vmatpush1.msra.mxu0 0.0
    %5611 = vmatprep.subr.mxu0 0.0
    %5612 = vmatpush1.msra.mxu0 0.0
    %5613 = vmatprep.subr.mxu0 0.0
    %5614 = vmatpush1.msra.mxu0 0.0
    %5615 = vmatprep.subr.mxu0 0.0
    %5616 = vmatpush1.msra.mxu0 0.0
    %5617 = vmatprep.subr.mxu0 0.0
    %5618 = vmatpush1.msra.mxu0 0.0
    %5619 = vmatprep.subr.mxu0 0.0
    %5620 = vmatpush1.msra.mxu0 0.0
    %5621 = vmatprep.subr.mxu0 0.0
    %5622 = vmatpush1.msra.mxu0 0.0
    %5623 = vmatprep.subr.mxu0 0.0
    %5624 = vmatpush1.msra.mxu0 0.0
    %5625 = vmatprep.subr.mxu0 0.0
    %5626 = vmatpush1.msra.mxu0 0.0
    %5627 = vmatprep.subr.mxu0 0.0
    %5628 = vmatpush1.msra.mxu0 0.0
    %5629 = vmatprep.subr.mxu0 0.0
    %5630 = vmatpush1.msra.mxu0 0.0
    %5631 = vmatprep.subr.mxu0 0.0
    %5632 = vmatpush1.msra.mxu0 0.0
    %5633 = vmatprep.subr.mxu0 0.0
    %5634 = vmatpush1.msra.mxu0 0.0
    %5635 = vmatprep.subr.mxu0 0.0
    %5636 = vmatpush1.msra.mxu0 0.0
    %5637 = vmatprep.subr.mxu0 0.0
    %5638 = vmatpush1.msra.mxu0 0.0
    %5639 = vmatprep.subr.mxu0 0.0
    %5640 = vmatpush1.msra.mxu0 0.0
    %5641 = vmatprep.mubr.f32.mxu0 0.0
    %5642 = vmatmul.mubr.f32.gmra.mrb[0].mxu0 %v5576
    %v5643 = vpop.f32.mrb[0].mxu0
    %v5644 = vadd.f32 0.0, %v5643
    %v5645 = vpop.f32.mrb[0].mxu0
    %v5646 = vadd.f32 0.0, %v5645
    %5647 = vdwg.mxu0
    %5648 = vmatprep.subr.mxu0 %v4260
    %5649 = vmatpush1.msra.mxu0 %v4259
    %5650 = vmatprep.subr.mxu0 %v4264
    %5651 = vmatpush1.msra.mxu0 %v4263
    %5652 = vmatprep.subr.mxu0 %v4268
    %5653 = vmatpush1.msra.mxu0 %v4267
    %5654 = vmatprep.subr.mxu0 %v4272
    %5655 = vmatpush1.msra.mxu0 %v4271
    %5656 = vmatprep.subr.mxu0 %v4276
    %5657 = vmatpush1.msra.mxu0 %v4275
    %5658 = vmatprep.subr.mxu0 %v4280
    %5659 = vmatpush1.msra.mxu0 %v4279
    %5660 = vmatprep.subr.mxu0 %v4284
    %5661 = vmatpush1.msra.mxu0 %v4283
    %5662 = vmatprep.subr.mxu0 %v4288
    %5663 = vmatpush1.msra.mxu0 %v4287
    %5664 = vmatprep.subr.mxu0 %v4292
    %5665 = vmatpush1.msra.mxu0 %v4291
    %5666 = vmatprep.subr.mxu0 %v4296
    %5667 = vmatpush1.msra.mxu0 %v4295
    %5668 = vmatprep.subr.mxu0 %v4300
    %5669 = vmatpush1.msra.mxu0 %v4299
    %5670 = vmatprep.subr.mxu0 %v4304
    %5671 = vmatpush1.msra.mxu0 %v4303
    %5672 = vmatprep.subr.mxu0 %v4308
    %5673 = vmatpush1.msra.mxu0 %v4307
    %5674 = vmatprep.subr.mxu0 %v4312
    %5675 = vmatpush1.msra.mxu0 %v4311
    %5676 = vmatprep.subr.mxu0 %v4316
    %5677 = vmatpush1.msra.mxu0 %v4315
    %5678 = vmatprep.subr.mxu0 %v4320
    %5679 = vmatpush1.msra.mxu0 %v4319
    %5680 = vmatprep.subr.mxu0 0.0
    %5681 = vmatpush1.msra.mxu0 0.0
    %5682 = vmatprep.subr.mxu0 0.0
    %5683 = vmatpush1.msra.mxu0 0.0
    %5684 = vmatprep.subr.mxu0 0.0
    %5685 = vmatpush1.msra.mxu0 0.0
    %5686 = vmatprep.subr.mxu0 0.0
    %5687 = vmatpush1.msra.mxu0 0.0
    %5688 = vmatprep.subr.mxu0 0.0
    %5689 = vmatpush1.msra.mxu0 0.0
    %5690 = vmatprep.subr.mxu0 0.0
    %5691 = vmatpush1.msra.mxu0 0.0
    %5692 = vmatprep.subr.mxu0 0.0
    %5693 = vmatpush1.msra.mxu0 0.0
    %5694 = vmatprep.subr.mxu0 0.0
    %5695 = vmatpush1.msra.mxu0 0.0
    %5696 = vmatprep.subr.mxu0 0.0
    %5697 = vmatpush1.msra.mxu0 0.0
    %5698 = vmatprep.subr.mxu0 0.0
    %5699 = vmatpush1.msra.mxu0 0.0
    %5700 = vmatprep.subr.mxu0 0.0
    %5701 = vmatpush1.msra.mxu0 0.0
    %5702 = vmatprep.subr.mxu0 0.0
    %5703 = vmatpush1.msra.mxu0 0.0
    %5704 = vmatprep.subr.mxu0 0.0
    %5705 = vmatpush1.msra.mxu0 0.0
    %5706 = vmatprep.subr.mxu0 0.0
    %5707 = vmatpush1.msra.mxu0 0.0
    %5708 = vmatprep.subr.mxu0 0.0
    %5709 = vmatpush1.msra.mxu0 0.0
    %5710 = vmatprep.subr.mxu0 0.0
    %5711 = vmatpush1.msra.mxu0 0.0
    %5712 = vmatprep.mubr.f32.mxu0 0.0
    %5713 = vmatmul.mubr.f32.gmra.mrb[0].mxu0 %v5576
    %v5714 = vpop.f32.mrb[0].mxu0
    %v5715 = vadd.f32 0.0, %v5714
    %v5716 = vpop.f32.mrb[0].mxu0
    %v5717 = vadd.f32 0.0, %v5716
    %5718 = vdwg.mxu0
    %v5723 = vcombine.low %v5644, %v5646
    %v5724 = vcombine.low %v5715, %v5717
    %v5726 = vunpack.c.l.s4 1966171168
    %v5727 = vunpack.c.0.s8 %v5726
    %v5728 = vlaneseq
    %v5729 = vshrl.u32 %v5728, 7
    %v5730 = vsub.s32 %v5727, %v5729
    %v5731 = vrot.slane %v5723, %v5730
    %v5733 = vunpack.c.l.s4 1966171168
    %v5734 = vunpack.c.0.s8 %v5733
    %v5735 = vlaneseq
    %v5736 = vshrl.u32 %v5735, 7
    %v5737 = vsub.s32 %v5734, %v5736
    %v5738 = vrot.slane %v5724, %v5737
    %v5739 = vcombine.low %v5731, %v5738
    %v5741 = vunpack.c.l.s4 1966171168
    %v5742 = vunpack.c.0.s8 %v5741
    %v5743 = vlaneseq
    %v5744 = vshrl.u32 %v5743, 7
    %v5745 = vsub.s32 %v5742, %v5744
    %v5746 = vrot.slane %v5739, %v5745
    %v5748 = vadd.f32 %v5575, %v5746
    %v5749 = vxor.u32 %v5748, 2147483648
    %v5750 = vmul.f32 %v5749, 1.442695
    %v5751 = vpow.pop %v5750
    %v5752 = vadd.f32 %v5751, 1.0
    %v5753 = vrcp.pop %v5752
    %v5754 = vmul.f32 1.0, %v5753
    %v5756 = vrot.slane %v5748, 1
    %v5758 = vxor.u32 %v5756, 2147483648
    %v5759 = vmul.f32 %v5758, 1.442695
    %v5760 = vpow.pop %v5759
    %v5761 = vadd.f32 %v5760, 1.0
    %v5762 = vrcp.pop %v5761
    %v5763 = vmul.f32 1.0, %v5762
    %v5764 = vrot.slane %v5748, 2
    %v5766 = vtanh.pop %v5764
    %v5767 = vrot.slane %v5748, 3
    %v5769 = vxor.u32 %v5767, 2147483648
    %v5770 = vmul.f32 %v5769, 1.442695
    %v5771 = vpow.pop %v5770
    %v5772 = vadd.f32 %v5771, 1.0
    %v5773 = vrcp.pop %v5772
    %v5774 = vmul.f32 1.0, %v5773
    %v5775 = vld [vmem:[#allocation5] sm:$0x1]
    %v5776 = vmul.f32 %v5763, %v5775
    %v5777 = vmul.f32 %v5754, %v5766
    %v5778 = vadd.f32 %v5776, %v5777
    %v5779 = vtanh.pop %v5778
    %v5780 = vmul.f32 %v5774, %v5779
    %5781 = vst [vmem:[#allocation5] sm:$0x1] %v5778
    %5782 = vst [vmem:[#allocation4] sm:$0x1] %v5780
    %5783 = vst [vmem:[#allocation2 + $0x6] sm:$0x1] %v5780
    %v5784 = vld [vmem:[%s1835] ss:$8 sm:$0xf]
    %v5785 = vld [vmem:[#allocation4] sm:$0x1]
    %5786 = vmatprep.subr.mxu0 %v4258
    %5787 = vmatpush1.msra.mxu0 %v4257
    %5788 = vmatprep.subr.mxu0 %v4262
    %5789 = vmatpush1.msra.mxu0 %v4261
    %5790 = vmatprep.subr.mxu0 %v4266
    %5791 = vmatpush1.msra.mxu0 %v4265
    %5792 = vmatprep.subr.mxu0 %v4270
    %5793 = vmatpush1.msra.mxu0 %v4269
    %5794 = vmatprep.subr.mxu0 %v4274
    %5795 = vmatpush1.msra.mxu0 %v4273
    %5796 = vmatprep.subr.mxu0 %v4278
    %5797 = vmatpush1.msra.mxu0 %v4277
    %5798 = vmatprep.subr.mxu0 %v4282
    %5799 = vmatpush1.msra.mxu0 %v4281
    %5800 = vmatprep.subr.mxu0 %v4286
    %5801 = vmatpush1.msra.mxu0 %v4285
    %5802 = vmatprep.subr.mxu0 %v4290
    %5803 = vmatpush1.msra.mxu0 %v4289
    %5804 = vmatprep.subr.mxu0 %v4294
    %5805 = vmatpush1.msra.mxu0 %v4293
    %5806 = vmatprep.subr.mxu0 %v4298
    %5807 = vmatpush1.msra.mxu0 %v4297
    %5808 = vmatprep.subr.mxu0 %v4302
    %5809 = vmatpush1.msra.mxu0 %v4301
    %5810 = vmatprep.subr.mxu0 %v4306
    %5811 = vmatpush1.msra.mxu0 %v4305
    %5812 = vmatprep.subr.mxu0 %v4310
    %5813 = vmatpush1.msra.mxu0 %v4309
    %5814 = vmatprep.subr.mxu0 %v4314
    %5815 = vmatpush1.msra.mxu0 %v4313
    %5816 = vmatprep.subr.mxu0 %v4318
    %5817 = vmatpush1.msra.mxu0 %v4317
    %5818 = vmatprep.subr.mxu0 0.0
    %5819 = vmatpush1.msra.mxu0 0.0
    %5820 = vmatprep.subr.mxu0 0.0
    %5821 = vmatpush1.msra.mxu0 0.0
    %5822 = vmatprep.subr.mxu0 0.0
    %5823 = vmatpush1.msra.mxu0 0.0
    %5824 = vmatprep.subr.mxu0 0.0
    %5825 = vmatpush1.msra.mxu0 0.0
    %5826 = vmatprep.subr.mxu0 0.0
    %5827 = vmatpush1.msra.mxu0 0.0
    %5828 = vmatprep.subr.mxu0 0.0
    %5829 = vmatpush1.msra.mxu0 0.0
    %5830 = vmatprep.subr.mxu0 0.0
    %5831 = vmatpush1.msra.mxu0 0.0
    %5832 = vmatprep.subr.mxu0 0.0
    %5833 = vmatpush1.msra.mxu0 0.0
    %5834 = vmatprep.subr.mxu0 0.0
    %5835 = vmatpush1.msra.mxu0 0.0
    %5836 = vmatprep.subr.mxu0 0.0
    %5837 = vmatpush1.msra.mxu0 0.0
    %5838 = vmatprep.subr.mxu0 0.0
    %5839 = vmatpush1.msra.mxu0 0.0
    %5840 = vmatprep.subr.mxu0 0.0
    %5841 = vmatpush1.msra.mxu0 0.0
    %5842 = vmatprep.subr.mxu0 0.0
    %5843 = vmatpush1.msra.mxu0 0.0
    %5844 = vmatprep.subr.mxu0 0.0
    %5845 = vmatpush1.msra.mxu0 0.0
    %5846 = vmatprep.subr.mxu0 0.0
    %5847 = vmatpush1.msra.mxu0 0.0
    %5848 = vmatprep.subr.mxu0 0.0
    %5849 = vmatpush1.msra.mxu0 0.0
    %5850 = vmatprep.mubr.f32.mxu0 0.0
    %5851 = vmatmul.mubr.f32.gmra.mrb[0].mxu0 %v5785
    %v5852 = vpop.f32.mrb[0].mxu0
    %v5853 = vadd.f32 0.0, %v5852
    %v5854 = vpop.f32.mrb[0].mxu0
    %v5855 = vadd.f32 0.0, %v5854
    %5856 = vdwg.mxu0
    %5857 = vmatprep.subr.mxu0 %v4260
    %5858 = vmatpush1.msra.mxu0 %v4259
    %5859 = vmatprep.subr.mxu0 %v4264
    %5860 = vmatpush1.msra.mxu0 %v4263
    %5861 = vmatprep.subr.mxu0 %v4268
    %5862 = vmatpush1.msra.mxu0 %v4267
    %5863 = vmatprep.subr.mxu0 %v4272
    %5864 = vmatpush1.msra.mxu0 %v4271
    %5865 = vmatprep.subr.mxu0 %v4276
    %5866 = vmatpush1.msra.mxu0 %v4275
    %5867 = vmatprep.subr.mxu0 %v4280
    %5868 = vmatpush1.msra.mxu0 %v4279
    %5869 = vmatprep.subr.mxu0 %v4284
    %5870 = vmatpush1.msra.mxu0 %v4283
    %5871 = vmatprep.subr.mxu0 %v4288
    %5872 = vmatpush1.msra.mxu0 %v4287
    %5873 = vmatprep.subr.mxu0 %v4292
    %5874 = vmatpush1.msra.mxu0 %v4291
    %5875 = vmatprep.subr.mxu0 %v4296
    %5876 = vmatpush1.msra.mxu0 %v4295
    %5877 = vmatprep.subr.mxu0 %v4300
    %5878 = vmatpush1.msra.mxu0 %v4299
    %5879 = vmatprep.subr.mxu0 %v4304
    %5880 = vmatpush1.msra.mxu0 %v4303
    %5881 = vmatprep.subr.mxu0 %v4308
    %5882 = vmatpush1.msra.mxu0 %v4307
    %5883 = vmatprep.subr.mxu0 %v4312
    %5884 = vmatpush1.msra.mxu0 %v4311
    %5885 = vmatprep.subr.mxu0 %v4316
    %5886 = vmatpush1.msra.mxu0 %v4315
    %5887 = vmatprep.subr.mxu0 %v4320
    %5888 = vmatpush1.msra.mxu0 %v4319
    %5889 = vmatprep.subr.mxu0 0.0
    %5890 = vmatpush1.msra.mxu0 0.0
    %5891 = vmatprep.subr.mxu0 0.0
    %5892 = vmatpush1.msra.mxu0 0.0
    %5893 = vmatprep.subr.mxu0 0.0
    %5894 = vmatpush1.msra.mxu0 0.0
    %5895 = vmatprep.subr.mxu0 0.0
    %5896 = vmatpush1.msra.mxu0 0.0
    %5897 = vmatprep.subr.mxu0 0.0
    %5898 = vmatpush1.msra.mxu0 0.0
    %5899 = vmatprep.subr.mxu0 0.0
    %5900 = vmatpush1.msra.mxu0 0.0
    %5901 = vmatprep.subr.mxu0 0.0
    %5902 = vmatpush1.msra.mxu0 0.0
    %5903 = vmatprep.subr.mxu0 0.0
    %5904 = vmatpush1.msra.mxu0 0.0
    %5905 = vmatprep.subr.mxu0 0.0
    %5906 = vmatpush1.msra.mxu0 0.0
    %5907 = vmatprep.subr.mxu0 0.0
    %5908 = vmatpush1.msra.mxu0 0.0
    %5909 = vmatprep.subr.mxu0 0.0
    %5910 = vmatpush1.msra.mxu0 0.0
    %5911 = vmatprep.subr.mxu0 0.0
    %5912 = vmatpush1.msra.mxu0 0.0
    %5913 = vmatprep.subr.mxu0 0.0
    %5914 = vmatpush1.msra.mxu0 0.0
    %5915 = vmatprep.subr.mxu0 0.0
    %5916 = vmatpush1.msra.mxu0 0.0
    %5917 = vmatprep.subr.mxu0 0.0
    %5918 = vmatpush1.msra.mxu0 0.0
    %5919 = vmatprep.subr.mxu0 0.0
    %5920 = vmatpush1.msra.mxu0 0.0
    %5921 = vmatprep.mubr.f32.mxu0 0.0
    %5922 = vmatmul.mubr.f32.gmra.mrb[0].mxu0 %v5785
    %v5923 = vpop.f32.mrb[0].mxu0
    %v5924 = vadd.f32 0.0, %v5923
    %v5925 = vpop.f32.mrb[0].mxu0
    %v5926 = vadd.f32 0.0, %v5925
    %5927 = vdwg.mxu0
    %v5932 = vcombine.low %v5853, %v5855
    %v5933 = vcombine.low %v5924, %v5926
    %v5935 = vunpack.c.l.s4 1966171168
    %v5936 = vunpack.c.0.s8 %v5935
    %v5937 = vlaneseq
    %v5938 = vshrl.u32 %v5937, 7
    %v5939 = vsub.s32 %v5936, %v5938
    %v5940 = vrot.slane %v5932, %v5939
    %v5942 = vunpack.c.l.s4 1966171168
    %v5943 = vunpack.c.0.s8 %v5942
    %v5944 = vlaneseq
    %v5945 = vshrl.u32 %v5944, 7
    %v5946 = vsub.s32 %v5943, %v5945
    %v5947 = vrot.slane %v5933, %v5946
    %v5948 = vcombine.low %v5940, %v5947
    %v5950 = vunpack.c.l.s4 1966171168
    %v5951 = vunpack.c.0.s8 %v5950
    %v5952 = vlaneseq
    %v5953 = vshrl.u32 %v5952, 7
    %v5954 = vsub.s32 %v5951, %v5953
    %v5955 = vrot.slane %v5948, %v5954
    %v5957 = vadd.f32 %v5784, %v5955
    %v5958 = vxor.u32 %v5957, 2147483648
    %v5959 = vmul.f32 %v5958, 1.442695
    %v5960 = vpow.pop %v5959
    %v5961 = vadd.f32 %v5960, 1.0
    %v5962 = vrcp.pop %v5961
    %v5963 = vmul.f32 1.0, %v5962
    %v5965 = vrot.slane %v5957, 1
    %v5967 = vxor.u32 %v5965, 2147483648
    %v5968 = vmul.f32 %v5967, 1.442695
    %v5969 = vpow.pop %v5968
    %v5970 = vadd.f32 %v5969, 1.0
    %v5971 = vrcp.pop %v5970
    %v5972 = vmul.f32 1.0, %v5971
    %v5973 = vrot.slane %v5957, 2
    %v5975 = vtanh.pop %v5973
    %v5976 = vrot.slane %v5957, 3
    %v5978 = vxor.u32 %v5976, 2147483648
    %v5979 = vmul.f32 %v5978, 1.442695
    %v5980 = vpow.pop %v5979
    %v5981 = vadd.f32 %v5980, 1.0
    %v5982 = vrcp.pop %v5981
    %v5983 = vmul.f32 1.0, %v5982
    %v5984 = vld [vmem:[#allocation5] sm:$0x1]
    %v5985 = vmul.f32 %v5972, %v5984
    %v5986 = vmul.f32 %v5963, %v5975
    %v5987 = vadd.f32 %v5985, %v5986
    %v5988 = vtanh.pop %v5987
    %v5989 = vmul.f32 %v5983, %v5988
    %5990 = vst [vmem:[#allocation5] sm:$0x1] %v5987
    %5991 = vst [vmem:[#allocation4] sm:$0x1] %v5989
    %5992 = vst [vmem:[#allocation2 + $0x7] sm:$0x1] %v5989
    %v5993 = vld [vmem:[#allocation2] sm:$0xff]
    %v5994 = vld [vmem:[#allocation11] sm:$0xff]
    %v5995 = vld [vmem:[#allocation11 + $0x8] sm:$0xff]
    %v5996 = vld [vmem:[#allocation11 + $0x10] sm:$0xff]
    %v5997 = vld [vmem:[#allocation11 + $0x18] sm:$0xff]
    %v5998 = vld [vmem:[#allocation11 + $0x20] sm:$0xff]
    %v5999 = vld [vmem:[#allocation11 + $0x28] sm:$0xff]
    %v6000 = vld [vmem:[#allocation11 + $0x30] sm:$0xff]
    %v6001 = vld [vmem:[#allocation11 + $0x38] sm:$0xff]
    %v6002 = vld [vmem:[#allocation11 + $0x40] sm:$0xff]
    %v6003 = vld [vmem:[#allocation11 + $0x48] sm:$0xff]
    %v6004 = vld [vmem:[#allocation11 + $0x50] sm:$0xff]
    %v6005 = vld [vmem:[#allocation11 + $0x58] sm:$0xff]
    %v6006 = vld [vmem:[#allocation11 + $0x60] sm:$0xff]
    %v6007 = vld [vmem:[#allocation11 + $0x68] sm:$0xff]
    %v6008 = vld [vmem:[#allocation11 + $0x70] sm:$0xff]
    %v6009 = vld [vmem:[#allocation11 + $0x78] sm:$0xff]
    %v6010 = vld [vmem:[%s5] sm:$0x1]
    %v6012 = vlaneseq
    %v6013 = vshrl.u32 %v6012, 7
    %v6014 = vsub.s32 0, %v6013
    %v6015 = vrot.slane %v6010, %v6014
    %6017 = vmatprep.subr.mxu0 0.0
    %6018 = vmatpush1.msra.mxu0 %v5994
    %6019 = vmatprep.subr.mxu0 0.0
    %6020 = vmatpush1.msra.mxu0 %v5995
    %6021 = vmatprep.subr.mxu0 0.0
    %6022 = vmatpush1.msra.mxu0 %v5996
    %6023 = vmatprep.subr.mxu0 0.0
    %6024 = vmatpush1.msra.mxu0 %v5997
    %6025 = vmatprep.subr.mxu0 0.0
    %6026 = vmatpush1.msra.mxu0 %v5998
    %6027 = vmatprep.subr.mxu0 0.0
    %6028 = vmatpush1.msra.mxu0 %v5999
    %6029 = vmatprep.subr.mxu0 0.0
    %6030 = vmatpush1.msra.mxu0 %v6000
    %6031 = vmatprep.subr.mxu0 0.0
    %6032 = vmatpush1.msra.mxu0 %v6001
    %6033 = vmatprep.subr.mxu0 0.0
    %6034 = vmatpush1.msra.mxu0 %v6002
    %6035 = vmatprep.subr.mxu0 0.0
    %6036 = vmatpush1.msra.mxu0 %v6003
    %6037 = vmatprep.subr.mxu0 0.0
    %6038 = vmatpush1.msra.mxu0 %v6004
    %6039 = vmatprep.subr.mxu0 0.0
    %6040 = vmatpush1.msra.mxu0 %v6005
    %6041 = vmatprep.subr.mxu0 0.0
    %6042 = vmatpush1.msra.mxu0 %v6006
    %6043 = vmatprep.subr.mxu0 0.0
    %6044 = vmatpush1.msra.mxu0 %v6007
    %6045 = vmatprep.subr.mxu0 0.0
    %6046 = vmatpush1.msra.mxu0 %v6008
    %6047 = vmatprep.subr.mxu0 0.0
    %6048 = vmatpush1.msra.mxu0 %v6009
    %6049 = vmatprep.subr.mxu0 0.0
    %6050 = vmatpush1.msra.mxu0 0.0
    %6051 = vmatprep.subr.mxu0 0.0
    %6052 = vmatpush1.msra.mxu0 0.0
    %6053 = vmatprep.subr.mxu0 0.0
    %6054 = vmatpush1.msra.mxu0 0.0
    %6055 = vmatprep.subr.mxu0 0.0
    %6056 = vmatpush1.msra.mxu0 0.0
    %6057 = vmatprep.subr.mxu0 0.0
    %6058 = vmatpush1.msra.mxu0 0.0
    %6059 = vmatprep.subr.mxu0 0.0
    %6060 = vmatpush1.msra.mxu0 0.0
    %6061 = vmatprep.subr.mxu0 0.0
    %6062 = vmatpush1.msra.mxu0 0.0
    %6063 = vmatprep.subr.mxu0 0.0
    %6064 = vmatpush1.msra.mxu0 0.0
    %6065 = vmatprep.subr.mxu0 0.0
    %6066 = vmatpush1.msra.mxu0 0.0
    %6067 = vmatprep.subr.mxu0 0.0
    %6068 = vmatpush1.msra.mxu0 0.0
    %6069 = vmatprep.subr.mxu0 0.0
    %6070 = vmatpush1.msra.mxu0 0.0
    %6071 = vmatprep.subr.mxu0 0.0
    %6072 = vmatpush1.msra.mxu0 0.0
    %6073 = vmatprep.subr.mxu0 0.0
    %6074 = vmatpush1.msra.mxu0 0.0
    %6075 = vmatprep.subr.mxu0 0.0
    %6076 = vmatpush1.msra.mxu0 0.0
    %6077 = vmatprep.subr.mxu0 0.0
    %6078 = vmatpush1.msra.mxu0 0.0
    %6079 = vmatprep.subr.mxu0 0.0
    %6080 = vmatpush1.msra.mxu0 0.0
    %6081 = vmatprep.mubr.f32.mxu0 0.0
    %6082 = vmatmul.mubr.f32.gmra.mrb[0].mxu0 %v5993
    %v6083 = vpop.f32.mrb[0].mxu0
    %v6084 = vadd.f32 %v6015, %v6083
    %v6085 = vpop.f32.mrb[0].mxu0
    %6086 = vdwg.mxu0
    %6087 = vmax.xlane.f32.xlu0 %v6084
    %v6088 = vpop.xlane.xlu0 %6087
    %v6089 = vsub.f32 %v6084, %v6088
    %v6090 = vmul.f32 %v6089, 1.442695
    %v6091 = vpow.pop %v6090
    %6092 = vadd.xlane.f32.xlu0 %v6091
    %v6093 = vpop.xlane.xlu0 %6092
    %v6094 = vlog2.pop %v6093
    %v6095 = vmul.f32 %v6094, 0.6931472
    %v6096 = vadd.f32 %v6088, %v6095
    %v6097 = vsub.f32 %v6084, %v6096
    %6098 = vst [vmem:[#allocation12] sm:$0xff] %v6097
    // Predicated region
    $region38: #{rnn_lm_forward.1} parent=1 // pred_check
      _
    $region39: #{rnn_lm_forward.1} parent=1 // pred_check_branch
      %6100 = sbr.rel (0) target = $region41
    $region40: #{rnn_lm_forward.1} parent=1 // pred_region
      %s6102 = ssub.s32 128, 128
      %6103 = vsyncadd [#allocation8], %s6102
      %s6105 = sshll.u32 [#allocation12], 4
      %s6106 = int_to_ptr.vmem [resolvable:$true] %s6105
      %6108 = dma.vmem_to_hbm [thread:$0]  %s6106, 128, %s6, [#allocation8]
    $region41: #{rnn_lm_forward.1} parent=1 // pred_fallthru
      _
    // Predicated region
    $region42: #{rnn_lm_forward.1} parent=1 // pred_check
      _
    $region43: #{rnn_lm_forward.1} parent=1 // pred_check_branch
      %6110 = sbr.rel (0) target = $region45
    $region44: #{rnn_lm_forward.1} parent=1 // pred_region
      %6111 = dma.done [#allocation8], 128
    $region45: #{rnn_lm_forward.1} parent=1 // pred_fallthru
      _
    %6112 = vsyncpa [#allocation7], 1
    %6113 = vsyncpa [#allocation10], 1
    %6114 = vsyncpa [#allocation8], 1

</llo_original>
